<compile_context>
chip_gen: v7x
topology: tpu7x:2x2x1
jax: 0.10.0
libtpu: 0.0.40
codegen_flags: <defaults>
</compile_context>

<pallas_src>
import functools

import jax
import jax.numpy as jnp
from jax import lax
from jax.experimental import pallas as pl
from jax.experimental.pallas import tpu as pltpu


# -----------------------------------------------------------------------------
# Small config (stand-in for cfg.MODEL.*) -- deliberately small shapes.
# -----------------------------------------------------------------------------
LATENT_SIZE = 32                  # cfg.MODEL.LATENT_SIZE
KPTS_NUM = 21                     # cfg.MODEL.KPTS_NUM
OUT_CHANNELS = [8, 16, 16, 32]    # cfg.MODEL.SPIRAL.OUT_CHANNELS (fine -> coarse)
SPIRAL_LEN = 4                    # cfg.MODEL.SPIRAL.LEN
VERT_LEVELS = [64, 32, 16, 8]     # mesh vertex counts, fine -> coarse
STEM_CH = 16                      # backbone stem channels

KP = 128                          # single MXU K tile (all layers have K <= 128)
NP = 128                          # padded / lane-dense output width


def _round_up(x, m):
    return ((x + m - 1) // m) * m


def _itemsize(dt):
    return jax.dtypes.canonicalize_dtype(dt).itemsize


def _vmem_limit(*blocks):
    """Rough per-call VMEM budget: 2x each block (double buffer) + headroom."""
    total = 0
    for shape, dt in blocks:
        n = 1
        for s in shape:
            n *= int(s)
        total += 2 * n * _itemsize(dt)
    # >= 4 MiB floor, <= 40 MiB cap (safe on v7x's 64 MiB physical VMEM).
    return int(min(max(total + (2 << 20), 4 << 20), 40 << 20))


def _choose_tiling(m):
    """Return (Mp, TM): single block for small M, 512-row tiles otherwise."""
    mp = max(8, _round_up(m, 8))
    if mp <= 1024:
        return mp, mp
    tm = 512
    return _round_up(mp, tm), tm


# -----------------------------------------------------------------------------
# Pre-packed weights: (KP, NP) weight tile + separate (1, NP) f32 bias row,
# padded once at init.
# -----------------------------------------------------------------------------
@jax.tree_util.register_pytree_node_class
class PackedWeight:
    def __init__(self, w, b, k, n):
        self.w = w                # (KP, NP)
        self.b = b                # (1, NP) f32
        self.k = k                # true K
        self.n = n                # true N

    def tree_flatten(self):
        return (self.w, self.b), (self.k, self.n)

    @classmethod
    def tree_unflatten(cls, aux, children):
        return cls(children[0], children[1], *aux)


def pack_weight(w, b=None, dtype=jnp.float32):
    w = jnp.asarray(w, jnp.float32)
    K, N = w.shape
    assert K <= KP and N <= NP, (K, N)
    wp = jnp.zeros((KP, NP), jnp.float32).at[:K, :N].set(w).astype(dtype)
    bp = jnp.zeros((1, NP), jnp.float32)
    if b is not None:
        bp = bp.at[0, :N].set(jnp.asarray(b, jnp.float32))
    return PackedWeight(wp, bp, K, N)


# -----------------------------------------------------------------------------
# Matmul kernel (single K tile; bias + optional residual + relu in epilogue).
# -----------------------------------------------------------------------------
def _mm_kernel(*refs, activation, has_residual):
    if has_residual:
        a_ref, w_ref, b_ref, r_ref, o_ref = refs
    else:
        a_ref, w_ref, b_ref, o_ref = refs
        r_ref = None
    acc = jnp.dot(a_ref[...], w_ref[...], preferred_element_type=jnp.float32)
    acc = acc + b_ref[...]
    if r_ref is not None:
        acc = acc + r_ref[...].astype(jnp.float32)
    if activation == "relu":
        acc = jnp.maximum(acc, 0.0)
    o_ref[...] = acc.astype(o_ref.dtype)


def pallas_linear(a, pw, activation=None, *, residual=None, m=None,
                  input_padded=False, keep_padded=False, out_dtype=jnp.float32):
    """Activations @ packed weight.

    a: (M, K) raw activations, or (Mp, 128) lane-dense slab (input_padded=True,
       real columns = pw.k, padded columns zero).
    Returns (Mp, 128) slab (keep_padded=True) or cropped (M, pw.n).
    """
    dt = pw.w.dtype
    if input_padded:
        assert a.shape[1] == KP, a.shape
        mp_in = a.shape[0]
        Mp, TM = _choose_tiling(mp_in)
        a_p = a if Mp == mp_in else jnp.pad(a, ((0, Mp - mp_in), (0, 0)))
        if a_p.dtype != dt:
            a_p = a_p.astype(dt)
        M = mp_in if m is None else m
    else:
        M, K = a.shape
        assert K == pw.k, (K, pw.k)
        Mp, TM = _choose_tiling(M)
        a_p = jnp.zeros((Mp, KP), dt).at[:M, :K].set(a.astype(dt))

    has_res = residual is not None
    operands = [a_p, pw.w, pw.b]
    in_specs = [pl.BlockSpec((TM, KP), lambda i: (i, 0)),
                pl.BlockSpec((KP, NP), lambda i: (0, 0)),
                pl.BlockSpec((1, NP), lambda i: (0, 0))]
    vmem_blocks = [((TM, KP), dt), ((KP, NP), dt), ((1, NP), jnp.float32),
                   ((TM, NP), out_dtype)]
    if has_res:
        assert residual.shape == (Mp, NP), (residual.shape, Mp)
        operands.append(residual)
        in_specs.append(pl.BlockSpec((TM, NP), lambda i: (i, 0)))
        vmem_blocks.append(((TM, NP), residual.dtype))

    grid = (Mp // TM,)
    sem = ("parallel",) if grid[0] > 1 else ("arbitrary",)
    out = pl.pallas_call(
        functools.partial(_mm_kernel, activation=activation,
                          has_residual=has_res),
        out_shape=jax.ShapeDtypeStruct((Mp, NP), out_dtype),
        grid=grid,
        in_specs=in_specs,
        out_specs=pl.BlockSpec((TM, NP), lambda i: (i, 0)),
        compiler_params=pltpu.CompilerParams(
            dimension_semantics=sem,
            vmem_limit_bytes=_vmem_limit(*vmem_blocks)),
    )(*operands)
    if keep_padded:
        return out
    return out[:M, :pw.n]


# -----------------------------------------------------------------------------
# Soft-argmax kernel: row softmax + coordinate expectation, f32 on the VPU.
# -----------------------------------------------------------------------------
def _softargmax_kernel(h_ref, cx_ref, cy_ref, o_ref):
    h = h_ref[...]                                          # (Mp, Lp)
    m = jnp.max(h, axis=-1, keepdims=True)
    e = jnp.exp(h - m)
    s = jnp.sum(e, axis=-1, keepdims=True)
    p = e / s                                               # exact reciprocal
    ex = jnp.sum(p * cx_ref[...], axis=-1, keepdims=True)   # (Mp, 1)
    ey = jnp.sum(p * cy_ref[...], axis=-1, keepdims=True)
    lane = lax.broadcasted_iota(jnp.int32, (h.shape[0], NP), 1)
    o_ref[...] = jnp.where(lane == 0, ex, jnp.where(lane == 1, ey, 0.0))


def pallas_softargmax(heat, coords):
    """heat: (M, L) logits, coords: (L, 2) -> (M, 2) expected (x, y)."""
    M, L = heat.shape
    Mp = max(8, _round_up(M, 8))
    Lp = _round_up(L, 128)
    h_p = jnp.full((Mp, Lp), -1e9, jnp.float32).at[:M, :L].set(heat)
    cx = jnp.zeros((1, Lp), jnp.float32).at[0, :L].set(coords[:, 0])
    cy = jnp.zeros((1, Lp), jnp.float32).at[0, :L].set(coords[:, 1])
    out = pl.pallas_call(
        _softargmax_kernel,
        out_shape=jax.ShapeDtypeStruct((Mp, NP), jnp.float32),
        grid=(1,),
        in_specs=[pl.BlockSpec((Mp, Lp), lambda i: (0, 0)),
                  pl.BlockSpec((1, Lp), lambda i: (0, 0)),
                  pl.BlockSpec((1, Lp), lambda i: (0, 0))],
        out_specs=pl.BlockSpec((Mp, NP), lambda i: (0, 0)),
        compiler_params=pltpu.CompilerParams(
            vmem_limit_bytes=_vmem_limit(((Mp, Lp), jnp.float32),
                                         ((1, Lp), jnp.float32),
                                         ((1, Lp), jnp.float32),
                                         ((Mp, NP), jnp.float32))),
    )(h_p, cx, cy)
    return out[:M, :2]


# -----------------------------------------------------------------------------
# Fused mesh decoder kernel: upsample + 3 SpiralDeblocks + head in ONE call.
# The spiral gather is folded into per-tap matrices A_j = S_j @ U at init, so
# each block is   x_out = relu( sum_j A_j @ (x_in @ W_j) + b ).
# -----------------------------------------------------------------------------
def _decoder_kernel(s_ref, u0_ref,
                    a0_ref, w0_ref, b0_ref,
                    a1_ref, w1_ref, b1_ref,
                    a2_ref, w2_ref, b2_ref,
                    ah_ref, wh_ref, bh_ref,
                    o_ref):
    x = jnp.dot(u0_ref[...], s_ref[0], preferred_element_type=jnp.float32)

    def deblock(x, a_ref, w_ref, b_ref, relu):
        acc = None
        for j in range(SPIRAL_LEN):
            t = jnp.dot(x, w_ref[j], preferred_element_type=jnp.float32)
            y = jnp.dot(a_ref[j], t, preferred_element_type=jnp.float32)
            acc = y if acc is None else acc + y
        acc = acc + b_ref[...]
        return jnp.maximum(acc, 0.0) if relu else acc

    x = deblock(x, a0_ref, w0_ref, b0_ref, True)
    x = deblock(x, a1_ref, w1_ref, b1_ref, True)
    x = deblock(x, a2_ref, w2_ref, b2_ref, True)
    o_ref[0] = deblock(x, ah_ref, wh_ref, bh_ref, False)   # lane-dense (V, 128)


def pallas_mesh_decoder(sampled, dec):
    """sampled: (B, KPTS, C_last) f32 -> (B, V, 3) mesh coordinates."""
    B, K, C = sampled.shape
    V = VERT_LEVELS[0]
    (a0, w0, b0), (a1, w1, b1), (a2, w2, b2) = dec["layers"]
    ah, wh, bh = dec["head"]
    weights = [dec["u0"], a0, w0, b0, a1, w1, b1, a2, w2, b2, ah, wh, bh]

    def full_spec(arr):
        nd = arr.ndim

        def imap(b):
            return (0,) * nd

        return pl.BlockSpec(arr.shape, imap)

    in_specs = [pl.BlockSpec((1, K, C), lambda b: (b, 0, 0))]
    in_specs += [full_spec(w) for w in weights]
    vmem_blocks = [((1, K, C), jnp.float32), ((1, V, NP), jnp.float32)]
    vmem_blocks += [(w.shape, w.dtype) for w in weights]
    out = pl.pallas_call(
        _decoder_kernel,
        out_shape=jax.ShapeDtypeStruct((B, V, NP), jnp.float32),
        grid=(B,),
        in_specs=in_specs,
        out_specs=pl.BlockSpec((1, V, NP), lambda b: (b, 0, 0)),
        compiler_params=pltpu.CompilerParams(
            dimension_semantics=("arbitrary",),
            vmem_limit_bytes=_vmem_limit(*vmem_blocks)),
    )(sampled.astype(jnp.float32), *weights)
    return out[:, :, :3]


# -----------------------------------------------------------------------------
# Conv glue: the two 3x3 convs use a tiny im2col (XLA), 1x1 convs chain padded
# lane-dense slabs through pallas_linear directly.
# -----------------------------------------------------------------------------
def _im2col(x, kh, kw, stride, padding):
    # TODO(synk): the 3x3 taps could be fused into the matmul kernel as a
    # trailing reduction grid axis over shifted windows; kept as im2col (only 2
    # such convs at small resolution).
    B, H, W, C = x.shape
    xp = jnp.pad(x, ((0, 0), (padding, padding), (padding, padding), (0, 0)))
    Ho = (H + 2 * padding - kh) // stride + 1
    Wo = (W + 2 * padding - kw) // stride + 1
    patches = []
    for i in range(kh):
        for j in range(kw):
            patches.append(
                xp[:, i:i + Ho * stride:stride, j:j + Wo * stride:stride, :])
    return jnp.concatenate(patches, axis=-1), Ho, Wo


def bilinear_sample(feat, uv):
    """feat: (B, H, W, C); uv: (B, K, 2) in [0,1] as (x, y)."""
    # TODO(synk): data-dependent grid-sample gather has no clean rectangular-
    # tile Pallas equivalent; kept as an XLA gather.
    B, H, W, C = feat.shape
    x = jnp.clip(uv[..., 0], 0.0, 1.0) * (W - 1)
    y = jnp.clip(uv[..., 1], 0.0, 1.0) * (H - 1)
    x0 = jnp.floor(x)
    y0 = jnp.floor(y)
    x0i = jnp.clip(x0, 0, W - 1).astype(jnp.int32)
    x1i = jnp.clip(x0 + 1, 0, W - 1).astype(jnp.int32)
    y0i = jnp.clip(y0, 0, H - 1).astype(jnp.int32)
    y1i = jnp.clip(y0 + 1, 0, H - 1).astype(jnp.int32)
    wx = (x - x0)[..., None]
    wy = (y - y0)[..., None]
    bidx = jnp.arange(B)[:, None]
    f00 = feat[bidx, y0i, x0i]
    f01 = feat[bidx, y0i, x1i]
    f10 = feat[bidx, y1i, x0i]
    f11 = feat[bidx, y1i, x1i]
    return (f00 * (1 - wx) * (1 - wy) + f01 * wx * (1 - wy) +
            f10 * (1 - wx) * wy + f11 * wx * wy)


# -----------------------------------------------------------------------------
# Parameters (deterministic, synthetic) -- pre-packed once at init.
# -----------------------------------------------------------------------------
def init_params(key):
    keys = jax.random.split(key, 12)
    ki = iter(keys)
    conv_dt = jnp.bfloat16     # bf16 MXU operands / activations for the convs

    def conv_w(k, kh, kw, cin, cout):
        fan = kh * kw * cin
        w = jax.random.normal(k, (fan, cout), jnp.float32) / jnp.sqrt(fan)
        return pack_weight(w, jnp.zeros((cout,), jnp.float32), conv_dt)

    p = {}
    mid = STEM_CH // 2
    # Backbone (simplified ResnetStack_Backbone with one Bottleneck stage).
    p["stem"] = conv_w(next(ki), 3, 3, 3, STEM_CH)
    p["b1"] = conv_w(next(ki), 1, 1, STEM_CH, mid)
    p["b2"] = conv_w(next(ki), 3, 3, mid, mid)
    p["b3"] = conv_w(next(ki), 1, 1, mid, STEM_CH)
    p["lat"] = conv_w(next(ki), 1, 1, STEM_CH, LATENT_SIZE)
    # hm (latent->21) and de (latent->32) fused into one N=53 weight.
    w_hm = (jax.random.normal(next(ki), (LATENT_SIZE, KPTS_NUM), jnp.float32)
            / jnp.sqrt(LATENT_SIZE))
    w_de = (jax.random.normal(next(ki), (LATENT_SIZE, OUT_CHANNELS[-1]),
                              jnp.float32) / jnp.sqrt(LATENT_SIZE))
    p["hm_de"] = pack_weight(
        jnp.concatenate([w_hm, w_de], axis=1),
        jnp.zeros((KPTS_NUM + OUT_CHANNELS[-1],), jnp.float32), conv_dt)

    # TODO(synk): real spiral_tramsform() reads template.ply/transform.pkl;
    # deterministic synthetic topology is used instead.
    def spiral_idx(v):
        base = jnp.arange(v)[:, None]
        return ((base + jnp.arange(SPIRAL_LEN)[None, :]) % v).astype(jnp.int32)

    def up_mat(v_out, v_in):
        m = jnp.zeros((v_out, v_in), jnp.float32)
        rows = jnp.arange(v_out)
        m = m.at[rows, rows // 2].set(0.7)
        m = m.at[rows, (rows // 2 + 1) % v_in].set(0.3)
        return m

    dec = {}
    # Keypoint -> coarsest-mesh upsample (Vc, K), init 0.01 like the reference.
    dec["u0"] = jnp.ones((VERT_LEVELS[-1], KPTS_NUM), jnp.float32) * 0.01

    # de_layers: coarse(8) -> 16 -> 32 -> 64 with channels 32 -> 16 -> 16 -> 8.
    layer_specs = [
        (VERT_LEVELS[2], VERT_LEVELS[3], OUT_CHANNELS[3], OUT_CHANNELS[2]),
        (VERT_LEVELS[1], VERT_LEVELS[2], OUT_CHANNELS[2], OUT_CHANNELS[1]),
        (VERT_LEVELS[0], VERT_LEVELS[1], OUT_CHANNELS[1], OUT_CHANNELS[0]),
    ]
    layers = []
    for (v_out, v_in, c_in, c_out) in layer_specs:
        fan = SPIRAL_LEN * c_in
        w = jax.random.normal(next(ki), (fan, c_out), jnp.float32) / jnp.sqrt(fan)
        U = up_mat(v_out, v_in)
        sp = spiral_idx(v_out)
        A = U[sp.T]                                   # (S, v_out, v_in): S_j @ U
        Wr = w.reshape(SPIRAL_LEN, c_in, c_out)
        layers.append((A, Wr, jnp.zeros((1, c_out), jnp.float32)))
    dec["layers"] = layers

    # Head spiral conv -> 3D coords (N padded to 128 for a lane-dense store).
    V, c_in = VERT_LEVELS[0], OUT_CHANNELS[0]
    fan = SPIRAL_LEN * c_in
    w = jax.random.normal(next(ki), (fan, 3), jnp.float32) / jnp.sqrt(fan)
    sp = spiral_idx(V)
    A_h = jnp.eye(V, dtype=jnp.float32)[sp.T]         # (S, V, V): pure gather
    W_h = jnp.zeros((SPIRAL_LEN, c_in, NP), jnp.float32)
    W_h = W_h.at[:, :, :3].set(w.reshape(SPIRAL_LEN, c_in, 3))
    dec["head"] = (A_h, W_h, jnp.zeros((1, NP), jnp.float32))
    p["decoder"] = dec
    return p


# -----------------------------------------------------------------------------
# Backbone + decoder forward (Pallas kernels inside), fully batched over 2B.
# -----------------------------------------------------------------------------
def backbone(p, x_nchw):
    x = jnp.transpose(x_nchw, (0, 2, 3, 1)).astype(jnp.float32)      # NHWC
    B = x.shape[0]

    patches, Ho, Wo = _im2col(x, 3, 3, 2, 1)                         # stem 3x3 s2
    M = B * Ho * Wo
    stem = pallas_linear(patches.reshape(M, -1), p["stem"], "relu",
                         keep_padded=True, out_dtype=jnp.bfloat16)   # (Mp,128) slab

    h = pallas_linear(stem, p["b1"], "relu", input_padded=True, m=M,
                      out_dtype=jnp.bfloat16)                        # (M, mid)
    patches2, _, _ = _im2col(h.reshape(B, Ho, Wo, -1), 3, 3, 1, 1)   # b2 3x3
    h = pallas_linear(patches2.reshape(M, -1), p["b2"], "relu",
                      keep_padded=True, out_dtype=jnp.bfloat16)
    # b3 1x1 with residual add + relu fused into the epilogue.
    h = pallas_linear(h, p["b3"], "relu", input_padded=True, keep_padded=True,
                      residual=stem, out_dtype=jnp.bfloat16)
    lat = pallas_linear(h, p["lat"], "relu", input_padded=True,
                        keep_padded=True, out_dtype=jnp.bfloat16)
    # Fused heatmap + decoder-feature 1x1 conv: reads `latent` once.
    hd = pallas_linear(lat, p["hm_de"], None, input_padded=True, m=M,
                       out_dtype=jnp.float32)                        # (M, 53)
    heat = hd[:, :KPTS_NUM].reshape(B, Ho, Wo, KPTS_NUM)
    feat = hd[:, KPTS_NUM:].reshape(B, Ho, Wo, OUT_CHANNELS[-1])

    heat_flat = jnp.transpose(heat, (0, 3, 1, 2)).reshape(B * KPTS_NUM, Ho * Wo)
    ys, xs = jnp.meshgrid(jnp.arange(Ho), jnp.arange(Wo), indexing="ij")
    coords = jnp.stack([xs.reshape(-1) / (Wo - 1),
                        ys.reshape(-1) / (Ho - 1)], axis=-1).astype(jnp.float32)
    uv = pallas_softargmax(heat_flat, coords).reshape(B, KPTS_NUM, 2)
    return feat, uv


def decoder3d(p, uv, feat):
    sampled = bilinear_sample(feat, uv)                   # (B, K, C_last)
    return pallas_mesh_decoder(sampled, p["decoder"])     # (B, V, 3)


def mobrecon_forward(params, x):
    """x: (B, C, H, W) NCHW; C == 3 or 6 (stereo)."""
    B, C, H, W = x.shape
    if C == 6:
        # Both stereo views run in one batched pass over 2B images.
        xv = jnp.transpose(x.reshape(B, 2, 3, H, W),
                           (1, 0, 2, 3, 4)).reshape(2 * B, 3, H, W)
        feat, p2d = backbone(params, xv)
        p3d = decoder3d(params, p2d, feat)
        p2d = p2d.reshape(2, B, KPTS_NUM, 2)
        p3d = p3d.reshape(2, B, VERT_LEVELS[0], 3)
        pred2d = jnp.concatenate([p2d[0], p2d[1]], -1)    # (B, K, 4)
        pred3d = jnp.concatenate([p3d[0], p3d[1]], -1)    # (B, V, 6)
    else:
        feat, pred2d = backbone(params, x)
        pred3d = decoder3d(params, pred2d, feat)
    return {"verts": pred3d, "joint_img": pred2d}


if __name__ == "__main__":
    x = jax.random.normal(jax.random.PRNGKey(0), (2, 6, 32, 32), jnp.float32)
    params = init_params(jax.random.PRNGKey(42))

    fwd = jax.jit(mobrecon_forward)
    out = jax.block_until_ready(fwd(params, x))

    assert out["verts"].shape == (2, VERT_LEVELS[0], 6), out["verts"].shape
    assert out["joint_img"].shape == (2, KPTS_NUM, 4), out["joint_img"].shape
    assert bool(jnp.all(jnp.isfinite(out["verts"])))
    assert bool(jnp.all(jnp.isfinite(out["joint_img"])))
    print("KERNEL_OK")
</pallas_src>

<mosaic_0001>
module attributes {stable_mosaic.version = 11 : i64} {
  func.func @_mm_kernel(%arg0: i32, %arg1: memref<1024x128xbf16, #tpu.memory_space<vmem>>, %arg2: memref<128x128xbf16, #tpu.memory_space<vmem>>, %arg3: memref<1x128xf32, #tpu.memory_space<vmem>>, %arg4: memref<1024x128xbf16, #tpu.memory_space<vmem>>) attributes {dimension_semantics = [#tpu.dimension_semantics<arbitrary>], iteration_bounds = array<i64: 1>, scalar_prefetch = 0 : i64, scratch_operands = 0 : i64, tpu.core_type = #tpu.core_type<tc>, window_params = [{transform_indices = @transform_0, window_bounds = array<i64: 1024, 128>}, {pipeline_mode = #tpu.pipeline_mode<synchronous>, transform_indices = @transform_1, window_bounds = array<i64: 128, 128>}, {pipeline_mode = #tpu.pipeline_mode<synchronous>, transform_indices = @transform_2, window_bounds = array<i64: 1, 128>}, {transform_indices = @transform_3, window_bounds = array<i64: 1024, 128>}]} {
    %c0 = arith.constant 0 : index
    %c0_0 = arith.constant 0 : index
    %0 = vector.load %arg1[%c0, %c0_0] : memref<1024x128xbf16, #tpu.memory_space<vmem>>, vector<1024x128xbf16>
    %c0_1 = arith.constant 0 : index
    %c0_2 = arith.constant 0 : index
    %1 = vector.load %arg2[%c0_1, %c0_2] : memref<128x128xbf16, #tpu.memory_space<vmem>>, vector<128x128xbf16>
    %cst = arith.constant dense<0.000000e+00> : vector<1024x128xf32>
    %2 = tpu.matmul %0, %1, %cst {dimension_numbers = #tpu.dot_dimension_numbers<[1], [0], [0], [1], [0, 0, 1, 1], [], []>} : vector<1024x128xbf16>, vector<128x128xbf16>, vector<1024x128xf32> -> vector<1024x128xf32>
    %c0_3 = arith.constant 0 : index
    %c0_4 = arith.constant 0 : index
    %3 = vector.load %arg3[%c0_3, %c0_4] : memref<1x128xf32, #tpu.memory_space<vmem>>, vector<1x128xf32>
    %4 = vector.broadcast %3 : vector<1x128xf32> to vector<1024x128xf32>
    %5 = arith.addf %2, %4 : vector<1024x128xf32>
    %cst_5 = arith.constant 0.000000e+00 : f32
    %6 = vector.broadcast %cst_5 : f32 to vector<1024x128xf32>
    %7 = arith.maximumf %5, %6 : vector<1024x128xf32>
    %8 = arith.truncf %7 : vector<1024x128xf32> to vector<1024x128xbf16>
    %c0_6 = arith.constant 0 : index
    %c0_7 = arith.constant 0 : index
    %9 = vector.load %arg4[%c0_6, %c0_7] : memref<1024x128xbf16, #tpu.memory_space<vmem>>, vector<1024x128xbf16>
    tpu.vector_store %arg4[%c0_6, %c0_7], %8 {strides = array<i32>} : memref<1024x128xbf16, #tpu.memory_space<vmem>>, vector<1024x128xbf16>,
    return
  }
  func.func @transform_0(%arg0: i32) -> (i32, i32) {
    %c0_i32 = arith.constant 0 : i32
    %c0_i32_0 = arith.constant 0 : i32
    return %arg0, %c0_i32 : i32, i32
  }
  func.func @transform_1(%arg0: i32) -> (i32, i32) {
    %c0_i32 = arith.constant 0 : i32
    %c0_i32_0 = arith.constant 0 : i32
    %c0_i32_1 = arith.constant 0 : i32
    return %c0_i32, %c0_i32_0 : i32, i32
  }
  func.func @transform_2(%arg0: i32) -> (i32, i32) {
    %c0_i32 = arith.constant 0 : i32
    %c0_i32_0 = arith.constant 0 : i32
    %c0_i32_1 = arith.constant 0 : i32
    return %c0_i32, %c0_i32_0 : i32, i32
  }
  func.func @transform_3(%arg0: i32) -> (i32, i32) {
    %c0_i32 = arith.constant 0 : i32
    %c0_i32_0 = arith.constant 0 : i32
    return %arg0, %c0_i32 : i32, i32
  }
}

module attributes {stable_mosaic.version = 11 : i64} {
  func.func @_mm_kernel(%arg0: i32, %arg1: memref<1024x128xbf16, #tpu.memory_space<vmem>>, %arg2: memref<128x128xbf16, #tpu.memory_space<vmem>>, %arg3: memref<1x128xf32, #tpu.memory_space<vmem>>, %arg4: memref<1024x128xbf16, #tpu.memory_space<vmem>>, %arg5: memref<1024x128xbf16, #tpu.memory_space<vmem>>) attributes {dimension_semantics = [#tpu.dimension_semantics<arbitrary>], iteration_bounds = array<i64: 1>, scalar_prefetch = 0 : i64, scratch_operands = 0 : i64, tpu.core_type = #tpu.core_type<tc>, window_params = [{transform_indices = @transform_0, window_bounds = array<i64: 1024, 128>}, {pipeline_mode = #tpu.pipeline_mode<synchronous>, transform_indices = @transform_1, window_bounds = array<i64: 128, 128>}, {pipeline_mode = #tpu.pipeline_mode<synchronous>, transform_indices = @transform_2, window_bounds = array<i64: 1, 128>}, {transform_indices = @transform_3, window_bounds = array<i64: 1024, 128>}, {transform_indices = @transform_4, window_bounds = array<i64: 1024, 128>}]} {
    %c0 = arith.constant 0 : index
    %c0_0 = arith.constant 0 : index
    %0 = vector.load %arg1[%c0, %c0_0] : memref<1024x128xbf16, #tpu.memory_space<vmem>>, vector<1024x128xbf16>
    %c0_1 = arith.constant 0 : index
    %c0_2 = arith.constant 0 : index
    %1 = vector.load %arg2[%c0_1, %c0_2] : memref<128x128xbf16, #tpu.memory_space<vmem>>, vector<128x128xbf16>
    %cst = arith.constant dense<0.000000e+00> : vector<1024x128xf32>
    %2 = tpu.matmul %0, %1, %cst {dimension_numbers = #tpu.dot_dimension_numbers<[1], [0], [0], [1], [0, 0, 1, 1], [], []>} : vector<1024x128xbf16>, vector<128x128xbf16>, vector<1024x128xf32> -> vector<1024x128xf32>
    %c0_3 = arith.constant 0 : index
    %c0_4 = arith.constant 0 : index
    %3 = vector.load %arg3[%c0_3, %c0_4] : memref<1x128xf32, #tpu.memory_space<vmem>>, vector<1x128xf32>
    %4 = vector.broadcast %3 : vector<1x128xf32> to vector<1024x128xf32>
    %5 = arith.addf %2, %4 : vector<1024x128xf32>
    %c0_5 = arith.constant 0 : index
    %c0_6 = arith.constant 0 : index
    %6 = vector.load %arg4[%c0_5, %c0_6] : memref<1024x128xbf16, #tpu.memory_space<vmem>>, vector<1024x128xbf16>
    %7 = arith.extf %6 : vector<1024x128xbf16> to vector<1024x128xf32>
    %8 = arith.addf %5, %7 : vector<1024x128xf32>
    %cst_7 = arith.constant 0.000000e+00 : f32
    %9 = vector.broadcast %cst_7 : f32 to vector<1024x128xf32>
    %10 = arith.maximumf %8, %9 : vector<1024x128xf32>
    %11 = arith.truncf %10 : vector<1024x128xf32> to vector<1024x128xbf16>
    %c0_8 = arith.constant 0 : index
    %c0_9 = arith.constant 0 : index
    %12 = vector.load %arg5[%c0_8, %c0_9] : memref<1024x128xbf16, #tpu.memory_space<vmem>>, vector<1024x128xbf16>
    tpu.vector_store %arg5[%c0_8, %c0_9], %11 {strides = array<i32>} : memref<1024x128xbf16, #tpu.memory_space<vmem>>, vector<1024x128xbf16>,
    return
  }
  func.func @transform_0(%arg0: i32) -> (i32, i32) {
    %c0_i32 = arith.constant 0 : i32
    %c0_i32_0 = arith.constant 0 : i32
    return %arg0, %c0_i32 : i32, i32
  }
  func.func @transform_1(%arg0: i32) -> (i32, i32) {
    %c0_i32 = arith.constant 0 : i32
    %c0_i32_0 = arith.constant 0 : i32
    %c0_i32_1 = arith.constant 0 : i32
    return %c0_i32, %c0_i32_0 : i32, i32
  }
  func.func @transform_2(%arg0: i32) -> (i32, i32) {
    %c0_i32 = arith.constant 0 : i32
    %c0_i32_0 = arith.constant 0 : i32
    %c0_i32_1 = arith.constant 0 : i32
    return %c0_i32, %c0_i32_0 : i32, i32
  }
  func.func @transform_3(%arg0: i32) -> (i32, i32) {
    %c0_i32 = arith.constant 0 : i32
    %c0_i32_0 = arith.constant 0 : i32
    return %arg0, %c0_i32 : i32, i32
  }
  func.func @transform_4(%arg0: i32) -> (i32, i32) {
    %c0_i32 = arith.constant 0 : i32
    %c0_i32_0 = arith.constant 0 : i32
    return %arg0, %c0_i32 : i32, i32
  }
}

module attributes {stable_mosaic.version = 11 : i64} {
  func.func @_mm_kernel(%arg0: i32, %arg1: memref<1024x128xbf16, #tpu.memory_space<vmem>>, %arg2: memref<128x128xbf16, #tpu.memory_space<vmem>>, %arg3: memref<1x128xf32, #tpu.memory_space<vmem>>, %arg4: memref<1024x128xf32, #tpu.memory_space<vmem>>) attributes {dimension_semantics = [#tpu.dimension_semantics<arbitrary>], iteration_bounds = array<i64: 1>, scalar_prefetch = 0 : i64, scratch_operands = 0 : i64, tpu.core_type = #tpu.core_type<tc>, window_params = [{transform_indices = @transform_0, window_bounds = array<i64: 1024, 128>}, {pipeline_mode = #tpu.pipeline_mode<synchronous>, transform_indices = @transform_1, window_bounds = array<i64: 128, 128>}, {pipeline_mode = #tpu.pipeline_mode<synchronous>, transform_indices = @transform_2, window_bounds = array<i64: 1, 128>}, {transform_indices = @transform_3, window_bounds = array<i64: 1024, 128>}]} {
    %c0 = arith.constant 0 : index
    %c0_0 = arith.constant 0 : index
    %0 = vector.load %arg1[%c0, %c0_0] : memref<1024x128xbf16, #tpu.memory_space<vmem>>, vector<1024x128xbf16>
    %c0_1 = arith.constant 0 : index
    %c0_2 = arith.constant 0 : index
    %1 = vector.load %arg2[%c0_1, %c0_2] : memref<128x128xbf16, #tpu.memory_space<vmem>>, vector<128x128xbf16>
    %cst = arith.constant dense<0.000000e+00> : vector<1024x128xf32>
    %2 = tpu.matmul %0, %1, %cst {dimension_numbers = #tpu.dot_dimension_numbers<[1], [0], [0], [1], [0, 0, 1, 1], [], []>} : vector<1024x128xbf16>, vector<128x128xbf16>, vector<1024x128xf32> -> vector<1024x128xf32>
    %c0_3 = arith.constant 0 : index
    %c0_4 = arith.constant 0 : index
    %3 = vector.load %arg3[%c0_3, %c0_4] : memref<1x128xf32, #tpu.memory_space<vmem>>, vector<1x128xf32>
    %4 = vector.broadcast %3 : vector<1x128xf32> to vector<1024x128xf32>
    %5 = arith.addf %2, %4 : vector<1024x128xf32>
    %c0_5 = arith.constant 0 : index
    %c0_6 = arith.constant 0 : index
    %6 = vector.load %arg4[%c0_5, %c0_6] : memref<1024x128xf32, #tpu.memory_space<vmem>>, vector<1024x128xf32>
    tpu.vector_store %arg4[%c0_5, %c0_6], %5 {strides = array<i32>} : memref<1024x128xf32, #tpu.memory_space<vmem>>, vector<1024x128xf32>,
    return
  }
  func.func @transform_0(%arg0: i32) -> (i32, i32) {
    %c0_i32 = arith.constant 0 : i32
    %c0_i32_0 = arith.constant 0 : i32
    return %arg0, %c0_i32 : i32, i32
  }
  func.func @transform_1(%arg0: i32) -> (i32, i32) {
    %c0_i32 = arith.constant 0 : i32
    %c0_i32_0 = arith.constant 0 : i32
    %c0_i32_1 = arith.constant 0 : i32
    return %c0_i32, %c0_i32_0 : i32, i32
  }
  func.func @transform_2(%arg0: i32) -> (i32, i32) {
    %c0_i32 = arith.constant 0 : i32
    %c0_i32_0 = arith.constant 0 : i32
    %c0_i32_1 = arith.constant 0 : i32
    return %c0_i32, %c0_i32_0 : i32, i32
  }
  func.func @transform_3(%arg0: i32) -> (i32, i32) {
    %c0_i32 = arith.constant 0 : i32
    %c0_i32_0 = arith.constant 0 : i32
    return %arg0, %c0_i32 : i32, i32
  }
}

module attributes {stable_mosaic.version = 11 : i64} {
  func.func @_softargmax_kernel(%arg0: i32, %arg1: memref<88x256xf32, #tpu.memory_space<vmem>>, %arg2: memref<1x256xf32, #tpu.memory_space<vmem>>, %arg3: memref<1x256xf32, #tpu.memory_space<vmem>>, %arg4: memref<88x128xf32, #tpu.memory_space<vmem>>) attributes {dimension_semantics = [#tpu.dimension_semantics<arbitrary>], iteration_bounds = array<i64: 1>, scalar_prefetch = 0 : i64, scratch_operands = 0 : i64, tpu.core_type = #tpu.core_type<tc>, window_params = [{pipeline_mode = #tpu.pipeline_mode<synchronous>, transform_indices = @transform_0, window_bounds = array<i64: 88, 256>}, {pipeline_mode = #tpu.pipeline_mode<synchronous>, transform_indices = @transform_1, window_bounds = array<i64: 1, 256>}, {pipeline_mode = #tpu.pipeline_mode<synchronous>, transform_indices = @transform_2, window_bounds = array<i64: 1, 256>}, {pipeline_mode = #tpu.pipeline_mode<synchronous>, transform_indices = @transform_3, window_bounds = array<i64: 88, 128>}]} {
    %c0 = arith.constant 0 : index
    %c0_0 = arith.constant 0 : index
    %0 = vector.load %arg1[%c0, %c0_0] : memref<88x256xf32, #tpu.memory_space<vmem>>, vector<88x256xf32>
    %cst = arith.constant dense<0xFF800000> : vector<88xf32>
    %1 = vector.multi_reduction <maximumf>, %0, %cst [1] : vector<88x256xf32> to vector<88xf32>
    %2 = vector.shape_cast %1 : vector<88xf32> to vector<88x1xf32>
    %3 = vector.broadcast %2 : vector<88x1xf32> to vector<88x256xf32>
    %4 = arith.subf %0, %3 : vector<88x256xf32>
    %5 = math.exp %4 : vector<88x256xf32>
    %cst_1 = arith.constant dense<0.000000e+00> : vector<88xf32>
    %6 = vector.multi_reduction <add>, %5, %cst_1 [1] : vector<88x256xf32> to vector<88xf32>
    %7 = vector.shape_cast %6 : vector<88xf32> to vector<88x1xf32>
    %8 = vector.broadcast %7 : vector<88x1xf32> to vector<88x256xf32>
    %9 = arith.divf %5, %8 : vector<88x256xf32>
    %c0_2 = arith.constant 0 : index
    %c0_3 = arith.constant 0 : index
    %10 = vector.load %arg2[%c0_2, %c0_3] : memref<1x256xf32, #tpu.memory_space<vmem>>, vector<1x256xf32>
    %11 = vector.broadcast %10 : vector<1x256xf32> to vector<88x256xf32>
    %12 = arith.mulf %9, %11 : vector<88x256xf32>
    %cst_4 = arith.constant dense<0.000000e+00> : vector<88xf32>
    %13 = vector.multi_reduction <add>, %12, %cst_4 [1] : vector<88x256xf32> to vector<88xf32>
    %14 = vector.shape_cast %13 : vector<88xf32> to vector<88x1xf32>
    %c0_5 = arith.constant 0 : index
    %c0_6 = arith.constant 0 : index
    %15 = vector.load %arg3[%c0_5, %c0_6] : memref<1x256xf32, #tpu.memory_space<vmem>>, vector<1x256xf32>
    %16 = vector.broadcast %15 : vector<1x256xf32> to vector<88x256xf32>
    %17 = arith.mulf %9, %16 : vector<88x256xf32>
    %cst_7 = arith.constant dense<0.000000e+00> : vector<88xf32>
    %18 = vector.multi_reduction <add>, %17, %cst_7 [1] : vector<88x256xf32> to vector<88xf32>
    %19 = vector.shape_cast %18 : vector<88xf32> to vector<88x1xf32>
    %20 = tpu.iota {dimensions = array<i32: 1>} : vector<88x128xi32>
    %c0_i32 = arith.constant 0 : i32
    %21 = vector.broadcast %c0_i32 : i32 to vector<88x128xi32>
    %22 = arith.cmpi eq, %20, %21 : vector<88x128xi32>
    %c1_i32 = arith.constant 1 : i32
    %23 = vector.broadcast %c1_i32 : i32 to vector<88x128xi32>
    %24 = arith.cmpi eq, %20, %23 : vector<88x128xi32>
    %cst_8 = arith.constant 0.000000e+00 : f32
    %25 = vector.shape_cast %19 : vector<88x1xf32> to vector<88x1xf32>
    %26 = vector.broadcast %25 : vector<88x1xf32> to vector<88x128xf32>
    %27 = vector.broadcast %cst_8 : f32 to vector<88x128xf32>
    %28 = arith.select %24, %26, %27 : vector<88x128xi1>, vector<88x128xf32>
    %29 = vector.shape_cast %14 : vector<88x1xf32> to vector<88x1xf32>
    %30 = vector.broadcast %29 : vector<88x1xf32> to vector<88x128xf32>
    %31 = arith.select %22, %30, %28 : vector<88x128xi1>, vector<88x128xf32>
    %c0_9 = arith.constant 0 : index
    %c0_10 = arith.constant 0 : index
    %32 = vector.load %arg4[%c0_9, %c0_10] : memref<88x128xf32, #tpu.memory_space<vmem>>, vector<88x128xf32>
    tpu.vector_store %arg4[%c0_9, %c0_10], %31 {strides = array<i32>} : memref<88x128xf32, #tpu.memory_space<vmem>>, vector<88x128xf32>,
    return
  }
  func.func @transform_0(%arg0: i32) -> (i32, i32) {
    %c0_i32 = arith.constant 0 : i32
    %c0_i32_0 = arith.constant 0 : i32
    %c0_i32_1 = arith.constant 0 : i32
    return %c0_i32, %c0_i32_0 : i32, i32
  }
  func.func @transform_1(%arg0: i32) -> (i32, i32) {
    %c0_i32 = arith.constant 0 : i32
    %c0_i32_0 = arith.constant 0 : i32
    %c0_i32_1 = arith.constant 0 : i32
    return %c0_i32, %c0_i32_0 : i32, i32
  }
  func.func @transform_2(%arg0: i32) -> (i32, i32) {
    %c0_i32 = arith.constant 0 : i32
    %c0_i32_0 = arith.constant 0 : i32
    %c0_i32_1 = arith.constant 0 : i32
    return %c0_i32, %c0_i32_0 : i32, i32
  }
  func.func @transform_3(%arg0: i32) -> (i32, i32) {
    %c0_i32 = arith.constant 0 : i32
    %c0_i32_0 = arith.constant 0 : i32
    %c0_i32_1 = arith.constant 0 : i32
    return %c0_i32, %c0_i32_0 : i32, i32
  }
}

module attributes {stable_mosaic.version = 11 : i64} {
  func.func @_decoder_kernel(%arg0: i32, %arg1: memref<1x21x32xf32, #tpu.memory_space<vmem>>, %arg2: memref<8x21xf32, #tpu.memory_space<vmem>>, %arg3: memref<4x16x8xf32, #tpu.memory_space<vmem>>, %arg4: memref<4x32x16xf32, #tpu.memory_space<vmem>>, %arg5: memref<1x16xf32, #tpu.memory_space<vmem>>, %arg6: memref<4x32x16xf32, #tpu.memory_space<vmem>>, %arg7: memref<4x16x16xf32, #tpu.memory_space<vmem>>, %arg8: memref<1x16xf32, #tpu.memory_space<vmem>>, %arg9: memref<4x64x32xf32, #tpu.memory_space<vmem>>, %arg10: memref<4x16x8xf32, #tpu.memory_space<vmem>>, %arg11: memref<1x8xf32, #tpu.memory_space<vmem>>, %arg12: memref<4x64x64xf32, #tpu.memory_space<vmem>>, %arg13: memref<4x8x128xf32, #tpu.memory_space<vmem>>, %arg14: memref<1x128xf32, #tpu.memory_space<vmem>>, %arg15: memref<1x64x128xf32, #tpu.memory_space<vmem>>) attributes {dimension_semantics = [#tpu.dimension_semantics<arbitrary>], iteration_bounds = array<i64: 4>, scalar_prefetch = 0 : i64, scratch_operands = 0 : i64, tpu.core_type = #tpu.core_type<tc>, window_params = [{transform_indices = @transform_0, window_bounds = array<i64: 1, 21, 32>}, {pipeline_mode = #tpu.pipeline_mode<synchronous>, transform_indices = @transform_1, window_bounds = array<i64: 8, 21>}, {pipeline_mode = #tpu.pipeline_mode<synchronous>, transform_indices = @transform_2, window_bounds = array<i64: 4, 16, 8>}, {pipeline_mode = #tpu.pipeline_mode<synchronous>, transform_indices = @transform_3, window_bounds = array<i64: 4, 32, 16>}, {pipeline_mode = #tpu.pipeline_mode<synchronous>, transform_indices = @transform_4, window_bounds = array<i64: 1, 16>}, {pipeline_mode = #tpu.pipeline_mode<synchronous>, transform_indices = @transform_5, window_bounds = array<i64: 4, 32, 16>}, {pipeline_mode = #tpu.pipeline_mode<synchronous>, transform_indices = @transform_6, window_bounds = array<i64: 4, 16, 16>}, {pipeline_mode = #tpu.pipeline_mode<synchronous>, transform_indices = @transform_7, window_bounds = array<i64: 1, 16>}, {pipeline_mode = #tpu.pipeline_mode<synchronous>, transform_indices = @transform_8, window_bounds = array<i64: 4, 64, 32>}, {pipeline_mode = #tpu.pipeline_mode<synchronous>, transform_indices = @transform_9, window_bounds = array<i64: 4, 16, 8>}, {pipeline_mode = #tpu.pipeline_mode<synchronous>, transform_indices = @transform_10, window_bounds = array<i64: 1, 8>}, {pipeline_mode = #tpu.pipeline_mode<synchronous>, transform_indices = @transform_11, window_bounds = array<i64: 4, 64, 64>}, {pipeline_mode = #tpu.pipeline_mode<synchronous>, transform_indices = @transform_12, window_bounds = array<i64: 4, 8, 128>}, {pipeline_mode = #tpu.pipeline_mode<synchronous>, transform_indices = @transform_13, window_bounds = array<i64: 1, 128>}, {transform_indices = @transform_14, window_bounds = array<i64: 1, 64, 128>}]} {
    %c0 = arith.constant 0 : index
    %c0_0 = arith.constant 0 : index
    %0 = vector.load %arg2[%c0, %c0_0] : memref<8x21xf32, #tpu.memory_space<vmem>>, vector<8x21xf32>
    %c0_1 = arith.constant 0 : index
    %c0_2 = arith.constant 0 : index
    %c0_3 = arith.constant 0 : index
    %1 = vector.load %arg1[%c0_1, %c0_2, %c0_3] : memref<1x21x32xf32, #tpu.memory_space<vmem>>, vector<1x21x32xf32>
    %2 = vector.shape_cast %1 : vector<1x21x32xf32> to vector<21x32xf32>
    %cst = arith.constant dense<0.000000e+00> : vector<8x32xf32>
    %3 = tpu.matmul %0, %2, %cst {dimension_numbers = #tpu.dot_dimension_numbers<[1], [0], [0], [1], [0, 0, 1, 1], [], []>} : vector<8x21xf32>, vector<21x32xf32>, vector<8x32xf32> -> vector<8x32xf32>
    %c0_4 = arith.constant 0 : index
    %c0_5 = arith.constant 0 : index
    %c0_6 = arith.constant 0 : index
    %4 = vector.load %arg4[%c0_4, %c0_5, %c0_6] : memref<4x32x16xf32, #tpu.memory_space<vmem>>, vector<1x32x16xf32>
    %5 = vector.shape_cast %4 : vector<1x32x16xf32> to vector<32x16xf32>
    %cst_7 = arith.constant dense<0.000000e+00> : vector<8x16xf32>
    %6 = tpu.matmul %3, %5, %cst_7 {dimension_numbers = #tpu.dot_dimension_numbers<[1], [0], [0], [1], [0, 0, 1, 1], [], []>} : vector<8x32xf32>, vector<32x16xf32>, vector<8x16xf32> -> vector<8x16xf32>
    %c0_8 = arith.constant 0 : index
    %c0_9 = arith.constant 0 : index
    %c0_10 = arith.constant 0 : index
    %7 = vector.load %arg3[%c0_8, %c0_9, %c0_10] : memref<4x16x8xf32, #tpu.memory_space<vmem>>, vector<1x16x8xf32>
    %8 = vector.shape_cast %7 : vector<1x16x8xf32> to vector<16x8xf32>
    %cst_11 = arith.constant dense<0.000000e+00> : vector<16x16xf32>
    %9 = tpu.matmul %8, %6, %cst_11 {dimension_numbers = #tpu.dot_dimension_numbers<[1], [0], [0], [1], [0, 0, 1, 1], [], []>} : vector<16x8xf32>, vector<8x16xf32>, vector<16x16xf32> -> vector<16x16xf32>
    %c1 = arith.constant 1 : index
    %c0_12 = arith.constant 0 : index
    %c0_13 = arith.constant 0 : index
    %10 = vector.load %arg4[%c1, %c0_12, %c0_13] : memref<4x32x16xf32, #tpu.memory_space<vmem>>, vector<1x32x16xf32>
    %11 = vector.shape_cast %10 : vector<1x32x16xf32> to vector<32x16xf32>
    %cst_14 = arith.constant dense<0.000000e+00> : vector<8x16xf32>
    %12 = tpu.matmul %3, %11, %cst_14 {dimension_numbers = #tpu.dot_dimension_numbers<[1], [0], [0], [1], [0, 0, 1, 1], [], []>} : vector<8x32xf32>, vector<32x16xf32>, vector<8x16xf32> -> vector<8x16xf32>
    %c1_15 = arith.constant 1 : index
    %c0_16 = arith.constant 0 : index
    %c0_17 = arith.constant 0 : index
    %13 = vector.load %arg3[%c1_15, %c0_16, %c0_17] : memref<4x16x8xf32, #tpu.memory_space<vmem>>, vector<1x16x8xf32>
    %14 = vector.shape_cast %13 : vector<1x16x8xf32> to vector<16x8xf32>
    %cst_18 = arith.constant dense<0.000000e+00> : vector<16x16xf32>
    %15 = tpu.matmul %14, %12, %cst_18 {dimension_numbers = #tpu.dot_dimension_numbers<[1], [0], [0], [1], [0, 0, 1, 1], [], []>} : vector<16x8xf32>, vector<8x16xf32>, vector<16x16xf32> -> vector<16x16xf32>
    %16 = arith.addf %9, %15 : vector<16x16xf32>
    %c2 = arith.constant 2 : index
    %c0_19 = arith.constant 0 : index
    %c0_20 = arith.constant 0 : index
    %17 = vector.load %arg4[%c2, %c0_19, %c0_20] : memref<4x32x16xf32, #tpu.memory_space<vmem>>, vector<1x32x16xf32>
    %18 = vector.shape_cast %17 : vector<1x32x16xf32> to vector<32x16xf32>
    %cst_21 = arith.constant dense<0.000000e+00> : vector<8x16xf32>
    %19 = tpu.matmul %3, %18, %cst_21 {dimension_numbers = #tpu.dot_dimension_numbers<[1], [0], [0], [1], [0, 0, 1, 1], [], []>} : vector<8x32xf32>, vector<32x16xf32>, vector<8x16xf32> -> vector<8x16xf32>
    %c2_22 = arith.constant 2 : index
    %c0_23 = arith.constant 0 : index
    %c0_24 = arith.constant 0 : index
    %20 = vector.load %arg3[%c2_22, %c0_23, %c0_24] : memref<4x16x8xf32, #tpu.memory_space<vmem>>, vector<1x16x8xf32>
    %21 = vector.shape_cast %20 : vector<1x16x8xf32> to vector<16x8xf32>
    %cst_25 = arith.constant dense<0.000000e+00> : vector<16x16xf32>
    %22 = tpu.matmul %21, %19, %cst_25 {dimension_numbers = #tpu.dot_dimension_numbers<[1], [0], [0], [1], [0, 0, 1, 1], [], []>} : vector<16x8xf32>, vector<8x16xf32>, vector<16x16xf32> -> vector<16x16xf32>
    %23 = arith.addf %16, %22 : vector<16x16xf32>
    %c3 = arith.constant 3 : index
    %c0_26 = arith.constant 0 : index
    %c0_27 = arith.constant 0 : index
    %24 = vector.load %arg4[%c3, %c0_26, %c0_27] : memref<4x32x16xf32, #tpu.memory_space<vmem>>, vector<1x32x16xf32>
    %25 = vector.shape_cast %24 : vector<1x32x16xf32> to vector<32x16xf32>
    %cst_28 = arith.constant dense<0.000000e+00> : vector<8x16xf32>
    %26 = tpu.matmul %3, %25, %cst_28 {dimension_numbers = #tpu.dot_dimension_numbers<[1], [0], [0], [1], [0, 0, 1, 1], [], []>} : vector<8x32xf32>, vector<32x16xf32>, vector<8x16xf32> -> vector<8x16xf32>
    %c3_29 = arith.constant 3 : index
    %c0_30 = arith.constant 0 : index
    %c0_31 = arith.constant 0 : index
    %27 = vector.load %arg3[%c3_29, %c0_30, %c0_31] : memref<4x16x8xf32, #tpu.memory_space<vmem>>, vector<1x16x8xf32>
    %28 = vector.shape_cast %27 : vector<1x16x8xf32> to vector<16x8xf32>
    %cst_32 = arith.constant dense<0.000000e+00> : vector<16x16xf32>
    %29 = tpu.matmul %28, %26, %cst_32 {dimension_numbers = #tpu.dot_dimension_numbers<[1], [0], [0], [1], [0, 0, 1, 1], [], []>} : vector<16x8xf32>, vector<8x16xf32>, vector<16x16xf32> -> vector<16x16xf32>
    %30 = arith.addf %23, %29 : vector<16x16xf32>
    %c0_33 = arith.constant 0 : index
    %c0_34 = arith.constant 0 : index
    %31 = vector.load %arg5[%c0_33, %c0_34] : memref<1x16xf32, #tpu.memory_space<vmem>>, vector<1x16xf32>
    %32 = vector.broadcast %31 : vector<1x16xf32> to vector<16x16xf32>
    %33 = arith.addf %30, %32 : vector<16x16xf32>
    %cst_35 = arith.constant 0.000000e+00 : f32
    %34 = vector.broadcast %cst_35 : f32 to vector<16x16xf32>
    %35 = arith.maximumf %33, %34 : vector<16x16xf32>
    %c0_36 = arith.constant 0 : index
    %c0_37 = arith.constant 0 : index
    %c0_38 = arith.constant 0 : index
    %36 = vector.load %arg7[%c0_36, %c0_37, %c0_38] : memref<4x16x16xf32, #tpu.memory_space<vmem>>, vector<1x16x16xf32>
    %37 = vector.shape_cast %36 : vector<1x16x16xf32> to vector<16x16xf32>
    %cst_39 = arith.constant dense<0.000000e+00> : vector<16x16xf32>
    %38 = tpu.matmul %35, %37, %cst_39 {dimension_numbers = #tpu.dot_dimension_numbers<[1], [0], [0], [1], [0, 0, 1, 1], [], []>} : vector<16x16xf32>, vector<16x16xf32>, vector<16x16xf32> -> vector<16x16xf32>
    %c0_40 = arith.constant 0 : index
    %c0_41 = arith.constant 0 : index
    %c0_42 = arith.constant 0 : index
    %39 = vector.load %arg6[%c0_40, %c0_41, %c0_42] : memref<4x32x16xf32, #tpu.memory_space<vmem>>, vector<1x32x16xf32>
    %40 = vector.shape_cast %39 : vector<1x32x16xf32> to vector<32x16xf32>
    %cst_43 = arith.constant dense<0.000000e+00> : vector<32x16xf32>
    %41 = tpu.matmul %40, %38, %cst_43 {dimension_numbers = #tpu.dot_dimension_numbers<[1], [0], [0], [1], [0, 0, 1, 1], [], []>} : vector<32x16xf32>, vector<16x16xf32>, vector<32x16xf32> -> vector<32x16xf32>
    %c1_44 = arith.constant 1 : index
    %c0_45 = arith.constant 0 : index
    %c0_46 = arith.constant 0 : index
    %42 = vector.load %arg7[%c1_44, %c0_45, %c0_46] : memref<4x16x16xf32, #tpu.memory_space<vmem>>, vector<1x16x16xf32>
    %43 = vector.shape_cast %42 : vector<1x16x16xf32> to vector<16x16xf32>
    %cst_47 = arith.constant dense<0.000000e+00> : vector<16x16xf32>
    %44 = tpu.matmul %35, %43, %cst_47 {dimension_numbers = #tpu.dot_dimension_numbers<[1], [0], [0], [1], [0, 0, 1, 1], [], []>} : vector<16x16xf32>, vector<16x16xf32>, vector<16x16xf32> -> vector<16x16xf32>
    %c1_48 = arith.constant 1 : index
    %c0_49 = arith.constant 0 : index
    %c0_50 = arith.constant 0 : index
    %45 = vector.load %arg6[%c1_48, %c0_49, %c0_50] : memref<4x32x16xf32, #tpu.memory_space<vmem>>, vector<1x32x16xf32>
    %46 = vector.shape_cast %45 : vector<1x32x16xf32> to vector<32x16xf32>
    %cst_51 = arith.constant dense<0.000000e+00> : vector<32x16xf32>
    %47 = tpu.matmul %46, %44, %cst_51 {dimension_numbers = #tpu.dot_dimension_numbers<[1], [0], [0], [1], [0, 0, 1, 1], [], []>} : vector<32x16xf32>, vector<16x16xf32>, vector<32x16xf32> -> vector<32x16xf32>
    %48 = arith.addf %41, %47 : vector<32x16xf32>
    %c2_52 = arith.constant 2 : index
    %c0_53 = arith.constant 0 : index
    %c0_54 = arith.constant 0 : index
    %49 = vector.load %arg7[%c2_52, %c0_53, %c0_54] : memref<4x16x16xf32, #tpu.memory_space<vmem>>, vector<1x16x16xf32>
    %50 = vector.shape_cast %49 : vector<1x16x16xf32> to vector<16x16xf32>
    %cst_55 = arith.constant dense<0.000000e+00> : vector<16x16xf32>
    %51 = tpu.matmul %35, %50, %cst_55 {dimension_numbers = #tpu.dot_dimension_numbers<[1], [0], [0], [1], [0, 0, 1, 1], [], []>} : vector<16x16xf32>, vector<16x16xf32>, vector<16x16xf32> -> vector<16x16xf32>
    %c2_56 = arith.constant 2 : index
    %c0_57 = arith.constant 0 : index
    %c0_58 = arith.constant 0 : index
    %52 = vector.load %arg6[%c2_56, %c0_57, %c0_58] : memref<4x32x16xf32, #tpu.memory_space<vmem>>, vector<1x32x16xf32>
    %53 = vector.shape_cast %52 : vector<1x32x16xf32> to vector<32x16xf32>
    %cst_59 = arith.constant dense<0.000000e+00> : vector<32x16xf32>
    %54 = tpu.matmul %53, %51, %cst_59 {dimension_numbers = #tpu.dot_dimension_numbers<[1], [0], [0], [1], [0, 0, 1, 1], [], []>} : vector<32x16xf32>, vector<16x16xf32>, vector<32x16xf32> -> vector<32x16xf32>
    %55 = arith.addf %48, %54 : vector<32x16xf32>
    %c3_60 = arith.constant 3 : index
    %c0_61 = arith.constant 0 : index
    %c0_62 = arith.constant 0 : index
    %56 = vector.load %arg7[%c3_60, %c0_61, %c0_62] : memref<4x16x16xf32, #tpu.memory_space<vmem>>, vector<1x16x16xf32>
    %57 = vector.shape_cast %56 : vector<1x16x16xf32> to vector<16x16xf32>
    %cst_63 = arith.constant dense<0.000000e+00> : vector<16x16xf32>
    %58 = tpu.matmul %35, %57, %cst_63 {dimension_numbers = #tpu.dot_dimension_numbers<[1], [0], [0], [1], [0, 0, 1, 1], [], []>} : vector<16x16xf32>, vector<16x16xf32>, vector<16x16xf32> -> vector<16x16xf32>
    %c3_64 = arith.constant 3 : index
    %c0_65 = arith.constant 0 : index
    %c0_66 = arith.constant 0 : index
    %59 = vector.load %arg6[%c3_64, %c0_65, %c0_66] : memref<4x32x16xf32, #tpu.memory_space<vmem>>, vector<1x32x16xf32>
    %60 = vector.shape_cast %59 : vector<1x32x16xf32> to vector<32x16xf32>
    %cst_67 = arith.constant dense<0.000000e+00> : vector<32x16xf32>
    %61 = tpu.matmul %60, %58, %cst_67 {dimension_numbers = #tpu.dot_dimension_numbers<[1], [0], [0], [1], [0, 0, 1, 1], [], []>} : vector<32x16xf32>, vector<16x16xf32>, vector<32x16xf32> -> vector<32x16xf32>
    %62 = arith.addf %55, %61 : vector<32x16xf32>
    %c0_68 = arith.constant 0 : index
    %c0_69 = arith.constant 0 : index
    %63 = vector.load %arg8[%c0_68, %c0_69] : memref<1x16xf32, #tpu.memory_space<vmem>>, vector<1x16xf32>
    %64 = vector.broadcast %63 : vector<1x16xf32> to vector<32x16xf32>
    %65 = arith.addf %62, %64 : vector<32x16xf32>
    %cst_70 = arith.constant 0.000000e+00 : f32
    %66 = vector.broadcast %cst_70 : f32 to vector<32x16xf32>
    %67 = arith.maximumf %65, %66 : vector<32x16xf32>
    %c0_71 = arith.constant 0 : index
    %c0_72 = arith.constant 0 : index
    %c0_73 = arith.constant 0 : index
    %68 = vector.load %arg10[%c0_71, %c0_72, %c0_73] : memref<4x16x8xf32, #tpu.memory_space<vmem>>, vector<1x16x8xf32>
    %69 = vector.shape_cast %68 : vector<1x16x8xf32> to vector<16x8xf32>
    %cst_74 = arith.constant dense<0.000000e+00> : vector<32x8xf32>
    %70 = tpu.matmul %67, %69, %cst_74 {dimension_numbers = #tpu.dot_dimension_numbers<[1], [0], [0], [1], [0, 0, 1, 1], [], []>} : vector<32x16xf32>, vector<16x8xf32>, vector<32x8xf32> -> vector<32x8xf32>
    %c0_75 = arith.constant 0 : index
    %c0_76 = arith.constant 0 : index
    %c0_77 = arith.constant 0 : index
    %71 = vector.load %arg9[%c0_75, %c0_76, %c0_77] : memref<4x64x32xf32, #tpu.memory_space<vmem>>, vector<1x64x32xf32>
    %72 = vector.shape_cast %71 : vector<1x64x32xf32> to vector<64x32xf32>
    %cst_78 = arith.constant dense<0.000000e+00> : vector<64x8xf32>
    %73 = tpu.matmul %72, %70, %cst_78 {dimension_numbers = #tpu.dot_dimension_numbers<[1], [0], [0], [1], [0, 0, 1, 1], [], []>} : vector<64x32xf32>, vector<32x8xf32>, vector<64x8xf32> -> vector<64x8xf32>
    %c1_79 = arith.constant 1 : index
    %c0_80 = arith.constant 0 : index
    %c0_81 = arith.constant 0 : index
    %74 = vector.load %arg10[%c1_79, %c0_80, %c0_81] : memref<4x16x8xf32, #tpu.memory_space<vmem>>, vector<1x16x8xf32>
    %75 = vector.shape_cast %74 : vector<1x16x8xf32> to vector<16x8xf32>
    %cst_82 = arith.constant dense<0.000000e+00> : vector<32x8xf32>
    %76 = tpu.matmul %67, %75, %cst_82 {dimension_numbers = #tpu.dot_dimension_numbers<[1], [0], [0], [1], [0, 0, 1, 1], [], []>} : vector<32x16xf32>, vector<16x8xf32>, vector<32x8xf32> -> vector<32x8xf32>
    %c1_83 = arith.constant 1 : index
    %c0_84 = arith.constant 0 : index
    %c0_85 = arith.constant 0 : index
    %77 = vector.load %arg9[%c1_83, %c0_84, %c0_85] : memref<4x64x32xf32, #tpu.memory_space<vmem>>, vector<1x64x32xf32>
    %78 = vector.shape_cast %77 : vector<1x64x32xf32> to vector<64x32xf32>
    %cst_86 = arith.constant dense<0.000000e+00> : vector<64x8xf32>
    %79 = tpu.matmul %78, %76, %cst_86 {dimension_numbers = #tpu.dot_dimension_numbers<[1], [0], [0], [1], [0, 0, 1, 1], [], []>} : vector<64x32xf32>, vector<32x8xf32>, vector<64x8xf32> -> vector<64x8xf32>
    %80 = arith.addf %73, %79 : vector<64x8xf32>
    %c2_87 = arith.constant 2 : index
    %c0_88 = arith.constant 0 : index
    %c0_89 = arith.constant 0 : index
    %81 = vector.load %arg10[%c2_87, %c0_88, %c0_89] : memref<4x16x8xf32, #tpu.memory_space<vmem>>, vector<1x16x8xf32>
    %82 = vector.shape_cast %81 : vector<1x16x8xf32> to vector<16x8xf32>
    %cst_90 = arith.constant dense<0.000000e+00> : vector<32x8xf32>
    %83 = tpu.matmul %67, %82, %cst_90 {dimension_numbers = #tpu.dot_dimension_numbers<[1], [0], [0], [1], [0, 0, 1, 1], [], []>} : vector<32x16xf32>, vector<16x8xf32>, vector<32x8xf32> -> vector<32x8xf32>
    %c2_91 = arith.constant 2 : index
    %c0_92 = arith.constant 0 : index
    %c0_93 = arith.constant 0 : index
    %84 = vector.load %arg9[%c2_91, %c0_92, %c0_93] : memref<4x64x32xf32, #tpu.memory_space<vmem>>, vector<1x64x32xf32>
    %85 = vector.shape_cast %84 : vector<1x64x32xf32> to vector<64x32xf32>
    %cst_94 = arith.constant dense<0.000000e+00> : vector<64x8xf32>
    %86 = tpu.matmul %85, %83, %cst_94 {dimension_numbers = #tpu.dot_dimension_numbers<[1], [0], [0], [1], [0, 0, 1, 1], [], []>} : vector<64x32xf32>, vector<32x8xf32>, vector<64x8xf32> -> vector<64x8xf32>
    %87 = arith.addf %80, %86 : vector<64x8xf32>
    %c3_95 = arith.constant 3 : index
    %c0_96 = arith.constant 0 : index
    %c0_97 = arith.constant 0 : index
    %88 = vector.load %arg10[%c3_95, %c0_96, %c0_97] : memref<4x16x8xf32, #tpu.memory_space<vmem>>, vector<1x16x8xf32>
    %89 = vector.shape_cast %88 : vector<1x16x8xf32> to vector<16x8xf32>
    %cst_98 = arith.constant dense<0.000000e+00> : vector<32x8xf32>
    %90 = tpu.matmul %67, %89, %cst_98 {dimension_numbers = #tpu.dot_dimension_numbers<[1], [0], [0], [1], [0, 0, 1, 1], [], []>} : vector<32x16xf32>, vector<16x8xf32>, vector<32x8xf32> -> vector<32x8xf32>
    %c3_99 = arith.constant 3 : index
    %c0_100 = arith.constant 0 : index
    %c0_101 = arith.constant 0 : index
    %91 = vector.load %arg9[%c3_99, %c0_100, %c0_101] : memref<4x64x32xf32, #tpu.memory_space<vmem>>, vector<1x64x32xf32>
    %92 = vector.shape_cast %91 : vector<1x64x32xf32> to vector<64x32xf32>
    %cst_102 = arith.constant dense<0.000000e+00> : vector<64x8xf32>
    %93 = tpu.matmul %92, %90, %cst_102 {dimension_numbers = #tpu.dot_dimension_numbers<[1], [0], [0], [1], [0, 0, 1, 1], [], []>} : vector<64x32xf32>, vector<32x8xf32>, vector<64x8xf32> -> vector<64x8xf32>
    %94 = arith.addf %87, %93 : vector<64x8xf32>
    %c0_103 = arith.constant 0 : index
    %c0_104 = arith.constant 0 : index
    %95 = vector.load %arg11[%c0_103, %c0_104] : memref<1x8xf32, #tpu.memory_space<vmem>>, vector<1x8xf32>
    %96 = vector.broadcast %95 : vector<1x8xf32> to vector<64x8xf32>
    %97 = arith.addf %94, %96 : vector<64x8xf32>
    %cst_105 = arith.constant 0.000000e+00 : f32
    %98 = vector.broadcast %cst_105 : f32 to vector<64x8xf32>
    %99 = arith.maximumf %97, %98 : vector<64x8xf32>
    %c0_106 = arith.constant 0 : index
    %c0_107 = arith.constant 0 : index
    %c0_108 = arith.constant 0 : index
    %100 = vector.load %arg13[%c0_106, %c0_107, %c0_108] : memref<4x8x128xf32, #tpu.memory_space<vmem>>, vector<1x8x128xf32>
    %101 = vector.shape_cast %100 : vector<1x8x128xf32> to vector<8x128xf32>
    %cst_109 = arith.constant dense<0.000000e+00> : vector<64x128xf32>
    %102 = tpu.matmul %99, %101, %cst_109 {dimension_numbers = #tpu.dot_dimension_numbers<[1], [0], [0], [1], [0, 0, 1, 1], [], []>} : vector<64x8xf32>, vector<8x128xf32>, vector<64x128xf32> -> vector<64x128xf32>
    %c0_110 = arith.constant 0 : index
    %c0_111 = arith.constant 0 : index
    %c0_112 = arith.constant 0 : index
    %103 = vector.load %arg12[%c0_110, %c0_111, %c0_112] : memref<4x64x64xf32, #tpu.memory_space<vmem>>, vector<1x64x64xf32>
    %104 = vector.shape_cast %103 : vector<1x64x64xf32> to vector<64x64xf32>
    %cst_113 = arith.constant dense<0.000000e+00> : vector<64x128xf32>
    %105 = tpu.matmul %104, %102, %cst_113 {dimension_numbers = #tpu.dot_dimension_numbers<[1], [0], [0], [1], [0, 0, 1, 1], [], []>} : vector<64x64xf32>, vector<64x128xf32>, vector<64x128xf32> -> vector<64x128xf32>
    %c1_114 = arith.constant 1 : index
    %c0_115 = arith.constant 0 : index
    %c0_116 = arith.constant 0 : index
    %106 = vector.load %arg13[%c1_114, %c0_115, %c0_116] : memref<4x8x128xf32, #tpu.memory_space<vmem>>, vector<1x8x128xf32>
    %107 = vector.shape_cast %106 : vector<1x8x128xf32> to vector<8x128xf32>
    %cst_117 = arith.constant dense<0.000000e+00> : vector<64x128xf32>
    %108 = tpu.matmul %99, %107, %cst_117 {dimension_numbers = #tpu.dot_dimension_numbers<[1], [0], [0], [1], [0, 0, 1, 1], [], []>} : vector<64x8xf32>, vector<8x128xf32>, vector<64x128xf32> -> vector<64x128xf32>
    %c1_118 = arith.constant 1 : index
    %c0_119 = arith.constant 0 : index
    %c0_120 = arith.constant 0 : index
    %109 = vector.load %arg12[%c1_118, %c0_119, %c0_120] : memref<4x64x64xf32, #tpu.memory_space<vmem>>, vector<1x64x64xf32>
    %110 = vector.shape_cast %109 : vector<1x64x64xf32> to vector<64x64xf32>
    %cst_121 = arith.constant dense<0.000000e+00> : vector<64x128xf32>
    %111 = tpu.matmul %110, %108, %cst_121 {dimension_numbers = #tpu.dot_dimension_numbers<[1], [0], [0], [1], [0, 0, 1, 1], [], []>} : vector<64x64xf32>, vector<64x128xf32>, vector<64x128xf32> -> vector<64x128xf32>
    %112 = arith.addf %105, %111 : vector<64x128xf32>
    %c2_122 = arith.constant 2 : index
    %c0_123 = arith.constant 0 : index
    %c0_124 = arith.constant 0 : index
    %113 = vector.load %arg13[%c2_122, %c0_123, %c0_124] : memref<4x8x128xf32, #tpu.memory_space<vmem>>, vector<1x8x128xf32>
    %114 = vector.shape_cast %113 : vector<1x8x128xf32> to vector<8x128xf32>
    %cst_125 = arith.constant dense<0.000000e+00> : vector<64x128xf32>
    %115 = tpu.matmul %99, %114, %cst_125 {dimension_numbers = #tpu.dot_dimension_numbers<[1], [0], [0], [1], [0, 0, 1, 1], [], []>} : vector<64x8xf32>, vector<8x128xf32>, vector<64x128xf32> -> vector<64x128xf32>
    %c2_126 = arith.constant 2 : index
    %c0_127 = arith.constant 0 : index
    %c0_128 = arith.constant 0 : index
    %116 = vector.load %arg12[%c2_126, %c0_127, %c0_128] : memref<4x64x64xf32, #tpu.memory_space<vmem>>, vector<1x64x64xf32>
    %117 = vector.shape_cast %116 : vector<1x64x64xf32> to vector<64x64xf32>
    %cst_129 = arith.constant dense<0.000000e+00> : vector<64x128xf32>
    %118 = tpu.matmul %117, %115, %cst_129 {dimension_numbers = #tpu.dot_dimension_numbers<[1], [0], [0], [1], [0, 0, 1, 1], [], []>} : vector<64x64xf32>, vector<64x128xf32>, vector<64x128xf32> -> vector<64x128xf32>
    %119 = arith.addf %112, %118 : vector<64x128xf32>
    %c3_130 = arith.constant 3 : index
    %c0_131 = arith.constant 0 : index
    %c0_132 = arith.constant 0 : index
    %120 = vector.load %arg13[%c3_130, %c0_131, %c0_132] : memref<4x8x128xf32, #tpu.memory_space<vmem>>, vector<1x8x128xf32>
    %121 = vector.shape_cast %120 : vector<1x8x128xf32> to vector<8x128xf32>
    %cst_133 = arith.constant dense<0.000000e+00> : vector<64x128xf32>
    %122 = tpu.matmul %99, %121, %cst_133 {dimension_numbers = #tpu.dot_dimension_numbers<[1], [0], [0], [1], [0, 0, 1, 1], [], []>} : vector<64x8xf32>, vector<8x128xf32>, vector<64x128xf32> -> vector<64x128xf32>
    %c3_134 = arith.constant 3 : index
    %c0_135 = arith.constant 0 : index
    %c0_136 = arith.constant 0 : index
    %123 = vector.load %arg12[%c3_134, %c0_135, %c0_136] : memref<4x64x64xf32, #tpu.memory_space<vmem>>, vector<1x64x64xf32>
    %124 = vector.shape_cast %123 : vector<1x64x64xf32> to vector<64x64xf32>
    %cst_137 = arith.constant dense<0.000000e+00> : vector<64x128xf32>
    %125 = tpu.matmul %124, %122, %cst_137 {dimension_numbers = #tpu.dot_dimension_numbers<[1], [0], [0], [1], [0, 0, 1, 1], [], []>} : vector<64x64xf32>, vector<64x128xf32>, vector<64x128xf32> -> vector<64x128xf32>
    %126 = arith.addf %119, %125 : vector<64x128xf32>
    %c0_138 = arith.constant 0 : index
    %c0_139 = arith.constant 0 : index
    %127 = vector.load %arg14[%c0_138, %c0_139] : memref<1x128xf32, #tpu.memory_space<vmem>>, vector<1x128xf32>
    %128 = vector.broadcast %127 : vector<1x128xf32> to vector<64x128xf32>
    %129 = arith.addf %126, %128 : vector<64x128xf32>
    %c0_140 = arith.constant 0 : index
    %c0_141 = arith.constant 0 : index
    %c0_142 = arith.constant 0 : index
    %130 = vector.load %arg15[%c0_140, %c0_141, %c0_142] : memref<1x64x128xf32, #tpu.memory_space<vmem>>, vector<1x64x128xf32>
    %131 = vector.shape_cast %130 : vector<1x64x128xf32> to vector<64x128xf32>
    %132 = vector.shape_cast %129 : vector<64x128xf32> to vector<1x64x128xf32>
    tpu.vector_store %arg15[%c0_140, %c0_141, %c0_142], %132 {strides = array<i32>} : memref<1x64x128xf32, #tpu.memory_space<vmem>>, vector<1x64x128xf32>,
    return
  }
  func.func @transform_0(%arg0: i32) -> (i32, i32, i32) {
    %c0_i32 = arith.constant 0 : i32
    %c0_i32_0 = arith.constant 0 : i32
    %c0_i32_1 = arith.constant 0 : i32
    return %arg0, %c0_i32, %c0_i32_0 : i32, i32, i32
  }
  func.func @transform_1(%arg0: i32) -> (i32, i32) {
    %c0_i32 = arith.constant 0 : i32
    %c0_i32_0 = arith.constant 0 : i32
    %c0_i32_1 = arith.constant 0 : i32
    return %c0_i32, %c0_i32_0 : i32, i32
  }
  func.func @transform_2(%arg0: i32) -> (i32, i32, i32) {
    %c0_i32 = arith.constant 0 : i32
    %c0_i32_0 = arith.constant 0 : i32
    %c0_i32_1 = arith.constant 0 : i32
    %c0_i32_2 = arith.constant 0 : i32
    return %c0_i32, %c0_i32_0, %c0_i32_1 : i32, i32, i32
  }
  func.func @transform_3(%arg0: i32) -> (i32, i32, i32) {
    %c0_i32 = arith.constant 0 : i32
    %c0_i32_0 = arith.constant 0 : i32
    %c0_i32_1 = arith.constant 0 : i32
    %c0_i32_2 = arith.constant 0 : i32
    return %c0_i32, %c0_i32_0, %c0_i32_1 : i32, i32, i32
  }
  func.func @transform_4(%arg0: i32) -> (i32, i32) {
    %c0_i32 = arith.constant 0 : i32
    %c0_i32_0 = arith.constant 0 : i32
    %c0_i32_1 = arith.constant 0 : i32
    return %c0_i32, %c0_i32_0 : i32, i32
  }
  func.func @transform_5(%arg0: i32) -> (i32, i32, i32) {
    %c0_i32 = arith.constant 0 : i32
    %c0_i32_0 = arith.constant 0 : i32
    %c0_i32_1 = arith.constant 0 : i32
    %c0_i32_2 = arith.constant 0 : i32
    return %c0_i32, %c0_i32_0, %c0_i32_1 : i32, i32, i32
  }
  func.func @transform_6(%arg0: i32) -> (i32, i32, i32) {
    %c0_i32 = arith.constant 0 : i32
    %c0_i32_0 = arith.constant 0 : i32
    %c0_i32_1 = arith.constant 0 : i32
    %c0_i32_2 = arith.constant 0 : i32
    return %c0_i32, %c0_i32_0, %c0_i32_1 : i32, i32, i32
  }
  func.func @transform_7(%arg0: i32) -> (i32, i32) {
    %c0_i32 = arith.constant 0 : i32
    %c0_i32_0 = arith.constant 0 : i32
    %c0_i32_1 = arith.constant 0 : i32
    return %c0_i32, %c0_i32_0 : i32, i32
  }
  func.func @transform_8(%arg0: i32) -> (i32, i32, i32) {
    %c0_i32 = arith.constant 0 : i32
    %c0_i32_0 = arith.constant 0 : i32
    %c0_i32_1 = arith.constant 0 : i32
    %c0_i32_2 = arith.constant 0 : i32
    return %c0_i32, %c0_i32_0, %c0_i32_1 : i32, i32, i32
  }
  func.func @transform_9(%arg0: i32) -> (i32, i32, i32) {
    %c0_i32 = arith.constant 0 : i32
    %c0_i32_0 = arith.constant 0 : i32
    %c0_i32_1 = arith.constant 0 : i32
    %c0_i32_2 = arith.constant 0 : i32
    return %c0_i32, %c0_i32_0, %c0_i32_1 : i32, i32, i32
  }
  func.func @transform_10(%arg0: i32) -> (i32, i32) {
    %c0_i32 = arith.constant 0 : i32
    %c0_i32_0 = arith.constant 0 : i32
    %c0_i32_1 = arith.constant 0 : i32
    return %c0_i32, %c0_i32_0 : i32, i32
  }
  func.func @transform_11(%arg0: i32) -> (i32, i32, i32) {
    %c0_i32 = arith.constant 0 : i32
    %c0_i32_0 = arith.constant 0 : i32
    %c0_i32_1 = arith.constant 0 : i32
    %c0_i32_2 = arith.constant 0 : i32
    return %c0_i32, %c0_i32_0, %c0_i32_1 : i32, i32, i32
  }
  func.func @transform_12(%arg0: i32) -> (i32, i32, i32) {
    %c0_i32 = arith.constant 0 : i32
    %c0_i32_0 = arith.constant 0 : i32
    %c0_i32_1 = arith.constant 0 : i32
    %c0_i32_2 = arith.constant 0 : i32
    return %c0_i32, %c0_i32_0, %c0_i32_1 : i32, i32, i32
  }
  func.func @transform_13(%arg0: i32) -> (i32, i32) {
    %c0_i32 = arith.constant 0 : i32
    %c0_i32_0 = arith.constant 0 : i32
    %c0_i32_1 = arith.constant 0 : i32
    return %c0_i32, %c0_i32_0 : i32, i32
  }
  func.func @transform_14(%arg0: i32) -> (i32, i32, i32) {
    %c0_i32 = arith.constant 0 : i32
    %c0_i32_0 = arith.constant 0 : i32
    %c0_i32_1 = arith.constant 0 : i32
    return %arg0, %c0_i32, %c0_i32_0 : i32, i32, i32
  }
}

</mosaic_0001>

<llo_original>
// kernel: mobrecon_forward.8
$region0: #{mobrecon_forward.8}
  #allocation0 [shape = 'u32[]', space=smem, size = 0x4, offset = 0x4, fixed_abs, tag = 'smem constant byte address 0x4 - core index']
  #allocation1 [shape = 'u32[144,128]{1,0:T(1,128)}', space=vmem, size = 0x12000, scoped, tag = 'internal scratch']
  %s0 = inlined_call_operand.vmem [shape: bf16[1024,128], index: 0, kind: input, shape index: {}]
  %s1 = inlined_call_operand.vmem [shape: bf16[128,128], index: 1, kind: input, shape index: {}]
  %s2 = inlined_call_operand.vmem [shape: f32[1,128], index: 2, kind: input, shape index: {}]
  %s3 = inlined_call_operand.vmem [shape: bf16[1024,128], index: 3, kind: output, shape index: {}]
  %s4 = sld [smem:[#allocation0]]
  $region22: #{mobrecon_forward.8} parent=0
    _
  %s6 = ssub.s32 1, %s4
  %s7 = scalar_select 0, %s6, %s4
  // Predicated region
  $region2: #{mobrecon_forward.8} parent=0 // pred_check
    _
  $region3: #{mobrecon_forward.8} parent=0 // pred_check_branch
    %9 = sbr.rel (0) target = $region5
  $region4: #{mobrecon_forward.8} parent=0 // pred_region
    _
  $region5: #{mobrecon_forward.8} parent=0 // pred_fallthru
    _
  // Predicated region
  $region6: #{mobrecon_forward.8} parent=0 // pred_check
    _
  $region7: #{mobrecon_forward.8} parent=0 // pred_check_branch
    %11 = sbr.rel (0) target = $region9
  $region8: #{mobrecon_forward.8} parent=0 // pred_region
    _
  $region9: #{mobrecon_forward.8} parent=0 // pred_fallthru
    _
  // Predicated region
  $region10: #{mobrecon_forward.8} parent=0 // pred_check
    _
  $region11: #{mobrecon_forward.8} parent=0 // pred_check_branch
    %13 = sbr.rel (0) target = $region13
  $region12: #{mobrecon_forward.8} parent=0 // pred_region
    _
  $region13: #{mobrecon_forward.8} parent=0 // pred_fallthru
    _
  %v15 = vld [vmem:[%s0] sm:$0xf]
  %v16 = vld [vmem:[%s0 + $0x4] sm:$0xf]
  %v17 = vld [vmem:[%s0 + $0x8] sm:$0xf]
  %v18 = vld [vmem:[%s0 + $0xc] sm:$0xf]
  %v19 = vld [vmem:[%s0 + $0x10] sm:$0xf]
  %v20 = vld [vmem:[%s0 + $0x14] sm:$0xf]
  %v21 = vld [vmem:[%s0 + $0x18] sm:$0xf]
  %v22 = vld [vmem:[%s0 + $0x1c] sm:$0xf]
  %v23 = vld [vmem:[%s0 + $0x20] sm:$0xf]
  %v24 = vld [vmem:[%s0 + $0x24] sm:$0xf]
  %v25 = vld [vmem:[%s0 + $0x28] sm:$0xf]
  %v26 = vld [vmem:[%s0 + $0x2c] sm:$0xf]
  %v27 = vld [vmem:[%s0 + $0x30] sm:$0xf]
  %v28 = vld [vmem:[%s0 + $0x34] sm:$0xf]
  %v29 = vld [vmem:[%s0 + $0x38] sm:$0xf]
  %v30 = vld [vmem:[%s0 + $0x3c] sm:$0xf]
  %v31 = vld [vmem:[%s0 + $0x40] sm:$0xf]
  %v32 = vld [vmem:[%s0 + $0x44] sm:$0xf]
  %v33 = vld [vmem:[%s0 + $0x48] sm:$0xf]
  %v34 = vld [vmem:[%s0 + $0x4c] sm:$0xf]
  %v35 = vld [vmem:[%s0 + $0x50] sm:$0xf]
  %v36 = vld [vmem:[%s0 + $0x54] sm:$0xf]
  %v37 = vld [vmem:[%s0 + $0x58] sm:$0xf]
  %v38 = vld [vmem:[%s0 + $0x5c] sm:$0xf]
  %v39 = vld [vmem:[%s0 + $0x60] sm:$0xf]
  %v40 = vld [vmem:[%s0 + $0x64] sm:$0xf]
  %v41 = vld [vmem:[%s0 + $0x68] sm:$0xf]
  %v42 = vld [vmem:[%s0 + $0x6c] sm:$0xf]
  %v43 = vld [vmem:[%s0 + $0x70] sm:$0xf]
  %v44 = vld [vmem:[%s0 + $0x74] sm:$0xf]
  %v45 = vld [vmem:[%s0 + $0x78] sm:$0xf]
  %v46 = vld [vmem:[%s0 + $0x7c] sm:$0xf]
  %v47 = vld [vmem:[%s0 + $0x80] sm:$0xf]
  %v48 = vld [vmem:[%s0 + $0x84] sm:$0xf]
  %v49 = vld [vmem:[%s0 + $0x88] sm:$0xf]
  %v50 = vld [vmem:[%s0 + $0x8c] sm:$0xf]
  %v51 = vld [vmem:[%s0 + $0x90] sm:$0xf]
  %v52 = vld [vmem:[%s0 + $0x94] sm:$0xf]
  %v53 = vld [vmem:[%s0 + $0x98] sm:$0xf]
  %v54 = vld [vmem:[%s0 + $0x9c] sm:$0xf]
  %v55 = vld [vmem:[%s0 + $0xa0] sm:$0xf]
  %v56 = vld [vmem:[%s0 + $0xa4] sm:$0xf]
  %v57 = vld [vmem:[%s0 + $0xa8] sm:$0xf]
  %v58 = vld [vmem:[%s0 + $0xac] sm:$0xf]
  %v59 = vld [vmem:[%s0 + $0xb0] sm:$0xf]
  %v60 = vld [vmem:[%s0 + $0xb4] sm:$0xf]
  %v61 = vld [vmem:[%s0 + $0xb8] sm:$0xf]
  %v62 = vld [vmem:[%s0 + $0xbc] sm:$0xf]
  %v63 = vld [vmem:[%s0 + $0xc0] sm:$0xf]
  %v64 = vld [vmem:[%s0 + $0xc4] sm:$0xf]
  %v65 = vld [vmem:[%s0 + $0xc8] sm:$0xf]
  %v66 = vld [vmem:[%s0 + $0xcc] sm:$0xf]
  %v67 = vld [vmem:[%s0 + $0xd0] sm:$0xf]
  %v68 = vld [vmem:[%s0 + $0xd4] sm:$0xf]
  %v69 = vld [vmem:[%s0 + $0xd8] sm:$0xf]
  %v70 = vld [vmem:[%s0 + $0xdc] sm:$0xf]
  %v71 = vld [vmem:[%s0 + $0xe0] sm:$0xf]
  %v72 = vld [vmem:[%s0 + $0xe4] sm:$0xf]
  %v73 = vld [vmem:[%s0 + $0xe8] sm:$0xf]
  %v74 = vld [vmem:[%s0 + $0xec] sm:$0xf]
  %v75 = vld [vmem:[%s0 + $0xf0] sm:$0xf]
  %v76 = vld [vmem:[%s0 + $0xf4] sm:$0xf]
  %v77 = vld [vmem:[%s0 + $0xf8] sm:$0xf]
  %v78 = vld [vmem:[%s0 + $0xfc] sm:$0xf]
  %v79 = vld [vmem:[%s0 + $0x100] sm:$0xf]
  %v80 = vld [vmem:[%s0 + $0x104] sm:$0xf]
  %v81 = vld [vmem:[%s0 + $0x108] sm:$0xf]
  %v82 = vld [vmem:[%s0 + $0x10c] sm:$0xf]
  %v83 = vld [vmem:[%s0 + $0x110] sm:$0xf]
  %v84 = vld [vmem:[%s0 + $0x114] sm:$0xf]
  %v85 = vld [vmem:[%s0 + $0x118] sm:$0xf]
  %v86 = vld [vmem:[%s0 + $0x11c] sm:$0xf]
  %v87 = vld [vmem:[%s0 + $0x120] sm:$0xf]
  %v88 = vld [vmem:[%s0 + $0x124] sm:$0xf]
  %v89 = vld [vmem:[%s0 + $0x128] sm:$0xf]
  %v90 = vld [vmem:[%s0 + $0x12c] sm:$0xf]
  %v91 = vld [vmem:[%s0 + $0x130] sm:$0xf]
  %v92 = vld [vmem:[%s0 + $0x134] sm:$0xf]
  %v93 = vld [vmem:[%s0 + $0x138] sm:$0xf]
  %v94 = vld [vmem:[%s0 + $0x13c] sm:$0xf]
  %v95 = vld [vmem:[%s0 + $0x140] sm:$0xf]
  %v96 = vld [vmem:[%s0 + $0x144] sm:$0xf]
  %v97 = vld [vmem:[%s0 + $0x148] sm:$0xf]
  %v98 = vld [vmem:[%s0 + $0x14c] sm:$0xf]
  %v99 = vld [vmem:[%s0 + $0x150] sm:$0xf]
  %v100 = vld [vmem:[%s0 + $0x154] sm:$0xf]
  %v101 = vld [vmem:[%s0 + $0x158] sm:$0xf]
  %v102 = vld [vmem:[%s0 + $0x15c] sm:$0xf]
  %v103 = vld [vmem:[%s0 + $0x160] sm:$0xf]
  %v104 = vld [vmem:[%s0 + $0x164] sm:$0xf]
  %v105 = vld [vmem:[%s0 + $0x168] sm:$0xf]
  %v106 = vld [vmem:[%s0 + $0x16c] sm:$0xf]
  %v107 = vld [vmem:[%s0 + $0x170] sm:$0xf]
  %v108 = vld [vmem:[%s0 + $0x174] sm:$0xf]
  %v109 = vld [vmem:[%s0 + $0x178] sm:$0xf]
  %v110 = vld [vmem:[%s0 + $0x17c] sm:$0xf]
  %v111 = vld [vmem:[%s0 + $0x180] sm:$0xf]
  %v112 = vld [vmem:[%s0 + $0x184] sm:$0xf]
  %v113 = vld [vmem:[%s0 + $0x188] sm:$0xf]
  %v114 = vld [vmem:[%s0 + $0x18c] sm:$0xf]
  %v115 = vld [vmem:[%s0 + $0x190] sm:$0xf]
  %v116 = vld [vmem:[%s0 + $0x194] sm:$0xf]
  %v117 = vld [vmem:[%s0 + $0x198] sm:$0xf]
  %v118 = vld [vmem:[%s0 + $0x19c] sm:$0xf]
  %v119 = vld [vmem:[%s0 + $0x1a0] sm:$0xf]
  %v120 = vld [vmem:[%s0 + $0x1a4] sm:$0xf]
  %v121 = vld [vmem:[%s0 + $0x1a8] sm:$0xf]
  %v122 = vld [vmem:[%s0 + $0x1ac] sm:$0xf]
  %v123 = vld [vmem:[%s0 + $0x1b0] sm:$0xf]
  %v124 = vld [vmem:[%s0 + $0x1b4] sm:$0xf]
  %v125 = vld [vmem:[%s0 + $0x1b8] sm:$0xf]
  %v126 = vld [vmem:[%s0 + $0x1bc] sm:$0xf]
  %v127 = vld [vmem:[%s0 + $0x1c0] sm:$0xf]
  %v128 = vld [vmem:[%s0 + $0x1c4] sm:$0xf]
  %v129 = vld [vmem:[%s0 + $0x1c8] sm:$0xf]
  %v130 = vld [vmem:[%s0 + $0x1cc] sm:$0xf]
  %v131 = vld [vmem:[%s0 + $0x1d0] sm:$0xf]
  %v132 = vld [vmem:[%s0 + $0x1d4] sm:$0xf]
  %v133 = vld [vmem:[%s0 + $0x1d8] sm:$0xf]
  %v134 = vld [vmem:[%s0 + $0x1dc] sm:$0xf]
  %v135 = vld [vmem:[%s0 + $0x1e0] sm:$0xf]
  %v136 = vld [vmem:[%s0 + $0x1e4] sm:$0xf]
  %v137 = vld [vmem:[%s0 + $0x1e8] sm:$0xf]
  %v138 = vld [vmem:[%s0 + $0x1ec] sm:$0xf]
  %v139 = vld [vmem:[%s0 + $0x1f0] sm:$0xf]
  %v140 = vld [vmem:[%s0 + $0x1f4] sm:$0xf]
  %v141 = vld [vmem:[%s0 + $0x1f8] sm:$0xf]
  %v142 = vld [vmem:[%s0 + $0x1fc] sm:$0xf]
  %v143 = vld [vmem:[%s1] sm:$0xf]
  %v144 = vld [vmem:[%s1 + $0x4] sm:$0xf]
  %v145 = vld [vmem:[%s1 + $0x8] sm:$0xf]
  %v146 = vld [vmem:[%s1 + $0xc] sm:$0xf]
  %v147 = vld [vmem:[%s1 + $0x10] sm:$0xf]
  %v148 = vld [vmem:[%s1 + $0x14] sm:$0xf]
  %v149 = vld [vmem:[%s1 + $0x18] sm:$0xf]
  %v150 = vld [vmem:[%s1 + $0x1c] sm:$0xf]
  %v151 = vld [vmem:[%s1 + $0x20] sm:$0xf]
  %v152 = vld [vmem:[%s1 + $0x24] sm:$0xf]
  %v153 = vld [vmem:[%s1 + $0x28] sm:$0xf]
  %v154 = vld [vmem:[%s1 + $0x2c] sm:$0xf]
  %v155 = vld [vmem:[%s1 + $0x30] sm:$0xf]
  %v156 = vld [vmem:[%s1 + $0x34] sm:$0xf]
  %v157 = vld [vmem:[%s1 + $0x38] sm:$0xf]
  %v158 = vld [vmem:[%s1 + $0x3c] sm:$0xf]
  %v159 = vld [vmem:[%s2] sm:$0x1]
  %v161 = vlaneseq
  %v162 = vshrl.u32 %v161, 7
  %v163 = vsub.s32 0, %v162
  %v164 = vrot.slane %v159, %v163
  %v294 = vunpack.c.l.b16 %v15
  %v295 = vunpack.c.l.b16 %v16
  %v296 = vunpack.c.l.b16 %v17
  %v297 = vunpack.c.l.b16 %v18
  %v298 = vunpack.c.l.b16 %v19
  %v299 = vunpack.c.l.b16 %v20
  %v300 = vunpack.c.l.b16 %v21
  %v301 = vunpack.c.l.b16 %v22
  %v302 = vunpack.c.l.b16 %v23
  %v303 = vunpack.c.l.b16 %v24
  %v304 = vunpack.c.l.b16 %v25
  %v305 = vunpack.c.l.b16 %v26
  %v306 = vunpack.c.l.b16 %v27
  %v307 = vunpack.c.l.b16 %v28
  %v308 = vunpack.c.l.b16 %v29
  %v309 = vunpack.c.l.b16 %v30
  %v310 = vunpack.c.l.b16 %v31
  %v311 = vunpack.c.l.b16 %v32
  %v312 = vunpack.c.l.b16 %v33
  %v313 = vunpack.c.l.b16 %v34
  %v314 = vunpack.c.l.b16 %v35
  %v315 = vunpack.c.l.b16 %v36
  %v316 = vunpack.c.l.b16 %v37
  %v317 = vunpack.c.l.b16 %v38
  %v318 = vunpack.c.l.b16 %v39
  %v319 = vunpack.c.l.b16 %v40
  %v320 = vunpack.c.l.b16 %v41
  %v321 = vunpack.c.l.b16 %v42
  %v322 = vunpack.c.l.b16 %v43
  %v323 = vunpack.c.l.b16 %v44
  %v324 = vunpack.c.l.b16 %v45
  %v325 = vunpack.c.l.b16 %v46
  %v326 = vunpack.c.l.b16 %v47
  %v327 = vunpack.c.l.b16 %v48
  %v328 = vunpack.c.l.b16 %v49
  %v329 = vunpack.c.l.b16 %v50
  %v330 = vunpack.c.l.b16 %v51
  %v331 = vunpack.c.l.b16 %v52
  %v332 = vunpack.c.l.b16 %v53
  %v333 = vunpack.c.l.b16 %v54
  %v334 = vunpack.c.l.b16 %v55
  %v335 = vunpack.c.l.b16 %v56
  %v336 = vunpack.c.l.b16 %v57
  %v337 = vunpack.c.l.b16 %v58
  %v338 = vunpack.c.l.b16 %v59
  %v339 = vunpack.c.l.b16 %v60
  %v340 = vunpack.c.l.b16 %v61
  %v341 = vunpack.c.l.b16 %v62
  %v342 = vunpack.c.l.b16 %v63
  %v343 = vunpack.c.l.b16 %v64
  %v344 = vunpack.c.l.b16 %v65
  %v345 = vunpack.c.l.b16 %v66
  %v346 = vunpack.c.l.b16 %v67
  %v347 = vunpack.c.l.b16 %v68
  %v348 = vunpack.c.l.b16 %v69
  %v349 = vunpack.c.l.b16 %v70
  %v350 = vunpack.c.l.b16 %v71
  %v351 = vunpack.c.l.b16 %v72
  %v352 = vunpack.c.l.b16 %v73
  %v353 = vunpack.c.l.b16 %v74
  %v354 = vunpack.c.l.b16 %v75
  %v355 = vunpack.c.l.b16 %v76
  %v356 = vunpack.c.l.b16 %v77
  %v357 = vunpack.c.l.b16 %v78
  %v358 = vunpack.c.l.b16 %v79
  %v359 = vunpack.c.l.b16 %v80
  %v360 = vunpack.c.l.b16 %v81
  %v361 = vunpack.c.l.b16 %v82
  %v362 = vunpack.c.l.b16 %v83
  %v363 = vunpack.c.l.b16 %v84
  %v364 = vunpack.c.l.b16 %v85
  %v365 = vunpack.c.l.b16 %v86
  %v366 = vunpack.c.l.b16 %v87
  %v367 = vunpack.c.l.b16 %v88
  %v368 = vunpack.c.l.b16 %v89
  %v369 = vunpack.c.l.b16 %v90
  %v370 = vunpack.c.l.b16 %v91
  %v371 = vunpack.c.l.b16 %v92
  %v372 = vunpack.c.l.b16 %v93
  %v373 = vunpack.c.l.b16 %v94
  %v374 = vunpack.c.l.b16 %v95
  %v375 = vunpack.c.l.b16 %v96
  %v376 = vunpack.c.l.b16 %v97
  %v377 = vunpack.c.l.b16 %v98
  %v378 = vunpack.c.l.b16 %v99
  %v379 = vunpack.c.l.b16 %v100
  %v380 = vunpack.c.l.b16 %v101
  %v381 = vunpack.c.l.b16 %v102
  %v382 = vunpack.c.l.b16 %v103
  %v383 = vunpack.c.l.b16 %v104
  %v384 = vunpack.c.l.b16 %v105
  %v385 = vunpack.c.l.b16 %v106
  %v386 = vunpack.c.l.b16 %v107
  %v387 = vunpack.c.l.b16 %v108
  %v388 = vunpack.c.l.b16 %v109
  %v389 = vunpack.c.l.b16 %v110
  %v390 = vunpack.c.l.b16 %v111
  %v391 = vunpack.c.l.b16 %v112
  %v392 = vunpack.c.l.b16 %v113
  %v393 = vunpack.c.l.b16 %v114
  %v394 = vunpack.c.l.b16 %v115
  %v395 = vunpack.c.l.b16 %v116
  %v396 = vunpack.c.l.b16 %v117
  %v397 = vunpack.c.l.b16 %v118
  %v398 = vunpack.c.l.b16 %v119
  %v399 = vunpack.c.l.b16 %v120
  %v400 = vunpack.c.l.b16 %v121
  %v401 = vunpack.c.l.b16 %v122
  %v402 = vunpack.c.l.b16 %v123
  %v403 = vunpack.c.l.b16 %v124
  %v404 = vunpack.c.l.b16 %v125
  %v405 = vunpack.c.l.b16 %v126
  %v406 = vunpack.c.l.b16 %v127
  %v407 = vunpack.c.l.b16 %v128
  %v408 = vunpack.c.l.b16 %v129
  %v409 = vunpack.c.l.b16 %v130
  %v410 = vunpack.c.l.b16 %v131
  %v411 = vunpack.c.l.b16 %v132
  %v412 = vunpack.c.l.b16 %v133
  %v413 = vunpack.c.l.b16 %v134
  %v414 = vunpack.c.l.b16 %v135
  %v415 = vunpack.c.l.b16 %v136
  %v416 = vunpack.c.l.b16 %v137
  %v417 = vunpack.c.l.b16 %v138
  %v418 = vunpack.c.l.b16 %v139
  %v419 = vunpack.c.l.b16 %v140
  %v420 = vunpack.c.l.b16 %v141
  %v421 = vunpack.c.l.b16 %v142
  %v422 = vpack.c.b16 %v295, %v294
  %v423 = vpack.c.b16 %v297, %v296
  %v424 = vpack.c.b16 %v299, %v298
  %v425 = vpack.c.b16 %v301, %v300
  %v426 = vpack.c.b16 %v303, %v302
  %v427 = vpack.c.b16 %v305, %v304
  %v428 = vpack.c.b16 %v307, %v306
  %v429 = vpack.c.b16 %v309, %v308
  %v430 = vpack.c.b16 %v311, %v310
  %v431 = vpack.c.b16 %v313, %v312
  %v432 = vpack.c.b16 %v315, %v314
  %v433 = vpack.c.b16 %v317, %v316
  %v434 = vpack.c.b16 %v319, %v318
  %v435 = vpack.c.b16 %v321, %v320
  %v436 = vpack.c.b16 %v323, %v322
  %v437 = vpack.c.b16 %v325, %v324
  %v438 = vpack.c.b16 %v327, %v326
  %v439 = vpack.c.b16 %v329, %v328
  %v440 = vpack.c.b16 %v331, %v330
  %v441 = vpack.c.b16 %v333, %v332
  %v442 = vpack.c.b16 %v335, %v334
  %v443 = vpack.c.b16 %v337, %v336
  %v444 = vpack.c.b16 %v339, %v338
  %v445 = vpack.c.b16 %v341, %v340
  %v446 = vpack.c.b16 %v343, %v342
  %v447 = vpack.c.b16 %v345, %v344
  %v448 = vpack.c.b16 %v347, %v346
  %v449 = vpack.c.b16 %v349, %v348
  %v450 = vpack.c.b16 %v351, %v350
  %v451 = vpack.c.b16 %v353, %v352
  %v452 = vpack.c.b16 %v355, %v354
  %v453 = vpack.c.b16 %v357, %v356
  %v454 = vpack.c.b16 %v359, %v358
  %v455 = vpack.c.b16 %v361, %v360
  %v456 = vpack.c.b16 %v363, %v362
  %v457 = vpack.c.b16 %v365, %v364
  %v458 = vpack.c.b16 %v367, %v366
  %v459 = vpack.c.b16 %v369, %v368
  %v460 = vpack.c.b16 %v371, %v370
  %v461 = vpack.c.b16 %v373, %v372
  %v462 = vpack.c.b16 %v375, %v374
  %v463 = vpack.c.b16 %v377, %v376
  %v464 = vpack.c.b16 %v379, %v378
  %v465 = vpack.c.b16 %v381, %v380
  %v466 = vpack.c.b16 %v383, %v382
  %v467 = vpack.c.b16 %v385, %v384
  %v468 = vpack.c.b16 %v387, %v386
  %v469 = vpack.c.b16 %v389, %v388
  %v470 = vpack.c.b16 %v391, %v390
  %v471 = vpack.c.b16 %v393, %v392
  %v472 = vpack.c.b16 %v395, %v394
  %v473 = vpack.c.b16 %v397, %v396
  %v474 = vpack.c.b16 %v399, %v398
  %v475 = vpack.c.b16 %v401, %v400
  %v476 = vpack.c.b16 %v403, %v402
  %v477 = vpack.c.b16 %v405, %v404
  %v478 = vpack.c.b16 %v407, %v406
  %v479 = vpack.c.b16 %v409, %v408
  %v480 = vpack.c.b16 %v411, %v410
  %v481 = vpack.c.b16 %v413, %v412
  %v482 = vpack.c.b16 %v415, %v414
  %v483 = vpack.c.b16 %v417, %v416
  %v484 = vpack.c.b16 %v419, %v418
  %v485 = vpack.c.b16 %v421, %v420
  %v566 = vunpack.c.l.b16 %v143
  %v567 = vunpack.c.l.b16 %v144
  %v568 = vunpack.c.l.b16 %v145
  %v569 = vunpack.c.l.b16 %v146
  %v570 = vunpack.c.l.b16 %v147
  %v571 = vunpack.c.l.b16 %v148
  %v572 = vunpack.c.l.b16 %v149
  %v573 = vunpack.c.l.b16 %v150
  %v574 = vunpack.c.l.b16 %v151
  %v575 = vunpack.c.l.b16 %v152
  %v576 = vunpack.c.l.b16 %v153
  %v577 = vunpack.c.l.b16 %v154
  %v578 = vunpack.c.l.b16 %v155
  %v579 = vunpack.c.l.b16 %v156
  %v580 = vunpack.c.l.b16 %v157
  %v581 = vunpack.c.l.b16 %v158
  %v582 = vpack.c.b16 %v567, %v566
  %v583 = vpack.c.b16 %v569, %v568
  %v584 = vpack.c.b16 %v571, %v570
  %v585 = vpack.c.b16 %v573, %v572
  %v586 = vpack.c.b16 %v575, %v574
  %v587 = vpack.c.b16 %v577, %v576
  %v588 = vpack.c.b16 %v579, %v578
  %v589 = vpack.c.b16 %v581, %v580
  %598 = vmatprep.subr.bf16.mxu0 0
  %599 = vmatpush1.bf16.msra.mxu0 %v582
  %600 = vmatprep.subr.bf16.mxu0 0
  %601 = vmatpush1.bf16.msra.mxu0 %v583
  %602 = vmatprep.subr.bf16.mxu0 0
  %603 = vmatpush1.bf16.msra.mxu0 %v584
  %604 = vmatprep.subr.bf16.mxu0 0
  %605 = vmatpush1.bf16.msra.mxu0 %v585
  %606 = vmatprep.subr.bf16.mxu0 0
  %607 = vmatpush1.bf16.msra.mxu0 %v586
  %608 = vmatprep.subr.bf16.mxu0 0
  %609 = vmatpush1.bf16.msra.mxu0 %v587
  %610 = vmatprep.subr.bf16.mxu0 0
  %611 = vmatpush1.bf16.msra.mxu0 %v588
  %612 = vmatprep.subr.bf16.mxu0 0
  %613 = vmatpush1.bf16.msra.mxu0 %v589
  %614 = vmatprep.subr.bf16.mxu0 0
  %615 = vmatpush1.bf16.msra.mxu0 0
  %616 = vmatprep.subr.bf16.mxu0 0
  %617 = vmatpush1.bf16.msra.mxu0 0
  %618 = vmatprep.subr.bf16.mxu0 0
  %619 = vmatpush1.bf16.msra.mxu0 0
  %620 = vmatprep.subr.bf16.mxu0 0
  %621 = vmatpush1.bf16.msra.mxu0 0
  %622 = vmatprep.subr.bf16.mxu0 0
  %623 = vmatpush1.bf16.msra.mxu0 0
  %624 = vmatprep.subr.bf16.mxu0 0
  %625 = vmatpush1.bf16.msra.mxu0 0
  %626 = vmatprep.subr.bf16.mxu0 0
  %627 = vmatpush1.bf16.msra.mxu0 0
  %628 = vmatprep.subr.bf16.mxu0 0
  %629 = vmatpush1.bf16.msra.mxu0 0
  %630 = vmatprep.mubr.bf16.mxu0 0
  %631 = vmatmul.mubr.bf16.gmra.mrb[0].mxu0 %v422
  %v632 = vpop.f32.mrb[0].mxu0
  %v633 = vadd.f32 %v164, %v632
  %v634 = vpop.f32.mrb[0].mxu0
  %v635 = vpop.f32.mrb[0].mxu0
  %v636 = vadd.f32 %v164, %v635
  %v637 = vpop.f32.mrb[0].mxu0
  %638 = vmatprep.mubr.bf16.mxu0 0
  %639 = vmatmul.mubr.bf16.gmra.mrb[0].mxu0 %v423
  %v640 = vpop.f32.mrb[0].mxu0
  %v641 = vadd.f32 %v164, %v640
  %v642 = vpop.f32.mrb[0].mxu0
  %v643 = vpop.f32.mrb[0].mxu0
  %v644 = vadd.f32 %v164, %v643
  %v645 = vpop.f32.mrb[0].mxu0
  %646 = vmatprep.mubr.bf16.mxu0 0
  %647 = vmatmul.mubr.bf16.gmra.mrb[0].mxu0 %v424
  %v648 = vpop.f32.mrb[0].mxu0
  %v649 = vadd.f32 %v164, %v648
  %v650 = vpop.f32.mrb[0].mxu0
  %v651 = vpop.f32.mrb[0].mxu0
  %v652 = vadd.f32 %v164, %v651
  %v653 = vpop.f32.mrb[0].mxu0
  %654 = vmatprep.mubr.bf16.mxu0 0
  %655 = vmatmul.mubr.bf16.gmra.mrb[0].mxu0 %v425
  %v656 = vpop.f32.mrb[0].mxu0
  %v657 = vadd.f32 %v164, %v656
  %v658 = vpop.f32.mrb[0].mxu0
  %v659 = vpop.f32.mrb[0].mxu0
  %v660 = vadd.f32 %v164, %v659
  %v661 = vpop.f32.mrb[0].mxu0
  %662 = vmatprep.mubr.bf16.mxu0 0
  %663 = vmatmul.mubr.bf16.gmra.mrb[0].mxu0 %v426
  %v664 = vpop.f32.mrb[0].mxu0
  %v665 = vadd.f32 %v164, %v664
  %v666 = vpop.f32.mrb[0].mxu0
  %v667 = vpop.f32.mrb[0].mxu0
  %v668 = vadd.f32 %v164, %v667
  %v669 = vpop.f32.mrb[0].mxu0
  %670 = vmatprep.mubr.bf16.mxu0 0
  %671 = vmatmul.mubr.bf16.gmra.mrb[0].mxu0 %v427
  %v672 = vpop.f32.mrb[0].mxu0
  %v673 = vadd.f32 %v164, %v672
  %v674 = vpop.f32.mrb[0].mxu0
  %v675 = vpop.f32.mrb[0].mxu0
  %v676 = vadd.f32 %v164, %v675
  %v677 = vpop.f32.mrb[0].mxu0
  %678 = vmatprep.mubr.bf16.mxu0 0
  %679 = vmatmul.mubr.bf16.gmra.mrb[0].mxu0 %v428
  %v680 = vpop.f32.mrb[0].mxu0
  %v681 = vadd.f32 %v164, %v680
  %v682 = vpop.f32.mrb[0].mxu0
  %v683 = vpop.f32.mrb[0].mxu0
  %v684 = vadd.f32 %v164, %v683
  %v685 = vpop.f32.mrb[0].mxu0
  %686 = vmatprep.mubr.bf16.mxu0 0
  %687 = vmatmul.mubr.bf16.gmra.mrb[0].mxu0 %v429
  %v688 = vpop.f32.mrb[0].mxu0
  %v689 = vadd.f32 %v164, %v688
  %v690 = vpop.f32.mrb[0].mxu0
  %v691 = vpop.f32.mrb[0].mxu0
  %v692 = vadd.f32 %v164, %v691
  %v693 = vpop.f32.mrb[0].mxu0
  %694 = vmatprep.mubr.bf16.mxu0 0
  %695 = vmatmul.mubr.bf16.gmra.mrb[0].mxu0 %v430
  %v696 = vpop.f32.mrb[0].mxu0
  %v697 = vadd.f32 %v164, %v696
  %v698 = vpop.f32.mrb[0].mxu0
  %v699 = vpop.f32.mrb[0].mxu0
  %v700 = vadd.f32 %v164, %v699
  %v701 = vpop.f32.mrb[0].mxu0
  %702 = vmatprep.mubr.bf16.mxu0 0
  %703 = vmatmul.mubr.bf16.gmra.mrb[0].mxu0 %v431
  %v704 = vpop.f32.mrb[0].mxu0
  %v705 = vadd.f32 %v164, %v704
  %v706 = vpop.f32.mrb[0].mxu0
  %v707 = vpop.f32.mrb[0].mxu0
  %v708 = vadd.f32 %v164, %v707
  %v709 = vpop.f32.mrb[0].mxu0
  %710 = vmatprep.mubr.bf16.mxu0 0
  %711 = vmatmul.mubr.bf16.gmra.mrb[0].mxu0 %v432
  %v712 = vpop.f32.mrb[0].mxu0
  %v713 = vadd.f32 %v164, %v712
  %v714 = vpop.f32.mrb[0].mxu0
  %v715 = vpop.f32.mrb[0].mxu0
  %v716 = vadd.f32 %v164, %v715
  %v717 = vpop.f32.mrb[0].mxu0
  %718 = vmatprep.mubr.bf16.mxu0 0
  %719 = vmatmul.mubr.bf16.gmra.mrb[0].mxu0 %v433
  %v720 = vpop.f32.mrb[0].mxu0
  %v721 = vadd.f32 %v164, %v720
  %v722 = vpop.f32.mrb[0].mxu0
  %v723 = vpop.f32.mrb[0].mxu0
  %v724 = vadd.f32 %v164, %v723
  %v725 = vpop.f32.mrb[0].mxu0
  %726 = vmatprep.mubr.bf16.mxu0 0
  %727 = vmatmul.mubr.bf16.gmra.mrb[0].mxu0 %v434
  %v728 = vpop.f32.mrb[0].mxu0
  %v729 = vadd.f32 %v164, %v728
  %v730 = vpop.f32.mrb[0].mxu0
  %v731 = vpop.f32.mrb[0].mxu0
  %v732 = vadd.f32 %v164, %v731
  %v733 = vpop.f32.mrb[0].mxu0
  %734 = vmatprep.mubr.bf16.mxu0 0
  %735 = vmatmul.mubr.bf16.gmra.mrb[0].mxu0 %v435
  %v736 = vpop.f32.mrb[0].mxu0
  %v737 = vadd.f32 %v164, %v736
  %v738 = vpop.f32.mrb[0].mxu0
  %v739 = vpop.f32.mrb[0].mxu0
  %v740 = vadd.f32 %v164, %v739
  %v741 = vpop.f32.mrb[0].mxu0
  %742 = vmatprep.mubr.bf16.mxu0 0
  %743 = vmatmul.mubr.bf16.gmra.mrb[0].mxu0 %v436
  %v744 = vpop.f32.mrb[0].mxu0
  %v745 = vadd.f32 %v164, %v744
  %v746 = vpop.f32.mrb[0].mxu0
  %v747 = vpop.f32.mrb[0].mxu0
  %v748 = vadd.f32 %v164, %v747
  %v749 = vpop.f32.mrb[0].mxu0
  %750 = vmatprep.mubr.bf16.mxu0 0
  %751 = vmatmul.mubr.bf16.gmra.mrb[0].mxu0 %v437
  %v752 = vpop.f32.mrb[0].mxu0
  %v753 = vadd.f32 %v164, %v752
  %v754 = vpop.f32.mrb[0].mxu0
  %v755 = vpop.f32.mrb[0].mxu0
  %v756 = vadd.f32 %v164, %v755
  %v757 = vpop.f32.mrb[0].mxu0
  %758 = vmatprep.mubr.bf16.mxu0 0
  %759 = vmatmul.mubr.bf16.gmra.mrb[0].mxu0 %v438
  %v760 = vpop.f32.mrb[0].mxu0
  %v761 = vadd.f32 %v164, %v760
  %v762 = vpop.f32.mrb[0].mxu0
  %v763 = vpop.f32.mrb[0].mxu0
  %v764 = vadd.f32 %v164, %v763
  %v765 = vpop.f32.mrb[0].mxu0
  %766 = vmatprep.mubr.bf16.mxu0 0
  %767 = vmatmul.mubr.bf16.gmra.mrb[0].mxu0 %v439
  %v768 = vpop.f32.mrb[0].mxu0
  %v769 = vadd.f32 %v164, %v768
  %v770 = vpop.f32.mrb[0].mxu0
  %v771 = vpop.f32.mrb[0].mxu0
  %v772 = vadd.f32 %v164, %v771
  %v773 = vpop.f32.mrb[0].mxu0
  %774 = vmatprep.mubr.bf16.mxu0 0
  %775 = vmatmul.mubr.bf16.gmra.mrb[0].mxu0 %v440
  %v776 = vpop.f32.mrb[0].mxu0
  %v777 = vadd.f32 %v164, %v776
  %v778 = vpop.f32.mrb[0].mxu0
  %v779 = vpop.f32.mrb[0].mxu0
  %v780 = vadd.f32 %v164, %v779
  %v781 = vpop.f32.mrb[0].mxu0
  %782 = vmatprep.mubr.bf16.mxu0 0
  %783 = vmatmul.mubr.bf16.gmra.mrb[0].mxu0 %v441
  %v784 = vpop.f32.mrb[0].mxu0
  %v785 = vadd.f32 %v164, %v784
  %v786 = vpop.f32.mrb[0].mxu0
  %v787 = vpop.f32.mrb[0].mxu0
  %v788 = vadd.f32 %v164, %v787
  %v789 = vpop.f32.mrb[0].mxu0
  %790 = vmatprep.mubr.bf16.mxu0 0
  %791 = vmatmul.mubr.bf16.gmra.mrb[0].mxu0 %v442
  %v792 = vpop.f32.mrb[0].mxu0
  %v793 = vadd.f32 %v164, %v792
  %v794 = vpop.f32.mrb[0].mxu0
  %v795 = vpop.f32.mrb[0].mxu0
  %v796 = vadd.f32 %v164, %v795
  %v797 = vpop.f32.mrb[0].mxu0
  %798 = vmatprep.mubr.bf16.mxu0 0
  %799 = vmatmul.mubr.bf16.gmra.mrb[0].mxu0 %v443
  %v800 = vpop.f32.mrb[0].mxu0
  %v801 = vadd.f32 %v164, %v800
  %v802 = vpop.f32.mrb[0].mxu0
  %v803 = vpop.f32.mrb[0].mxu0
  %v804 = vadd.f32 %v164, %v803
  %v805 = vpop.f32.mrb[0].mxu0
  %806 = vmatprep.mubr.bf16.mxu0 0
  %807 = vmatmul.mubr.bf16.gmra.mrb[0].mxu0 %v444
  %v808 = vpop.f32.mrb[0].mxu0
  %v809 = vadd.f32 %v164, %v808
  %v810 = vpop.f32.mrb[0].mxu0
  %v811 = vpop.f32.mrb[0].mxu0
  %v812 = vadd.f32 %v164, %v811
  %v813 = vpop.f32.mrb[0].mxu0
  %814 = vmatprep.mubr.bf16.mxu0 0
  %815 = vmatmul.mubr.bf16.gmra.mrb[0].mxu0 %v445
  %v816 = vpop.f32.mrb[0].mxu0
  %v817 = vadd.f32 %v164, %v816
  %v818 = vpop.f32.mrb[0].mxu0
  %v819 = vpop.f32.mrb[0].mxu0
  %v820 = vadd.f32 %v164, %v819
  %v821 = vpop.f32.mrb[0].mxu0
  %822 = vmatprep.mubr.bf16.mxu0 0
  %823 = vmatmul.mubr.bf16.gmra.mrb[0].mxu0 %v446
  %v824 = vpop.f32.mrb[0].mxu0
  %v825 = vadd.f32 %v164, %v824
  %v826 = vpop.f32.mrb[0].mxu0
  %v827 = vpop.f32.mrb[0].mxu0
  %v828 = vadd.f32 %v164, %v827
  %v829 = vpop.f32.mrb[0].mxu0
  %830 = vmatprep.mubr.bf16.mxu0 0
  %831 = vmatmul.mubr.bf16.gmra.mrb[0].mxu0 %v447
  %v832 = vpop.f32.mrb[0].mxu0
  %v833 = vadd.f32 %v164, %v832
  %v834 = vpop.f32.mrb[0].mxu0
  %v835 = vpop.f32.mrb[0].mxu0
  %v836 = vadd.f32 %v164, %v835
  %v837 = vpop.f32.mrb[0].mxu0
  %838 = vmatprep.mubr.bf16.mxu0 0
  %839 = vmatmul.mubr.bf16.gmra.mrb[0].mxu0 %v448
  %v840 = vpop.f32.mrb[0].mxu0
  %v841 = vadd.f32 %v164, %v840
  %v842 = vpop.f32.mrb[0].mxu0
  %v843 = vpop.f32.mrb[0].mxu0
  %v844 = vadd.f32 %v164, %v843
  %v845 = vpop.f32.mrb[0].mxu0
  %846 = vmatprep.mubr.bf16.mxu0 0
  %847 = vmatmul.mubr.bf16.gmra.mrb[0].mxu0 %v449
  %v848 = vpop.f32.mrb[0].mxu0
  %v849 = vadd.f32 %v164, %v848
  %v850 = vpop.f32.mrb[0].mxu0
  %v851 = vpop.f32.mrb[0].mxu0
  %v852 = vadd.f32 %v164, %v851
  %v853 = vpop.f32.mrb[0].mxu0
  %854 = vmatprep.mubr.bf16.mxu0 0
  %855 = vmatmul.mubr.bf16.gmra.mrb[0].mxu0 %v450
  %v856 = vpop.f32.mrb[0].mxu0
  %v857 = vadd.f32 %v164, %v856
  %v858 = vpop.f32.mrb[0].mxu0
  %v859 = vpop.f32.mrb[0].mxu0
  %v860 = vadd.f32 %v164, %v859
  %v861 = vpop.f32.mrb[0].mxu0
  %862 = vmatprep.mubr.bf16.mxu0 0
  %863 = vmatmul.mubr.bf16.gmra.mrb[0].mxu0 %v451
  %v864 = vpop.f32.mrb[0].mxu0
  %v865 = vadd.f32 %v164, %v864
  %v866 = vpop.f32.mrb[0].mxu0
  %v867 = vpop.f32.mrb[0].mxu0
  %v868 = vadd.f32 %v164, %v867
  %v869 = vpop.f32.mrb[0].mxu0
  %870 = vmatprep.mubr.bf16.mxu0 0
  %871 = vmatmul.mubr.bf16.gmra.mrb[0].mxu0 %v452
  %v872 = vpop.f32.mrb[0].mxu0
  %v873 = vadd.f32 %v164, %v872
  %v874 = vpop.f32.mrb[0].mxu0
  %v875 = vpop.f32.mrb[0].mxu0
  %v876 = vadd.f32 %v164, %v875
  %v877 = vpop.f32.mrb[0].mxu0
  %878 = vmatprep.mubr.bf16.mxu0 0
  %879 = vmatmul.mubr.bf16.gmra.mrb[0].mxu0 %v453
  %v880 = vpop.f32.mrb[0].mxu0
  %v881 = vadd.f32 %v164, %v880
  %v882 = vpop.f32.mrb[0].mxu0
  %v883 = vpop.f32.mrb[0].mxu0
  %v884 = vadd.f32 %v164, %v883
  %v885 = vpop.f32.mrb[0].mxu0
  %886 = vmatprep.mubr.bf16.mxu0 0
  %887 = vmatmul.mubr.bf16.gmra.mrb[0].mxu0 %v454
  %v888 = vpop.f32.mrb[0].mxu0
  %v889 = vadd.f32 %v164, %v888
  %v890 = vpop.f32.mrb[0].mxu0
  %v891 = vpop.f32.mrb[0].mxu0
  %v892 = vadd.f32 %v164, %v891
  %v893 = vpop.f32.mrb[0].mxu0
  %894 = vmatprep.mubr.bf16.mxu0 0
  %895 = vmatmul.mubr.bf16.gmra.mrb[0].mxu0 %v455
  %v896 = vpop.f32.mrb[0].mxu0
  %v897 = vadd.f32 %v164, %v896
  %v898 = vpop.f32.mrb[0].mxu0
  %v899 = vpop.f32.mrb[0].mxu0
  %v900 = vadd.f32 %v164, %v899
  %v901 = vpop.f32.mrb[0].mxu0
  %902 = vmatprep.mubr.bf16.mxu0 0
  %903 = vmatmul.mubr.bf16.gmra.mrb[0].mxu0 %v456
  %v904 = vpop.f32.mrb[0].mxu0
  %v905 = vadd.f32 %v164, %v904
  %v906 = vpop.f32.mrb[0].mxu0
  %v907 = vpop.f32.mrb[0].mxu0
  %v908 = vadd.f32 %v164, %v907
  %v909 = vpop.f32.mrb[0].mxu0
  %910 = vmatprep.mubr.bf16.mxu0 0
  %911 = vmatmul.mubr.bf16.gmra.mrb[0].mxu0 %v457
  %v912 = vpop.f32.mrb[0].mxu0
  %v913 = vadd.f32 %v164, %v912
  %v914 = vpop.f32.mrb[0].mxu0
  %v915 = vpop.f32.mrb[0].mxu0
  %v916 = vadd.f32 %v164, %v915
  %v917 = vpop.f32.mrb[0].mxu0
  %918 = vmatprep.mubr.bf16.mxu0 0
  %919 = vmatmul.mubr.bf16.gmra.mrb[0].mxu0 %v458
  %v920 = vpop.f32.mrb[0].mxu0
  %v921 = vadd.f32 %v164, %v920
  %v922 = vpop.f32.mrb[0].mxu0
  %v923 = vpop.f32.mrb[0].mxu0
  %v924 = vadd.f32 %v164, %v923
  %v925 = vpop.f32.mrb[0].mxu0
  %926 = vmatprep.mubr.bf16.mxu0 0
  %927 = vmatmul.mubr.bf16.gmra.mrb[0].mxu0 %v459
  %v928 = vpop.f32.mrb[0].mxu0
  %v929 = vadd.f32 %v164, %v928
  %v930 = vpop.f32.mrb[0].mxu0
  %v931 = vpop.f32.mrb[0].mxu0
  %v932 = vadd.f32 %v164, %v931
  %v933 = vpop.f32.mrb[0].mxu0
  %934 = vmatprep.mubr.bf16.mxu0 0
  %935 = vmatmul.mubr.bf16.gmra.mrb[0].mxu0 %v460
  %v936 = vpop.f32.mrb[0].mxu0
  %v937 = vadd.f32 %v164, %v936
  %v938 = vpop.f32.mrb[0].mxu0
  %v939 = vpop.f32.mrb[0].mxu0
  %v940 = vadd.f32 %v164, %v939
  %v941 = vpop.f32.mrb[0].mxu0
  %942 = vmatprep.mubr.bf16.mxu0 0
  %943 = vmatmul.mubr.bf16.gmra.mrb[0].mxu0 %v461
  %v944 = vpop.f32.mrb[0].mxu0
  %v945 = vadd.f32 %v164, %v944
  %v946 = vpop.f32.mrb[0].mxu0
  %v947 = vpop.f32.mrb[0].mxu0
  %v948 = vadd.f32 %v164, %v947
  %v949 = vpop.f32.mrb[0].mxu0
  %950 = vmatprep.mubr.bf16.mxu0 0
  %951 = vmatmul.mubr.bf16.gmra.mrb[0].mxu0 %v462
  %v952 = vpop.f32.mrb[0].mxu0
  %v953 = vadd.f32 %v164, %v952
  %v954 = vpop.f32.mrb[0].mxu0
  %v955 = vpop.f32.mrb[0].mxu0
  %v956 = vadd.f32 %v164, %v955
  %v957 = vpop.f32.mrb[0].mxu0
  %958 = vmatprep.mubr.bf16.mxu0 0
  %959 = vmatmul.mubr.bf16.gmra.mrb[0].mxu0 %v463
  %v960 = vpop.f32.mrb[0].mxu0
  %v961 = vadd.f32 %v164, %v960
  %v962 = vpop.f32.mrb[0].mxu0
  %v963 = vpop.f32.mrb[0].mxu0
  %v964 = vadd.f32 %v164, %v963
  %v965 = vpop.f32.mrb[0].mxu0
  %966 = vmatprep.mubr.bf16.mxu0 0
  %967 = vmatmul.mubr.bf16.gmra.mrb[0].mxu0 %v464
  %v968 = vpop.f32.mrb[0].mxu0
  %v969 = vadd.f32 %v164, %v968
  %v970 = vpop.f32.mrb[0].mxu0
  %v971 = vpop.f32.mrb[0].mxu0
  %v972 = vadd.f32 %v164, %v971
  %v973 = vpop.f32.mrb[0].mxu0
  %974 = vmatprep.mubr.bf16.mxu0 0
  %975 = vmatmul.mubr.bf16.gmra.mrb[0].mxu0 %v465
  %v976 = vpop.f32.mrb[0].mxu0
  %v977 = vadd.f32 %v164, %v976
  %v978 = vpop.f32.mrb[0].mxu0
  %v979 = vpop.f32.mrb[0].mxu0
  %v980 = vadd.f32 %v164, %v979
  %v981 = vpop.f32.mrb[0].mxu0
  %982 = vmatprep.mubr.bf16.mxu0 0
  %983 = vmatmul.mubr.bf16.gmra.mrb[0].mxu0 %v466
  %v984 = vpop.f32.mrb[0].mxu0
  %v985 = vadd.f32 %v164, %v984
  %v986 = vpop.f32.mrb[0].mxu0
  %v987 = vpop.f32.mrb[0].mxu0
  %v988 = vadd.f32 %v164, %v987
  %v989 = vpop.f32.mrb[0].mxu0
  %990 = vmatprep.mubr.bf16.mxu0 0
  %991 = vmatmul.mubr.bf16.gmra.mrb[0].mxu0 %v467
  %v992 = vpop.f32.mrb[0].mxu0
  %v993 = vadd.f32 %v164, %v992
  %v994 = vpop.f32.mrb[0].mxu0
  %v995 = vpop.f32.mrb[0].mxu0
  %v996 = vadd.f32 %v164, %v995
  %v997 = vpop.f32.mrb[0].mxu0
  %998 = vmatprep.mubr.bf16.mxu0 0
  %999 = vmatmul.mubr.bf16.gmra.mrb[0].mxu0 %v468
  %v1000 = vpop.f32.mrb[0].mxu0
  %v1001 = vadd.f32 %v164, %v1000
  %v1002 = vpop.f32.mrb[0].mxu0
  %v1003 = vpop.f32.mrb[0].mxu0
  %v1004 = vadd.f32 %v164, %v1003
  %v1005 = vpop.f32.mrb[0].mxu0
  %1006 = vmatprep.mubr.bf16.mxu0 0
  %1007 = vmatmul.mubr.bf16.gmra.mrb[0].mxu0 %v469
  %v1008 = vpop.f32.mrb[0].mxu0
  %v1009 = vadd.f32 %v164, %v1008
  %v1010 = vpop.f32.mrb[0].mxu0
  %v1011 = vpop.f32.mrb[0].mxu0
  %v1012 = vadd.f32 %v164, %v1011
  %v1013 = vpop.f32.mrb[0].mxu0
  %1014 = vmatprep.mubr.bf16.mxu0 0
  %1015 = vmatmul.mubr.bf16.gmra.mrb[0].mxu0 %v470
  %v1016 = vpop.f32.mrb[0].mxu0
  %v1017 = vadd.f32 %v164, %v1016
  %v1018 = vpop.f32.mrb[0].mxu0
  %v1019 = vpop.f32.mrb[0].mxu0
  %v1020 = vadd.f32 %v164, %v1019
  %v1021 = vpop.f32.mrb[0].mxu0
  %1022 = vmatprep.mubr.bf16.mxu0 0
  %1023 = vmatmul.mubr.bf16.gmra.mrb[0].mxu0 %v471
  %v1024 = vpop.f32.mrb[0].mxu0
  %v1025 = vadd.f32 %v164, %v1024
  %v1026 = vpop.f32.mrb[0].mxu0
  %v1027 = vpop.f32.mrb[0].mxu0
  %v1028 = vadd.f32 %v164, %v1027
  %v1029 = vpop.f32.mrb[0].mxu0
  %1030 = vmatprep.mubr.bf16.mxu0 0
  %1031 = vmatmul.mubr.bf16.gmra.mrb[0].mxu0 %v472
  %v1032 = vpop.f32.mrb[0].mxu0
  %v1033 = vadd.f32 %v164, %v1032
  %v1034 = vpop.f32.mrb[0].mxu0
  %v1035 = vpop.f32.mrb[0].mxu0
  %v1036 = vadd.f32 %v164, %v1035
  %v1037 = vpop.f32.mrb[0].mxu0
  %1038 = vmatprep.mubr.bf16.mxu0 0
  %1039 = vmatmul.mubr.bf16.gmra.mrb[0].mxu0 %v473
  %v1040 = vpop.f32.mrb[0].mxu0
  %v1041 = vadd.f32 %v164, %v1040
  %v1042 = vpop.f32.mrb[0].mxu0
  %v1043 = vpop.f32.mrb[0].mxu0
  %v1044 = vadd.f32 %v164, %v1043
  %v1045 = vpop.f32.mrb[0].mxu0
  %1046 = vmatprep.mubr.bf16.mxu0 0
  %1047 = vmatmul.mubr.bf16.gmra.mrb[0].mxu0 %v474
  %v1048 = vpop.f32.mrb[0].mxu0
  %v1049 = vadd.f32 %v164, %v1048
  %v1050 = vpop.f32.mrb[0].mxu0
  %v1051 = vpop.f32.mrb[0].mxu0
  %v1052 = vadd.f32 %v164, %v1051
  %v1053 = vpop.f32.mrb[0].mxu0
  %1054 = vmatprep.mubr.bf16.mxu0 0
  %1055 = vmatmul.mubr.bf16.gmra.mrb[0].mxu0 %v475
  %v1056 = vpop.f32.mrb[0].mxu0
  %v1057 = vadd.f32 %v164, %v1056
  %v1058 = vpop.f32.mrb[0].mxu0
  %v1059 = vpop.f32.mrb[0].mxu0
  %v1060 = vadd.f32 %v164, %v1059
  %v1061 = vpop.f32.mrb[0].mxu0
  %1062 = vmatprep.mubr.bf16.mxu0 0
  %1063 = vmatmul.mubr.bf16.gmra.mrb[0].mxu0 %v476
  %v1064 = vpop.f32.mrb[0].mxu0
  %v1065 = vadd.f32 %v164, %v1064
  %v1066 = vpop.f32.mrb[0].mxu0
  %v1067 = vpop.f32.mrb[0].mxu0
  %v1068 = vadd.f32 %v164, %v1067
  %v1069 = vpop.f32.mrb[0].mxu0
  %1070 = vmatprep.mubr.bf16.mxu0 0
  %1071 = vmatmul.mubr.bf16.gmra.mrb[0].mxu0 %v477
  %v1072 = vpop.f32.mrb[0].mxu0
  %v1073 = vadd.f32 %v164, %v1072
  %v1074 = vpop.f32.mrb[0].mxu0
  %v1075 = vpop.f32.mrb[0].mxu0
  %v1076 = vadd.f32 %v164, %v1075
  %v1077 = vpop.f32.mrb[0].mxu0
  %1078 = vmatprep.mubr.bf16.mxu0 0
  %1079 = vmatmul.mubr.bf16.gmra.mrb[0].mxu0 %v478
  %v1080 = vpop.f32.mrb[0].mxu0
  %v1081 = vadd.f32 %v164, %v1080
  %v1082 = vpop.f32.mrb[0].mxu0
  %v1083 = vpop.f32.mrb[0].mxu0
  %v1084 = vadd.f32 %v164, %v1083
  %v1085 = vpop.f32.mrb[0].mxu0
  %1086 = vmatprep.mubr.bf16.mxu0 0
  %1087 = vmatmul.mubr.bf16.gmra.mrb[0].mxu0 %v479
  %v1088 = vpop.f32.mrb[0].mxu0
  %v1089 = vadd.f32 %v164, %v1088
  %v1090 = vpop.f32.mrb[0].mxu0
  %v1091 = vpop.f32.mrb[0].mxu0
  %v1092 = vadd.f32 %v164, %v1091
  %v1093 = vpop.f32.mrb[0].mxu0
  %1094 = vmatprep.mubr.bf16.mxu0 0
  %1095 = vmatmul.mubr.bf16.gmra.mrb[0].mxu0 %v480
  %v1096 = vpop.f32.mrb[0].mxu0
  %v1097 = vadd.f32 %v164, %v1096
  %v1098 = vpop.f32.mrb[0].mxu0
  %v1099 = vpop.f32.mrb[0].mxu0
  %v1100 = vadd.f32 %v164, %v1099
  %v1101 = vpop.f32.mrb[0].mxu0
  %1102 = vmatprep.mubr.bf16.mxu0 0
  %1103 = vmatmul.mubr.bf16.gmra.mrb[0].mxu0 %v481
  %v1104 = vpop.f32.mrb[0].mxu0
  %v1105 = vadd.f32 %v164, %v1104
  %v1106 = vpop.f32.mrb[0].mxu0
  %v1107 = vpop.f32.mrb[0].mxu0
  %v1108 = vadd.f32 %v164, %v1107
  %v1109 = vpop.f32.mrb[0].mxu0
  %1110 = vmatprep.mubr.bf16.mxu0 0
  %1111 = vmatmul.mubr.bf16.gmra.mrb[0].mxu0 %v482
  %v1112 = vpop.f32.mrb[0].mxu0
  %v1113 = vadd.f32 %v164, %v1112
  %v1114 = vpop.f32.mrb[0].mxu0
  %v1115 = vpop.f32.mrb[0].mxu0
  %v1116 = vadd.f32 %v164, %v1115
  %v1117 = vpop.f32.mrb[0].mxu0
  %1118 = vmatprep.mubr.bf16.mxu0 0
  %1119 = vmatmul.mubr.bf16.gmra.mrb[0].mxu0 %v483
  %v1120 = vpop.f32.mrb[0].mxu0
  %v1121 = vadd.f32 %v164, %v1120
  %v1122 = vpop.f32.mrb[0].mxu0
  %v1123 = vpop.f32.mrb[0].mxu0
  %v1124 = vadd.f32 %v164, %v1123
  %v1125 = vpop.f32.mrb[0].mxu0
  %1126 = vmatprep.mubr.bf16.mxu0 0
  %1127 = vmatmul.mubr.bf16.gmra.mrb[0].mxu0 %v484
  %v1128 = vpop.f32.mrb[0].mxu0
  %v1129 = vadd.f32 %v164, %v1128
  %v1130 = vpop.f32.mrb[0].mxu0
  %v1131 = vpop.f32.mrb[0].mxu0
  %v1132 = vadd.f32 %v164, %v1131
  %v1133 = vpop.f32.mrb[0].mxu0
  %1134 = vmatprep.mubr.bf16.mxu0 0
  %1135 = vmatmul.mubr.bf16.gmra.mrb[0].mxu0 %v485
  %v1136 = vpop.f32.mrb[0].mxu0
  %v1137 = vadd.f32 %v164, %v1136
  %v1138 = vpop.f32.mrb[0].mxu0
  %v1139 = vpop.f32.mrb[0].mxu0
  %v1140 = vadd.f32 %v164, %v1139
  %v1141 = vpop.f32.mrb[0].mxu0
  %1142 = vdwg.mxu0
  %v1143 = vmax.f32 %v633, 0.0
  %v1144 = vmax.f32 %v636, 0.0
  %v1145 = vmax.f32 %v641, 0.0
  %v1146 = vmax.f32 %v644, 0.0
  %v1147 = vmax.f32 %v649, 0.0
  %v1148 = vmax.f32 %v652, 0.0
  %v1149 = vmax.f32 %v657, 0.0
  %v1150 = vmax.f32 %v660, 0.0
  %v1151 = vmax.f32 %v665, 0.0
  %v1152 = vmax.f32 %v668, 0.0
  %v1153 = vmax.f32 %v673, 0.0
  %v1154 = vmax.f32 %v676, 0.0
  %v1155 = vmax.f32 %v681, 0.0
  %v1156 = vmax.f32 %v684, 0.0
  %v1157 = vmax.f32 %v689, 0.0
  %v1158 = vmax.f32 %v692, 0.0
  %v1159 = vmax.f32 %v697, 0.0
  %v1160 = vmax.f32 %v700, 0.0
  %v1161 = vmax.f32 %v705, 0.0
  %v1162 = vmax.f32 %v708, 0.0
  %v1163 = vmax.f32 %v713, 0.0
  %v1164 = vmax.f32 %v716, 0.0
  %v1165 = vmax.f32 %v721, 0.0
  %v1166 = vmax.f32 %v724, 0.0
  %v1167 = vmax.f32 %v729, 0.0
  %v1168 = vmax.f32 %v732, 0.0
  %v1169 = vmax.f32 %v737, 0.0
  %v1170 = vmax.f32 %v740, 0.0
  %v1171 = vmax.f32 %v745, 0.0
  %v1172 = vmax.f32 %v748, 0.0
  %v1173 = vmax.f32 %v753, 0.0
  %v1174 = vmax.f32 %v756, 0.0
  %v1175 = vmax.f32 %v761, 0.0
  %v1176 = vmax.f32 %v764, 0.0
  %v1177 = vmax.f32 %v769, 0.0
  %v1178 = vmax.f32 %v772, 0.0
  %v1179 = vmax.f32 %v777, 0.0
  %v1180 = vmax.f32 %v780, 0.0
  %v1181 = vmax.f32 %v785, 0.0
  %v1182 = vmax.f32 %v788, 0.0
  %v1183 = vmax.f32 %v793, 0.0
  %v1184 = vmax.f32 %v796, 0.0
  %v1185 = vmax.f32 %v801, 0.0
  %v1186 = vmax.f32 %v804, 0.0
  %v1187 = vmax.f32 %v809, 0.0
  %v1188 = vmax.f32 %v812, 0.0
  %v1189 = vmax.f32 %v817, 0.0
  %v1190 = vmax.f32 %v820, 0.0
  %v1191 = vmax.f32 %v825, 0.0
  %v1192 = vmax.f32 %v828, 0.0
  %v1193 = vmax.f32 %v833, 0.0
  %v1194 = vmax.f32 %v836, 0.0
  %v1195 = vmax.f32 %v841, 0.0
  %v1196 = vmax.f32 %v844, 0.0
  %v1197 = vmax.f32 %v849, 0.0
  %v1198 = vmax.f32 %v852, 0.0
  %v1199 = vmax.f32 %v857, 0.0
  %v1200 = vmax.f32 %v860, 0.0
  %v1201 = vmax.f32 %v865, 0.0
  %v1202 = vmax.f32 %v868, 0.0
  %v1203 = vmax.f32 %v873, 0.0
  %v1204 = vmax.f32 %v876, 0.0
  %v1205 = vmax.f32 %v881, 0.0
  %v1206 = vmax.f32 %v884, 0.0
  %v1207 = vmax.f32 %v889, 0.0
  %v1208 = vmax.f32 %v892, 0.0
  %v1209 = vmax.f32 %v897, 0.0
  %v1210 = vmax.f32 %v900, 0.0
  %v1211 = vmax.f32 %v905, 0.0
  %v1212 = vmax.f32 %v908, 0.0
  %v1213 = vmax.f32 %v913, 0.0
  %v1214 = vmax.f32 %v916, 0.0
  %v1215 = vmax.f32 %v921, 0.0
  %v1216 = vmax.f32 %v924, 0.0
  %v1217 = vmax.f32 %v929, 0.0
  %v1218 = vmax.f32 %v932, 0.0
  %v1219 = vmax.f32 %v937, 0.0
  %v1220 = vmax.f32 %v940, 0.0
  %v1221 = vmax.f32 %v945, 0.0
  %v1222 = vmax.f32 %v948, 0.0
  %v1223 = vmax.f32 %v953, 0.0
  %v1224 = vmax.f32 %v956, 0.0
  %v1225 = vmax.f32 %v961, 0.0
  %v1226 = vmax.f32 %v964, 0.0
  %v1227 = vmax.f32 %v969, 0.0
  %v1228 = vmax.f32 %v972, 0.0
  %v1229 = vmax.f32 %v977, 0.0
  %v1230 = vmax.f32 %v980, 0.0
  %v1231 = vmax.f32 %v985, 0.0
  %v1232 = vmax.f32 %v988, 0.0
  %v1233 = vmax.f32 %v993, 0.0
  %v1234 = vmax.f32 %v996, 0.0
  %v1235 = vmax.f32 %v1001, 0.0
  %v1236 = vmax.f32 %v1004, 0.0
  %v1237 = vmax.f32 %v1009, 0.0
  %v1238 = vmax.f32 %v1012, 0.0
  %v1239 = vmax.f32 %v1017, 0.0
  %v1240 = vmax.f32 %v1020, 0.0
  %v1241 = vmax.f32 %v1025, 0.0
  %v1242 = vmax.f32 %v1028, 0.0
  %v1243 = vmax.f32 %v1033, 0.0
  %v1244 = vmax.f32 %v1036, 0.0
  %v1245 = vmax.f32 %v1041, 0.0
  %v1246 = vmax.f32 %v1044, 0.0
  %v1247 = vmax.f32 %v1049, 0.0
  %v1248 = vmax.f32 %v1052, 0.0
  %v1249 = vmax.f32 %v1057, 0.0
  %v1250 = vmax.f32 %v1060, 0.0
  %v1251 = vmax.f32 %v1065, 0.0
  %v1252 = vmax.f32 %v1068, 0.0
  %v1253 = vmax.f32 %v1073, 0.0
  %v1254 = vmax.f32 %v1076, 0.0
  %v1255 = vmax.f32 %v1081, 0.0
  %v1256 = vmax.f32 %v1084, 0.0
  %v1257 = vmax.f32 %v1089, 0.0
  %v1258 = vmax.f32 %v1092, 0.0
  %v1259 = vmax.f32 %v1097, 0.0
  %v1260 = vmax.f32 %v1100, 0.0
  %v1261 = vmax.f32 %v1105, 0.0
  %v1262 = vmax.f32 %v1108, 0.0
  %v1263 = vmax.f32 %v1113, 0.0
  %v1264 = vmax.f32 %v1116, 0.0
  %v1265 = vmax.f32 %v1121, 0.0
  %v1266 = vmax.f32 %v1124, 0.0
  %v1267 = vmax.f32 %v1129, 0.0
  %v1268 = vmax.f32 %v1132, 0.0
  %v1269 = vmax.f32 %v1137, 0.0
  %v1270 = vmax.f32 %v1140, 0.0
  %v1271 = vpack.c.bf16 %v1144, %v1143
  %v1272 = vpack.c.bf16 %v1146, %v1145
  %v1273 = vpack.c.bf16 %v1148, %v1147
  %v1274 = vpack.c.bf16 %v1150, %v1149
  %v1275 = vpack.c.bf16 %v1152, %v1151
  %v1276 = vpack.c.bf16 %v1154, %v1153
  %v1277 = vpack.c.bf16 %v1156, %v1155
  %v1278 = vpack.c.bf16 %v1158, %v1157
  %v1279 = vpack.c.bf16 %v1160, %v1159
  %v1280 = vpack.c.bf16 %v1162, %v1161
  %v1281 = vpack.c.bf16 %v1164, %v1163
  %v1282 = vpack.c.bf16 %v1166, %v1165
  %v1283 = vpack.c.bf16 %v1168, %v1167
  %v1284 = vpack.c.bf16 %v1170, %v1169
  %v1285 = vpack.c.bf16 %v1172, %v1171
  %v1286 = vpack.c.bf16 %v1174, %v1173
  %v1287 = vpack.c.bf16 %v1176, %v1175
  %v1288 = vpack.c.bf16 %v1178, %v1177
  %v1289 = vpack.c.bf16 %v1180, %v1179
  %v1290 = vpack.c.bf16 %v1182, %v1181
  %v1291 = vpack.c.bf16 %v1184, %v1183
  %v1292 = vpack.c.bf16 %v1186, %v1185
  %v1293 = vpack.c.bf16 %v1188, %v1187
  %v1294 = vpack.c.bf16 %v1190, %v1189
  %v1295 = vpack.c.bf16 %v1192, %v1191
  %v1296 = vpack.c.bf16 %v1194, %v1193
  %v1297 = vpack.c.bf16 %v1196, %v1195
  %v1298 = vpack.c.bf16 %v1198, %v1197
  %v1299 = vpack.c.bf16 %v1200, %v1199
  %v1300 = vpack.c.bf16 %v1202, %v1201
  %v1301 = vpack.c.bf16 %v1204, %v1203
  %v1302 = vpack.c.bf16 %v1206, %v1205
  %v1303 = vpack.c.bf16 %v1208, %v1207
  %v1304 = vpack.c.bf16 %v1210, %v1209
  %v1305 = vpack.c.bf16 %v1212, %v1211
  %v1306 = vpack.c.bf16 %v1214, %v1213
  %v1307 = vpack.c.bf16 %v1216, %v1215
  %v1308 = vpack.c.bf16 %v1218, %v1217
  %v1309 = vpack.c.bf16 %v1220, %v1219
  %v1310 = vpack.c.bf16 %v1222, %v1221
  %v1311 = vpack.c.bf16 %v1224, %v1223
  %v1312 = vpack.c.bf16 %v1226, %v1225
  %v1313 = vpack.c.bf16 %v1228, %v1227
  %v1314 = vpack.c.bf16 %v1230, %v1229
  %v1315 = vpack.c.bf16 %v1232, %v1231
  %v1316 = vpack.c.bf16 %v1234, %v1233
  %v1317 = vpack.c.bf16 %v1236, %v1235
  %v1318 = vpack.c.bf16 %v1238, %v1237
  %v1319 = vpack.c.bf16 %v1240, %v1239
  %v1320 = vpack.c.bf16 %v1242, %v1241
  %v1321 = vpack.c.bf16 %v1244, %v1243
  %v1322 = vpack.c.bf16 %v1246, %v1245
  %v1323 = vpack.c.bf16 %v1248, %v1247
  %v1324 = vpack.c.bf16 %v1250, %v1249
  %v1325 = vpack.c.bf16 %v1252, %v1251
  %v1326 = vpack.c.bf16 %v1254, %v1253
  %v1327 = vpack.c.bf16 %v1256, %v1255
  %v1328 = vpack.c.bf16 %v1258, %v1257
  %v1329 = vpack.c.bf16 %v1260, %v1259
  %v1330 = vpack.c.bf16 %v1262, %v1261
  %v1331 = vpack.c.bf16 %v1264, %v1263
  %v1332 = vpack.c.bf16 %v1266, %v1265
  %v1333 = vpack.c.bf16 %v1268, %v1267
  %v1334 = vpack.c.bf16 %v1270, %v1269
  %v1399 = vunpack.c.l.b16 %v1271
  %v1400 = vunpack.c.h.b16 %v1271
  %v1401 = vunpack.c.l.b16 %v1272
  %v1402 = vunpack.c.h.b16 %v1272
  %v1403 = vunpack.c.l.b16 %v1273
  %v1404 = vunpack.c.h.b16 %v1273
  %v1405 = vunpack.c.l.b16 %v1274
  %v1406 = vunpack.c.h.b16 %v1274
  %v1407 = vunpack.c.l.b16 %v1275
  %v1408 = vunpack.c.h.b16 %v1275
  %v1409 = vunpack.c.l.b16 %v1276
  %v1410 = vunpack.c.h.b16 %v1276
  %v1411 = vunpack.c.l.b16 %v1277
  %v1412 = vunpack.c.h.b16 %v1277
  %v1413 = vunpack.c.l.b16 %v1278
  %v1414 = vunpack.c.h.b16 %v1278
  %v1415 = vunpack.c.l.b16 %v1279
  %v1416 = vunpack.c.h.b16 %v1279
  %v1417 = vunpack.c.l.b16 %v1280
  %v1418 = vunpack.c.h.b16 %v1280
  %v1419 = vunpack.c.l.b16 %v1281
  %v1420 = vunpack.c.h.b16 %v1281
  %v1421 = vunpack.c.l.b16 %v1282
  %v1422 = vunpack.c.h.b16 %v1282
  %v1423 = vunpack.c.l.b16 %v1283
  %v1424 = vunpack.c.h.b16 %v1283
  %v1425 = vunpack.c.l.b16 %v1284
  %v1426 = vunpack.c.h.b16 %v1284
  %v1427 = vunpack.c.l.b16 %v1285
  %v1428 = vunpack.c.h.b16 %v1285
  %v1429 = vunpack.c.l.b16 %v1286
  %v1430 = vunpack.c.h.b16 %v1286
  %v1431 = vunpack.c.l.b16 %v1287
  %v1432 = vunpack.c.h.b16 %v1287
  %v1433 = vunpack.c.l.b16 %v1288
  %v1434 = vunpack.c.h.b16 %v1288
  %v1435 = vunpack.c.l.b16 %v1289
  %v1436 = vunpack.c.h.b16 %v1289
  %v1437 = vunpack.c.l.b16 %v1290
  %v1438 = vunpack.c.h.b16 %v1290
  %v1439 = vunpack.c.l.b16 %v1291
  %v1440 = vunpack.c.h.b16 %v1291
  %v1441 = vunpack.c.l.b16 %v1292
  %v1442 = vunpack.c.h.b16 %v1292
  %v1443 = vunpack.c.l.b16 %v1293
  %v1444 = vunpack.c.h.b16 %v1293
  %v1445 = vunpack.c.l.b16 %v1294
  %v1446 = vunpack.c.h.b16 %v1294
  %v1447 = vunpack.c.l.b16 %v1295
  %v1448 = vunpack.c.h.b16 %v1295
  %v1449 = vunpack.c.l.b16 %v1296
  %v1450 = vunpack.c.h.b16 %v1296
  %v1451 = vunpack.c.l.b16 %v1297
  %v1452 = vunpack.c.h.b16 %v1297
  %v1453 = vunpack.c.l.b16 %v1298
  %v1454 = vunpack.c.h.b16 %v1298
  %v1455 = vunpack.c.l.b16 %v1299
  %v1456 = vunpack.c.h.b16 %v1299
  %v1457 = vunpack.c.l.b16 %v1300
  %v1458 = vunpack.c.h.b16 %v1300
  %v1459 = vunpack.c.l.b16 %v1301
  %v1460 = vunpack.c.h.b16 %v1301
  %v1461 = vunpack.c.l.b16 %v1302
  %v1462 = vunpack.c.h.b16 %v1302
  %v1463 = vunpack.c.l.b16 %v1303
  %v1464 = vunpack.c.h.b16 %v1303
  %v1465 = vunpack.c.l.b16 %v1304
  %v1466 = vunpack.c.h.b16 %v1304
  %v1467 = vunpack.c.l.b16 %v1305
  %v1468 = vunpack.c.h.b16 %v1305
  %v1469 = vunpack.c.l.b16 %v1306
  %v1470 = vunpack.c.h.b16 %v1306
  %v1471 = vunpack.c.l.b16 %v1307
  %v1472 = vunpack.c.h.b16 %v1307
  %v1473 = vunpack.c.l.b16 %v1308
  %v1474 = vunpack.c.h.b16 %v1308
  %v1475 = vunpack.c.l.b16 %v1309
  %v1476 = vunpack.c.h.b16 %v1309
  %v1477 = vunpack.c.l.b16 %v1310
  %v1478 = vunpack.c.h.b16 %v1310
  %v1479 = vunpack.c.l.b16 %v1311
  %v1480 = vunpack.c.h.b16 %v1311
  %v1481 = vunpack.c.l.b16 %v1312
  %v1482 = vunpack.c.h.b16 %v1312
  %v1483 = vunpack.c.l.b16 %v1313
  %v1484 = vunpack.c.h.b16 %v1313
  %v1485 = vunpack.c.l.b16 %v1314
  %v1486 = vunpack.c.h.b16 %v1314
  %v1487 = vunpack.c.l.b16 %v1315
  %v1488 = vunpack.c.h.b16 %v1315
  %v1489 = vunpack.c.l.b16 %v1316
  %v1490 = vunpack.c.h.b16 %v1316
  %v1491 = vunpack.c.l.b16 %v1317
  %v1492 = vunpack.c.h.b16 %v1317
  %v1493 = vunpack.c.l.b16 %v1318
  %v1494 = vunpack.c.h.b16 %v1318
  %v1495 = vunpack.c.l.b16 %v1319
  %v1496 = vunpack.c.h.b16 %v1319
  %v1497 = vunpack.c.l.b16 %v1320
  %v1498 = vunpack.c.h.b16 %v1320
  %v1499 = vunpack.c.l.b16 %v1321
  %v1500 = vunpack.c.h.b16 %v1321
  %v1501 = vunpack.c.l.b16 %v1322
  %v1502 = vunpack.c.h.b16 %v1322
  %v1503 = vunpack.c.l.b16 %v1323
  %v1504 = vunpack.c.h.b16 %v1323
  %v1505 = vunpack.c.l.b16 %v1324
  %v1506 = vunpack.c.h.b16 %v1324
  %v1507 = vunpack.c.l.b16 %v1325
  %v1508 = vunpack.c.h.b16 %v1325
  %v1509 = vunpack.c.l.b16 %v1326
  %v1510 = vunpack.c.h.b16 %v1326
  %v1511 = vunpack.c.l.b16 %v1327
  %v1512 = vunpack.c.h.b16 %v1327
  %v1513 = vunpack.c.l.b16 %v1328
  %v1514 = vunpack.c.h.b16 %v1328
  %v1515 = vunpack.c.l.b16 %v1329
  %v1516 = vunpack.c.h.b16 %v1329
  %v1517 = vunpack.c.l.b16 %v1330
  %v1518 = vunpack.c.h.b16 %v1330
  %v1519 = vunpack.c.l.b16 %v1331
  %v1520 = vunpack.c.h.b16 %v1331
  %v1521 = vunpack.c.l.b16 %v1332
  %v1522 = vunpack.c.h.b16 %v1332
  %v1523 = vunpack.c.l.b16 %v1333
  %v1524 = vunpack.c.h.b16 %v1333
  %v1525 = vunpack.c.l.b16 %v1334
  %v1526 = vunpack.c.h.b16 %v1334
  %v1527 = vpack.c.b16 %v1399, %v1399
  %v1528 = vpack.c.b16 %v1400, %v1400
  %v1529 = vpack.c.b16 %v1401, %v1401
  %v1530 = vpack.c.b16 %v1402, %v1402
  %v1531 = vpack.c.b16 %v1403, %v1403
  %v1532 = vpack.c.b16 %v1404, %v1404
  %v1533 = vpack.c.b16 %v1405, %v1405
  %v1534 = vpack.c.b16 %v1406, %v1406
  %v1535 = vpack.c.b16 %v1407, %v1407
  %v1536 = vpack.c.b16 %v1408, %v1408
  %v1537 = vpack.c.b16 %v1409, %v1409
  %v1538 = vpack.c.b16 %v1410, %v1410
  %v1539 = vpack.c.b16 %v1411, %v1411
  %v1540 = vpack.c.b16 %v1412, %v1412
  %v1541 = vpack.c.b16 %v1413, %v1413
  %v1542 = vpack.c.b16 %v1414, %v1414
  %v1543 = vpack.c.b16 %v1415, %v1415
  %v1544 = vpack.c.b16 %v1416, %v1416
  %v1545 = vpack.c.b16 %v1417, %v1417
  %v1546 = vpack.c.b16 %v1418, %v1418
  %v1547 = vpack.c.b16 %v1419, %v1419
  %v1548 = vpack.c.b16 %v1420, %v1420
  %v1549 = vpack.c.b16 %v1421, %v1421
  %v1550 = vpack.c.b16 %v1422, %v1422
  %v1551 = vpack.c.b16 %v1423, %v1423
  %v1552 = vpack.c.b16 %v1424, %v1424
  %v1553 = vpack.c.b16 %v1425, %v1425
  %v1554 = vpack.c.b16 %v1426, %v1426
  %v1555 = vpack.c.b16 %v1427, %v1427
  %v1556 = vpack.c.b16 %v1428, %v1428
  %v1557 = vpack.c.b16 %v1429, %v1429
  %v1558 = vpack.c.b16 %v1430, %v1430
  %v1559 = vpack.c.b16 %v1431, %v1431
  %v1560 = vpack.c.b16 %v1432, %v1432
  %v1561 = vpack.c.b16 %v1433, %v1433
  %v1562 = vpack.c.b16 %v1434, %v1434
  %v1563 = vpack.c.b16 %v1435, %v1435
  %v1564 = vpack.c.b16 %v1436, %v1436
  %v1565 = vpack.c.b16 %v1437, %v1437
  %v1566 = vpack.c.b16 %v1438, %v1438
  %v1567 = vpack.c.b16 %v1439, %v1439
  %v1568 = vpack.c.b16 %v1440, %v1440
  %v1569 = vpack.c.b16 %v1441, %v1441
  %v1570 = vpack.c.b16 %v1442, %v1442
  %v1571 = vpack.c.b16 %v1443, %v1443
  %v1572 = vpack.c.b16 %v1444, %v1444
  %v1573 = vpack.c.b16 %v1445, %v1445
  %v1574 = vpack.c.b16 %v1446, %v1446
  %v1575 = vpack.c.b16 %v1447, %v1447
  %v1576 = vpack.c.b16 %v1448, %v1448
  %v1577 = vpack.c.b16 %v1449, %v1449
  %v1578 = vpack.c.b16 %v1450, %v1450
  %v1579 = vpack.c.b16 %v1451, %v1451
  %v1580 = vpack.c.b16 %v1452, %v1452
  %v1581 = vpack.c.b16 %v1453, %v1453
  %v1582 = vpack.c.b16 %v1454, %v1454
  %v1583 = vpack.c.b16 %v1455, %v1455
  %v1584 = vpack.c.b16 %v1456, %v1456
  %v1585 = vpack.c.b16 %v1457, %v1457
  %v1586 = vpack.c.b16 %v1458, %v1458
  %v1587 = vpack.c.b16 %v1459, %v1459
  %v1588 = vpack.c.b16 %v1460, %v1460
  %v1589 = vpack.c.b16 %v1461, %v1461
  %v1590 = vpack.c.b16 %v1462, %v1462
  %v1591 = vpack.c.b16 %v1463, %v1463
  %v1592 = vpack.c.b16 %v1464, %v1464
  %v1593 = vpack.c.b16 %v1465, %v1465
  %v1594 = vpack.c.b16 %v1466, %v1466
  %v1595 = vpack.c.b16 %v1467, %v1467
  %v1596 = vpack.c.b16 %v1468, %v1468
  %v1597 = vpack.c.b16 %v1469, %v1469
  %v1598 = vpack.c.b16 %v1470, %v1470
  %v1599 = vpack.c.b16 %v1471, %v1471
  %v1600 = vpack.c.b16 %v1472, %v1472
  %v1601 = vpack.c.b16 %v1473, %v1473
  %v1602 = vpack.c.b16 %v1474, %v1474
  %v1603 = vpack.c.b16 %v1475, %v1475
  %v1604 = vpack.c.b16 %v1476, %v1476
  %v1605 = vpack.c.b16 %v1477, %v1477
  %v1606 = vpack.c.b16 %v1478, %v1478
  %v1607 = vpack.c.b16 %v1479, %v1479
  %v1608 = vpack.c.b16 %v1480, %v1480
  %v1609 = vpack.c.b16 %v1481, %v1481
  %v1610 = vpack.c.b16 %v1482, %v1482
  %v1611 = vpack.c.b16 %v1483, %v1483
  %v1612 = vpack.c.b16 %v1484, %v1484
  %v1613 = vpack.c.b16 %v1485, %v1485
  %v1614 = vpack.c.b16 %v1486, %v1486
  %v1615 = vpack.c.b16 %v1487, %v1487
  %v1616 = vpack.c.b16 %v1488, %v1488
  %v1617 = vpack.c.b16 %v1489, %v1489
  %v1618 = vpack.c.b16 %v1490, %v1490
  %v1619 = vpack.c.b16 %v1491, %v1491
  %v1620 = vpack.c.b16 %v1492, %v1492
  %v1621 = vpack.c.b16 %v1493, %v1493
  %v1622 = vpack.c.b16 %v1494, %v1494
  %v1623 = vpack.c.b16 %v1495, %v1495
  %v1624 = vpack.c.b16 %v1496, %v1496
  %v1625 = vpack.c.b16 %v1497, %v1497
  %v1626 = vpack.c.b16 %v1498, %v1498
  %v1627 = vpack.c.b16 %v1499, %v1499
  %v1628 = vpack.c.b16 %v1500, %v1500
  %v1629 = vpack.c.b16 %v1501, %v1501
  %v1630 = vpack.c.b16 %v1502, %v1502
  %v1631 = vpack.c.b16 %v1503, %v1503
  %v1632 = vpack.c.b16 %v1504, %v1504
  %v1633 = vpack.c.b16 %v1505, %v1505
  %v1634 = vpack.c.b16 %v1506, %v1506
  %v1635 = vpack.c.b16 %v1507, %v1507
  %v1636 = vpack.c.b16 %v1508, %v1508
  %v1637 = vpack.c.b16 %v1509, %v1509
  %v1638 = vpack.c.b16 %v1510, %v1510
  %v1639 = vpack.c.b16 %v1511, %v1511
  %v1640 = vpack.c.b16 %v1512, %v1512
  %v1641 = vpack.c.b16 %v1513, %v1513
  %v1642 = vpack.c.b16 %v1514, %v1514
  %v1643 = vpack.c.b16 %v1515, %v1515
  %v1644 = vpack.c.b16 %v1516, %v1516
  %v1645 = vpack.c.b16 %v1517, %v1517
  %v1646 = vpack.c.b16 %v1518, %v1518
  %v1647 = vpack.c.b16 %v1519, %v1519
  %v1648 = vpack.c.b16 %v1520, %v1520
  %v1649 = vpack.c.b16 %v1521, %v1521
  %v1650 = vpack.c.b16 %v1522, %v1522
  %v1651 = vpack.c.b16 %v1523, %v1523
  %v1652 = vpack.c.b16 %v1524, %v1524
  %v1653 = vpack.c.b16 %v1525, %v1525
  %v1654 = vpack.c.b16 %v1526, %v1526
  %1783 = vst [vmem:[%s3] sm:$0xf] %v1527
  %1784 = vst [vmem:[%s3 + $0x4] sm:$0xf] %v1528
  %1785 = vst [vmem:[%s3 + $0x8] sm:$0xf] %v1529
  %1786 = vst [vmem:[%s3 + $0xc] sm:$0xf] %v1530
  %1787 = vst [vmem:[%s3 + $0x10] sm:$0xf] %v1531
  %1788 = vst [vmem:[%s3 + $0x14] sm:$0xf] %v1532
  %1789 = vst [vmem:[%s3 + $0x18] sm:$0xf] %v1533
  %1790 = vst [vmem:[%s3 + $0x1c] sm:$0xf] %v1534
  %1791 = vst [vmem:[%s3 + $0x20] sm:$0xf] %v1535
  %1792 = vst [vmem:[%s3 + $0x24] sm:$0xf] %v1536
  %1793 = vst [vmem:[%s3 + $0x28] sm:$0xf] %v1537
  %1794 = vst [vmem:[%s3 + $0x2c] sm:$0xf] %v1538
  %1795 = vst [vmem:[%s3 + $0x30] sm:$0xf] %v1539
  %1796 = vst [vmem:[%s3 + $0x34] sm:$0xf] %v1540
  %1797 = vst [vmem:[%s3 + $0x38] sm:$0xf] %v1541
  %1798 = vst [vmem:[%s3 + $0x3c] sm:$0xf] %v1542
  %1799 = vst [vmem:[%s3 + $0x40] sm:$0xf] %v1543
  %1800 = vst [vmem:[%s3 + $0x44] sm:$0xf] %v1544
  %1801 = vst [vmem:[%s3 + $0x48] sm:$0xf] %v1545
  %1802 = vst [vmem:[%s3 + $0x4c] sm:$0xf] %v1546
  %1803 = vst [vmem:[%s3 + $0x50] sm:$0xf] %v1547
  %1804 = vst [vmem:[%s3 + $0x54] sm:$0xf] %v1548
  %1805 = vst [vmem:[%s3 + $0x58] sm:$0xf] %v1549
  %1806 = vst [vmem:[%s3 + $0x5c] sm:$0xf] %v1550
  %1807 = vst [vmem:[%s3 + $0x60] sm:$0xf] %v1551
  %1808 = vst [vmem:[%s3 + $0x64] sm:$0xf] %v1552
  %1809 = vst [vmem:[%s3 + $0x68] sm:$0xf] %v1553
  %1810 = vst [vmem:[%s3 + $0x6c] sm:$0xf] %v1554
  %1811 = vst [vmem:[%s3 + $0x70] sm:$0xf] %v1555
  %1812 = vst [vmem:[%s3 + $0x74] sm:$0xf] %v1556
  %1813 = vst [vmem:[%s3 + $0x78] sm:$0xf] %v1557
  %1814 = vst [vmem:[%s3 + $0x7c] sm:$0xf] %v1558
  %1815 = vst [vmem:[%s3 + $0x80] sm:$0xf] %v1559
  %1816 = vst [vmem:[%s3 + $0x84] sm:$0xf] %v1560
  %1817 = vst [vmem:[%s3 + $0x88] sm:$0xf] %v1561
  %1818 = vst [vmem:[%s3 + $0x8c] sm:$0xf] %v1562
  %1819 = vst [vmem:[%s3 + $0x90] sm:$0xf] %v1563
  %1820 = vst [vmem:[%s3 + $0x94] sm:$0xf] %v1564
  %1821 = vst [vmem:[%s3 + $0x98] sm:$0xf] %v1565
  %1822 = vst [vmem:[%s3 + $0x9c] sm:$0xf] %v1566
  %1823 = vst [vmem:[%s3 + $0xa0] sm:$0xf] %v1567
  %1824 = vst [vmem:[%s3 + $0xa4] sm:$0xf] %v1568
  %1825 = vst [vmem:[%s3 + $0xa8] sm:$0xf] %v1569
  %1826 = vst [vmem:[%s3 + $0xac] sm:$0xf] %v1570
  %1827 = vst [vmem:[%s3 + $0xb0] sm:$0xf] %v1571
  %1828 = vst [vmem:[%s3 + $0xb4] sm:$0xf] %v1572
  %1829 = vst [vmem:[%s3 + $0xb8] sm:$0xf] %v1573
  %1830 = vst [vmem:[%s3 + $0xbc] sm:$0xf] %v1574
  %1831 = vst [vmem:[%s3 + $0xc0] sm:$0xf] %v1575
  %1832 = vst [vmem:[%s3 + $0xc4] sm:$0xf] %v1576
  %1833 = vst [vmem:[%s3 + $0xc8] sm:$0xf] %v1577
  %1834 = vst [vmem:[%s3 + $0xcc] sm:$0xf] %v1578
  %1835 = vst [vmem:[%s3 + $0xd0] sm:$0xf] %v1579
  %1836 = vst [vmem:[%s3 + $0xd4] sm:$0xf] %v1580
  %1837 = vst [vmem:[%s3 + $0xd8] sm:$0xf] %v1581
  %1838 = vst [vmem:[%s3 + $0xdc] sm:$0xf] %v1582
  %1839 = vst [vmem:[%s3 + $0xe0] sm:$0xf] %v1583
  %1840 = vst [vmem:[%s3 + $0xe4] sm:$0xf] %v1584
  %1841 = vst [vmem:[%s3 + $0xe8] sm:$0xf] %v1585
  %1842 = vst [vmem:[%s3 + $0xec] sm:$0xf] %v1586
  %1843 = vst [vmem:[%s3 + $0xf0] sm:$0xf] %v1587
  %1844 = vst [vmem:[%s3 + $0xf4] sm:$0xf] %v1588
  %1845 = vst [vmem:[%s3 + $0xf8] sm:$0xf] %v1589
  %1846 = vst [vmem:[%s3 + $0xfc] sm:$0xf] %v1590
  %1847 = vst [vmem:[%s3 + $0x100] sm:$0xf] %v1591
  %1848 = vst [vmem:[%s3 + $0x104] sm:$0xf] %v1592
  %1849 = vst [vmem:[%s3 + $0x108] sm:$0xf] %v1593
  %1850 = vst [vmem:[%s3 + $0x10c] sm:$0xf] %v1594
  %1851 = vst [vmem:[%s3 + $0x110] sm:$0xf] %v1595
  %1852 = vst [vmem:[%s3 + $0x114] sm:$0xf] %v1596
  %1853 = vst [vmem:[%s3 + $0x118] sm:$0xf] %v1597
  %1854 = vst [vmem:[%s3 + $0x11c] sm:$0xf] %v1598
  %1855 = vst [vmem:[%s3 + $0x120] sm:$0xf] %v1599
  %1856 = vst [vmem:[%s3 + $0x124] sm:$0xf] %v1600
  %1857 = vst [vmem:[%s3 + $0x128] sm:$0xf] %v1601
  %1858 = vst [vmem:[%s3 + $0x12c] sm:$0xf] %v1602
  %1859 = vst [vmem:[%s3 + $0x130] sm:$0xf] %v1603
  %1860 = vst [vmem:[%s3 + $0x134] sm:$0xf] %v1604
  %1861 = vst [vmem:[%s3 + $0x138] sm:$0xf] %v1605
  %1862 = vst [vmem:[%s3 + $0x13c] sm:$0xf] %v1606
  %1863 = vst [vmem:[%s3 + $0x140] sm:$0xf] %v1607
  %1864 = vst [vmem:[%s3 + $0x144] sm:$0xf] %v1608
  %1865 = vst [vmem:[%s3 + $0x148] sm:$0xf] %v1609
  %1866 = vst [vmem:[%s3 + $0x14c] sm:$0xf] %v1610
  %1867 = vst [vmem:[%s3 + $0x150] sm:$0xf] %v1611
  %1868 = vst [vmem:[%s3 + $0x154] sm:$0xf] %v1612
  %1869 = vst [vmem:[%s3 + $0x158] sm:$0xf] %v1613
  %1870 = vst [vmem:[%s3 + $0x15c] sm:$0xf] %v1614
  %1871 = vst [vmem:[%s3 + $0x160] sm:$0xf] %v1615
  %1872 = vst [vmem:[%s3 + $0x164] sm:$0xf] %v1616
  %1873 = vst [vmem:[%s3 + $0x168] sm:$0xf] %v1617
  %1874 = vst [vmem:[%s3 + $0x16c] sm:$0xf] %v1618
  %1875 = vst [vmem:[%s3 + $0x170] sm:$0xf] %v1619
  %1876 = vst [vmem:[%s3 + $0x174] sm:$0xf] %v1620
  %1877 = vst [vmem:[%s3 + $0x178] sm:$0xf] %v1621
  %1878 = vst [vmem:[%s3 + $0x17c] sm:$0xf] %v1622
  %1879 = vst [vmem:[%s3 + $0x180] sm:$0xf] %v1623
  %1880 = vst [vmem:[%s3 + $0x184] sm:$0xf] %v1624
  %1881 = vst [vmem:[%s3 + $0x188] sm:$0xf] %v1625
  %1882 = vst [vmem:[%s3 + $0x18c] sm:$0xf] %v1626
  %1883 = vst [vmem:[%s3 + $0x190] sm:$0xf] %v1627
  %1884 = vst [vmem:[%s3 + $0x194] sm:$0xf] %v1628
  %1885 = vst [vmem:[%s3 + $0x198] sm:$0xf] %v1629
  %1886 = vst [vmem:[%s3 + $0x19c] sm:$0xf] %v1630
  %1887 = vst [vmem:[%s3 + $0x1a0] sm:$0xf] %v1631
  %1888 = vst [vmem:[%s3 + $0x1a4] sm:$0xf] %v1632
  %1889 = vst [vmem:[%s3 + $0x1a8] sm:$0xf] %v1633
  %1890 = vst [vmem:[%s3 + $0x1ac] sm:$0xf] %v1634
  %1891 = vst [vmem:[%s3 + $0x1b0] sm:$0xf] %v1635
  %1892 = vst [vmem:[%s3 + $0x1b4] sm:$0xf] %v1636
  %1893 = vst [vmem:[%s3 + $0x1b8] sm:$0xf] %v1637
  %1894 = vst [vmem:[%s3 + $0x1bc] sm:$0xf] %v1638
  %1895 = vst [vmem:[%s3 + $0x1c0] sm:$0xf] %v1639
  %1896 = vst [vmem:[%s3 + $0x1c4] sm:$0xf] %v1640
  %1897 = vst [vmem:[%s3 + $0x1c8] sm:$0xf] %v1641
  %1898 = vst [vmem:[%s3 + $0x1cc] sm:$0xf] %v1642
  %1899 = vst [vmem:[%s3 + $0x1d0] sm:$0xf] %v1643
  %1900 = vst [vmem:[%s3 + $0x1d4] sm:$0xf] %v1644
  %1901 = vst [vmem:[%s3 + $0x1d8] sm:$0xf] %v1645
  %1902 = vst [vmem:[%s3 + $0x1dc] sm:$0xf] %v1646
  %1903 = vst [vmem:[%s3 + $0x1e0] sm:$0xf] %v1647
  %1904 = vst [vmem:[%s3 + $0x1e4] sm:$0xf] %v1648
  %1905 = vst [vmem:[%s3 + $0x1e8] sm:$0xf] %v1649
  %1906 = vst [vmem:[%s3 + $0x1ec] sm:$0xf] %v1650
  %1907 = vst [vmem:[%s3 + $0x1f0] sm:$0xf] %v1651
  %1908 = vst [vmem:[%s3 + $0x1f4] sm:$0xf] %v1652
  %1909 = vst [vmem:[%s3 + $0x1f8] sm:$0xf] %v1653
  %1910 = vst [vmem:[%s3 + $0x1fc] sm:$0xf] %v1654
  // Predicated region
  $region14: #{mobrecon_forward.8} parent=0 // pred_check
    _
  $region15: #{mobrecon_forward.8} parent=0 // pred_check_branch
    %1912 = sbr.rel (0) target = $region17
  $region16: #{mobrecon_forward.8} parent=0 // pred_region
    _
  $region17: #{mobrecon_forward.8} parent=0 // pred_fallthru
    _
  // Predicated region
  $region18: #{mobrecon_forward.8} parent=0 // pred_check
    _
  $region19: #{mobrecon_forward.8} parent=0 // pred_check_branch
    %1914 = sbr.rel (0) target = $region21
  $region20: #{mobrecon_forward.8} parent=0 // pred_region
    _
  $region21: #{mobrecon_forward.8} parent=0 // pred_fallthru
    _

// kernel: mobrecon_forward.13
$region0: #{mobrecon_forward.13}
  #allocation0 [shape = 'u32[]', space=smem, size = 0x4, offset = 0x4, fixed_abs, tag = 'smem constant byte address 0x4 - core index']
  #allocation1 [shape = 'u32[144,128]{1,0:T(1,128)}', space=vmem, size = 0x12000, scoped, tag = 'internal scratch']
  %s0 = inlined_call_operand.vmem [shape: bf16[1024,128], index: 0, kind: input, shape index: {}]
  %s1 = inlined_call_operand.vmem [shape: bf16[128,128], index: 1, kind: input, shape index: {}]
  %s2 = inlined_call_operand.vmem [shape: f32[1,128], index: 2, kind: input, shape index: {}]
  %s3 = inlined_call_operand.vmem [shape: f32[1024,128], index: 3, kind: output, shape index: {}]
  %s4 = sld [smem:[#allocation0]]
  $region22: #{mobrecon_forward.13} parent=0
    _
  %s6 = ssub.s32 1, %s4
  %s7 = scalar_select 0, %s6, %s4
  // Predicated region
  $region2: #{mobrecon_forward.13} parent=0 // pred_check
    _
  $region3: #{mobrecon_forward.13} parent=0 // pred_check_branch
    %9 = sbr.rel (0) target = $region5
  $region4: #{mobrecon_forward.13} parent=0 // pred_region
    _
  $region5: #{mobrecon_forward.13} parent=0 // pred_fallthru
    _
  // Predicated region
  $region6: #{mobrecon_forward.13} parent=0 // pred_check
    _
  $region7: #{mobrecon_forward.13} parent=0 // pred_check_branch
    %11 = sbr.rel (0) target = $region9
  $region8: #{mobrecon_forward.13} parent=0 // pred_region
    _
  $region9: #{mobrecon_forward.13} parent=0 // pred_fallthru
    _
  // Predicated region
  $region10: #{mobrecon_forward.13} parent=0 // pred_check
    _
  $region11: #{mobrecon_forward.13} parent=0 // pred_check_branch
    %13 = sbr.rel (0) target = $region13
  $region12: #{mobrecon_forward.13} parent=0 // pred_region
    _
  $region13: #{mobrecon_forward.13} parent=0 // pred_fallthru
    _
  %v15 = vld [vmem:[%s0] sm:$0xf]
  %v16 = vld [vmem:[%s0 + $0x4] sm:$0xf]
  %v17 = vld [vmem:[%s0 + $0x8] sm:$0xf]
  %v18 = vld [vmem:[%s0 + $0xc] sm:$0xf]
  %v19 = vld [vmem:[%s0 + $0x10] sm:$0xf]
  %v20 = vld [vmem:[%s0 + $0x14] sm:$0xf]
  %v21 = vld [vmem:[%s0 + $0x18] sm:$0xf]
  %v22 = vld [vmem:[%s0 + $0x1c] sm:$0xf]
  %v23 = vld [vmem:[%s0 + $0x20] sm:$0xf]
  %v24 = vld [vmem:[%s0 + $0x24] sm:$0xf]
  %v25 = vld [vmem:[%s0 + $0x28] sm:$0xf]
  %v26 = vld [vmem:[%s0 + $0x2c] sm:$0xf]
  %v27 = vld [vmem:[%s0 + $0x30] sm:$0xf]
  %v28 = vld [vmem:[%s0 + $0x34] sm:$0xf]
  %v29 = vld [vmem:[%s0 + $0x38] sm:$0xf]
  %v30 = vld [vmem:[%s0 + $0x3c] sm:$0xf]
  %v31 = vld [vmem:[%s0 + $0x40] sm:$0xf]
  %v32 = vld [vmem:[%s0 + $0x44] sm:$0xf]
  %v33 = vld [vmem:[%s0 + $0x48] sm:$0xf]
  %v34 = vld [vmem:[%s0 + $0x4c] sm:$0xf]
  %v35 = vld [vmem:[%s0 + $0x50] sm:$0xf]
  %v36 = vld [vmem:[%s0 + $0x54] sm:$0xf]
  %v37 = vld [vmem:[%s0 + $0x58] sm:$0xf]
  %v38 = vld [vmem:[%s0 + $0x5c] sm:$0xf]
  %v39 = vld [vmem:[%s0 + $0x60] sm:$0xf]
  %v40 = vld [vmem:[%s0 + $0x64] sm:$0xf]
  %v41 = vld [vmem:[%s0 + $0x68] sm:$0xf]
  %v42 = vld [vmem:[%s0 + $0x6c] sm:$0xf]
  %v43 = vld [vmem:[%s0 + $0x70] sm:$0xf]
  %v44 = vld [vmem:[%s0 + $0x74] sm:$0xf]
  %v45 = vld [vmem:[%s0 + $0x78] sm:$0xf]
  %v46 = vld [vmem:[%s0 + $0x7c] sm:$0xf]
  %v47 = vld [vmem:[%s0 + $0x80] sm:$0xf]
  %v48 = vld [vmem:[%s0 + $0x84] sm:$0xf]
  %v49 = vld [vmem:[%s0 + $0x88] sm:$0xf]
  %v50 = vld [vmem:[%s0 + $0x8c] sm:$0xf]
  %v51 = vld [vmem:[%s0 + $0x90] sm:$0xf]
  %v52 = vld [vmem:[%s0 + $0x94] sm:$0xf]
  %v53 = vld [vmem:[%s0 + $0x98] sm:$0xf]
  %v54 = vld [vmem:[%s0 + $0x9c] sm:$0xf]
  %v55 = vld [vmem:[%s0 + $0xa0] sm:$0xf]
  %v56 = vld [vmem:[%s0 + $0xa4] sm:$0xf]
  %v57 = vld [vmem:[%s0 + $0xa8] sm:$0xf]
  %v58 = vld [vmem:[%s0 + $0xac] sm:$0xf]
  %v59 = vld [vmem:[%s0 + $0xb0] sm:$0xf]
  %v60 = vld [vmem:[%s0 + $0xb4] sm:$0xf]
  %v61 = vld [vmem:[%s0 + $0xb8] sm:$0xf]
  %v62 = vld [vmem:[%s0 + $0xbc] sm:$0xf]
  %v63 = vld [vmem:[%s0 + $0xc0] sm:$0xf]
  %v64 = vld [vmem:[%s0 + $0xc4] sm:$0xf]
  %v65 = vld [vmem:[%s0 + $0xc8] sm:$0xf]
  %v66 = vld [vmem:[%s0 + $0xcc] sm:$0xf]
  %v67 = vld [vmem:[%s0 + $0xd0] sm:$0xf]
  %v68 = vld [vmem:[%s0 + $0xd4] sm:$0xf]
  %v69 = vld [vmem:[%s0 + $0xd8] sm:$0xf]
  %v70 = vld [vmem:[%s0 + $0xdc] sm:$0xf]
  %v71 = vld [vmem:[%s0 + $0xe0] sm:$0xf]
  %v72 = vld [vmem:[%s0 + $0xe4] sm:$0xf]
  %v73 = vld [vmem:[%s0 + $0xe8] sm:$0xf]
  %v74 = vld [vmem:[%s0 + $0xec] sm:$0xf]
  %v75 = vld [vmem:[%s0 + $0xf0] sm:$0xf]
  %v76 = vld [vmem:[%s0 + $0xf4] sm:$0xf]
  %v77 = vld [vmem:[%s0 + $0xf8] sm:$0xf]
  %v78 = vld [vmem:[%s0 + $0xfc] sm:$0xf]
  %v79 = vld [vmem:[%s0 + $0x100] sm:$0xf]
  %v80 = vld [vmem:[%s0 + $0x104] sm:$0xf]
  %v81 = vld [vmem:[%s0 + $0x108] sm:$0xf]
  %v82 = vld [vmem:[%s0 + $0x10c] sm:$0xf]
  %v83 = vld [vmem:[%s0 + $0x110] sm:$0xf]
  %v84 = vld [vmem:[%s0 + $0x114] sm:$0xf]
  %v85 = vld [vmem:[%s0 + $0x118] sm:$0xf]
  %v86 = vld [vmem:[%s0 + $0x11c] sm:$0xf]
  %v87 = vld [vmem:[%s0 + $0x120] sm:$0xf]
  %v88 = vld [vmem:[%s0 + $0x124] sm:$0xf]
  %v89 = vld [vmem:[%s0 + $0x128] sm:$0xf]
  %v90 = vld [vmem:[%s0 + $0x12c] sm:$0xf]
  %v91 = vld [vmem:[%s0 + $0x130] sm:$0xf]
  %v92 = vld [vmem:[%s0 + $0x134] sm:$0xf]
  %v93 = vld [vmem:[%s0 + $0x138] sm:$0xf]
  %v94 = vld [vmem:[%s0 + $0x13c] sm:$0xf]
  %v95 = vld [vmem:[%s0 + $0x140] sm:$0xf]
  %v96 = vld [vmem:[%s0 + $0x144] sm:$0xf]
  %v97 = vld [vmem:[%s0 + $0x148] sm:$0xf]
  %v98 = vld [vmem:[%s0 + $0x14c] sm:$0xf]
  %v99 = vld [vmem:[%s0 + $0x150] sm:$0xf]
  %v100 = vld [vmem:[%s0 + $0x154] sm:$0xf]
  %v101 = vld [vmem:[%s0 + $0x158] sm:$0xf]
  %v102 = vld [vmem:[%s0 + $0x15c] sm:$0xf]
  %v103 = vld [vmem:[%s0 + $0x160] sm:$0xf]
  %v104 = vld [vmem:[%s0 + $0x164] sm:$0xf]
  %v105 = vld [vmem:[%s0 + $0x168] sm:$0xf]
  %v106 = vld [vmem:[%s0 + $0x16c] sm:$0xf]
  %v107 = vld [vmem:[%s0 + $0x170] sm:$0xf]
  %v108 = vld [vmem:[%s0 + $0x174] sm:$0xf]
  %v109 = vld [vmem:[%s0 + $0x178] sm:$0xf]
  %v110 = vld [vmem:[%s0 + $0x17c] sm:$0xf]
  %v111 = vld [vmem:[%s0 + $0x180] sm:$0xf]
  %v112 = vld [vmem:[%s0 + $0x184] sm:$0xf]
  %v113 = vld [vmem:[%s0 + $0x188] sm:$0xf]
  %v114 = vld [vmem:[%s0 + $0x18c] sm:$0xf]
  %v115 = vld [vmem:[%s0 + $0x190] sm:$0xf]
  %v116 = vld [vmem:[%s0 + $0x194] sm:$0xf]
  %v117 = vld [vmem:[%s0 + $0x198] sm:$0xf]
  %v118 = vld [vmem:[%s0 + $0x19c] sm:$0xf]
  %v119 = vld [vmem:[%s0 + $0x1a0] sm:$0xf]
  %v120 = vld [vmem:[%s0 + $0x1a4] sm:$0xf]
  %v121 = vld [vmem:[%s0 + $0x1a8] sm:$0xf]
  %v122 = vld [vmem:[%s0 + $0x1ac] sm:$0xf]
  %v123 = vld [vmem:[%s0 + $0x1b0] sm:$0xf]
  %v124 = vld [vmem:[%s0 + $0x1b4] sm:$0xf]
  %v125 = vld [vmem:[%s0 + $0x1b8] sm:$0xf]
  %v126 = vld [vmem:[%s0 + $0x1bc] sm:$0xf]
  %v127 = vld [vmem:[%s0 + $0x1c0] sm:$0xf]
  %v128 = vld [vmem:[%s0 + $0x1c4] sm:$0xf]
  %v129 = vld [vmem:[%s0 + $0x1c8] sm:$0xf]
  %v130 = vld [vmem:[%s0 + $0x1cc] sm:$0xf]
  %v131 = vld [vmem:[%s0 + $0x1d0] sm:$0xf]
  %v132 = vld [vmem:[%s0 + $0x1d4] sm:$0xf]
  %v133 = vld [vmem:[%s0 + $0x1d8] sm:$0xf]
  %v134 = vld [vmem:[%s0 + $0x1dc] sm:$0xf]
  %v135 = vld [vmem:[%s0 + $0x1e0] sm:$0xf]
  %v136 = vld [vmem:[%s0 + $0x1e4] sm:$0xf]
  %v137 = vld [vmem:[%s0 + $0x1e8] sm:$0xf]
  %v138 = vld [vmem:[%s0 + $0x1ec] sm:$0xf]
  %v139 = vld [vmem:[%s0 + $0x1f0] sm:$0xf]
  %v140 = vld [vmem:[%s0 + $0x1f4] sm:$0xf]
  %v141 = vld [vmem:[%s0 + $0x1f8] sm:$0xf]
  %v142 = vld [vmem:[%s0 + $0x1fc] sm:$0xf]
  %v143 = vld [vmem:[%s1] sm:$0xf]
  %v144 = vld [vmem:[%s1 + $0x4] sm:$0xf]
  %v145 = vld [vmem:[%s1 + $0x8] sm:$0xf]
  %v146 = vld [vmem:[%s1 + $0xc] sm:$0xf]
  %v147 = vld [vmem:[%s1 + $0x10] sm:$0xf]
  %v148 = vld [vmem:[%s1 + $0x14] sm:$0xf]
  %v149 = vld [vmem:[%s1 + $0x18] sm:$0xf]
  %v150 = vld [vmem:[%s1 + $0x1c] sm:$0xf]
  %v151 = vld [vmem:[%s1 + $0x20] sm:$0xf]
  %v152 = vld [vmem:[%s1 + $0x24] sm:$0xf]
  %v153 = vld [vmem:[%s1 + $0x28] sm:$0xf]
  %v154 = vld [vmem:[%s1 + $0x2c] sm:$0xf]
  %v155 = vld [vmem:[%s1 + $0x30] sm:$0xf]
  %v156 = vld [vmem:[%s1 + $0x34] sm:$0xf]
  %v157 = vld [vmem:[%s1 + $0x38] sm:$0xf]
  %v158 = vld [vmem:[%s1 + $0x3c] sm:$0xf]
  %v159 = vld [vmem:[%s2] sm:$0x1]
  %v161 = vlaneseq
  %v162 = vshrl.u32 %v161, 7
  %v163 = vsub.s32 0, %v162
  %v164 = vrot.slane %v159, %v163
  %v294 = vunpack.c.l.b16 %v15
  %v295 = vunpack.c.l.b16 %v16
  %v296 = vunpack.c.l.b16 %v17
  %v297 = vunpack.c.l.b16 %v18
  %v298 = vunpack.c.l.b16 %v19
  %v299 = vunpack.c.l.b16 %v20
  %v300 = vunpack.c.l.b16 %v21
  %v301 = vunpack.c.l.b16 %v22
  %v302 = vunpack.c.l.b16 %v23
  %v303 = vunpack.c.l.b16 %v24
  %v304 = vunpack.c.l.b16 %v25
  %v305 = vunpack.c.l.b16 %v26
  %v306 = vunpack.c.l.b16 %v27
  %v307 = vunpack.c.l.b16 %v28
  %v308 = vunpack.c.l.b16 %v29
  %v309 = vunpack.c.l.b16 %v30
  %v310 = vunpack.c.l.b16 %v31
  %v311 = vunpack.c.l.b16 %v32
  %v312 = vunpack.c.l.b16 %v33
  %v313 = vunpack.c.l.b16 %v34
  %v314 = vunpack.c.l.b16 %v35
  %v315 = vunpack.c.l.b16 %v36
  %v316 = vunpack.c.l.b16 %v37
  %v317 = vunpack.c.l.b16 %v38
  %v318 = vunpack.c.l.b16 %v39
  %v319 = vunpack.c.l.b16 %v40
  %v320 = vunpack.c.l.b16 %v41
  %v321 = vunpack.c.l.b16 %v42
  %v322 = vunpack.c.l.b16 %v43
  %v323 = vunpack.c.l.b16 %v44
  %v324 = vunpack.c.l.b16 %v45
  %v325 = vunpack.c.l.b16 %v46
  %v326 = vunpack.c.l.b16 %v47
  %v327 = vunpack.c.l.b16 %v48
  %v328 = vunpack.c.l.b16 %v49
  %v329 = vunpack.c.l.b16 %v50
  %v330 = vunpack.c.l.b16 %v51
  %v331 = vunpack.c.l.b16 %v52
  %v332 = vunpack.c.l.b16 %v53
  %v333 = vunpack.c.l.b16 %v54
  %v334 = vunpack.c.l.b16 %v55
  %v335 = vunpack.c.l.b16 %v56
  %v336 = vunpack.c.l.b16 %v57
  %v337 = vunpack.c.l.b16 %v58
  %v338 = vunpack.c.l.b16 %v59
  %v339 = vunpack.c.l.b16 %v60
  %v340 = vunpack.c.l.b16 %v61
  %v341 = vunpack.c.l.b16 %v62
  %v342 = vunpack.c.l.b16 %v63
  %v343 = vunpack.c.l.b16 %v64
  %v344 = vunpack.c.l.b16 %v65
  %v345 = vunpack.c.l.b16 %v66
  %v346 = vunpack.c.l.b16 %v67
  %v347 = vunpack.c.l.b16 %v68
  %v348 = vunpack.c.l.b16 %v69
  %v349 = vunpack.c.l.b16 %v70
  %v350 = vunpack.c.l.b16 %v71
  %v351 = vunpack.c.l.b16 %v72
  %v352 = vunpack.c.l.b16 %v73
  %v353 = vunpack.c.l.b16 %v74
  %v354 = vunpack.c.l.b16 %v75
  %v355 = vunpack.c.l.b16 %v76
  %v356 = vunpack.c.l.b16 %v77
  %v357 = vunpack.c.l.b16 %v78
  %v358 = vunpack.c.l.b16 %v79
  %v359 = vunpack.c.l.b16 %v80
  %v360 = vunpack.c.l.b16 %v81
  %v361 = vunpack.c.l.b16 %v82
  %v362 = vunpack.c.l.b16 %v83
  %v363 = vunpack.c.l.b16 %v84
  %v364 = vunpack.c.l.b16 %v85
  %v365 = vunpack.c.l.b16 %v86
  %v366 = vunpack.c.l.b16 %v87
  %v367 = vunpack.c.l.b16 %v88
  %v368 = vunpack.c.l.b16 %v89
  %v369 = vunpack.c.l.b16 %v90
  %v370 = vunpack.c.l.b16 %v91
  %v371 = vunpack.c.l.b16 %v92
  %v372 = vunpack.c.l.b16 %v93
  %v373 = vunpack.c.l.b16 %v94
  %v374 = vunpack.c.l.b16 %v95
  %v375 = vunpack.c.l.b16 %v96
  %v376 = vunpack.c.l.b16 %v97
  %v377 = vunpack.c.l.b16 %v98
  %v378 = vunpack.c.l.b16 %v99
  %v379 = vunpack.c.l.b16 %v100
  %v380 = vunpack.c.l.b16 %v101
  %v381 = vunpack.c.l.b16 %v102
  %v382 = vunpack.c.l.b16 %v103
  %v383 = vunpack.c.l.b16 %v104
  %v384 = vunpack.c.l.b16 %v105
  %v385 = vunpack.c.l.b16 %v106
  %v386 = vunpack.c.l.b16 %v107
  %v387 = vunpack.c.l.b16 %v108
  %v388 = vunpack.c.l.b16 %v109
  %v389 = vunpack.c.l.b16 %v110
  %v390 = vunpack.c.l.b16 %v111
  %v391 = vunpack.c.l.b16 %v112
  %v392 = vunpack.c.l.b16 %v113
  %v393 = vunpack.c.l.b16 %v114
  %v394 = vunpack.c.l.b16 %v115
  %v395 = vunpack.c.l.b16 %v116
  %v396 = vunpack.c.l.b16 %v117
  %v397 = vunpack.c.l.b16 %v118
  %v398 = vunpack.c.l.b16 %v119
  %v399 = vunpack.c.l.b16 %v120
  %v400 = vunpack.c.l.b16 %v121
  %v401 = vunpack.c.l.b16 %v122
  %v402 = vunpack.c.l.b16 %v123
  %v403 = vunpack.c.l.b16 %v124
  %v404 = vunpack.c.l.b16 %v125
  %v405 = vunpack.c.l.b16 %v126
  %v406 = vunpack.c.l.b16 %v127
  %v407 = vunpack.c.l.b16 %v128
  %v408 = vunpack.c.l.b16 %v129
  %v409 = vunpack.c.l.b16 %v130
  %v410 = vunpack.c.l.b16 %v131
  %v411 = vunpack.c.l.b16 %v132
  %v412 = vunpack.c.l.b16 %v133
  %v413 = vunpack.c.l.b16 %v134
  %v414 = vunpack.c.l.b16 %v135
  %v415 = vunpack.c.l.b16 %v136
  %v416 = vunpack.c.l.b16 %v137
  %v417 = vunpack.c.l.b16 %v138
  %v418 = vunpack.c.l.b16 %v139
  %v419 = vunpack.c.l.b16 %v140
  %v420 = vunpack.c.l.b16 %v141
  %v421 = vunpack.c.l.b16 %v142
  %v422 = vpack.c.b16 %v295, %v294
  %v423 = vpack.c.b16 %v297, %v296
  %v424 = vpack.c.b16 %v299, %v298
  %v425 = vpack.c.b16 %v301, %v300
  %v426 = vpack.c.b16 %v303, %v302
  %v427 = vpack.c.b16 %v305, %v304
  %v428 = vpack.c.b16 %v307, %v306
  %v429 = vpack.c.b16 %v309, %v308
  %v430 = vpack.c.b16 %v311, %v310
  %v431 = vpack.c.b16 %v313, %v312
  %v432 = vpack.c.b16 %v315, %v314
  %v433 = vpack.c.b16 %v317, %v316
  %v434 = vpack.c.b16 %v319, %v318
  %v435 = vpack.c.b16 %v321, %v320
  %v436 = vpack.c.b16 %v323, %v322
  %v437 = vpack.c.b16 %v325, %v324
  %v438 = vpack.c.b16 %v327, %v326
  %v439 = vpack.c.b16 %v329, %v328
  %v440 = vpack.c.b16 %v331, %v330
  %v441 = vpack.c.b16 %v333, %v332
  %v442 = vpack.c.b16 %v335, %v334
  %v443 = vpack.c.b16 %v337, %v336
  %v444 = vpack.c.b16 %v339, %v338
  %v445 = vpack.c.b16 %v341, %v340
  %v446 = vpack.c.b16 %v343, %v342
  %v447 = vpack.c.b16 %v345, %v344
  %v448 = vpack.c.b16 %v347, %v346
  %v449 = vpack.c.b16 %v349, %v348
  %v450 = vpack.c.b16 %v351, %v350
  %v451 = vpack.c.b16 %v353, %v352
  %v452 = vpack.c.b16 %v355, %v354
  %v453 = vpack.c.b16 %v357, %v356
  %v454 = vpack.c.b16 %v359, %v358
  %v455 = vpack.c.b16 %v361, %v360
  %v456 = vpack.c.b16 %v363, %v362
  %v457 = vpack.c.b16 %v365, %v364
  %v458 = vpack.c.b16 %v367, %v366
  %v459 = vpack.c.b16 %v369, %v368
  %v460 = vpack.c.b16 %v371, %v370
  %v461 = vpack.c.b16 %v373, %v372
  %v462 = vpack.c.b16 %v375, %v374
  %v463 = vpack.c.b16 %v377, %v376
  %v464 = vpack.c.b16 %v379, %v378
  %v465 = vpack.c.b16 %v381, %v380
  %v466 = vpack.c.b16 %v383, %v382
  %v467 = vpack.c.b16 %v385, %v384
  %v468 = vpack.c.b16 %v387, %v386
  %v469 = vpack.c.b16 %v389, %v388
  %v470 = vpack.c.b16 %v391, %v390
  %v471 = vpack.c.b16 %v393, %v392
  %v472 = vpack.c.b16 %v395, %v394
  %v473 = vpack.c.b16 %v397, %v396
  %v474 = vpack.c.b16 %v399, %v398
  %v475 = vpack.c.b16 %v401, %v400
  %v476 = vpack.c.b16 %v403, %v402
  %v477 = vpack.c.b16 %v405, %v404
  %v478 = vpack.c.b16 %v407, %v406
  %v479 = vpack.c.b16 %v409, %v408
  %v480 = vpack.c.b16 %v411, %v410
  %v481 = vpack.c.b16 %v413, %v412
  %v482 = vpack.c.b16 %v415, %v414
  %v483 = vpack.c.b16 %v417, %v416
  %v484 = vpack.c.b16 %v419, %v418
  %v485 = vpack.c.b16 %v421, %v420
  %v566 = vunpack.c.l.b16 %v143
  %v567 = vunpack.c.l.b16 %v144
  %v568 = vunpack.c.l.b16 %v145
  %v569 = vunpack.c.l.b16 %v146
  %v570 = vunpack.c.l.b16 %v147
  %v571 = vunpack.c.l.b16 %v148
  %v572 = vunpack.c.l.b16 %v149
  %v573 = vunpack.c.l.b16 %v150
  %v574 = vunpack.c.l.b16 %v151
  %v575 = vunpack.c.l.b16 %v152
  %v576 = vunpack.c.l.b16 %v153
  %v577 = vunpack.c.l.b16 %v154
  %v578 = vunpack.c.l.b16 %v155
  %v579 = vunpack.c.l.b16 %v156
  %v580 = vunpack.c.l.b16 %v157
  %v581 = vunpack.c.l.b16 %v158
  %v582 = vpack.c.b16 %v567, %v566
  %v583 = vpack.c.b16 %v569, %v568
  %v584 = vpack.c.b16 %v571, %v570
  %v585 = vpack.c.b16 %v573, %v572
  %v586 = vpack.c.b16 %v575, %v574
  %v587 = vpack.c.b16 %v577, %v576
  %v588 = vpack.c.b16 %v579, %v578
  %v589 = vpack.c.b16 %v581, %v580
  %598 = vmatprep.subr.bf16.mxu0 0
  %599 = vmatpush1.bf16.msra.mxu0 %v582
  %600 = vmatprep.subr.bf16.mxu0 0
  %601 = vmatpush1.bf16.msra.mxu0 %v583
  %602 = vmatprep.subr.bf16.mxu0 0
  %603 = vmatpush1.bf16.msra.mxu0 %v584
  %604 = vmatprep.subr.bf16.mxu0 0
  %605 = vmatpush1.bf16.msra.mxu0 %v585
  %606 = vmatprep.subr.bf16.mxu0 0
  %607 = vmatpush1.bf16.msra.mxu0 %v586
  %608 = vmatprep.subr.bf16.mxu0 0
  %609 = vmatpush1.bf16.msra.mxu0 %v587
  %610 = vmatprep.subr.bf16.mxu0 0
  %611 = vmatpush1.bf16.msra.mxu0 %v588
  %612 = vmatprep.subr.bf16.mxu0 0
  %613 = vmatpush1.bf16.msra.mxu0 %v589
  %614 = vmatprep.subr.bf16.mxu0 0
  %615 = vmatpush1.bf16.msra.mxu0 0
  %616 = vmatprep.subr.bf16.mxu0 0
  %617 = vmatpush1.bf16.msra.mxu0 0
  %618 = vmatprep.subr.bf16.mxu0 0
  %619 = vmatpush1.bf16.msra.mxu0 0
  %620 = vmatprep.subr.bf16.mxu0 0
  %621 = vmatpush1.bf16.msra.mxu0 0
  %622 = vmatprep.subr.bf16.mxu0 0
  %623 = vmatpush1.bf16.msra.mxu0 0
  %624 = vmatprep.subr.bf16.mxu0 0
  %625 = vmatpush1.bf16.msra.mxu0 0
  %626 = vmatprep.subr.bf16.mxu0 0
  %627 = vmatpush1.bf16.msra.mxu0 0
  %628 = vmatprep.subr.bf16.mxu0 0
  %629 = vmatpush1.bf16.msra.mxu0 0
  %630 = vmatprep.mubr.bf16.mxu0 0
  %631 = vmatmul.mubr.bf16.gmra.mrb[0].mxu0 %v422
  %v632 = vpop.f32.mrb[0].mxu0
  %v633 = vadd.f32 %v164, %v632
  %v634 = vpop.f32.mrb[0].mxu0
  %v635 = vpop.f32.mrb[0].mxu0
  %v636 = vadd.f32 %v164, %v635
  %v637 = vpop.f32.mrb[0].mxu0
  %638 = vmatprep.mubr.bf16.mxu0 0
  %639 = vmatmul.mubr.bf16.gmra.mrb[0].mxu0 %v423
  %v640 = vpop.f32.mrb[0].mxu0
  %v641 = vadd.f32 %v164, %v640
  %v642 = vpop.f32.mrb[0].mxu0
  %v643 = vpop.f32.mrb[0].mxu0
  %v644 = vadd.f32 %v164, %v643
  %v645 = vpop.f32.mrb[0].mxu0
  %646 = vmatprep.mubr.bf16.mxu0 0
  %647 = vmatmul.mubr.bf16.gmra.mrb[0].mxu0 %v424
  %v648 = vpop.f32.mrb[0].mxu0
  %v649 = vadd.f32 %v164, %v648
  %v650 = vpop.f32.mrb[0].mxu0
  %v651 = vpop.f32.mrb[0].mxu0
  %v652 = vadd.f32 %v164, %v651
  %v653 = vpop.f32.mrb[0].mxu0
  %654 = vmatprep.mubr.bf16.mxu0 0
  %655 = vmatmul.mubr.bf16.gmra.mrb[0].mxu0 %v425
  %v656 = vpop.f32.mrb[0].mxu0
  %v657 = vadd.f32 %v164, %v656
  %v658 = vpop.f32.mrb[0].mxu0
  %v659 = vpop.f32.mrb[0].mxu0
  %v660 = vadd.f32 %v164, %v659
  %v661 = vpop.f32.mrb[0].mxu0
  %662 = vmatprep.mubr.bf16.mxu0 0
  %663 = vmatmul.mubr.bf16.gmra.mrb[0].mxu0 %v426
  %v664 = vpop.f32.mrb[0].mxu0
  %v665 = vadd.f32 %v164, %v664
  %v666 = vpop.f32.mrb[0].mxu0
  %v667 = vpop.f32.mrb[0].mxu0
  %v668 = vadd.f32 %v164, %v667
  %v669 = vpop.f32.mrb[0].mxu0
  %670 = vmatprep.mubr.bf16.mxu0 0
  %671 = vmatmul.mubr.bf16.gmra.mrb[0].mxu0 %v427
  %v672 = vpop.f32.mrb[0].mxu0
  %v673 = vadd.f32 %v164, %v672
  %v674 = vpop.f32.mrb[0].mxu0
  %v675 = vpop.f32.mrb[0].mxu0
  %v676 = vadd.f32 %v164, %v675
  %v677 = vpop.f32.mrb[0].mxu0
  %678 = vmatprep.mubr.bf16.mxu0 0
  %679 = vmatmul.mubr.bf16.gmra.mrb[0].mxu0 %v428
  %v680 = vpop.f32.mrb[0].mxu0
  %v681 = vadd.f32 %v164, %v680
  %v682 = vpop.f32.mrb[0].mxu0
  %v683 = vpop.f32.mrb[0].mxu0
  %v684 = vadd.f32 %v164, %v683
  %v685 = vpop.f32.mrb[0].mxu0
  %686 = vmatprep.mubr.bf16.mxu0 0
  %687 = vmatmul.mubr.bf16.gmra.mrb[0].mxu0 %v429
  %v688 = vpop.f32.mrb[0].mxu0
  %v689 = vadd.f32 %v164, %v688
  %v690 = vpop.f32.mrb[0].mxu0
  %v691 = vpop.f32.mrb[0].mxu0
  %v692 = vadd.f32 %v164, %v691
  %v693 = vpop.f32.mrb[0].mxu0
  %694 = vmatprep.mubr.bf16.mxu0 0
  %695 = vmatmul.mubr.bf16.gmra.mrb[0].mxu0 %v430
  %v696 = vpop.f32.mrb[0].mxu0
  %v697 = vadd.f32 %v164, %v696
  %v698 = vpop.f32.mrb[0].mxu0
  %v699 = vpop.f32.mrb[0].mxu0
  %v700 = vadd.f32 %v164, %v699
  %v701 = vpop.f32.mrb[0].mxu0
  %702 = vmatprep.mubr.bf16.mxu0 0
  %703 = vmatmul.mubr.bf16.gmra.mrb[0].mxu0 %v431
  %v704 = vpop.f32.mrb[0].mxu0
  %v705 = vadd.f32 %v164, %v704
  %v706 = vpop.f32.mrb[0].mxu0
  %v707 = vpop.f32.mrb[0].mxu0
  %v708 = vadd.f32 %v164, %v707
  %v709 = vpop.f32.mrb[0].mxu0
  %710 = vmatprep.mubr.bf16.mxu0 0
  %711 = vmatmul.mubr.bf16.gmra.mrb[0].mxu0 %v432
  %v712 = vpop.f32.mrb[0].mxu0
  %v713 = vadd.f32 %v164, %v712
  %v714 = vpop.f32.mrb[0].mxu0
  %v715 = vpop.f32.mrb[0].mxu0
  %v716 = vadd.f32 %v164, %v715
  %v717 = vpop.f32.mrb[0].mxu0
  %718 = vmatprep.mubr.bf16.mxu0 0
  %719 = vmatmul.mubr.bf16.gmra.mrb[0].mxu0 %v433
  %v720 = vpop.f32.mrb[0].mxu0
  %v721 = vadd.f32 %v164, %v720
  %v722 = vpop.f32.mrb[0].mxu0
  %v723 = vpop.f32.mrb[0].mxu0
  %v724 = vadd.f32 %v164, %v723
  %v725 = vpop.f32.mrb[0].mxu0
  %726 = vmatprep.mubr.bf16.mxu0 0
  %727 = vmatmul.mubr.bf16.gmra.mrb[0].mxu0 %v434
  %v728 = vpop.f32.mrb[0].mxu0
  %v729 = vadd.f32 %v164, %v728
  %v730 = vpop.f32.mrb[0].mxu0
  %v731 = vpop.f32.mrb[0].mxu0
  %v732 = vadd.f32 %v164, %v731
  %v733 = vpop.f32.mrb[0].mxu0
  %734 = vmatprep.mubr.bf16.mxu0 0
  %735 = vmatmul.mubr.bf16.gmra.mrb[0].mxu0 %v435
  %v736 = vpop.f32.mrb[0].mxu0
  %v737 = vadd.f32 %v164, %v736
  %v738 = vpop.f32.mrb[0].mxu0
  %v739 = vpop.f32.mrb[0].mxu0
  %v740 = vadd.f32 %v164, %v739
  %v741 = vpop.f32.mrb[0].mxu0
  %742 = vmatprep.mubr.bf16.mxu0 0
  %743 = vmatmul.mubr.bf16.gmra.mrb[0].mxu0 %v436
  %v744 = vpop.f32.mrb[0].mxu0
  %v745 = vadd.f32 %v164, %v744
  %v746 = vpop.f32.mrb[0].mxu0
  %v747 = vpop.f32.mrb[0].mxu0
  %v748 = vadd.f32 %v164, %v747
  %v749 = vpop.f32.mrb[0].mxu0
  %750 = vmatprep.mubr.bf16.mxu0 0
  %751 = vmatmul.mubr.bf16.gmra.mrb[0].mxu0 %v437
  %v752 = vpop.f32.mrb[0].mxu0
  %v753 = vadd.f32 %v164, %v752
  %v754 = vpop.f32.mrb[0].mxu0
  %v755 = vpop.f32.mrb[0].mxu0
  %v756 = vadd.f32 %v164, %v755
  %v757 = vpop.f32.mrb[0].mxu0
  %758 = vmatprep.mubr.bf16.mxu0 0
  %759 = vmatmul.mubr.bf16.gmra.mrb[0].mxu0 %v438
  %v760 = vpop.f32.mrb[0].mxu0
  %v761 = vadd.f32 %v164, %v760
  %v762 = vpop.f32.mrb[0].mxu0
  %v763 = vpop.f32.mrb[0].mxu0
  %v764 = vadd.f32 %v164, %v763
  %v765 = vpop.f32.mrb[0].mxu0
  %766 = vmatprep.mubr.bf16.mxu0 0
  %767 = vmatmul.mubr.bf16.gmra.mrb[0].mxu0 %v439
  %v768 = vpop.f32.mrb[0].mxu0
  %v769 = vadd.f32 %v164, %v768
  %v770 = vpop.f32.mrb[0].mxu0
  %v771 = vpop.f32.mrb[0].mxu0
  %v772 = vadd.f32 %v164, %v771
  %v773 = vpop.f32.mrb[0].mxu0
  %774 = vmatprep.mubr.bf16.mxu0 0
  %775 = vmatmul.mubr.bf16.gmra.mrb[0].mxu0 %v440
  %v776 = vpop.f32.mrb[0].mxu0
  %v777 = vadd.f32 %v164, %v776
  %v778 = vpop.f32.mrb[0].mxu0
  %v779 = vpop.f32.mrb[0].mxu0
  %v780 = vadd.f32 %v164, %v779
  %v781 = vpop.f32.mrb[0].mxu0
  %782 = vmatprep.mubr.bf16.mxu0 0
  %783 = vmatmul.mubr.bf16.gmra.mrb[0].mxu0 %v441
  %v784 = vpop.f32.mrb[0].mxu0
  %v785 = vadd.f32 %v164, %v784
  %v786 = vpop.f32.mrb[0].mxu0
  %v787 = vpop.f32.mrb[0].mxu0
  %v788 = vadd.f32 %v164, %v787
  %v789 = vpop.f32.mrb[0].mxu0
  %790 = vmatprep.mubr.bf16.mxu0 0
  %791 = vmatmul.mubr.bf16.gmra.mrb[0].mxu0 %v442
  %v792 = vpop.f32.mrb[0].mxu0
  %v793 = vadd.f32 %v164, %v792
  %v794 = vpop.f32.mrb[0].mxu0
  %v795 = vpop.f32.mrb[0].mxu0
  %v796 = vadd.f32 %v164, %v795
  %v797 = vpop.f32.mrb[0].mxu0
  %798 = vmatprep.mubr.bf16.mxu0 0
  %799 = vmatmul.mubr.bf16.gmra.mrb[0].mxu0 %v443
  %v800 = vpop.f32.mrb[0].mxu0
  %v801 = vadd.f32 %v164, %v800
  %v802 = vpop.f32.mrb[0].mxu0
  %v803 = vpop.f32.mrb[0].mxu0
  %v804 = vadd.f32 %v164, %v803
  %v805 = vpop.f32.mrb[0].mxu0
  %806 = vmatprep.mubr.bf16.mxu0 0
  %807 = vmatmul.mubr.bf16.gmra.mrb[0].mxu0 %v444
  %v808 = vpop.f32.mrb[0].mxu0
  %v809 = vadd.f32 %v164, %v808
  %v810 = vpop.f32.mrb[0].mxu0
  %v811 = vpop.f32.mrb[0].mxu0
  %v812 = vadd.f32 %v164, %v811
  %v813 = vpop.f32.mrb[0].mxu0
  %814 = vmatprep.mubr.bf16.mxu0 0
  %815 = vmatmul.mubr.bf16.gmra.mrb[0].mxu0 %v445
  %v816 = vpop.f32.mrb[0].mxu0
  %v817 = vadd.f32 %v164, %v816
  %v818 = vpop.f32.mrb[0].mxu0
  %v819 = vpop.f32.mrb[0].mxu0
  %v820 = vadd.f32 %v164, %v819
  %v821 = vpop.f32.mrb[0].mxu0
  %822 = vmatprep.mubr.bf16.mxu0 0
  %823 = vmatmul.mubr.bf16.gmra.mrb[0].mxu0 %v446
  %v824 = vpop.f32.mrb[0].mxu0
  %v825 = vadd.f32 %v164, %v824
  %v826 = vpop.f32.mrb[0].mxu0
  %v827 = vpop.f32.mrb[0].mxu0
  %v828 = vadd.f32 %v164, %v827
  %v829 = vpop.f32.mrb[0].mxu0
  %830 = vmatprep.mubr.bf16.mxu0 0
  %831 = vmatmul.mubr.bf16.gmra.mrb[0].mxu0 %v447
  %v832 = vpop.f32.mrb[0].mxu0
  %v833 = vadd.f32 %v164, %v832
  %v834 = vpop.f32.mrb[0].mxu0
  %v835 = vpop.f32.mrb[0].mxu0
  %v836 = vadd.f32 %v164, %v835
  %v837 = vpop.f32.mrb[0].mxu0
  %838 = vmatprep.mubr.bf16.mxu0 0
  %839 = vmatmul.mubr.bf16.gmra.mrb[0].mxu0 %v448
  %v840 = vpop.f32.mrb[0].mxu0
  %v841 = vadd.f32 %v164, %v840
  %v842 = vpop.f32.mrb[0].mxu0
  %v843 = vpop.f32.mrb[0].mxu0
  %v844 = vadd.f32 %v164, %v843
  %v845 = vpop.f32.mrb[0].mxu0
  %846 = vmatprep.mubr.bf16.mxu0 0
  %847 = vmatmul.mubr.bf16.gmra.mrb[0].mxu0 %v449
  %v848 = vpop.f32.mrb[0].mxu0
  %v849 = vadd.f32 %v164, %v848
  %v850 = vpop.f32.mrb[0].mxu0
  %v851 = vpop.f32.mrb[0].mxu0
  %v852 = vadd.f32 %v164, %v851
  %v853 = vpop.f32.mrb[0].mxu0
  %854 = vmatprep.mubr.bf16.mxu0 0
  %855 = vmatmul.mubr.bf16.gmra.mrb[0].mxu0 %v450
  %v856 = vpop.f32.mrb[0].mxu0
  %v857 = vadd.f32 %v164, %v856
  %v858 = vpop.f32.mrb[0].mxu0
  %v859 = vpop.f32.mrb[0].mxu0
  %v860 = vadd.f32 %v164, %v859
  %v861 = vpop.f32.mrb[0].mxu0
  %862 = vmatprep.mubr.bf16.mxu0 0
  %863 = vmatmul.mubr.bf16.gmra.mrb[0].mxu0 %v451
  %v864 = vpop.f32.mrb[0].mxu0
  %v865 = vadd.f32 %v164, %v864
  %v866 = vpop.f32.mrb[0].mxu0
  %v867 = vpop.f32.mrb[0].mxu0
  %v868 = vadd.f32 %v164, %v867
  %v869 = vpop.f32.mrb[0].mxu0
  %870 = vmatprep.mubr.bf16.mxu0 0
  %871 = vmatmul.mubr.bf16.gmra.mrb[0].mxu0 %v452
  %v872 = vpop.f32.mrb[0].mxu0
  %v873 = vadd.f32 %v164, %v872
  %v874 = vpop.f32.mrb[0].mxu0
  %v875 = vpop.f32.mrb[0].mxu0
  %v876 = vadd.f32 %v164, %v875
  %v877 = vpop.f32.mrb[0].mxu0
  %878 = vmatprep.mubr.bf16.mxu0 0
  %879 = vmatmul.mubr.bf16.gmra.mrb[0].mxu0 %v453
  %v880 = vpop.f32.mrb[0].mxu0
  %v881 = vadd.f32 %v164, %v880
  %v882 = vpop.f32.mrb[0].mxu0
  %v883 = vpop.f32.mrb[0].mxu0
  %v884 = vadd.f32 %v164, %v883
  %v885 = vpop.f32.mrb[0].mxu0
  %886 = vmatprep.mubr.bf16.mxu0 0
  %887 = vmatmul.mubr.bf16.gmra.mrb[0].mxu0 %v454
  %v888 = vpop.f32.mrb[0].mxu0
  %v889 = vadd.f32 %v164, %v888
  %v890 = vpop.f32.mrb[0].mxu0
  %v891 = vpop.f32.mrb[0].mxu0
  %v892 = vadd.f32 %v164, %v891
  %v893 = vpop.f32.mrb[0].mxu0
  %894 = vmatprep.mubr.bf16.mxu0 0
  %895 = vmatmul.mubr.bf16.gmra.mrb[0].mxu0 %v455
  %v896 = vpop.f32.mrb[0].mxu0
  %v897 = vadd.f32 %v164, %v896
  %v898 = vpop.f32.mrb[0].mxu0
  %v899 = vpop.f32.mrb[0].mxu0
  %v900 = vadd.f32 %v164, %v899
  %v901 = vpop.f32.mrb[0].mxu0
  %902 = vmatprep.mubr.bf16.mxu0 0
  %903 = vmatmul.mubr.bf16.gmra.mrb[0].mxu0 %v456
  %v904 = vpop.f32.mrb[0].mxu0
  %v905 = vadd.f32 %v164, %v904
  %v906 = vpop.f32.mrb[0].mxu0
  %v907 = vpop.f32.mrb[0].mxu0
  %v908 = vadd.f32 %v164, %v907
  %v909 = vpop.f32.mrb[0].mxu0
  %910 = vmatprep.mubr.bf16.mxu0 0
  %911 = vmatmul.mubr.bf16.gmra.mrb[0].mxu0 %v457
  %v912 = vpop.f32.mrb[0].mxu0
  %v913 = vadd.f32 %v164, %v912
  %v914 = vpop.f32.mrb[0].mxu0
  %v915 = vpop.f32.mrb[0].mxu0
  %v916 = vadd.f32 %v164, %v915
  %v917 = vpop.f32.mrb[0].mxu0
  %918 = vmatprep.mubr.bf16.mxu0 0
  %919 = vmatmul.mubr.bf16.gmra.mrb[0].mxu0 %v458
  %v920 = vpop.f32.mrb[0].mxu0
  %v921 = vadd.f32 %v164, %v920
  %v922 = vpop.f32.mrb[0].mxu0
  %v923 = vpop.f32.mrb[0].mxu0
  %v924 = vadd.f32 %v164, %v923
  %v925 = vpop.f32.mrb[0].mxu0
  %926 = vmatprep.mubr.bf16.mxu0 0
  %927 = vmatmul.mubr.bf16.gmra.mrb[0].mxu0 %v459
  %v928 = vpop.f32.mrb[0].mxu0
  %v929 = vadd.f32 %v164, %v928
  %v930 = vpop.f32.mrb[0].mxu0
  %v931 = vpop.f32.mrb[0].mxu0
  %v932 = vadd.f32 %v164, %v931
  %v933 = vpop.f32.mrb[0].mxu0
  %934 = vmatprep.mubr.bf16.mxu0 0
  %935 = vmatmul.mubr.bf16.gmra.mrb[0].mxu0 %v460
  %v936 = vpop.f32.mrb[0].mxu0
  %v937 = vadd.f32 %v164, %v936
  %v938 = vpop.f32.mrb[0].mxu0
  %v939 = vpop.f32.mrb[0].mxu0
  %v940 = vadd.f32 %v164, %v939
  %v941 = vpop.f32.mrb[0].mxu0
  %942 = vmatprep.mubr.bf16.mxu0 0
  %943 = vmatmul.mubr.bf16.gmra.mrb[0].mxu0 %v461
  %v944 = vpop.f32.mrb[0].mxu0
  %v945 = vadd.f32 %v164, %v944
  %v946 = vpop.f32.mrb[0].mxu0
  %v947 = vpop.f32.mrb[0].mxu0
  %v948 = vadd.f32 %v164, %v947
  %v949 = vpop.f32.mrb[0].mxu0
  %950 = vmatprep.mubr.bf16.mxu0 0
  %951 = vmatmul.mubr.bf16.gmra.mrb[0].mxu0 %v462
  %v952 = vpop.f32.mrb[0].mxu0
  %v953 = vadd.f32 %v164, %v952
  %v954 = vpop.f32.mrb[0].mxu0
  %v955 = vpop.f32.mrb[0].mxu0
  %v956 = vadd.f32 %v164, %v955
  %v957 = vpop.f32.mrb[0].mxu0
  %958 = vmatprep.mubr.bf16.mxu0 0
  %959 = vmatmul.mubr.bf16.gmra.mrb[0].mxu0 %v463
  %v960 = vpop.f32.mrb[0].mxu0
  %v961 = vadd.f32 %v164, %v960
  %v962 = vpop.f32.mrb[0].mxu0
  %v963 = vpop.f32.mrb[0].mxu0
  %v964 = vadd.f32 %v164, %v963
  %v965 = vpop.f32.mrb[0].mxu0
  %966 = vmatprep.mubr.bf16.mxu0 0
  %967 = vmatmul.mubr.bf16.gmra.mrb[0].mxu0 %v464
  %v968 = vpop.f32.mrb[0].mxu0
  %v969 = vadd.f32 %v164, %v968
  %v970 = vpop.f32.mrb[0].mxu0
  %v971 = vpop.f32.mrb[0].mxu0
  %v972 = vadd.f32 %v164, %v971
  %v973 = vpop.f32.mrb[0].mxu0
  %974 = vmatprep.mubr.bf16.mxu0 0
  %975 = vmatmul.mubr.bf16.gmra.mrb[0].mxu0 %v465
  %v976 = vpop.f32.mrb[0].mxu0
  %v977 = vadd.f32 %v164, %v976
  %v978 = vpop.f32.mrb[0].mxu0
  %v979 = vpop.f32.mrb[0].mxu0
  %v980 = vadd.f32 %v164, %v979
  %v981 = vpop.f32.mrb[0].mxu0
  %982 = vmatprep.mubr.bf16.mxu0 0
  %983 = vmatmul.mubr.bf16.gmra.mrb[0].mxu0 %v466
  %v984 = vpop.f32.mrb[0].mxu0
  %v985 = vadd.f32 %v164, %v984
  %v986 = vpop.f32.mrb[0].mxu0
  %v987 = vpop.f32.mrb[0].mxu0
  %v988 = vadd.f32 %v164, %v987
  %v989 = vpop.f32.mrb[0].mxu0
  %990 = vmatprep.mubr.bf16.mxu0 0
  %991 = vmatmul.mubr.bf16.gmra.mrb[0].mxu0 %v467
  %v992 = vpop.f32.mrb[0].mxu0
  %v993 = vadd.f32 %v164, %v992
  %v994 = vpop.f32.mrb[0].mxu0
  %v995 = vpop.f32.mrb[0].mxu0
  %v996 = vadd.f32 %v164, %v995
  %v997 = vpop.f32.mrb[0].mxu0
  %998 = vmatprep.mubr.bf16.mxu0 0
  %999 = vmatmul.mubr.bf16.gmra.mrb[0].mxu0 %v468
  %v1000 = vpop.f32.mrb[0].mxu0
  %v1001 = vadd.f32 %v164, %v1000
  %v1002 = vpop.f32.mrb[0].mxu0
  %v1003 = vpop.f32.mrb[0].mxu0
  %v1004 = vadd.f32 %v164, %v1003
  %v1005 = vpop.f32.mrb[0].mxu0
  %1006 = vmatprep.mubr.bf16.mxu0 0
  %1007 = vmatmul.mubr.bf16.gmra.mrb[0].mxu0 %v469
  %v1008 = vpop.f32.mrb[0].mxu0
  %v1009 = vadd.f32 %v164, %v1008
  %v1010 = vpop.f32.mrb[0].mxu0
  %v1011 = vpop.f32.mrb[0].mxu0
  %v1012 = vadd.f32 %v164, %v1011
  %v1013 = vpop.f32.mrb[0].mxu0
  %1014 = vmatprep.mubr.bf16.mxu0 0
  %1015 = vmatmul.mubr.bf16.gmra.mrb[0].mxu0 %v470
  %v1016 = vpop.f32.mrb[0].mxu0
  %v1017 = vadd.f32 %v164, %v1016
  %v1018 = vpop.f32.mrb[0].mxu0
  %v1019 = vpop.f32.mrb[0].mxu0
  %v1020 = vadd.f32 %v164, %v1019
  %v1021 = vpop.f32.mrb[0].mxu0
  %1022 = vmatprep.mubr.bf16.mxu0 0
  %1023 = vmatmul.mubr.bf16.gmra.mrb[0].mxu0 %v471
  %v1024 = vpop.f32.mrb[0].mxu0
  %v1025 = vadd.f32 %v164, %v1024
  %v1026 = vpop.f32.mrb[0].mxu0
  %v1027 = vpop.f32.mrb[0].mxu0
  %v1028 = vadd.f32 %v164, %v1027
  %v1029 = vpop.f32.mrb[0].mxu0
  %1030 = vmatprep.mubr.bf16.mxu0 0
  %1031 = vmatmul.mubr.bf16.gmra.mrb[0].mxu0 %v472
  %v1032 = vpop.f32.mrb[0].mxu0
  %v1033 = vadd.f32 %v164, %v1032
  %v1034 = vpop.f32.mrb[0].mxu0
  %v1035 = vpop.f32.mrb[0].mxu0
  %v1036 = vadd.f32 %v164, %v1035
  %v1037 = vpop.f32.mrb[0].mxu0
  %1038 = vmatprep.mubr.bf16.mxu0 0
  %1039 = vmatmul.mubr.bf16.gmra.mrb[0].mxu0 %v473
  %v1040 = vpop.f32.mrb[0].mxu0
  %v1041 = vadd.f32 %v164, %v1040
  %v1042 = vpop.f32.mrb[0].mxu0
  %v1043 = vpop.f32.mrb[0].mxu0
  %v1044 = vadd.f32 %v164, %v1043
  %v1045 = vpop.f32.mrb[0].mxu0
  %1046 = vmatprep.mubr.bf16.mxu0 0
  %1047 = vmatmul.mubr.bf16.gmra.mrb[0].mxu0 %v474
  %v1048 = vpop.f32.mrb[0].mxu0
  %v1049 = vadd.f32 %v164, %v1048
  %v1050 = vpop.f32.mrb[0].mxu0
  %v1051 = vpop.f32.mrb[0].mxu0
  %v1052 = vadd.f32 %v164, %v1051
  %v1053 = vpop.f32.mrb[0].mxu0
  %1054 = vmatprep.mubr.bf16.mxu0 0
  %1055 = vmatmul.mubr.bf16.gmra.mrb[0].mxu0 %v475
  %v1056 = vpop.f32.mrb[0].mxu0
  %v1057 = vadd.f32 %v164, %v1056
  %v1058 = vpop.f32.mrb[0].mxu0
  %v1059 = vpop.f32.mrb[0].mxu0
  %v1060 = vadd.f32 %v164, %v1059
  %v1061 = vpop.f32.mrb[0].mxu0
  %1062 = vmatprep.mubr.bf16.mxu0 0
  %1063 = vmatmul.mubr.bf16.gmra.mrb[0].mxu0 %v476
  %v1064 = vpop.f32.mrb[0].mxu0
  %v1065 = vadd.f32 %v164, %v1064
  %v1066 = vpop.f32.mrb[0].mxu0
  %v1067 = vpop.f32.mrb[0].mxu0
  %v1068 = vadd.f32 %v164, %v1067
  %v1069 = vpop.f32.mrb[0].mxu0
  %1070 = vmatprep.mubr.bf16.mxu0 0
  %1071 = vmatmul.mubr.bf16.gmra.mrb[0].mxu0 %v477
  %v1072 = vpop.f32.mrb[0].mxu0
  %v1073 = vadd.f32 %v164, %v1072
  %v1074 = vpop.f32.mrb[0].mxu0
  %v1075 = vpop.f32.mrb[0].mxu0
  %v1076 = vadd.f32 %v164, %v1075
  %v1077 = vpop.f32.mrb[0].mxu0
  %1078 = vmatprep.mubr.bf16.mxu0 0
  %1079 = vmatmul.mubr.bf16.gmra.mrb[0].mxu0 %v478
  %v1080 = vpop.f32.mrb[0].mxu0
  %v1081 = vadd.f32 %v164, %v1080
  %v1082 = vpop.f32.mrb[0].mxu0
  %v1083 = vpop.f32.mrb[0].mxu0
  %v1084 = vadd.f32 %v164, %v1083
  %v1085 = vpop.f32.mrb[0].mxu0
  %1086 = vmatprep.mubr.bf16.mxu0 0
  %1087 = vmatmul.mubr.bf16.gmra.mrb[0].mxu0 %v479
  %v1088 = vpop.f32.mrb[0].mxu0
  %v1089 = vadd.f32 %v164, %v1088
  %v1090 = vpop.f32.mrb[0].mxu0
  %v1091 = vpop.f32.mrb[0].mxu0
  %v1092 = vadd.f32 %v164, %v1091
  %v1093 = vpop.f32.mrb[0].mxu0
  %1094 = vmatprep.mubr.bf16.mxu0 0
  %1095 = vmatmul.mubr.bf16.gmra.mrb[0].mxu0 %v480
  %v1096 = vpop.f32.mrb[0].mxu0
  %v1097 = vadd.f32 %v164, %v1096
  %v1098 = vpop.f32.mrb[0].mxu0
  %v1099 = vpop.f32.mrb[0].mxu0
  %v1100 = vadd.f32 %v164, %v1099
  %v1101 = vpop.f32.mrb[0].mxu0
  %1102 = vmatprep.mubr.bf16.mxu0 0
  %1103 = vmatmul.mubr.bf16.gmra.mrb[0].mxu0 %v481
  %v1104 = vpop.f32.mrb[0].mxu0
  %v1105 = vadd.f32 %v164, %v1104
  %v1106 = vpop.f32.mrb[0].mxu0
  %v1107 = vpop.f32.mrb[0].mxu0
  %v1108 = vadd.f32 %v164, %v1107
  %v1109 = vpop.f32.mrb[0].mxu0
  %1110 = vmatprep.mubr.bf16.mxu0 0
  %1111 = vmatmul.mubr.bf16.gmra.mrb[0].mxu0 %v482
  %v1112 = vpop.f32.mrb[0].mxu0
  %v1113 = vadd.f32 %v164, %v1112
  %v1114 = vpop.f32.mrb[0].mxu0
  %v1115 = vpop.f32.mrb[0].mxu0
  %v1116 = vadd.f32 %v164, %v1115
  %v1117 = vpop.f32.mrb[0].mxu0
  %1118 = vmatprep.mubr.bf16.mxu0 0
  %1119 = vmatmul.mubr.bf16.gmra.mrb[0].mxu0 %v483
  %v1120 = vpop.f32.mrb[0].mxu0
  %v1121 = vadd.f32 %v164, %v1120
  %v1122 = vpop.f32.mrb[0].mxu0
  %v1123 = vpop.f32.mrb[0].mxu0
  %v1124 = vadd.f32 %v164, %v1123
  %v1125 = vpop.f32.mrb[0].mxu0
  %1126 = vmatprep.mubr.bf16.mxu0 0
  %1127 = vmatmul.mubr.bf16.gmra.mrb[0].mxu0 %v484
  %v1128 = vpop.f32.mrb[0].mxu0
  %v1129 = vadd.f32 %v164, %v1128
  %v1130 = vpop.f32.mrb[0].mxu0
  %v1131 = vpop.f32.mrb[0].mxu0
  %v1132 = vadd.f32 %v164, %v1131
  %v1133 = vpop.f32.mrb[0].mxu0
  %1134 = vmatprep.mubr.bf16.mxu0 0
  %1135 = vmatmul.mubr.bf16.gmra.mrb[0].mxu0 %v485
  %v1136 = vpop.f32.mrb[0].mxu0
  %v1137 = vadd.f32 %v164, %v1136
  %v1138 = vpop.f32.mrb[0].mxu0
  %v1139 = vpop.f32.mrb[0].mxu0
  %v1140 = vadd.f32 %v164, %v1139
  %v1141 = vpop.f32.mrb[0].mxu0
  %1142 = vdwg.mxu0
  %1143 = vst [vmem:[%s3] sm:$0xff] %v633
  %1144 = vst [vmem:[%s3 + $0x8] sm:$0xff] %v636
  %1145 = vst [vmem:[%s3 + $0x10] sm:$0xff] %v641
  %1146 = vst [vmem:[%s3 + $0x18] sm:$0xff] %v644
  %1147 = vst [vmem:[%s3 + $0x20] sm:$0xff] %v649
  %1148 = vst [vmem:[%s3 + $0x28] sm:$0xff] %v652
  %1149 = vst [vmem:[%s3 + $0x30] sm:$0xff] %v657
  %1150 = vst [vmem:[%s3 + $0x38] sm:$0xff] %v660
  %1151 = vst [vmem:[%s3 + $0x40] sm:$0xff] %v665
  %1152 = vst [vmem:[%s3 + $0x48] sm:$0xff] %v668
  %1153 = vst [vmem:[%s3 + $0x50] sm:$0xff] %v673
  %1154 = vst [vmem:[%s3 + $0x58] sm:$0xff] %v676
  %1155 = vst [vmem:[%s3 + $0x60] sm:$0xff] %v681
  %1156 = vst [vmem:[%s3 + $0x68] sm:$0xff] %v684
  %1157 = vst [vmem:[%s3 + $0x70] sm:$0xff] %v689
  %1158 = vst [vmem:[%s3 + $0x78] sm:$0xff] %v692
  %1159 = vst [vmem:[%s3 + $0x80] sm:$0xff] %v697
  %1160 = vst [vmem:[%s3 + $0x88] sm:$0xff] %v700
  %1161 = vst [vmem:[%s3 + $0x90] sm:$0xff] %v705
  %1162 = vst [vmem:[%s3 + $0x98] sm:$0xff] %v708
  %1163 = vst [vmem:[%s3 + $0xa0] sm:$0xff] %v713
  %1164 = vst [vmem:[%s3 + $0xa8] sm:$0xff] %v716
  %1165 = vst [vmem:[%s3 + $0xb0] sm:$0xff] %v721
  %1166 = vst [vmem:[%s3 + $0xb8] sm:$0xff] %v724
  %1167 = vst [vmem:[%s3 + $0xc0] sm:$0xff] %v729
  %1168 = vst [vmem:[%s3 + $0xc8] sm:$0xff] %v732
  %1169 = vst [vmem:[%s3 + $0xd0] sm:$0xff] %v737
  %1170 = vst [vmem:[%s3 + $0xd8] sm:$0xff] %v740
  %1171 = vst [vmem:[%s3 + $0xe0] sm:$0xff] %v745
  %1172 = vst [vmem:[%s3 + $0xe8] sm:$0xff] %v748
  %1173 = vst [vmem:[%s3 + $0xf0] sm:$0xff] %v753
  %1174 = vst [vmem:[%s3 + $0xf8] sm:$0xff] %v756
  %1175 = vst [vmem:[%s3 + $0x100] sm:$0xff] %v761
  %1176 = vst [vmem:[%s3 + $0x108] sm:$0xff] %v764
  %1177 = vst [vmem:[%s3 + $0x110] sm:$0xff] %v769
  %1178 = vst [vmem:[%s3 + $0x118] sm:$0xff] %v772
  %1179 = vst [vmem:[%s3 + $0x120] sm:$0xff] %v777
  %1180 = vst [vmem:[%s3 + $0x128] sm:$0xff] %v780
  %1181 = vst [vmem:[%s3 + $0x130] sm:$0xff] %v785
  %1182 = vst [vmem:[%s3 + $0x138] sm:$0xff] %v788
  %1183 = vst [vmem:[%s3 + $0x140] sm:$0xff] %v793
  %1184 = vst [vmem:[%s3 + $0x148] sm:$0xff] %v796
  %1185 = vst [vmem:[%s3 + $0x150] sm:$0xff] %v801
  %1186 = vst [vmem:[%s3 + $0x158] sm:$0xff] %v804
  %1187 = vst [vmem:[%s3 + $0x160] sm:$0xff] %v809
  %1188 = vst [vmem:[%s3 + $0x168] sm:$0xff] %v812
  %1189 = vst [vmem:[%s3 + $0x170] sm:$0xff] %v817
  %1190 = vst [vmem:[%s3 + $0x178] sm:$0xff] %v820
  %1191 = vst [vmem:[%s3 + $0x180] sm:$0xff] %v825
  %1192 = vst [vmem:[%s3 + $0x188] sm:$0xff] %v828
  %1193 = vst [vmem:[%s3 + $0x190] sm:$0xff] %v833
  %1194 = vst [vmem:[%s3 + $0x198] sm:$0xff] %v836
  %1195 = vst [vmem:[%s3 + $0x1a0] sm:$0xff] %v841
  %1196 = vst [vmem:[%s3 + $0x1a8] sm:$0xff] %v844
  %1197 = vst [vmem:[%s3 + $0x1b0] sm:$0xff] %v849
  %1198 = vst [vmem:[%s3 + $0x1b8] sm:$0xff] %v852
  %1199 = vst [vmem:[%s3 + $0x1c0] sm:$0xff] %v857
  %1200 = vst [vmem:[%s3 + $0x1c8] sm:$0xff] %v860
  %1201 = vst [vmem:[%s3 + $0x1d0] sm:$0xff] %v865
  %1202 = vst [vmem:[%s3 + $0x1d8] sm:$0xff] %v868
  %1203 = vst [vmem:[%s3 + $0x1e0] sm:$0xff] %v873
  %1204 = vst [vmem:[%s3 + $0x1e8] sm:$0xff] %v876
  %1205 = vst [vmem:[%s3 + $0x1f0] sm:$0xff] %v881
  %1206 = vst [vmem:[%s3 + $0x1f8] sm:$0xff] %v884
  %1207 = vst [vmem:[%s3 + $0x200] sm:$0xff] %v889
  %1208 = vst [vmem:[%s3 + $0x208] sm:$0xff] %v892
  %1209 = vst [vmem:[%s3 + $0x210] sm:$0xff] %v897
  %1210 = vst [vmem:[%s3 + $0x218] sm:$0xff] %v900
  %1211 = vst [vmem:[%s3 + $0x220] sm:$0xff] %v905
  %1212 = vst [vmem:[%s3 + $0x228] sm:$0xff] %v908
  %1213 = vst [vmem:[%s3 + $0x230] sm:$0xff] %v913
  %1214 = vst [vmem:[%s3 + $0x238] sm:$0xff] %v916
  %1215 = vst [vmem:[%s3 + $0x240] sm:$0xff] %v921
  %1216 = vst [vmem:[%s3 + $0x248] sm:$0xff] %v924
  %1217 = vst [vmem:[%s3 + $0x250] sm:$0xff] %v929
  %1218 = vst [vmem:[%s3 + $0x258] sm:$0xff] %v932
  %1219 = vst [vmem:[%s3 + $0x260] sm:$0xff] %v937
  %1220 = vst [vmem:[%s3 + $0x268] sm:$0xff] %v940
  %1221 = vst [vmem:[%s3 + $0x270] sm:$0xff] %v945
  %1222 = vst [vmem:[%s3 + $0x278] sm:$0xff] %v948
  %1223 = vst [vmem:[%s3 + $0x280] sm:$0xff] %v953
  %1224 = vst [vmem:[%s3 + $0x288] sm:$0xff] %v956
  %1225 = vst [vmem:[%s3 + $0x290] sm:$0xff] %v961
  %1226 = vst [vmem:[%s3 + $0x298] sm:$0xff] %v964
  %1227 = vst [vmem:[%s3 + $0x2a0] sm:$0xff] %v969
  %1228 = vst [vmem:[%s3 + $0x2a8] sm:$0xff] %v972
  %1229 = vst [vmem:[%s3 + $0x2b0] sm:$0xff] %v977
  %1230 = vst [vmem:[%s3 + $0x2b8] sm:$0xff] %v980
  %1231 = vst [vmem:[%s3 + $0x2c0] sm:$0xff] %v985
  %1232 = vst [vmem:[%s3 + $0x2c8] sm:$0xff] %v988
  %1233 = vst [vmem:[%s3 + $0x2d0] sm:$0xff] %v993
  %1234 = vst [vmem:[%s3 + $0x2d8] sm:$0xff] %v996
  %1235 = vst [vmem:[%s3 + $0x2e0] sm:$0xff] %v1001
  %1236 = vst [vmem:[%s3 + $0x2e8] sm:$0xff] %v1004
  %1237 = vst [vmem:[%s3 + $0x2f0] sm:$0xff] %v1009
  %1238 = vst [vmem:[%s3 + $0x2f8] sm:$0xff] %v1012
  %1239 = vst [vmem:[%s3 + $0x300] sm:$0xff] %v1017
  %1240 = vst [vmem:[%s3 + $0x308] sm:$0xff] %v1020
  %1241 = vst [vmem:[%s3 + $0x310] sm:$0xff] %v1025
  %1242 = vst [vmem:[%s3 + $0x318] sm:$0xff] %v1028
  %1243 = vst [vmem:[%s3 + $0x320] sm:$0xff] %v1033
  %1244 = vst [vmem:[%s3 + $0x328] sm:$0xff] %v1036
  %1245 = vst [vmem:[%s3 + $0x330] sm:$0xff] %v1041
  %1246 = vst [vmem:[%s3 + $0x338] sm:$0xff] %v1044
  %1247 = vst [vmem:[%s3 + $0x340] sm:$0xff] %v1049
  %1248 = vst [vmem:[%s3 + $0x348] sm:$0xff] %v1052
  %1249 = vst [vmem:[%s3 + $0x350] sm:$0xff] %v1057
  %1250 = vst [vmem:[%s3 + $0x358] sm:$0xff] %v1060
  %1251 = vst [vmem:[%s3 + $0x360] sm:$0xff] %v1065
  %1252 = vst [vmem:[%s3 + $0x368] sm:$0xff] %v1068
  %1253 = vst [vmem:[%s3 + $0x370] sm:$0xff] %v1073
  %1254 = vst [vmem:[%s3 + $0x378] sm:$0xff] %v1076
  %1255 = vst [vmem:[%s3 + $0x380] sm:$0xff] %v1081
  %1256 = vst [vmem:[%s3 + $0x388] sm:$0xff] %v1084
  %1257 = vst [vmem:[%s3 + $0x390] sm:$0xff] %v1089
  %1258 = vst [vmem:[%s3 + $0x398] sm:$0xff] %v1092
  %1259 = vst [vmem:[%s3 + $0x3a0] sm:$0xff] %v1097
  %1260 = vst [vmem:[%s3 + $0x3a8] sm:$0xff] %v1100
  %1261 = vst [vmem:[%s3 + $0x3b0] sm:$0xff] %v1105
  %1262 = vst [vmem:[%s3 + $0x3b8] sm:$0xff] %v1108
  %1263 = vst [vmem:[%s3 + $0x3c0] sm:$0xff] %v1113
  %1264 = vst [vmem:[%s3 + $0x3c8] sm:$0xff] %v1116
  %1265 = vst [vmem:[%s3 + $0x3d0] sm:$0xff] %v1121
  %1266 = vst [vmem:[%s3 + $0x3d8] sm:$0xff] %v1124
  %1267 = vst [vmem:[%s3 + $0x3e0] sm:$0xff] %v1129
  %1268 = vst [vmem:[%s3 + $0x3e8] sm:$0xff] %v1132
  %1269 = vst [vmem:[%s3 + $0x3f0] sm:$0xff] %v1137
  %1270 = vst [vmem:[%s3 + $0x3f8] sm:$0xff] %v1140
  // Predicated region
  $region14: #{mobrecon_forward.13} parent=0 // pred_check
    _
  $region15: #{mobrecon_forward.13} parent=0 // pred_check_branch
    %1272 = sbr.rel (0) target = $region17
  $region16: #{mobrecon_forward.13} parent=0 // pred_region
    _
  $region17: #{mobrecon_forward.13} parent=0 // pred_fallthru
    _
  // Predicated region
  $region18: #{mobrecon_forward.13} parent=0 // pred_check
    _
  $region19: #{mobrecon_forward.13} parent=0 // pred_check_branch
    %1274 = sbr.rel (0) target = $region21
  $region20: #{mobrecon_forward.13} parent=0 // pred_region
    _
  $region21: #{mobrecon_forward.13} parent=0 // pred_fallthru
    _

// kernel: mobrecon_forward.11
$region0: #{mobrecon_forward.11}
  #allocation0 [shape = 'u32[]', space=smem, size = 0x4, offset = 0x4, fixed_abs, tag = 'smem constant byte address 0x4 - core index']
  #allocation1 [shape = 'u32[144,128]{1,0:T(1,128)}', space=vmem, size = 0x12000, scoped, tag = 'internal scratch']
  %s0 = inlined_call_operand.vmem [shape: bf16[1024,128], index: 0, kind: input, shape index: {}]
  %s1 = inlined_call_operand.vmem [shape: bf16[128,128], index: 1, kind: input, shape index: {}]
  %s2 = inlined_call_operand.vmem [shape: f32[1,128], index: 2, kind: input, shape index: {}]
  %s3 = inlined_call_operand.vmem [shape: bf16[1024,128], index: 3, kind: input, shape index: {}]
  %s4 = inlined_call_operand.vmem [shape: bf16[1024,128], index: 4, kind: output, shape index: {}]
  %s5 = sld [smem:[#allocation0]]
  $region26: #{mobrecon_forward.11} parent=0
    _
  %s7 = ssub.s32 1, %s5
  %s8 = scalar_select 0, %s7, %s5
  // Predicated region
  $region2: #{mobrecon_forward.11} parent=0 // pred_check
    _
  $region3: #{mobrecon_forward.11} parent=0 // pred_check_branch
    %10 = sbr.rel (0) target = $region5
  $region4: #{mobrecon_forward.11} parent=0 // pred_region
    _
  $region5: #{mobrecon_forward.11} parent=0 // pred_fallthru
    _
  // Predicated region
  $region6: #{mobrecon_forward.11} parent=0 // pred_check
    _
  $region7: #{mobrecon_forward.11} parent=0 // pred_check_branch
    %12 = sbr.rel (0) target = $region9
  $region8: #{mobrecon_forward.11} parent=0 // pred_region
    _
  $region9: #{mobrecon_forward.11} parent=0 // pred_fallthru
    _
  // Predicated region
  $region10: #{mobrecon_forward.11} parent=0 // pred_check
    _
  $region11: #{mobrecon_forward.11} parent=0 // pred_check_branch
    %14 = sbr.rel (0) target = $region13
  $region12: #{mobrecon_forward.11} parent=0 // pred_region
    _
  $region13: #{mobrecon_forward.11} parent=0 // pred_fallthru
    _
  // Predicated region
  $region14: #{mobrecon_forward.11} parent=0 // pred_check
    _
  $region15: #{mobrecon_forward.11} parent=0 // pred_check_branch
    %16 = sbr.rel (0) target = $region17
  $region16: #{mobrecon_forward.11} parent=0 // pred_region
    _
  $region17: #{mobrecon_forward.11} parent=0 // pred_fallthru
    _
  %v18 = vld [vmem:[%s0] sm:$0xf]
  %v19 = vld [vmem:[%s0 + $0x4] sm:$0xf]
  %v20 = vld [vmem:[%s0 + $0x8] sm:$0xf]
  %v21 = vld [vmem:[%s0 + $0xc] sm:$0xf]
  %v22 = vld [vmem:[%s0 + $0x10] sm:$0xf]
  %v23 = vld [vmem:[%s0 + $0x14] sm:$0xf]
  %v24 = vld [vmem:[%s0 + $0x18] sm:$0xf]
  %v25 = vld [vmem:[%s0 + $0x1c] sm:$0xf]
  %v26 = vld [vmem:[%s0 + $0x20] sm:$0xf]
  %v27 = vld [vmem:[%s0 + $0x24] sm:$0xf]
  %v28 = vld [vmem:[%s0 + $0x28] sm:$0xf]
  %v29 = vld [vmem:[%s0 + $0x2c] sm:$0xf]
  %v30 = vld [vmem:[%s0 + $0x30] sm:$0xf]
  %v31 = vld [vmem:[%s0 + $0x34] sm:$0xf]
  %v32 = vld [vmem:[%s0 + $0x38] sm:$0xf]
  %v33 = vld [vmem:[%s0 + $0x3c] sm:$0xf]
  %v34 = vld [vmem:[%s0 + $0x40] sm:$0xf]
  %v35 = vld [vmem:[%s0 + $0x44] sm:$0xf]
  %v36 = vld [vmem:[%s0 + $0x48] sm:$0xf]
  %v37 = vld [vmem:[%s0 + $0x4c] sm:$0xf]
  %v38 = vld [vmem:[%s0 + $0x50] sm:$0xf]
  %v39 = vld [vmem:[%s0 + $0x54] sm:$0xf]
  %v40 = vld [vmem:[%s0 + $0x58] sm:$0xf]
  %v41 = vld [vmem:[%s0 + $0x5c] sm:$0xf]
  %v42 = vld [vmem:[%s0 + $0x60] sm:$0xf]
  %v43 = vld [vmem:[%s0 + $0x64] sm:$0xf]
  %v44 = vld [vmem:[%s0 + $0x68] sm:$0xf]
  %v45 = vld [vmem:[%s0 + $0x6c] sm:$0xf]
  %v46 = vld [vmem:[%s0 + $0x70] sm:$0xf]
  %v47 = vld [vmem:[%s0 + $0x74] sm:$0xf]
  %v48 = vld [vmem:[%s0 + $0x78] sm:$0xf]
  %v49 = vld [vmem:[%s0 + $0x7c] sm:$0xf]
  %v50 = vld [vmem:[%s0 + $0x80] sm:$0xf]
  %v51 = vld [vmem:[%s0 + $0x84] sm:$0xf]
  %v52 = vld [vmem:[%s0 + $0x88] sm:$0xf]
  %v53 = vld [vmem:[%s0 + $0x8c] sm:$0xf]
  %v54 = vld [vmem:[%s0 + $0x90] sm:$0xf]
  %v55 = vld [vmem:[%s0 + $0x94] sm:$0xf]
  %v56 = vld [vmem:[%s0 + $0x98] sm:$0xf]
  %v57 = vld [vmem:[%s0 + $0x9c] sm:$0xf]
  %v58 = vld [vmem:[%s0 + $0xa0] sm:$0xf]
  %v59 = vld [vmem:[%s0 + $0xa4] sm:$0xf]
  %v60 = vld [vmem:[%s0 + $0xa8] sm:$0xf]
  %v61 = vld [vmem:[%s0 + $0xac] sm:$0xf]
  %v62 = vld [vmem:[%s0 + $0xb0] sm:$0xf]
  %v63 = vld [vmem:[%s0 + $0xb4] sm:$0xf]
  %v64 = vld [vmem:[%s0 + $0xb8] sm:$0xf]
  %v65 = vld [vmem:[%s0 + $0xbc] sm:$0xf]
  %v66 = vld [vmem:[%s0 + $0xc0] sm:$0xf]
  %v67 = vld [vmem:[%s0 + $0xc4] sm:$0xf]
  %v68 = vld [vmem:[%s0 + $0xc8] sm:$0xf]
  %v69 = vld [vmem:[%s0 + $0xcc] sm:$0xf]
  %v70 = vld [vmem:[%s0 + $0xd0] sm:$0xf]
  %v71 = vld [vmem:[%s0 + $0xd4] sm:$0xf]
  %v72 = vld [vmem:[%s0 + $0xd8] sm:$0xf]
  %v73 = vld [vmem:[%s0 + $0xdc] sm:$0xf]
  %v74 = vld [vmem:[%s0 + $0xe0] sm:$0xf]
  %v75 = vld [vmem:[%s0 + $0xe4] sm:$0xf]
  %v76 = vld [vmem:[%s0 + $0xe8] sm:$0xf]
  %v77 = vld [vmem:[%s0 + $0xec] sm:$0xf]
  %v78 = vld [vmem:[%s0 + $0xf0] sm:$0xf]
  %v79 = vld [vmem:[%s0 + $0xf4] sm:$0xf]
  %v80 = vld [vmem:[%s0 + $0xf8] sm:$0xf]
  %v81 = vld [vmem:[%s0 + $0xfc] sm:$0xf]
  %v82 = vld [vmem:[%s0 + $0x100] sm:$0xf]
  %v83 = vld [vmem:[%s0 + $0x104] sm:$0xf]
  %v84 = vld [vmem:[%s0 + $0x108] sm:$0xf]
  %v85 = vld [vmem:[%s0 + $0x10c] sm:$0xf]
  %v86 = vld [vmem:[%s0 + $0x110] sm:$0xf]
  %v87 = vld [vmem:[%s0 + $0x114] sm:$0xf]
  %v88 = vld [vmem:[%s0 + $0x118] sm:$0xf]
  %v89 = vld [vmem:[%s0 + $0x11c] sm:$0xf]
  %v90 = vld [vmem:[%s0 + $0x120] sm:$0xf]
  %v91 = vld [vmem:[%s0 + $0x124] sm:$0xf]
  %v92 = vld [vmem:[%s0 + $0x128] sm:$0xf]
  %v93 = vld [vmem:[%s0 + $0x12c] sm:$0xf]
  %v94 = vld [vmem:[%s0 + $0x130] sm:$0xf]
  %v95 = vld [vmem:[%s0 + $0x134] sm:$0xf]
  %v96 = vld [vmem:[%s0 + $0x138] sm:$0xf]
  %v97 = vld [vmem:[%s0 + $0x13c] sm:$0xf]
  %v98 = vld [vmem:[%s0 + $0x140] sm:$0xf]
  %v99 = vld [vmem:[%s0 + $0x144] sm:$0xf]
  %v100 = vld [vmem:[%s0 + $0x148] sm:$0xf]
  %v101 = vld [vmem:[%s0 + $0x14c] sm:$0xf]
  %v102 = vld [vmem:[%s0 + $0x150] sm:$0xf]
  %v103 = vld [vmem:[%s0 + $0x154] sm:$0xf]
  %v104 = vld [vmem:[%s0 + $0x158] sm:$0xf]
  %v105 = vld [vmem:[%s0 + $0x15c] sm:$0xf]
  %v106 = vld [vmem:[%s0 + $0x160] sm:$0xf]
  %v107 = vld [vmem:[%s0 + $0x164] sm:$0xf]
  %v108 = vld [vmem:[%s0 + $0x168] sm:$0xf]
  %v109 = vld [vmem:[%s0 + $0x16c] sm:$0xf]
  %v110 = vld [vmem:[%s0 + $0x170] sm:$0xf]
  %v111 = vld [vmem:[%s0 + $0x174] sm:$0xf]
  %v112 = vld [vmem:[%s0 + $0x178] sm:$0xf]
  %v113 = vld [vmem:[%s0 + $0x17c] sm:$0xf]
  %v114 = vld [vmem:[%s0 + $0x180] sm:$0xf]
  %v115 = vld [vmem:[%s0 + $0x184] sm:$0xf]
  %v116 = vld [vmem:[%s0 + $0x188] sm:$0xf]
  %v117 = vld [vmem:[%s0 + $0x18c] sm:$0xf]
  %v118 = vld [vmem:[%s0 + $0x190] sm:$0xf]
  %v119 = vld [vmem:[%s0 + $0x194] sm:$0xf]
  %v120 = vld [vmem:[%s0 + $0x198] sm:$0xf]
  %v121 = vld [vmem:[%s0 + $0x19c] sm:$0xf]
  %v122 = vld [vmem:[%s0 + $0x1a0] sm:$0xf]
  %v123 = vld [vmem:[%s0 + $0x1a4] sm:$0xf]
  %v124 = vld [vmem:[%s0 + $0x1a8] sm:$0xf]
  %v125 = vld [vmem:[%s0 + $0x1ac] sm:$0xf]
  %v126 = vld [vmem:[%s0 + $0x1b0] sm:$0xf]
  %v127 = vld [vmem:[%s0 + $0x1b4] sm:$0xf]
  %v128 = vld [vmem:[%s0 + $0x1b8] sm:$0xf]
  %v129 = vld [vmem:[%s0 + $0x1bc] sm:$0xf]
  %v130 = vld [vmem:[%s0 + $0x1c0] sm:$0xf]
  %v131 = vld [vmem:[%s0 + $0x1c4] sm:$0xf]
  %v132 = vld [vmem:[%s0 + $0x1c8] sm:$0xf]
  %v133 = vld [vmem:[%s0 + $0x1cc] sm:$0xf]
  %v134 = vld [vmem:[%s0 + $0x1d0] sm:$0xf]
  %v135 = vld [vmem:[%s0 + $0x1d4] sm:$0xf]
  %v136 = vld [vmem:[%s0 + $0x1d8] sm:$0xf]
  %v137 = vld [vmem:[%s0 + $0x1dc] sm:$0xf]
  %v138 = vld [vmem:[%s0 + $0x1e0] sm:$0xf]
  %v139 = vld [vmem:[%s0 + $0x1e4] sm:$0xf]
  %v140 = vld [vmem:[%s0 + $0x1e8] sm:$0xf]
  %v141 = vld [vmem:[%s0 + $0x1ec] sm:$0xf]
  %v142 = vld [vmem:[%s0 + $0x1f0] sm:$0xf]
  %v143 = vld [vmem:[%s0 + $0x1f4] sm:$0xf]
  %v144 = vld [vmem:[%s0 + $0x1f8] sm:$0xf]
  %v145 = vld [vmem:[%s0 + $0x1fc] sm:$0xf]
  %v146 = vld [vmem:[%s1] sm:$0xf]
  %v147 = vld [vmem:[%s1 + $0x4] sm:$0xf]
  %v148 = vld [vmem:[%s1 + $0x8] sm:$0xf]
  %v149 = vld [vmem:[%s1 + $0xc] sm:$0xf]
  %v150 = vld [vmem:[%s1 + $0x10] sm:$0xf]
  %v151 = vld [vmem:[%s1 + $0x14] sm:$0xf]
  %v152 = vld [vmem:[%s1 + $0x18] sm:$0xf]
  %v153 = vld [vmem:[%s1 + $0x1c] sm:$0xf]
  %v154 = vld [vmem:[%s1 + $0x20] sm:$0xf]
  %v155 = vld [vmem:[%s1 + $0x24] sm:$0xf]
  %v156 = vld [vmem:[%s1 + $0x28] sm:$0xf]
  %v157 = vld [vmem:[%s1 + $0x2c] sm:$0xf]
  %v158 = vld [vmem:[%s1 + $0x30] sm:$0xf]
  %v159 = vld [vmem:[%s1 + $0x34] sm:$0xf]
  %v160 = vld [vmem:[%s1 + $0x38] sm:$0xf]
  %v161 = vld [vmem:[%s1 + $0x3c] sm:$0xf]
  %v162 = vld [vmem:[%s2] sm:$0x1]
  %v164 = vlaneseq
  %v165 = vshrl.u32 %v164, 7
  %v166 = vsub.s32 0, %v165
  %v167 = vrot.slane %v162, %v166
  %v297 = vunpack.c.l.b16 %v18
  %v298 = vunpack.c.l.b16 %v19
  %v299 = vunpack.c.l.b16 %v20
  %v300 = vunpack.c.l.b16 %v21
  %v301 = vunpack.c.l.b16 %v22
  %v302 = vunpack.c.l.b16 %v23
  %v303 = vunpack.c.l.b16 %v24
  %v304 = vunpack.c.l.b16 %v25
  %v305 = vunpack.c.l.b16 %v26
  %v306 = vunpack.c.l.b16 %v27
  %v307 = vunpack.c.l.b16 %v28
  %v308 = vunpack.c.l.b16 %v29
  %v309 = vunpack.c.l.b16 %v30
  %v310 = vunpack.c.l.b16 %v31
  %v311 = vunpack.c.l.b16 %v32
  %v312 = vunpack.c.l.b16 %v33
  %v313 = vunpack.c.l.b16 %v34
  %v314 = vunpack.c.l.b16 %v35
  %v315 = vunpack.c.l.b16 %v36
  %v316 = vunpack.c.l.b16 %v37
  %v317 = vunpack.c.l.b16 %v38
  %v318 = vunpack.c.l.b16 %v39
  %v319 = vunpack.c.l.b16 %v40
  %v320 = vunpack.c.l.b16 %v41
  %v321 = vunpack.c.l.b16 %v42
  %v322 = vunpack.c.l.b16 %v43
  %v323 = vunpack.c.l.b16 %v44
  %v324 = vunpack.c.l.b16 %v45
  %v325 = vunpack.c.l.b16 %v46
  %v326 = vunpack.c.l.b16 %v47
  %v327 = vunpack.c.l.b16 %v48
  %v328 = vunpack.c.l.b16 %v49
  %v329 = vunpack.c.l.b16 %v50
  %v330 = vunpack.c.l.b16 %v51
  %v331 = vunpack.c.l.b16 %v52
  %v332 = vunpack.c.l.b16 %v53
  %v333 = vunpack.c.l.b16 %v54
  %v334 = vunpack.c.l.b16 %v55
  %v335 = vunpack.c.l.b16 %v56
  %v336 = vunpack.c.l.b16 %v57
  %v337 = vunpack.c.l.b16 %v58
  %v338 = vunpack.c.l.b16 %v59
  %v339 = vunpack.c.l.b16 %v60
  %v340 = vunpack.c.l.b16 %v61
  %v341 = vunpack.c.l.b16 %v62
  %v342 = vunpack.c.l.b16 %v63
  %v343 = vunpack.c.l.b16 %v64
  %v344 = vunpack.c.l.b16 %v65
  %v345 = vunpack.c.l.b16 %v66
  %v346 = vunpack.c.l.b16 %v67
  %v347 = vunpack.c.l.b16 %v68
  %v348 = vunpack.c.l.b16 %v69
  %v349 = vunpack.c.l.b16 %v70
  %v350 = vunpack.c.l.b16 %v71
  %v351 = vunpack.c.l.b16 %v72
  %v352 = vunpack.c.l.b16 %v73
  %v353 = vunpack.c.l.b16 %v74
  %v354 = vunpack.c.l.b16 %v75
  %v355 = vunpack.c.l.b16 %v76
  %v356 = vunpack.c.l.b16 %v77
  %v357 = vunpack.c.l.b16 %v78
  %v358 = vunpack.c.l.b16 %v79
  %v359 = vunpack.c.l.b16 %v80
  %v360 = vunpack.c.l.b16 %v81
  %v361 = vunpack.c.l.b16 %v82
  %v362 = vunpack.c.l.b16 %v83
  %v363 = vunpack.c.l.b16 %v84
  %v364 = vunpack.c.l.b16 %v85
  %v365 = vunpack.c.l.b16 %v86
  %v366 = vunpack.c.l.b16 %v87
  %v367 = vunpack.c.l.b16 %v88
  %v368 = vunpack.c.l.b16 %v89
  %v369 = vunpack.c.l.b16 %v90
  %v370 = vunpack.c.l.b16 %v91
  %v371 = vunpack.c.l.b16 %v92
  %v372 = vunpack.c.l.b16 %v93
  %v373 = vunpack.c.l.b16 %v94
  %v374 = vunpack.c.l.b16 %v95
  %v375 = vunpack.c.l.b16 %v96
  %v376 = vunpack.c.l.b16 %v97
  %v377 = vunpack.c.l.b16 %v98
  %v378 = vunpack.c.l.b16 %v99
  %v379 = vunpack.c.l.b16 %v100
  %v380 = vunpack.c.l.b16 %v101
  %v381 = vunpack.c.l.b16 %v102
  %v382 = vunpack.c.l.b16 %v103
  %v383 = vunpack.c.l.b16 %v104
  %v384 = vunpack.c.l.b16 %v105
  %v385 = vunpack.c.l.b16 %v106
  %v386 = vunpack.c.l.b16 %v107
  %v387 = vunpack.c.l.b16 %v108
  %v388 = vunpack.c.l.b16 %v109
  %v389 = vunpack.c.l.b16 %v110
  %v390 = vunpack.c.l.b16 %v111
  %v391 = vunpack.c.l.b16 %v112
  %v392 = vunpack.c.l.b16 %v113
  %v393 = vunpack.c.l.b16 %v114
  %v394 = vunpack.c.l.b16 %v115
  %v395 = vunpack.c.l.b16 %v116
  %v396 = vunpack.c.l.b16 %v117
  %v397 = vunpack.c.l.b16 %v118
  %v398 = vunpack.c.l.b16 %v119
  %v399 = vunpack.c.l.b16 %v120
  %v400 = vunpack.c.l.b16 %v121
  %v401 = vunpack.c.l.b16 %v122
  %v402 = vunpack.c.l.b16 %v123
  %v403 = vunpack.c.l.b16 %v124
  %v404 = vunpack.c.l.b16 %v125
  %v405 = vunpack.c.l.b16 %v126
  %v406 = vunpack.c.l.b16 %v127
  %v407 = vunpack.c.l.b16 %v128
  %v408 = vunpack.c.l.b16 %v129
  %v409 = vunpack.c.l.b16 %v130
  %v410 = vunpack.c.l.b16 %v131
  %v411 = vunpack.c.l.b16 %v132
  %v412 = vunpack.c.l.b16 %v133
  %v413 = vunpack.c.l.b16 %v134
  %v414 = vunpack.c.l.b16 %v135
  %v415 = vunpack.c.l.b16 %v136
  %v416 = vunpack.c.l.b16 %v137
  %v417 = vunpack.c.l.b16 %v138
  %v418 = vunpack.c.l.b16 %v139
  %v419 = vunpack.c.l.b16 %v140
  %v420 = vunpack.c.l.b16 %v141
  %v421 = vunpack.c.l.b16 %v142
  %v422 = vunpack.c.l.b16 %v143
  %v423 = vunpack.c.l.b16 %v144
  %v424 = vunpack.c.l.b16 %v145
  %v425 = vpack.c.b16 %v298, %v297
  %v426 = vpack.c.b16 %v300, %v299
  %v427 = vpack.c.b16 %v302, %v301
  %v428 = vpack.c.b16 %v304, %v303
  %v429 = vpack.c.b16 %v306, %v305
  %v430 = vpack.c.b16 %v308, %v307
  %v431 = vpack.c.b16 %v310, %v309
  %v432 = vpack.c.b16 %v312, %v311
  %v433 = vpack.c.b16 %v314, %v313
  %v434 = vpack.c.b16 %v316, %v315
  %v435 = vpack.c.b16 %v318, %v317
  %v436 = vpack.c.b16 %v320, %v319
  %v437 = vpack.c.b16 %v322, %v321
  %v438 = vpack.c.b16 %v324, %v323
  %v439 = vpack.c.b16 %v326, %v325
  %v440 = vpack.c.b16 %v328, %v327
  %v441 = vpack.c.b16 %v330, %v329
  %v442 = vpack.c.b16 %v332, %v331
  %v443 = vpack.c.b16 %v334, %v333
  %v444 = vpack.c.b16 %v336, %v335
  %v445 = vpack.c.b16 %v338, %v337
  %v446 = vpack.c.b16 %v340, %v339
  %v447 = vpack.c.b16 %v342, %v341
  %v448 = vpack.c.b16 %v344, %v343
  %v449 = vpack.c.b16 %v346, %v345
  %v450 = vpack.c.b16 %v348, %v347
  %v451 = vpack.c.b16 %v350, %v349
  %v452 = vpack.c.b16 %v352, %v351
  %v453 = vpack.c.b16 %v354, %v353
  %v454 = vpack.c.b16 %v356, %v355
  %v455 = vpack.c.b16 %v358, %v357
  %v456 = vpack.c.b16 %v360, %v359
  %v457 = vpack.c.b16 %v362, %v361
  %v458 = vpack.c.b16 %v364, %v363
  %v459 = vpack.c.b16 %v366, %v365
  %v460 = vpack.c.b16 %v368, %v367
  %v461 = vpack.c.b16 %v370, %v369
  %v462 = vpack.c.b16 %v372, %v371
  %v463 = vpack.c.b16 %v374, %v373
  %v464 = vpack.c.b16 %v376, %v375
  %v465 = vpack.c.b16 %v378, %v377
  %v466 = vpack.c.b16 %v380, %v379
  %v467 = vpack.c.b16 %v382, %v381
  %v468 = vpack.c.b16 %v384, %v383
  %v469 = vpack.c.b16 %v386, %v385
  %v470 = vpack.c.b16 %v388, %v387
  %v471 = vpack.c.b16 %v390, %v389
  %v472 = vpack.c.b16 %v392, %v391
  %v473 = vpack.c.b16 %v394, %v393
  %v474 = vpack.c.b16 %v396, %v395
  %v475 = vpack.c.b16 %v398, %v397
  %v476 = vpack.c.b16 %v400, %v399
  %v477 = vpack.c.b16 %v402, %v401
  %v478 = vpack.c.b16 %v404, %v403
  %v479 = vpack.c.b16 %v406, %v405
  %v480 = vpack.c.b16 %v408, %v407
  %v481 = vpack.c.b16 %v410, %v409
  %v482 = vpack.c.b16 %v412, %v411
  %v483 = vpack.c.b16 %v414, %v413
  %v484 = vpack.c.b16 %v416, %v415
  %v485 = vpack.c.b16 %v418, %v417
  %v486 = vpack.c.b16 %v420, %v419
  %v487 = vpack.c.b16 %v422, %v421
  %v488 = vpack.c.b16 %v424, %v423
  %v569 = vunpack.c.l.b16 %v146
  %v570 = vunpack.c.l.b16 %v147
  %v571 = vunpack.c.l.b16 %v148
  %v572 = vunpack.c.l.b16 %v149
  %v573 = vunpack.c.l.b16 %v150
  %v574 = vunpack.c.l.b16 %v151
  %v575 = vunpack.c.l.b16 %v152
  %v576 = vunpack.c.l.b16 %v153
  %v577 = vunpack.c.l.b16 %v154
  %v578 = vunpack.c.l.b16 %v155
  %v579 = vunpack.c.l.b16 %v156
  %v580 = vunpack.c.l.b16 %v157
  %v581 = vunpack.c.l.b16 %v158
  %v582 = vunpack.c.l.b16 %v159
  %v583 = vunpack.c.l.b16 %v160
  %v584 = vunpack.c.l.b16 %v161
  %v585 = vpack.c.b16 %v570, %v569
  %v586 = vpack.c.b16 %v572, %v571
  %v587 = vpack.c.b16 %v574, %v573
  %v588 = vpack.c.b16 %v576, %v575
  %v589 = vpack.c.b16 %v578, %v577
  %v590 = vpack.c.b16 %v580, %v579
  %v591 = vpack.c.b16 %v582, %v581
  %v592 = vpack.c.b16 %v584, %v583
  %601 = vmatprep.subr.bf16.mxu0 0
  %602 = vmatpush1.bf16.msra.mxu0 %v585
  %603 = vmatprep.subr.bf16.mxu0 0
  %604 = vmatpush1.bf16.msra.mxu0 %v586
  %605 = vmatprep.subr.bf16.mxu0 0
  %606 = vmatpush1.bf16.msra.mxu0 %v587
  %607 = vmatprep.subr.bf16.mxu0 0
  %608 = vmatpush1.bf16.msra.mxu0 %v588
  %609 = vmatprep.subr.bf16.mxu0 0
  %610 = vmatpush1.bf16.msra.mxu0 %v589
  %611 = vmatprep.subr.bf16.mxu0 0
  %612 = vmatpush1.bf16.msra.mxu0 %v590
  %613 = vmatprep.subr.bf16.mxu0 0
  %614 = vmatpush1.bf16.msra.mxu0 %v591
  %615 = vmatprep.subr.bf16.mxu0 0
  %616 = vmatpush1.bf16.msra.mxu0 %v592
  %617 = vmatprep.subr.bf16.mxu0 0
  %618 = vmatpush1.bf16.msra.mxu0 0
  %619 = vmatprep.subr.bf16.mxu0 0
  %620 = vmatpush1.bf16.msra.mxu0 0
  %621 = vmatprep.subr.bf16.mxu0 0
  %622 = vmatpush1.bf16.msra.mxu0 0
  %623 = vmatprep.subr.bf16.mxu0 0
  %624 = vmatpush1.bf16.msra.mxu0 0
  %625 = vmatprep.subr.bf16.mxu0 0
  %626 = vmatpush1.bf16.msra.mxu0 0
  %627 = vmatprep.subr.bf16.mxu0 0
  %628 = vmatpush1.bf16.msra.mxu0 0
  %629 = vmatprep.subr.bf16.mxu0 0
  %630 = vmatpush1.bf16.msra.mxu0 0
  %631 = vmatprep.subr.bf16.mxu0 0
  %632 = vmatpush1.bf16.msra.mxu0 0
  %633 = vmatprep.mubr.bf16.mxu0 0
  %634 = vmatmul.mubr.bf16.gmra.mrb[0].mxu0 %v425
  %v635 = vpop.f32.mrb[0].mxu0
  %v636 = vadd.f32 %v167, %v635
  %v637 = vpop.f32.mrb[0].mxu0
  %v638 = vpop.f32.mrb[0].mxu0
  %v639 = vadd.f32 %v167, %v638
  %v640 = vpop.f32.mrb[0].mxu0
  %641 = vmatprep.mubr.bf16.mxu0 0
  %642 = vmatmul.mubr.bf16.gmra.mrb[0].mxu0 %v426
  %v643 = vpop.f32.mrb[0].mxu0
  %v644 = vadd.f32 %v167, %v643
  %v645 = vpop.f32.mrb[0].mxu0
  %v646 = vpop.f32.mrb[0].mxu0
  %v647 = vadd.f32 %v167, %v646
  %v648 = vpop.f32.mrb[0].mxu0
  %649 = vmatprep.mubr.bf16.mxu0 0
  %650 = vmatmul.mubr.bf16.gmra.mrb[0].mxu0 %v427
  %v651 = vpop.f32.mrb[0].mxu0
  %v652 = vadd.f32 %v167, %v651
  %v653 = vpop.f32.mrb[0].mxu0
  %v654 = vpop.f32.mrb[0].mxu0
  %v655 = vadd.f32 %v167, %v654
  %v656 = vpop.f32.mrb[0].mxu0
  %657 = vmatprep.mubr.bf16.mxu0 0
  %658 = vmatmul.mubr.bf16.gmra.mrb[0].mxu0 %v428
  %v659 = vpop.f32.mrb[0].mxu0
  %v660 = vadd.f32 %v167, %v659
  %v661 = vpop.f32.mrb[0].mxu0
  %v662 = vpop.f32.mrb[0].mxu0
  %v663 = vadd.f32 %v167, %v662
  %v664 = vpop.f32.mrb[0].mxu0
  %665 = vmatprep.mubr.bf16.mxu0 0
  %666 = vmatmul.mubr.bf16.gmra.mrb[0].mxu0 %v429
  %v667 = vpop.f32.mrb[0].mxu0
  %v668 = vadd.f32 %v167, %v667
  %v669 = vpop.f32.mrb[0].mxu0
  %v670 = vpop.f32.mrb[0].mxu0
  %v671 = vadd.f32 %v167, %v670
  %v672 = vpop.f32.mrb[0].mxu0
  %673 = vmatprep.mubr.bf16.mxu0 0
  %674 = vmatmul.mubr.bf16.gmra.mrb[0].mxu0 %v430
  %v675 = vpop.f32.mrb[0].mxu0
  %v676 = vadd.f32 %v167, %v675
  %v677 = vpop.f32.mrb[0].mxu0
  %v678 = vpop.f32.mrb[0].mxu0
  %v679 = vadd.f32 %v167, %v678
  %v680 = vpop.f32.mrb[0].mxu0
  %681 = vmatprep.mubr.bf16.mxu0 0
  %682 = vmatmul.mubr.bf16.gmra.mrb[0].mxu0 %v431
  %v683 = vpop.f32.mrb[0].mxu0
  %v684 = vadd.f32 %v167, %v683
  %v685 = vpop.f32.mrb[0].mxu0
  %v686 = vpop.f32.mrb[0].mxu0
  %v687 = vadd.f32 %v167, %v686
  %v688 = vpop.f32.mrb[0].mxu0
  %689 = vmatprep.mubr.bf16.mxu0 0
  %690 = vmatmul.mubr.bf16.gmra.mrb[0].mxu0 %v432
  %v691 = vpop.f32.mrb[0].mxu0
  %v692 = vadd.f32 %v167, %v691
  %v693 = vpop.f32.mrb[0].mxu0
  %v694 = vpop.f32.mrb[0].mxu0
  %v695 = vadd.f32 %v167, %v694
  %v696 = vpop.f32.mrb[0].mxu0
  %697 = vmatprep.mubr.bf16.mxu0 0
  %698 = vmatmul.mubr.bf16.gmra.mrb[0].mxu0 %v433
  %v699 = vpop.f32.mrb[0].mxu0
  %v700 = vadd.f32 %v167, %v699
  %v701 = vpop.f32.mrb[0].mxu0
  %v702 = vpop.f32.mrb[0].mxu0
  %v703 = vadd.f32 %v167, %v702
  %v704 = vpop.f32.mrb[0].mxu0
  %705 = vmatprep.mubr.bf16.mxu0 0
  %706 = vmatmul.mubr.bf16.gmra.mrb[0].mxu0 %v434
  %v707 = vpop.f32.mrb[0].mxu0
  %v708 = vadd.f32 %v167, %v707
  %v709 = vpop.f32.mrb[0].mxu0
  %v710 = vpop.f32.mrb[0].mxu0
  %v711 = vadd.f32 %v167, %v710
  %v712 = vpop.f32.mrb[0].mxu0
  %713 = vmatprep.mubr.bf16.mxu0 0
  %714 = vmatmul.mubr.bf16.gmra.mrb[0].mxu0 %v435
  %v715 = vpop.f32.mrb[0].mxu0
  %v716 = vadd.f32 %v167, %v715
  %v717 = vpop.f32.mrb[0].mxu0
  %v718 = vpop.f32.mrb[0].mxu0
  %v719 = vadd.f32 %v167, %v718
  %v720 = vpop.f32.mrb[0].mxu0
  %721 = vmatprep.mubr.bf16.mxu0 0
  %722 = vmatmul.mubr.bf16.gmra.mrb[0].mxu0 %v436
  %v723 = vpop.f32.mrb[0].mxu0
  %v724 = vadd.f32 %v167, %v723
  %v725 = vpop.f32.mrb[0].mxu0
  %v726 = vpop.f32.mrb[0].mxu0
  %v727 = vadd.f32 %v167, %v726
  %v728 = vpop.f32.mrb[0].mxu0
  %729 = vmatprep.mubr.bf16.mxu0 0
  %730 = vmatmul.mubr.bf16.gmra.mrb[0].mxu0 %v437
  %v731 = vpop.f32.mrb[0].mxu0
  %v732 = vadd.f32 %v167, %v731
  %v733 = vpop.f32.mrb[0].mxu0
  %v734 = vpop.f32.mrb[0].mxu0
  %v735 = vadd.f32 %v167, %v734
  %v736 = vpop.f32.mrb[0].mxu0
  %737 = vmatprep.mubr.bf16.mxu0 0
  %738 = vmatmul.mubr.bf16.gmra.mrb[0].mxu0 %v438
  %v739 = vpop.f32.mrb[0].mxu0
  %v740 = vadd.f32 %v167, %v739
  %v741 = vpop.f32.mrb[0].mxu0
  %v742 = vpop.f32.mrb[0].mxu0
  %v743 = vadd.f32 %v167, %v742
  %v744 = vpop.f32.mrb[0].mxu0
  %745 = vmatprep.mubr.bf16.mxu0 0
  %746 = vmatmul.mubr.bf16.gmra.mrb[0].mxu0 %v439
  %v747 = vpop.f32.mrb[0].mxu0
  %v748 = vadd.f32 %v167, %v747
  %v749 = vpop.f32.mrb[0].mxu0
  %v750 = vpop.f32.mrb[0].mxu0
  %v751 = vadd.f32 %v167, %v750
  %v752 = vpop.f32.mrb[0].mxu0
  %753 = vmatprep.mubr.bf16.mxu0 0
  %754 = vmatmul.mubr.bf16.gmra.mrb[0].mxu0 %v440
  %v755 = vpop.f32.mrb[0].mxu0
  %v756 = vadd.f32 %v167, %v755
  %v757 = vpop.f32.mrb[0].mxu0
  %v758 = vpop.f32.mrb[0].mxu0
  %v759 = vadd.f32 %v167, %v758
  %v760 = vpop.f32.mrb[0].mxu0
  %761 = vmatprep.mubr.bf16.mxu0 0
  %762 = vmatmul.mubr.bf16.gmra.mrb[0].mxu0 %v441
  %v763 = vpop.f32.mrb[0].mxu0
  %v764 = vadd.f32 %v167, %v763
  %v765 = vpop.f32.mrb[0].mxu0
  %v766 = vpop.f32.mrb[0].mxu0
  %v767 = vadd.f32 %v167, %v766
  %v768 = vpop.f32.mrb[0].mxu0
  %769 = vmatprep.mubr.bf16.mxu0 0
  %770 = vmatmul.mubr.bf16.gmra.mrb[0].mxu0 %v442
  %v771 = vpop.f32.mrb[0].mxu0
  %v772 = vadd.f32 %v167, %v771
  %v773 = vpop.f32.mrb[0].mxu0
  %v774 = vpop.f32.mrb[0].mxu0
  %v775 = vadd.f32 %v167, %v774
  %v776 = vpop.f32.mrb[0].mxu0
  %777 = vmatprep.mubr.bf16.mxu0 0
  %778 = vmatmul.mubr.bf16.gmra.mrb[0].mxu0 %v443
  %v779 = vpop.f32.mrb[0].mxu0
  %v780 = vadd.f32 %v167, %v779
  %v781 = vpop.f32.mrb[0].mxu0
  %v782 = vpop.f32.mrb[0].mxu0
  %v783 = vadd.f32 %v167, %v782
  %v784 = vpop.f32.mrb[0].mxu0
  %785 = vmatprep.mubr.bf16.mxu0 0
  %786 = vmatmul.mubr.bf16.gmra.mrb[0].mxu0 %v444
  %v787 = vpop.f32.mrb[0].mxu0
  %v788 = vadd.f32 %v167, %v787
  %v789 = vpop.f32.mrb[0].mxu0
  %v790 = vpop.f32.mrb[0].mxu0
  %v791 = vadd.f32 %v167, %v790
  %v792 = vpop.f32.mrb[0].mxu0
  %793 = vmatprep.mubr.bf16.mxu0 0
  %794 = vmatmul.mubr.bf16.gmra.mrb[0].mxu0 %v445
  %v795 = vpop.f32.mrb[0].mxu0
  %v796 = vadd.f32 %v167, %v795
  %v797 = vpop.f32.mrb[0].mxu0
  %v798 = vpop.f32.mrb[0].mxu0
  %v799 = vadd.f32 %v167, %v798
  %v800 = vpop.f32.mrb[0].mxu0
  %801 = vmatprep.mubr.bf16.mxu0 0
  %802 = vmatmul.mubr.bf16.gmra.mrb[0].mxu0 %v446
  %v803 = vpop.f32.mrb[0].mxu0
  %v804 = vadd.f32 %v167, %v803
  %v805 = vpop.f32.mrb[0].mxu0
  %v806 = vpop.f32.mrb[0].mxu0
  %v807 = vadd.f32 %v167, %v806
  %v808 = vpop.f32.mrb[0].mxu0
  %809 = vmatprep.mubr.bf16.mxu0 0
  %810 = vmatmul.mubr.bf16.gmra.mrb[0].mxu0 %v447
  %v811 = vpop.f32.mrb[0].mxu0
  %v812 = vadd.f32 %v167, %v811
  %v813 = vpop.f32.mrb[0].mxu0
  %v814 = vpop.f32.mrb[0].mxu0
  %v815 = vadd.f32 %v167, %v814
  %v816 = vpop.f32.mrb[0].mxu0
  %817 = vmatprep.mubr.bf16.mxu0 0
  %818 = vmatmul.mubr.bf16.gmra.mrb[0].mxu0 %v448
  %v819 = vpop.f32.mrb[0].mxu0
  %v820 = vadd.f32 %v167, %v819
  %v821 = vpop.f32.mrb[0].mxu0
  %v822 = vpop.f32.mrb[0].mxu0
  %v823 = vadd.f32 %v167, %v822
  %v824 = vpop.f32.mrb[0].mxu0
  %825 = vmatprep.mubr.bf16.mxu0 0
  %826 = vmatmul.mubr.bf16.gmra.mrb[0].mxu0 %v449
  %v827 = vpop.f32.mrb[0].mxu0
  %v828 = vadd.f32 %v167, %v827
  %v829 = vpop.f32.mrb[0].mxu0
  %v830 = vpop.f32.mrb[0].mxu0
  %v831 = vadd.f32 %v167, %v830
  %v832 = vpop.f32.mrb[0].mxu0
  %833 = vmatprep.mubr.bf16.mxu0 0
  %834 = vmatmul.mubr.bf16.gmra.mrb[0].mxu0 %v450
  %v835 = vpop.f32.mrb[0].mxu0
  %v836 = vadd.f32 %v167, %v835
  %v837 = vpop.f32.mrb[0].mxu0
  %v838 = vpop.f32.mrb[0].mxu0
  %v839 = vadd.f32 %v167, %v838
  %v840 = vpop.f32.mrb[0].mxu0
  %841 = vmatprep.mubr.bf16.mxu0 0
  %842 = vmatmul.mubr.bf16.gmra.mrb[0].mxu0 %v451
  %v843 = vpop.f32.mrb[0].mxu0
  %v844 = vadd.f32 %v167, %v843
  %v845 = vpop.f32.mrb[0].mxu0
  %v846 = vpop.f32.mrb[0].mxu0
  %v847 = vadd.f32 %v167, %v846
  %v848 = vpop.f32.mrb[0].mxu0
  %849 = vmatprep.mubr.bf16.mxu0 0
  %850 = vmatmul.mubr.bf16.gmra.mrb[0].mxu0 %v452
  %v851 = vpop.f32.mrb[0].mxu0
  %v852 = vadd.f32 %v167, %v851
  %v853 = vpop.f32.mrb[0].mxu0
  %v854 = vpop.f32.mrb[0].mxu0
  %v855 = vadd.f32 %v167, %v854
  %v856 = vpop.f32.mrb[0].mxu0
  %857 = vmatprep.mubr.bf16.mxu0 0
  %858 = vmatmul.mubr.bf16.gmra.mrb[0].mxu0 %v453
  %v859 = vpop.f32.mrb[0].mxu0
  %v860 = vadd.f32 %v167, %v859
  %v861 = vpop.f32.mrb[0].mxu0
  %v862 = vpop.f32.mrb[0].mxu0
  %v863 = vadd.f32 %v167, %v862
  %v864 = vpop.f32.mrb[0].mxu0
  %865 = vmatprep.mubr.bf16.mxu0 0
  %866 = vmatmul.mubr.bf16.gmra.mrb[0].mxu0 %v454
  %v867 = vpop.f32.mrb[0].mxu0
  %v868 = vadd.f32 %v167, %v867
  %v869 = vpop.f32.mrb[0].mxu0
  %v870 = vpop.f32.mrb[0].mxu0
  %v871 = vadd.f32 %v167, %v870
  %v872 = vpop.f32.mrb[0].mxu0
  %873 = vmatprep.mubr.bf16.mxu0 0
  %874 = vmatmul.mubr.bf16.gmra.mrb[0].mxu0 %v455
  %v875 = vpop.f32.mrb[0].mxu0
  %v876 = vadd.f32 %v167, %v875
  %v877 = vpop.f32.mrb[0].mxu0
  %v878 = vpop.f32.mrb[0].mxu0
  %v879 = vadd.f32 %v167, %v878
  %v880 = vpop.f32.mrb[0].mxu0
  %881 = vmatprep.mubr.bf16.mxu0 0
  %882 = vmatmul.mubr.bf16.gmra.mrb[0].mxu0 %v456
  %v883 = vpop.f32.mrb[0].mxu0
  %v884 = vadd.f32 %v167, %v883
  %v885 = vpop.f32.mrb[0].mxu0
  %v886 = vpop.f32.mrb[0].mxu0
  %v887 = vadd.f32 %v167, %v886
  %v888 = vpop.f32.mrb[0].mxu0
  %889 = vmatprep.mubr.bf16.mxu0 0
  %890 = vmatmul.mubr.bf16.gmra.mrb[0].mxu0 %v457
  %v891 = vpop.f32.mrb[0].mxu0
  %v892 = vadd.f32 %v167, %v891
  %v893 = vpop.f32.mrb[0].mxu0
  %v894 = vpop.f32.mrb[0].mxu0
  %v895 = vadd.f32 %v167, %v894
  %v896 = vpop.f32.mrb[0].mxu0
  %897 = vmatprep.mubr.bf16.mxu0 0
  %898 = vmatmul.mubr.bf16.gmra.mrb[0].mxu0 %v458
  %v899 = vpop.f32.mrb[0].mxu0
  %v900 = vadd.f32 %v167, %v899
  %v901 = vpop.f32.mrb[0].mxu0
  %v902 = vpop.f32.mrb[0].mxu0
  %v903 = vadd.f32 %v167, %v902
  %v904 = vpop.f32.mrb[0].mxu0
  %905 = vmatprep.mubr.bf16.mxu0 0
  %906 = vmatmul.mubr.bf16.gmra.mrb[0].mxu0 %v459
  %v907 = vpop.f32.mrb[0].mxu0
  %v908 = vadd.f32 %v167, %v907
  %v909 = vpop.f32.mrb[0].mxu0
  %v910 = vpop.f32.mrb[0].mxu0
  %v911 = vadd.f32 %v167, %v910
  %v912 = vpop.f32.mrb[0].mxu0
  %913 = vmatprep.mubr.bf16.mxu0 0
  %914 = vmatmul.mubr.bf16.gmra.mrb[0].mxu0 %v460
  %v915 = vpop.f32.mrb[0].mxu0
  %v916 = vadd.f32 %v167, %v915
  %v917 = vpop.f32.mrb[0].mxu0
  %v918 = vpop.f32.mrb[0].mxu0
  %v919 = vadd.f32 %v167, %v918
  %v920 = vpop.f32.mrb[0].mxu0
  %921 = vmatprep.mubr.bf16.mxu0 0
  %922 = vmatmul.mubr.bf16.gmra.mrb[0].mxu0 %v461
  %v923 = vpop.f32.mrb[0].mxu0
  %v924 = vadd.f32 %v167, %v923
  %v925 = vpop.f32.mrb[0].mxu0
  %v926 = vpop.f32.mrb[0].mxu0
  %v927 = vadd.f32 %v167, %v926
  %v928 = vpop.f32.mrb[0].mxu0
  %929 = vmatprep.mubr.bf16.mxu0 0
  %930 = vmatmul.mubr.bf16.gmra.mrb[0].mxu0 %v462
  %v931 = vpop.f32.mrb[0].mxu0
  %v932 = vadd.f32 %v167, %v931
  %v933 = vpop.f32.mrb[0].mxu0
  %v934 = vpop.f32.mrb[0].mxu0
  %v935 = vadd.f32 %v167, %v934
  %v936 = vpop.f32.mrb[0].mxu0
  %937 = vmatprep.mubr.bf16.mxu0 0
  %938 = vmatmul.mubr.bf16.gmra.mrb[0].mxu0 %v463
  %v939 = vpop.f32.mrb[0].mxu0
  %v940 = vadd.f32 %v167, %v939
  %v941 = vpop.f32.mrb[0].mxu0
  %v942 = vpop.f32.mrb[0].mxu0
  %v943 = vadd.f32 %v167, %v942
  %v944 = vpop.f32.mrb[0].mxu0
  %945 = vmatprep.mubr.bf16.mxu0 0
  %946 = vmatmul.mubr.bf16.gmra.mrb[0].mxu0 %v464
  %v947 = vpop.f32.mrb[0].mxu0
  %v948 = vadd.f32 %v167, %v947
  %v949 = vpop.f32.mrb[0].mxu0
  %v950 = vpop.f32.mrb[0].mxu0
  %v951 = vadd.f32 %v167, %v950
  %v952 = vpop.f32.mrb[0].mxu0
  %953 = vmatprep.mubr.bf16.mxu0 0
  %954 = vmatmul.mubr.bf16.gmra.mrb[0].mxu0 %v465
  %v955 = vpop.f32.mrb[0].mxu0
  %v956 = vadd.f32 %v167, %v955
  %v957 = vpop.f32.mrb[0].mxu0
  %v958 = vpop.f32.mrb[0].mxu0
  %v959 = vadd.f32 %v167, %v958
  %v960 = vpop.f32.mrb[0].mxu0
  %961 = vmatprep.mubr.bf16.mxu0 0
  %962 = vmatmul.mubr.bf16.gmra.mrb[0].mxu0 %v466
  %v963 = vpop.f32.mrb[0].mxu0
  %v964 = vadd.f32 %v167, %v963
  %v965 = vpop.f32.mrb[0].mxu0
  %v966 = vpop.f32.mrb[0].mxu0
  %v967 = vadd.f32 %v167, %v966
  %v968 = vpop.f32.mrb[0].mxu0
  %969 = vmatprep.mubr.bf16.mxu0 0
  %970 = vmatmul.mubr.bf16.gmra.mrb[0].mxu0 %v467
  %v971 = vpop.f32.mrb[0].mxu0
  %v972 = vadd.f32 %v167, %v971
  %v973 = vpop.f32.mrb[0].mxu0
  %v974 = vpop.f32.mrb[0].mxu0
  %v975 = vadd.f32 %v167, %v974
  %v976 = vpop.f32.mrb[0].mxu0
  %977 = vmatprep.mubr.bf16.mxu0 0
  %978 = vmatmul.mubr.bf16.gmra.mrb[0].mxu0 %v468
  %v979 = vpop.f32.mrb[0].mxu0
  %v980 = vadd.f32 %v167, %v979
  %v981 = vpop.f32.mrb[0].mxu0
  %v982 = vpop.f32.mrb[0].mxu0
  %v983 = vadd.f32 %v167, %v982
  %v984 = vpop.f32.mrb[0].mxu0
  %985 = vmatprep.mubr.bf16.mxu0 0
  %986 = vmatmul.mubr.bf16.gmra.mrb[0].mxu0 %v469
  %v987 = vpop.f32.mrb[0].mxu0
  %v988 = vadd.f32 %v167, %v987
  %v989 = vpop.f32.mrb[0].mxu0
  %v990 = vpop.f32.mrb[0].mxu0
  %v991 = vadd.f32 %v167, %v990
  %v992 = vpop.f32.mrb[0].mxu0
  %993 = vmatprep.mubr.bf16.mxu0 0
  %994 = vmatmul.mubr.bf16.gmra.mrb[0].mxu0 %v470
  %v995 = vpop.f32.mrb[0].mxu0
  %v996 = vadd.f32 %v167, %v995
  %v997 = vpop.f32.mrb[0].mxu0
  %v998 = vpop.f32.mrb[0].mxu0
  %v999 = vadd.f32 %v167, %v998
  %v1000 = vpop.f32.mrb[0].mxu0
  %1001 = vmatprep.mubr.bf16.mxu0 0
  %1002 = vmatmul.mubr.bf16.gmra.mrb[0].mxu0 %v471
  %v1003 = vpop.f32.mrb[0].mxu0
  %v1004 = vadd.f32 %v167, %v1003
  %v1005 = vpop.f32.mrb[0].mxu0
  %v1006 = vpop.f32.mrb[0].mxu0
  %v1007 = vadd.f32 %v167, %v1006
  %v1008 = vpop.f32.mrb[0].mxu0
  %1009 = vmatprep.mubr.bf16.mxu0 0
  %1010 = vmatmul.mubr.bf16.gmra.mrb[0].mxu0 %v472
  %v1011 = vpop.f32.mrb[0].mxu0
  %v1012 = vadd.f32 %v167, %v1011
  %v1013 = vpop.f32.mrb[0].mxu0
  %v1014 = vpop.f32.mrb[0].mxu0
  %v1015 = vadd.f32 %v167, %v1014
  %v1016 = vpop.f32.mrb[0].mxu0
  %1017 = vmatprep.mubr.bf16.mxu0 0
  %1018 = vmatmul.mubr.bf16.gmra.mrb[0].mxu0 %v473
  %v1019 = vpop.f32.mrb[0].mxu0
  %v1020 = vadd.f32 %v167, %v1019
  %v1021 = vpop.f32.mrb[0].mxu0
  %v1022 = vpop.f32.mrb[0].mxu0
  %v1023 = vadd.f32 %v167, %v1022
  %v1024 = vpop.f32.mrb[0].mxu0
  %1025 = vmatprep.mubr.bf16.mxu0 0
  %1026 = vmatmul.mubr.bf16.gmra.mrb[0].mxu0 %v474
  %v1027 = vpop.f32.mrb[0].mxu0
  %v1028 = vadd.f32 %v167, %v1027
  %v1029 = vpop.f32.mrb[0].mxu0
  %v1030 = vpop.f32.mrb[0].mxu0
  %v1031 = vadd.f32 %v167, %v1030
  %v1032 = vpop.f32.mrb[0].mxu0
  %1033 = vmatprep.mubr.bf16.mxu0 0
  %1034 = vmatmul.mubr.bf16.gmra.mrb[0].mxu0 %v475
  %v1035 = vpop.f32.mrb[0].mxu0
  %v1036 = vadd.f32 %v167, %v1035
  %v1037 = vpop.f32.mrb[0].mxu0
  %v1038 = vpop.f32.mrb[0].mxu0
  %v1039 = vadd.f32 %v167, %v1038
  %v1040 = vpop.f32.mrb[0].mxu0
  %1041 = vmatprep.mubr.bf16.mxu0 0
  %1042 = vmatmul.mubr.bf16.gmra.mrb[0].mxu0 %v476
  %v1043 = vpop.f32.mrb[0].mxu0
  %v1044 = vadd.f32 %v167, %v1043
  %v1045 = vpop.f32.mrb[0].mxu0
  %v1046 = vpop.f32.mrb[0].mxu0
  %v1047 = vadd.f32 %v167, %v1046
  %v1048 = vpop.f32.mrb[0].mxu0
  %1049 = vmatprep.mubr.bf16.mxu0 0
  %1050 = vmatmul.mubr.bf16.gmra.mrb[0].mxu0 %v477
  %v1051 = vpop.f32.mrb[0].mxu0
  %v1052 = vadd.f32 %v167, %v1051
  %v1053 = vpop.f32.mrb[0].mxu0
  %v1054 = vpop.f32.mrb[0].mxu0
  %v1055 = vadd.f32 %v167, %v1054
  %v1056 = vpop.f32.mrb[0].mxu0
  %1057 = vmatprep.mubr.bf16.mxu0 0
  %1058 = vmatmul.mubr.bf16.gmra.mrb[0].mxu0 %v478
  %v1059 = vpop.f32.mrb[0].mxu0
  %v1060 = vadd.f32 %v167, %v1059
  %v1061 = vpop.f32.mrb[0].mxu0
  %v1062 = vpop.f32.mrb[0].mxu0
  %v1063 = vadd.f32 %v167, %v1062
  %v1064 = vpop.f32.mrb[0].mxu0
  %1065 = vmatprep.mubr.bf16.mxu0 0
  %1066 = vmatmul.mubr.bf16.gmra.mrb[0].mxu0 %v479
  %v1067 = vpop.f32.mrb[0].mxu0
  %v1068 = vadd.f32 %v167, %v1067
  %v1069 = vpop.f32.mrb[0].mxu0
  %v1070 = vpop.f32.mrb[0].mxu0
  %v1071 = vadd.f32 %v167, %v1070
  %v1072 = vpop.f32.mrb[0].mxu0
  %1073 = vmatprep.mubr.bf16.mxu0 0
  %1074 = vmatmul.mubr.bf16.gmra.mrb[0].mxu0 %v480
  %v1075 = vpop.f32.mrb[0].mxu0
  %v1076 = vadd.f32 %v167, %v1075
  %v1077 = vpop.f32.mrb[0].mxu0
  %v1078 = vpop.f32.mrb[0].mxu0
  %v1079 = vadd.f32 %v167, %v1078
  %v1080 = vpop.f32.mrb[0].mxu0
  %1081 = vmatprep.mubr.bf16.mxu0 0
  %1082 = vmatmul.mubr.bf16.gmra.mrb[0].mxu0 %v481
  %v1083 = vpop.f32.mrb[0].mxu0
  %v1084 = vadd.f32 %v167, %v1083
  %v1085 = vpop.f32.mrb[0].mxu0
  %v1086 = vpop.f32.mrb[0].mxu0
  %v1087 = vadd.f32 %v167, %v1086
  %v1088 = vpop.f32.mrb[0].mxu0
  %1089 = vmatprep.mubr.bf16.mxu0 0
  %1090 = vmatmul.mubr.bf16.gmra.mrb[0].mxu0 %v482
  %v1091 = vpop.f32.mrb[0].mxu0
  %v1092 = vadd.f32 %v167, %v1091
  %v1093 = vpop.f32.mrb[0].mxu0
  %v1094 = vpop.f32.mrb[0].mxu0
  %v1095 = vadd.f32 %v167, %v1094
  %v1096 = vpop.f32.mrb[0].mxu0
  %1097 = vmatprep.mubr.bf16.mxu0 0
  %1098 = vmatmul.mubr.bf16.gmra.mrb[0].mxu0 %v483
  %v1099 = vpop.f32.mrb[0].mxu0
  %v1100 = vadd.f32 %v167, %v1099
  %v1101 = vpop.f32.mrb[0].mxu0
  %v1102 = vpop.f32.mrb[0].mxu0
  %v1103 = vadd.f32 %v167, %v1102
  %v1104 = vpop.f32.mrb[0].mxu0
  %1105 = vmatprep.mubr.bf16.mxu0 0
  %1106 = vmatmul.mubr.bf16.gmra.mrb[0].mxu0 %v484
  %v1107 = vpop.f32.mrb[0].mxu0
  %v1108 = vadd.f32 %v167, %v1107
  %v1109 = vpop.f32.mrb[0].mxu0
  %v1110 = vpop.f32.mrb[0].mxu0
  %v1111 = vadd.f32 %v167, %v1110
  %v1112 = vpop.f32.mrb[0].mxu0
  %1113 = vmatprep.mubr.bf16.mxu0 0
  %1114 = vmatmul.mubr.bf16.gmra.mrb[0].mxu0 %v485
  %v1115 = vpop.f32.mrb[0].mxu0
  %v1116 = vadd.f32 %v167, %v1115
  %v1117 = vpop.f32.mrb[0].mxu0
  %v1118 = vpop.f32.mrb[0].mxu0
  %v1119 = vadd.f32 %v167, %v1118
  %v1120 = vpop.f32.mrb[0].mxu0
  %1121 = vmatprep.mubr.bf16.mxu0 0
  %1122 = vmatmul.mubr.bf16.gmra.mrb[0].mxu0 %v486
  %v1123 = vpop.f32.mrb[0].mxu0
  %v1124 = vadd.f32 %v167, %v1123
  %v1125 = vpop.f32.mrb[0].mxu0
  %v1126 = vpop.f32.mrb[0].mxu0
  %v1127 = vadd.f32 %v167, %v1126
  %v1128 = vpop.f32.mrb[0].mxu0
  %1129 = vmatprep.mubr.bf16.mxu0 0
  %1130 = vmatmul.mubr.bf16.gmra.mrb[0].mxu0 %v487
  %v1131 = vpop.f32.mrb[0].mxu0
  %v1132 = vadd.f32 %v167, %v1131
  %v1133 = vpop.f32.mrb[0].mxu0
  %v1134 = vpop.f32.mrb[0].mxu0
  %v1135 = vadd.f32 %v167, %v1134
  %v1136 = vpop.f32.mrb[0].mxu0
  %1137 = vmatprep.mubr.bf16.mxu0 0
  %1138 = vmatmul.mubr.bf16.gmra.mrb[0].mxu0 %v488
  %v1139 = vpop.f32.mrb[0].mxu0
  %v1140 = vadd.f32 %v167, %v1139
  %v1141 = vpop.f32.mrb[0].mxu0
  %v1142 = vpop.f32.mrb[0].mxu0
  %v1143 = vadd.f32 %v167, %v1142
  %v1144 = vpop.f32.mrb[0].mxu0
  %1145 = vdwg.mxu0
  %v1146 = vld [vmem:[%s3] sm:$0xf]
  %v1147 = vld [vmem:[%s3 + $0x4] sm:$0xf]
  %v1148 = vld [vmem:[%s3 + $0x8] sm:$0xf]
  %v1149 = vld [vmem:[%s3 + $0xc] sm:$0xf]
  %v1150 = vld [vmem:[%s3 + $0x10] sm:$0xf]
  %v1151 = vld [vmem:[%s3 + $0x14] sm:$0xf]
  %v1152 = vld [vmem:[%s3 + $0x18] sm:$0xf]
  %v1153 = vld [vmem:[%s3 + $0x1c] sm:$0xf]
  %v1154 = vld [vmem:[%s3 + $0x20] sm:$0xf]
  %v1155 = vld [vmem:[%s3 + $0x24] sm:$0xf]
  %v1156 = vld [vmem:[%s3 + $0x28] sm:$0xf]
  %v1157 = vld [vmem:[%s3 + $0x2c] sm:$0xf]
  %v1158 = vld [vmem:[%s3 + $0x30] sm:$0xf]
  %v1159 = vld [vmem:[%s3 + $0x34] sm:$0xf]
  %v1160 = vld [vmem:[%s3 + $0x38] sm:$0xf]
  %v1161 = vld [vmem:[%s3 + $0x3c] sm:$0xf]
  %v1162 = vld [vmem:[%s3 + $0x40] sm:$0xf]
  %v1163 = vld [vmem:[%s3 + $0x44] sm:$0xf]
  %v1164 = vld [vmem:[%s3 + $0x48] sm:$0xf]
  %v1165 = vld [vmem:[%s3 + $0x4c] sm:$0xf]
  %v1166 = vld [vmem:[%s3 + $0x50] sm:$0xf]
  %v1167 = vld [vmem:[%s3 + $0x54] sm:$0xf]
  %v1168 = vld [vmem:[%s3 + $0x58] sm:$0xf]
  %v1169 = vld [vmem:[%s3 + $0x5c] sm:$0xf]
  %v1170 = vld [vmem:[%s3 + $0x60] sm:$0xf]
  %v1171 = vld [vmem:[%s3 + $0x64] sm:$0xf]
  %v1172 = vld [vmem:[%s3 + $0x68] sm:$0xf]
  %v1173 = vld [vmem:[%s3 + $0x6c] sm:$0xf]
  %v1174 = vld [vmem:[%s3 + $0x70] sm:$0xf]
  %v1175 = vld [vmem:[%s3 + $0x74] sm:$0xf]
  %v1176 = vld [vmem:[%s3 + $0x78] sm:$0xf]
  %v1177 = vld [vmem:[%s3 + $0x7c] sm:$0xf]
  %v1178 = vld [vmem:[%s3 + $0x80] sm:$0xf]
  %v1179 = vld [vmem:[%s3 + $0x84] sm:$0xf]
  %v1180 = vld [vmem:[%s3 + $0x88] sm:$0xf]
  %v1181 = vld [vmem:[%s3 + $0x8c] sm:$0xf]
  %v1182 = vld [vmem:[%s3 + $0x90] sm:$0xf]
  %v1183 = vld [vmem:[%s3 + $0x94] sm:$0xf]
  %v1184 = vld [vmem:[%s3 + $0x98] sm:$0xf]
  %v1185 = vld [vmem:[%s3 + $0x9c] sm:$0xf]
  %v1186 = vld [vmem:[%s3 + $0xa0] sm:$0xf]
  %v1187 = vld [vmem:[%s3 + $0xa4] sm:$0xf]
  %v1188 = vld [vmem:[%s3 + $0xa8] sm:$0xf]
  %v1189 = vld [vmem:[%s3 + $0xac] sm:$0xf]
  %v1190 = vld [vmem:[%s3 + $0xb0] sm:$0xf]
  %v1191 = vld [vmem:[%s3 + $0xb4] sm:$0xf]
  %v1192 = vld [vmem:[%s3 + $0xb8] sm:$0xf]
  %v1193 = vld [vmem:[%s3 + $0xbc] sm:$0xf]
  %v1194 = vld [vmem:[%s3 + $0xc0] sm:$0xf]
  %v1195 = vld [vmem:[%s3 + $0xc4] sm:$0xf]
  %v1196 = vld [vmem:[%s3 + $0xc8] sm:$0xf]
  %v1197 = vld [vmem:[%s3 + $0xcc] sm:$0xf]
  %v1198 = vld [vmem:[%s3 + $0xd0] sm:$0xf]
  %v1199 = vld [vmem:[%s3 + $0xd4] sm:$0xf]
  %v1200 = vld [vmem:[%s3 + $0xd8] sm:$0xf]
  %v1201 = vld [vmem:[%s3 + $0xdc] sm:$0xf]
  %v1202 = vld [vmem:[%s3 + $0xe0] sm:$0xf]
  %v1203 = vld [vmem:[%s3 + $0xe4] sm:$0xf]
  %v1204 = vld [vmem:[%s3 + $0xe8] sm:$0xf]
  %v1205 = vld [vmem:[%s3 + $0xec] sm:$0xf]
  %v1206 = vld [vmem:[%s3 + $0xf0] sm:$0xf]
  %v1207 = vld [vmem:[%s3 + $0xf4] sm:$0xf]
  %v1208 = vld [vmem:[%s3 + $0xf8] sm:$0xf]
  %v1209 = vld [vmem:[%s3 + $0xfc] sm:$0xf]
  %v1210 = vld [vmem:[%s3 + $0x100] sm:$0xf]
  %v1211 = vld [vmem:[%s3 + $0x104] sm:$0xf]
  %v1212 = vld [vmem:[%s3 + $0x108] sm:$0xf]
  %v1213 = vld [vmem:[%s3 + $0x10c] sm:$0xf]
  %v1214 = vld [vmem:[%s3 + $0x110] sm:$0xf]
  %v1215 = vld [vmem:[%s3 + $0x114] sm:$0xf]
  %v1216 = vld [vmem:[%s3 + $0x118] sm:$0xf]
  %v1217 = vld [vmem:[%s3 + $0x11c] sm:$0xf]
  %v1218 = vld [vmem:[%s3 + $0x120] sm:$0xf]
  %v1219 = vld [vmem:[%s3 + $0x124] sm:$0xf]
  %v1220 = vld [vmem:[%s3 + $0x128] sm:$0xf]
  %v1221 = vld [vmem:[%s3 + $0x12c] sm:$0xf]
  %v1222 = vld [vmem:[%s3 + $0x130] sm:$0xf]
  %v1223 = vld [vmem:[%s3 + $0x134] sm:$0xf]
  %v1224 = vld [vmem:[%s3 + $0x138] sm:$0xf]
  %v1225 = vld [vmem:[%s3 + $0x13c] sm:$0xf]
  %v1226 = vld [vmem:[%s3 + $0x140] sm:$0xf]
  %v1227 = vld [vmem:[%s3 + $0x144] sm:$0xf]
  %v1228 = vld [vmem:[%s3 + $0x148] sm:$0xf]
  %v1229 = vld [vmem:[%s3 + $0x14c] sm:$0xf]
  %v1230 = vld [vmem:[%s3 + $0x150] sm:$0xf]
  %v1231 = vld [vmem:[%s3 + $0x154] sm:$0xf]
  %v1232 = vld [vmem:[%s3 + $0x158] sm:$0xf]
  %v1233 = vld [vmem:[%s3 + $0x15c] sm:$0xf]
  %v1234 = vld [vmem:[%s3 + $0x160] sm:$0xf]
  %v1235 = vld [vmem:[%s3 + $0x164] sm:$0xf]
  %v1236 = vld [vmem:[%s3 + $0x168] sm:$0xf]
  %v1237 = vld [vmem:[%s3 + $0x16c] sm:$0xf]
  %v1238 = vld [vmem:[%s3 + $0x170] sm:$0xf]
  %v1239 = vld [vmem:[%s3 + $0x174] sm:$0xf]
  %v1240 = vld [vmem:[%s3 + $0x178] sm:$0xf]
  %v1241 = vld [vmem:[%s3 + $0x17c] sm:$0xf]
  %v1242 = vld [vmem:[%s3 + $0x180] sm:$0xf]
  %v1243 = vld [vmem:[%s3 + $0x184] sm:$0xf]
  %v1244 = vld [vmem:[%s3 + $0x188] sm:$0xf]
  %v1245 = vld [vmem:[%s3 + $0x18c] sm:$0xf]
  %v1246 = vld [vmem:[%s3 + $0x190] sm:$0xf]
  %v1247 = vld [vmem:[%s3 + $0x194] sm:$0xf]
  %v1248 = vld [vmem:[%s3 + $0x198] sm:$0xf]
  %v1249 = vld [vmem:[%s3 + $0x19c] sm:$0xf]
  %v1250 = vld [vmem:[%s3 + $0x1a0] sm:$0xf]
  %v1251 = vld [vmem:[%s3 + $0x1a4] sm:$0xf]
  %v1252 = vld [vmem:[%s3 + $0x1a8] sm:$0xf]
  %v1253 = vld [vmem:[%s3 + $0x1ac] sm:$0xf]
  %v1254 = vld [vmem:[%s3 + $0x1b0] sm:$0xf]
  %v1255 = vld [vmem:[%s3 + $0x1b4] sm:$0xf]
  %v1256 = vld [vmem:[%s3 + $0x1b8] sm:$0xf]
  %v1257 = vld [vmem:[%s3 + $0x1bc] sm:$0xf]
  %v1258 = vld [vmem:[%s3 + $0x1c0] sm:$0xf]
  %v1259 = vld [vmem:[%s3 + $0x1c4] sm:$0xf]
  %v1260 = vld [vmem:[%s3 + $0x1c8] sm:$0xf]
  %v1261 = vld [vmem:[%s3 + $0x1cc] sm:$0xf]
  %v1262 = vld [vmem:[%s3 + $0x1d0] sm:$0xf]
  %v1263 = vld [vmem:[%s3 + $0x1d4] sm:$0xf]
  %v1264 = vld [vmem:[%s3 + $0x1d8] sm:$0xf]
  %v1265 = vld [vmem:[%s3 + $0x1dc] sm:$0xf]
  %v1266 = vld [vmem:[%s3 + $0x1e0] sm:$0xf]
  %v1267 = vld [vmem:[%s3 + $0x1e4] sm:$0xf]
  %v1268 = vld [vmem:[%s3 + $0x1e8] sm:$0xf]
  %v1269 = vld [vmem:[%s3 + $0x1ec] sm:$0xf]
  %v1270 = vld [vmem:[%s3 + $0x1f0] sm:$0xf]
  %v1271 = vld [vmem:[%s3 + $0x1f4] sm:$0xf]
  %v1272 = vld [vmem:[%s3 + $0x1f8] sm:$0xf]
  %v1273 = vld [vmem:[%s3 + $0x1fc] sm:$0xf]
  %v1274 = vunpack.c.l.bf16 %v1146
  %v1275 = vunpack.c.l.bf16 %v1147
  %v1276 = vunpack.c.l.bf16 %v1148
  %v1277 = vunpack.c.l.bf16 %v1149
  %v1278 = vunpack.c.l.bf16 %v1150
  %v1279 = vunpack.c.l.bf16 %v1151
  %v1280 = vunpack.c.l.bf16 %v1152
  %v1281 = vunpack.c.l.bf16 %v1153
  %v1282 = vunpack.c.l.bf16 %v1154
  %v1283 = vunpack.c.l.bf16 %v1155
  %v1284 = vunpack.c.l.bf16 %v1156
  %v1285 = vunpack.c.l.bf16 %v1157
  %v1286 = vunpack.c.l.bf16 %v1158
  %v1287 = vunpack.c.l.bf16 %v1159
  %v1288 = vunpack.c.l.bf16 %v1160
  %v1289 = vunpack.c.l.bf16 %v1161
  %v1290 = vunpack.c.l.bf16 %v1162
  %v1291 = vunpack.c.l.bf16 %v1163
  %v1292 = vunpack.c.l.bf16 %v1164
  %v1293 = vunpack.c.l.bf16 %v1165
  %v1294 = vunpack.c.l.bf16 %v1166
  %v1295 = vunpack.c.l.bf16 %v1167
  %v1296 = vunpack.c.l.bf16 %v1168
  %v1297 = vunpack.c.l.bf16 %v1169
  %v1298 = vunpack.c.l.bf16 %v1170
  %v1299 = vunpack.c.l.bf16 %v1171
  %v1300 = vunpack.c.l.bf16 %v1172
  %v1301 = vunpack.c.l.bf16 %v1173
  %v1302 = vunpack.c.l.bf16 %v1174
  %v1303 = vunpack.c.l.bf16 %v1175
  %v1304 = vunpack.c.l.bf16 %v1176
  %v1305 = vunpack.c.l.bf16 %v1177
  %v1306 = vunpack.c.l.bf16 %v1178
  %v1307 = vunpack.c.l.bf16 %v1179
  %v1308 = vunpack.c.l.bf16 %v1180
  %v1309 = vunpack.c.l.bf16 %v1181
  %v1310 = vunpack.c.l.bf16 %v1182
  %v1311 = vunpack.c.l.bf16 %v1183
  %v1312 = vunpack.c.l.bf16 %v1184
  %v1313 = vunpack.c.l.bf16 %v1185
  %v1314 = vunpack.c.l.bf16 %v1186
  %v1315 = vunpack.c.l.bf16 %v1187
  %v1316 = vunpack.c.l.bf16 %v1188
  %v1317 = vunpack.c.l.bf16 %v1189
  %v1318 = vunpack.c.l.bf16 %v1190
  %v1319 = vunpack.c.l.bf16 %v1191
  %v1320 = vunpack.c.l.bf16 %v1192
  %v1321 = vunpack.c.l.bf16 %v1193
  %v1322 = vunpack.c.l.bf16 %v1194
  %v1323 = vunpack.c.l.bf16 %v1195
  %v1324 = vunpack.c.l.bf16 %v1196
  %v1325 = vunpack.c.l.bf16 %v1197
  %v1326 = vunpack.c.l.bf16 %v1198
  %v1327 = vunpack.c.l.bf16 %v1199
  %v1328 = vunpack.c.l.bf16 %v1200
  %v1329 = vunpack.c.l.bf16 %v1201
  %v1330 = vunpack.c.l.bf16 %v1202
  %v1331 = vunpack.c.l.bf16 %v1203
  %v1332 = vunpack.c.l.bf16 %v1204
  %v1333 = vunpack.c.l.bf16 %v1205
  %v1334 = vunpack.c.l.bf16 %v1206
  %v1335 = vunpack.c.l.bf16 %v1207
  %v1336 = vunpack.c.l.bf16 %v1208
  %v1337 = vunpack.c.l.bf16 %v1209
  %v1338 = vunpack.c.l.bf16 %v1210
  %v1339 = vunpack.c.l.bf16 %v1211
  %v1340 = vunpack.c.l.bf16 %v1212
  %v1341 = vunpack.c.l.bf16 %v1213
  %v1342 = vunpack.c.l.bf16 %v1214
  %v1343 = vunpack.c.l.bf16 %v1215
  %v1344 = vunpack.c.l.bf16 %v1216
  %v1345 = vunpack.c.l.bf16 %v1217
  %v1346 = vunpack.c.l.bf16 %v1218
  %v1347 = vunpack.c.l.bf16 %v1219
  %v1348 = vunpack.c.l.bf16 %v1220
  %v1349 = vunpack.c.l.bf16 %v1221
  %v1350 = vunpack.c.l.bf16 %v1222
  %v1351 = vunpack.c.l.bf16 %v1223
  %v1352 = vunpack.c.l.bf16 %v1224
  %v1353 = vunpack.c.l.bf16 %v1225
  %v1354 = vunpack.c.l.bf16 %v1226
  %v1355 = vunpack.c.l.bf16 %v1227
  %v1356 = vunpack.c.l.bf16 %v1228
  %v1357 = vunpack.c.l.bf16 %v1229
  %v1358 = vunpack.c.l.bf16 %v1230
  %v1359 = vunpack.c.l.bf16 %v1231
  %v1360 = vunpack.c.l.bf16 %v1232
  %v1361 = vunpack.c.l.bf16 %v1233
  %v1362 = vunpack.c.l.bf16 %v1234
  %v1363 = vunpack.c.l.bf16 %v1235
  %v1364 = vunpack.c.l.bf16 %v1236
  %v1365 = vunpack.c.l.bf16 %v1237
  %v1366 = vunpack.c.l.bf16 %v1238
  %v1367 = vunpack.c.l.bf16 %v1239
  %v1368 = vunpack.c.l.bf16 %v1240
  %v1369 = vunpack.c.l.bf16 %v1241
  %v1370 = vunpack.c.l.bf16 %v1242
  %v1371 = vunpack.c.l.bf16 %v1243
  %v1372 = vunpack.c.l.bf16 %v1244
  %v1373 = vunpack.c.l.bf16 %v1245
  %v1374 = vunpack.c.l.bf16 %v1246
  %v1375 = vunpack.c.l.bf16 %v1247
  %v1376 = vunpack.c.l.bf16 %v1248
  %v1377 = vunpack.c.l.bf16 %v1249
  %v1378 = vunpack.c.l.bf16 %v1250
  %v1379 = vunpack.c.l.bf16 %v1251
  %v1380 = vunpack.c.l.bf16 %v1252
  %v1381 = vunpack.c.l.bf16 %v1253
  %v1382 = vunpack.c.l.bf16 %v1254
  %v1383 = vunpack.c.l.bf16 %v1255
  %v1384 = vunpack.c.l.bf16 %v1256
  %v1385 = vunpack.c.l.bf16 %v1257
  %v1386 = vunpack.c.l.bf16 %v1258
  %v1387 = vunpack.c.l.bf16 %v1259
  %v1388 = vunpack.c.l.bf16 %v1260
  %v1389 = vunpack.c.l.bf16 %v1261
  %v1390 = vunpack.c.l.bf16 %v1262
  %v1391 = vunpack.c.l.bf16 %v1263
  %v1392 = vunpack.c.l.bf16 %v1264
  %v1393 = vunpack.c.l.bf16 %v1265
  %v1394 = vunpack.c.l.bf16 %v1266
  %v1395 = vunpack.c.l.bf16 %v1267
  %v1396 = vunpack.c.l.bf16 %v1268
  %v1397 = vunpack.c.l.bf16 %v1269
  %v1398 = vunpack.c.l.bf16 %v1270
  %v1399 = vunpack.c.l.bf16 %v1271
  %v1400 = vunpack.c.l.bf16 %v1272
  %v1401 = vunpack.c.l.bf16 %v1273
  %v1402 = vadd.f32 %v636, %v1274
  %v1403 = vadd.f32 %v639, %v1275
  %v1404 = vadd.f32 %v644, %v1276
  %v1405 = vadd.f32 %v647, %v1277
  %v1406 = vadd.f32 %v652, %v1278
  %v1407 = vadd.f32 %v655, %v1279
  %v1408 = vadd.f32 %v660, %v1280
  %v1409 = vadd.f32 %v663, %v1281
  %v1410 = vadd.f32 %v668, %v1282
  %v1411 = vadd.f32 %v671, %v1283
  %v1412 = vadd.f32 %v676, %v1284
  %v1413 = vadd.f32 %v679, %v1285
  %v1414 = vadd.f32 %v684, %v1286
  %v1415 = vadd.f32 %v687, %v1287
  %v1416 = vadd.f32 %v692, %v1288
  %v1417 = vadd.f32 %v695, %v1289
  %v1418 = vadd.f32 %v700, %v1290
  %v1419 = vadd.f32 %v703, %v1291
  %v1420 = vadd.f32 %v708, %v1292
  %v1421 = vadd.f32 %v711, %v1293
  %v1422 = vadd.f32 %v716, %v1294
  %v1423 = vadd.f32 %v719, %v1295
  %v1424 = vadd.f32 %v724, %v1296
  %v1425 = vadd.f32 %v727, %v1297
  %v1426 = vadd.f32 %v732, %v1298
  %v1427 = vadd.f32 %v735, %v1299
  %v1428 = vadd.f32 %v740, %v1300
  %v1429 = vadd.f32 %v743, %v1301
  %v1430 = vadd.f32 %v748, %v1302
  %v1431 = vadd.f32 %v751, %v1303
  %v1432 = vadd.f32 %v756, %v1304
  %v1433 = vadd.f32 %v759, %v1305
  %v1434 = vadd.f32 %v764, %v1306
  %v1435 = vadd.f32 %v767, %v1307
  %v1436 = vadd.f32 %v772, %v1308
  %v1437 = vadd.f32 %v775, %v1309
  %v1438 = vadd.f32 %v780, %v1310
  %v1439 = vadd.f32 %v783, %v1311
  %v1440 = vadd.f32 %v788, %v1312
  %v1441 = vadd.f32 %v791, %v1313
  %v1442 = vadd.f32 %v796, %v1314
  %v1443 = vadd.f32 %v799, %v1315
  %v1444 = vadd.f32 %v804, %v1316
  %v1445 = vadd.f32 %v807, %v1317
  %v1446 = vadd.f32 %v812, %v1318
  %v1447 = vadd.f32 %v815, %v1319
  %v1448 = vadd.f32 %v820, %v1320
  %v1449 = vadd.f32 %v823, %v1321
  %v1450 = vadd.f32 %v828, %v1322
  %v1451 = vadd.f32 %v831, %v1323
  %v1452 = vadd.f32 %v836, %v1324
  %v1453 = vadd.f32 %v839, %v1325
  %v1454 = vadd.f32 %v844, %v1326
  %v1455 = vadd.f32 %v847, %v1327
  %v1456 = vadd.f32 %v852, %v1328
  %v1457 = vadd.f32 %v855, %v1329
  %v1458 = vadd.f32 %v860, %v1330
  %v1459 = vadd.f32 %v863, %v1331
  %v1460 = vadd.f32 %v868, %v1332
  %v1461 = vadd.f32 %v871, %v1333
  %v1462 = vadd.f32 %v876, %v1334
  %v1463 = vadd.f32 %v879, %v1335
  %v1464 = vadd.f32 %v884, %v1336
  %v1465 = vadd.f32 %v887, %v1337
  %v1466 = vadd.f32 %v892, %v1338
  %v1467 = vadd.f32 %v895, %v1339
  %v1468 = vadd.f32 %v900, %v1340
  %v1469 = vadd.f32 %v903, %v1341
  %v1470 = vadd.f32 %v908, %v1342
  %v1471 = vadd.f32 %v911, %v1343
  %v1472 = vadd.f32 %v916, %v1344
  %v1473 = vadd.f32 %v919, %v1345
  %v1474 = vadd.f32 %v924, %v1346
  %v1475 = vadd.f32 %v927, %v1347
  %v1476 = vadd.f32 %v932, %v1348
  %v1477 = vadd.f32 %v935, %v1349
  %v1478 = vadd.f32 %v940, %v1350
  %v1479 = vadd.f32 %v943, %v1351
  %v1480 = vadd.f32 %v948, %v1352
  %v1481 = vadd.f32 %v951, %v1353
  %v1482 = vadd.f32 %v956, %v1354
  %v1483 = vadd.f32 %v959, %v1355
  %v1484 = vadd.f32 %v964, %v1356
  %v1485 = vadd.f32 %v967, %v1357
  %v1486 = vadd.f32 %v972, %v1358
  %v1487 = vadd.f32 %v975, %v1359
  %v1488 = vadd.f32 %v980, %v1360
  %v1489 = vadd.f32 %v983, %v1361
  %v1490 = vadd.f32 %v988, %v1362
  %v1491 = vadd.f32 %v991, %v1363
  %v1492 = vadd.f32 %v996, %v1364
  %v1493 = vadd.f32 %v999, %v1365
  %v1494 = vadd.f32 %v1004, %v1366
  %v1495 = vadd.f32 %v1007, %v1367
  %v1496 = vadd.f32 %v1012, %v1368
  %v1497 = vadd.f32 %v1015, %v1369
  %v1498 = vadd.f32 %v1020, %v1370
  %v1499 = vadd.f32 %v1023, %v1371
  %v1500 = vadd.f32 %v1028, %v1372
  %v1501 = vadd.f32 %v1031, %v1373
  %v1502 = vadd.f32 %v1036, %v1374
  %v1503 = vadd.f32 %v1039, %v1375
  %v1504 = vadd.f32 %v1044, %v1376
  %v1505 = vadd.f32 %v1047, %v1377
  %v1506 = vadd.f32 %v1052, %v1378
  %v1507 = vadd.f32 %v1055, %v1379
  %v1508 = vadd.f32 %v1060, %v1380
  %v1509 = vadd.f32 %v1063, %v1381
  %v1510 = vadd.f32 %v1068, %v1382
  %v1511 = vadd.f32 %v1071, %v1383
  %v1512 = vadd.f32 %v1076, %v1384
  %v1513 = vadd.f32 %v1079, %v1385
  %v1514 = vadd.f32 %v1084, %v1386
  %v1515 = vadd.f32 %v1087, %v1387
  %v1516 = vadd.f32 %v1092, %v1388
  %v1517 = vadd.f32 %v1095, %v1389
  %v1518 = vadd.f32 %v1100, %v1390
  %v1519 = vadd.f32 %v1103, %v1391
  %v1520 = vadd.f32 %v1108, %v1392
  %v1521 = vadd.f32 %v1111, %v1393
  %v1522 = vadd.f32 %v1116, %v1394
  %v1523 = vadd.f32 %v1119, %v1395
  %v1524 = vadd.f32 %v1124, %v1396
  %v1525 = vadd.f32 %v1127, %v1397
  %v1526 = vadd.f32 %v1132, %v1398
  %v1527 = vadd.f32 %v1135, %v1399
  %v1528 = vadd.f32 %v1140, %v1400
  %v1529 = vadd.f32 %v1143, %v1401
  %v1530 = vmax.f32 %v1402, 0.0
  %v1531 = vmax.f32 %v1403, 0.0
  %v1532 = vmax.f32 %v1404, 0.0
  %v1533 = vmax.f32 %v1405, 0.0
  %v1534 = vmax.f32 %v1406, 0.0
  %v1535 = vmax.f32 %v1407, 0.0
  %v1536 = vmax.f32 %v1408, 0.0
  %v1537 = vmax.f32 %v1409, 0.0
  %v1538 = vmax.f32 %v1410, 0.0
  %v1539 = vmax.f32 %v1411, 0.0
  %v1540 = vmax.f32 %v1412, 0.0
  %v1541 = vmax.f32 %v1413, 0.0
  %v1542 = vmax.f32 %v1414, 0.0
  %v1543 = vmax.f32 %v1415, 0.0
  %v1544 = vmax.f32 %v1416, 0.0
  %v1545 = vmax.f32 %v1417, 0.0
  %v1546 = vmax.f32 %v1418, 0.0
  %v1547 = vmax.f32 %v1419, 0.0
  %v1548 = vmax.f32 %v1420, 0.0
  %v1549 = vmax.f32 %v1421, 0.0
  %v1550 = vmax.f32 %v1422, 0.0
  %v1551 = vmax.f32 %v1423, 0.0
  %v1552 = vmax.f32 %v1424, 0.0
  %v1553 = vmax.f32 %v1425, 0.0
  %v1554 = vmax.f32 %v1426, 0.0
  %v1555 = vmax.f32 %v1427, 0.0
  %v1556 = vmax.f32 %v1428, 0.0
  %v1557 = vmax.f32 %v1429, 0.0
  %v1558 = vmax.f32 %v1430, 0.0
  %v1559 = vmax.f32 %v1431, 0.0
  %v1560 = vmax.f32 %v1432, 0.0
  %v1561 = vmax.f32 %v1433, 0.0
  %v1562 = vmax.f32 %v1434, 0.0
  %v1563 = vmax.f32 %v1435, 0.0
  %v1564 = vmax.f32 %v1436, 0.0
  %v1565 = vmax.f32 %v1437, 0.0
  %v1566 = vmax.f32 %v1438, 0.0
  %v1567 = vmax.f32 %v1439, 0.0
  %v1568 = vmax.f32 %v1440, 0.0
  %v1569 = vmax.f32 %v1441, 0.0
  %v1570 = vmax.f32 %v1442, 0.0
  %v1571 = vmax.f32 %v1443, 0.0
  %v1572 = vmax.f32 %v1444, 0.0
  %v1573 = vmax.f32 %v1445, 0.0
  %v1574 = vmax.f32 %v1446, 0.0
  %v1575 = vmax.f32 %v1447, 0.0
  %v1576 = vmax.f32 %v1448, 0.0
  %v1577 = vmax.f32 %v1449, 0.0
  %v1578 = vmax.f32 %v1450, 0.0
  %v1579 = vmax.f32 %v1451, 0.0
  %v1580 = vmax.f32 %v1452, 0.0
  %v1581 = vmax.f32 %v1453, 0.0
  %v1582 = vmax.f32 %v1454, 0.0
  %v1583 = vmax.f32 %v1455, 0.0
  %v1584 = vmax.f32 %v1456, 0.0
  %v1585 = vmax.f32 %v1457, 0.0
  %v1586 = vmax.f32 %v1458, 0.0
  %v1587 = vmax.f32 %v1459, 0.0
  %v1588 = vmax.f32 %v1460, 0.0
  %v1589 = vmax.f32 %v1461, 0.0
  %v1590 = vmax.f32 %v1462, 0.0
  %v1591 = vmax.f32 %v1463, 0.0
  %v1592 = vmax.f32 %v1464, 0.0
  %v1593 = vmax.f32 %v1465, 0.0
  %v1594 = vmax.f32 %v1466, 0.0
  %v1595 = vmax.f32 %v1467, 0.0
  %v1596 = vmax.f32 %v1468, 0.0
  %v1597 = vmax.f32 %v1469, 0.0
  %v1598 = vmax.f32 %v1470, 0.0
  %v1599 = vmax.f32 %v1471, 0.0
  %v1600 = vmax.f32 %v1472, 0.0
  %v1601 = vmax.f32 %v1473, 0.0
  %v1602 = vmax.f32 %v1474, 0.0
  %v1603 = vmax.f32 %v1475, 0.0
  %v1604 = vmax.f32 %v1476, 0.0
  %v1605 = vmax.f32 %v1477, 0.0
  %v1606 = vmax.f32 %v1478, 0.0
  %v1607 = vmax.f32 %v1479, 0.0
  %v1608 = vmax.f32 %v1480, 0.0
  %v1609 = vmax.f32 %v1481, 0.0
  %v1610 = vmax.f32 %v1482, 0.0
  %v1611 = vmax.f32 %v1483, 0.0
  %v1612 = vmax.f32 %v1484, 0.0
  %v1613 = vmax.f32 %v1485, 0.0
  %v1614 = vmax.f32 %v1486, 0.0
  %v1615 = vmax.f32 %v1487, 0.0
  %v1616 = vmax.f32 %v1488, 0.0
  %v1617 = vmax.f32 %v1489, 0.0
  %v1618 = vmax.f32 %v1490, 0.0
  %v1619 = vmax.f32 %v1491, 0.0
  %v1620 = vmax.f32 %v1492, 0.0
  %v1621 = vmax.f32 %v1493, 0.0
  %v1622 = vmax.f32 %v1494, 0.0
  %v1623 = vmax.f32 %v1495, 0.0
  %v1624 = vmax.f32 %v1496, 0.0
  %v1625 = vmax.f32 %v1497, 0.0
  %v1626 = vmax.f32 %v1498, 0.0
  %v1627 = vmax.f32 %v1499, 0.0
  %v1628 = vmax.f32 %v1500, 0.0
  %v1629 = vmax.f32 %v1501, 0.0
  %v1630 = vmax.f32 %v1502, 0.0
  %v1631 = vmax.f32 %v1503, 0.0
  %v1632 = vmax.f32 %v1504, 0.0
  %v1633 = vmax.f32 %v1505, 0.0
  %v1634 = vmax.f32 %v1506, 0.0
  %v1635 = vmax.f32 %v1507, 0.0
  %v1636 = vmax.f32 %v1508, 0.0
  %v1637 = vmax.f32 %v1509, 0.0
  %v1638 = vmax.f32 %v1510, 0.0
  %v1639 = vmax.f32 %v1511, 0.0
  %v1640 = vmax.f32 %v1512, 0.0
  %v1641 = vmax.f32 %v1513, 0.0
  %v1642 = vmax.f32 %v1514, 0.0
  %v1643 = vmax.f32 %v1515, 0.0
  %v1644 = vmax.f32 %v1516, 0.0
  %v1645 = vmax.f32 %v1517, 0.0
  %v1646 = vmax.f32 %v1518, 0.0
  %v1647 = vmax.f32 %v1519, 0.0
  %v1648 = vmax.f32 %v1520, 0.0
  %v1649 = vmax.f32 %v1521, 0.0
  %v1650 = vmax.f32 %v1522, 0.0
  %v1651 = vmax.f32 %v1523, 0.0
  %v1652 = vmax.f32 %v1524, 0.0
  %v1653 = vmax.f32 %v1525, 0.0
  %v1654 = vmax.f32 %v1526, 0.0
  %v1655 = vmax.f32 %v1527, 0.0
  %v1656 = vmax.f32 %v1528, 0.0
  %v1657 = vmax.f32 %v1529, 0.0
  %v1658 = vpack.c.bf16 %v1531, %v1530
  %v1659 = vpack.c.bf16 %v1533, %v1532
  %v1660 = vpack.c.bf16 %v1535, %v1534
  %v1661 = vpack.c.bf16 %v1537, %v1536
  %v1662 = vpack.c.bf16 %v1539, %v1538
  %v1663 = vpack.c.bf16 %v1541, %v1540
  %v1664 = vpack.c.bf16 %v1543, %v1542
  %v1665 = vpack.c.bf16 %v1545, %v1544
  %v1666 = vpack.c.bf16 %v1547, %v1546
  %v1667 = vpack.c.bf16 %v1549, %v1548
  %v1668 = vpack.c.bf16 %v1551, %v1550
  %v1669 = vpack.c.bf16 %v1553, %v1552
  %v1670 = vpack.c.bf16 %v1555, %v1554
  %v1671 = vpack.c.bf16 %v1557, %v1556
  %v1672 = vpack.c.bf16 %v1559, %v1558
  %v1673 = vpack.c.bf16 %v1561, %v1560
  %v1674 = vpack.c.bf16 %v1563, %v1562
  %v1675 = vpack.c.bf16 %v1565, %v1564
  %v1676 = vpack.c.bf16 %v1567, %v1566
  %v1677 = vpack.c.bf16 %v1569, %v1568
  %v1678 = vpack.c.bf16 %v1571, %v1570
  %v1679 = vpack.c.bf16 %v1573, %v1572
  %v1680 = vpack.c.bf16 %v1575, %v1574
  %v1681 = vpack.c.bf16 %v1577, %v1576
  %v1682 = vpack.c.bf16 %v1579, %v1578
  %v1683 = vpack.c.bf16 %v1581, %v1580
  %v1684 = vpack.c.bf16 %v1583, %v1582
  %v1685 = vpack.c.bf16 %v1585, %v1584
  %v1686 = vpack.c.bf16 %v1587, %v1586
  %v1687 = vpack.c.bf16 %v1589, %v1588
  %v1688 = vpack.c.bf16 %v1591, %v1590
  %v1689 = vpack.c.bf16 %v1593, %v1592
  %v1690 = vpack.c.bf16 %v1595, %v1594
  %v1691 = vpack.c.bf16 %v1597, %v1596
  %v1692 = vpack.c.bf16 %v1599, %v1598
  %v1693 = vpack.c.bf16 %v1601, %v1600
  %v1694 = vpack.c.bf16 %v1603, %v1602
  %v1695 = vpack.c.bf16 %v1605, %v1604
  %v1696 = vpack.c.bf16 %v1607, %v1606
  %v1697 = vpack.c.bf16 %v1609, %v1608
  %v1698 = vpack.c.bf16 %v1611, %v1610
  %v1699 = vpack.c.bf16 %v1613, %v1612
  %v1700 = vpack.c.bf16 %v1615, %v1614
  %v1701 = vpack.c.bf16 %v1617, %v1616
  %v1702 = vpack.c.bf16 %v1619, %v1618
  %v1703 = vpack.c.bf16 %v1621, %v1620
  %v1704 = vpack.c.bf16 %v1623, %v1622
  %v1705 = vpack.c.bf16 %v1625, %v1624
  %v1706 = vpack.c.bf16 %v1627, %v1626
  %v1707 = vpack.c.bf16 %v1629, %v1628
  %v1708 = vpack.c.bf16 %v1631, %v1630
  %v1709 = vpack.c.bf16 %v1633, %v1632
  %v1710 = vpack.c.bf16 %v1635, %v1634
  %v1711 = vpack.c.bf16 %v1637, %v1636
  %v1712 = vpack.c.bf16 %v1639, %v1638
  %v1713 = vpack.c.bf16 %v1641, %v1640
  %v1714 = vpack.c.bf16 %v1643, %v1642
  %v1715 = vpack.c.bf16 %v1645, %v1644
  %v1716 = vpack.c.bf16 %v1647, %v1646
  %v1717 = vpack.c.bf16 %v1649, %v1648
  %v1718 = vpack.c.bf16 %v1651, %v1650
  %v1719 = vpack.c.bf16 %v1653, %v1652
  %v1720 = vpack.c.bf16 %v1655, %v1654
  %v1721 = vpack.c.bf16 %v1657, %v1656
  %v1786 = vunpack.c.l.b16 %v1658
  %v1787 = vunpack.c.h.b16 %v1658
  %v1788 = vunpack.c.l.b16 %v1659
  %v1789 = vunpack.c.h.b16 %v1659
  %v1790 = vunpack.c.l.b16 %v1660
  %v1791 = vunpack.c.h.b16 %v1660
  %v1792 = vunpack.c.l.b16 %v1661
  %v1793 = vunpack.c.h.b16 %v1661
  %v1794 = vunpack.c.l.b16 %v1662
  %v1795 = vunpack.c.h.b16 %v1662
  %v1796 = vunpack.c.l.b16 %v1663
  %v1797 = vunpack.c.h.b16 %v1663
  %v1798 = vunpack.c.l.b16 %v1664
  %v1799 = vunpack.c.h.b16 %v1664
  %v1800 = vunpack.c.l.b16 %v1665
  %v1801 = vunpack.c.h.b16 %v1665
  %v1802 = vunpack.c.l.b16 %v1666
  %v1803 = vunpack.c.h.b16 %v1666
  %v1804 = vunpack.c.l.b16 %v1667
  %v1805 = vunpack.c.h.b16 %v1667
  %v1806 = vunpack.c.l.b16 %v1668
  %v1807 = vunpack.c.h.b16 %v1668
  %v1808 = vunpack.c.l.b16 %v1669
  %v1809 = vunpack.c.h.b16 %v1669
  %v1810 = vunpack.c.l.b16 %v1670
  %v1811 = vunpack.c.h.b16 %v1670
  %v1812 = vunpack.c.l.b16 %v1671
  %v1813 = vunpack.c.h.b16 %v1671
  %v1814 = vunpack.c.l.b16 %v1672
  %v1815 = vunpack.c.h.b16 %v1672
  %v1816 = vunpack.c.l.b16 %v1673
  %v1817 = vunpack.c.h.b16 %v1673
  %v1818 = vunpack.c.l.b16 %v1674
  %v1819 = vunpack.c.h.b16 %v1674
  %v1820 = vunpack.c.l.b16 %v1675
  %v1821 = vunpack.c.h.b16 %v1675
  %v1822 = vunpack.c.l.b16 %v1676
  %v1823 = vunpack.c.h.b16 %v1676
  %v1824 = vunpack.c.l.b16 %v1677
  %v1825 = vunpack.c.h.b16 %v1677
  %v1826 = vunpack.c.l.b16 %v1678
  %v1827 = vunpack.c.h.b16 %v1678
  %v1828 = vunpack.c.l.b16 %v1679
  %v1829 = vunpack.c.h.b16 %v1679
  %v1830 = vunpack.c.l.b16 %v1680
  %v1831 = vunpack.c.h.b16 %v1680
  %v1832 = vunpack.c.l.b16 %v1681
  %v1833 = vunpack.c.h.b16 %v1681
  %v1834 = vunpack.c.l.b16 %v1682
  %v1835 = vunpack.c.h.b16 %v1682
  %v1836 = vunpack.c.l.b16 %v1683
  %v1837 = vunpack.c.h.b16 %v1683
  %v1838 = vunpack.c.l.b16 %v1684
  %v1839 = vunpack.c.h.b16 %v1684
  %v1840 = vunpack.c.l.b16 %v1685
  %v1841 = vunpack.c.h.b16 %v1685
  %v1842 = vunpack.c.l.b16 %v1686
  %v1843 = vunpack.c.h.b16 %v1686
  %v1844 = vunpack.c.l.b16 %v1687
  %v1845 = vunpack.c.h.b16 %v1687
  %v1846 = vunpack.c.l.b16 %v1688
  %v1847 = vunpack.c.h.b16 %v1688
  %v1848 = vunpack.c.l.b16 %v1689
  %v1849 = vunpack.c.h.b16 %v1689
  %v1850 = vunpack.c.l.b16 %v1690
  %v1851 = vunpack.c.h.b16 %v1690
  %v1852 = vunpack.c.l.b16 %v1691
  %v1853 = vunpack.c.h.b16 %v1691
  %v1854 = vunpack.c.l.b16 %v1692
  %v1855 = vunpack.c.h.b16 %v1692
  %v1856 = vunpack.c.l.b16 %v1693
  %v1857 = vunpack.c.h.b16 %v1693
  %v1858 = vunpack.c.l.b16 %v1694
  %v1859 = vunpack.c.h.b16 %v1694
  %v1860 = vunpack.c.l.b16 %v1695
  %v1861 = vunpack.c.h.b16 %v1695
  %v1862 = vunpack.c.l.b16 %v1696
  %v1863 = vunpack.c.h.b16 %v1696
  %v1864 = vunpack.c.l.b16 %v1697
  %v1865 = vunpack.c.h.b16 %v1697
  %v1866 = vunpack.c.l.b16 %v1698
  %v1867 = vunpack.c.h.b16 %v1698
  %v1868 = vunpack.c.l.b16 %v1699
  %v1869 = vunpack.c.h.b16 %v1699
  %v1870 = vunpack.c.l.b16 %v1700
  %v1871 = vunpack.c.h.b16 %v1700
  %v1872 = vunpack.c.l.b16 %v1701
  %v1873 = vunpack.c.h.b16 %v1701
  %v1874 = vunpack.c.l.b16 %v1702
  %v1875 = vunpack.c.h.b16 %v1702
  %v1876 = vunpack.c.l.b16 %v1703
  %v1877 = vunpack.c.h.b16 %v1703
  %v1878 = vunpack.c.l.b16 %v1704
  %v1879 = vunpack.c.h.b16 %v1704
  %v1880 = vunpack.c.l.b16 %v1705
  %v1881 = vunpack.c.h.b16 %v1705
  %v1882 = vunpack.c.l.b16 %v1706
  %v1883 = vunpack.c.h.b16 %v1706
  %v1884 = vunpack.c.l.b16 %v1707
  %v1885 = vunpack.c.h.b16 %v1707
  %v1886 = vunpack.c.l.b16 %v1708
  %v1887 = vunpack.c.h.b16 %v1708
  %v1888 = vunpack.c.l.b16 %v1709
  %v1889 = vunpack.c.h.b16 %v1709
  %v1890 = vunpack.c.l.b16 %v1710
  %v1891 = vunpack.c.h.b16 %v1710
  %v1892 = vunpack.c.l.b16 %v1711
  %v1893 = vunpack.c.h.b16 %v1711
  %v1894 = vunpack.c.l.b16 %v1712
  %v1895 = vunpack.c.h.b16 %v1712
  %v1896 = vunpack.c.l.b16 %v1713
  %v1897 = vunpack.c.h.b16 %v1713
  %v1898 = vunpack.c.l.b16 %v1714
  %v1899 = vunpack.c.h.b16 %v1714
  %v1900 = vunpack.c.l.b16 %v1715
  %v1901 = vunpack.c.h.b16 %v1715
  %v1902 = vunpack.c.l.b16 %v1716
  %v1903 = vunpack.c.h.b16 %v1716
  %v1904 = vunpack.c.l.b16 %v1717
  %v1905 = vunpack.c.h.b16 %v1717
  %v1906 = vunpack.c.l.b16 %v1718
  %v1907 = vunpack.c.h.b16 %v1718
  %v1908 = vunpack.c.l.b16 %v1719
  %v1909 = vunpack.c.h.b16 %v1719
  %v1910 = vunpack.c.l.b16 %v1720
  %v1911 = vunpack.c.h.b16 %v1720
  %v1912 = vunpack.c.l.b16 %v1721
  %v1913 = vunpack.c.h.b16 %v1721
  %v1914 = vpack.c.b16 %v1786, %v1786
  %v1915 = vpack.c.b16 %v1787, %v1787
  %v1916 = vpack.c.b16 %v1788, %v1788
  %v1917 = vpack.c.b16 %v1789, %v1789
  %v1918 = vpack.c.b16 %v1790, %v1790
  %v1919 = vpack.c.b16 %v1791, %v1791
  %v1920 = vpack.c.b16 %v1792, %v1792
  %v1921 = vpack.c.b16 %v1793, %v1793
  %v1922 = vpack.c.b16 %v1794, %v1794
  %v1923 = vpack.c.b16 %v1795, %v1795
  %v1924 = vpack.c.b16 %v1796, %v1796
  %v1925 = vpack.c.b16 %v1797, %v1797
  %v1926 = vpack.c.b16 %v1798, %v1798
  %v1927 = vpack.c.b16 %v1799, %v1799
  %v1928 = vpack.c.b16 %v1800, %v1800
  %v1929 = vpack.c.b16 %v1801, %v1801
  %v1930 = vpack.c.b16 %v1802, %v1802
  %v1931 = vpack.c.b16 %v1803, %v1803
  %v1932 = vpack.c.b16 %v1804, %v1804
  %v1933 = vpack.c.b16 %v1805, %v1805
  %v1934 = vpack.c.b16 %v1806, %v1806
  %v1935 = vpack.c.b16 %v1807, %v1807
  %v1936 = vpack.c.b16 %v1808, %v1808
  %v1937 = vpack.c.b16 %v1809, %v1809
  %v1938 = vpack.c.b16 %v1810, %v1810
  %v1939 = vpack.c.b16 %v1811, %v1811
  %v1940 = vpack.c.b16 %v1812, %v1812
  %v1941 = vpack.c.b16 %v1813, %v1813
  %v1942 = vpack.c.b16 %v1814, %v1814
  %v1943 = vpack.c.b16 %v1815, %v1815
  %v1944 = vpack.c.b16 %v1816, %v1816
  %v1945 = vpack.c.b16 %v1817, %v1817
  %v1946 = vpack.c.b16 %v1818, %v1818
  %v1947 = vpack.c.b16 %v1819, %v1819
  %v1948 = vpack.c.b16 %v1820, %v1820
  %v1949 = vpack.c.b16 %v1821, %v1821
  %v1950 = vpack.c.b16 %v1822, %v1822
  %v1951 = vpack.c.b16 %v1823, %v1823
  %v1952 = vpack.c.b16 %v1824, %v1824
  %v1953 = vpack.c.b16 %v1825, %v1825
  %v1954 = vpack.c.b16 %v1826, %v1826
  %v1955 = vpack.c.b16 %v1827, %v1827
  %v1956 = vpack.c.b16 %v1828, %v1828
  %v1957 = vpack.c.b16 %v1829, %v1829
  %v1958 = vpack.c.b16 %v1830, %v1830
  %v1959 = vpack.c.b16 %v1831, %v1831
  %v1960 = vpack.c.b16 %v1832, %v1832
  %v1961 = vpack.c.b16 %v1833, %v1833
  %v1962 = vpack.c.b16 %v1834, %v1834
  %v1963 = vpack.c.b16 %v1835, %v1835
  %v1964 = vpack.c.b16 %v1836, %v1836
  %v1965 = vpack.c.b16 %v1837, %v1837
  %v1966 = vpack.c.b16 %v1838, %v1838
  %v1967 = vpack.c.b16 %v1839, %v1839
  %v1968 = vpack.c.b16 %v1840, %v1840
  %v1969 = vpack.c.b16 %v1841, %v1841
  %v1970 = vpack.c.b16 %v1842, %v1842
  %v1971 = vpack.c.b16 %v1843, %v1843
  %v1972 = vpack.c.b16 %v1844, %v1844
  %v1973 = vpack.c.b16 %v1845, %v1845
  %v1974 = vpack.c.b16 %v1846, %v1846
  %v1975 = vpack.c.b16 %v1847, %v1847
  %v1976 = vpack.c.b16 %v1848, %v1848
  %v1977 = vpack.c.b16 %v1849, %v1849
  %v1978 = vpack.c.b16 %v1850, %v1850
  %v1979 = vpack.c.b16 %v1851, %v1851
  %v1980 = vpack.c.b16 %v1852, %v1852
  %v1981 = vpack.c.b16 %v1853, %v1853
  %v1982 = vpack.c.b16 %v1854, %v1854
  %v1983 = vpack.c.b16 %v1855, %v1855
  %v1984 = vpack.c.b16 %v1856, %v1856
  %v1985 = vpack.c.b16 %v1857, %v1857
  %v1986 = vpack.c.b16 %v1858, %v1858
  %v1987 = vpack.c.b16 %v1859, %v1859
  %v1988 = vpack.c.b16 %v1860, %v1860
  %v1989 = vpack.c.b16 %v1861, %v1861
  %v1990 = vpack.c.b16 %v1862, %v1862
  %v1991 = vpack.c.b16 %v1863, %v1863
  %v1992 = vpack.c.b16 %v1864, %v1864
  %v1993 = vpack.c.b16 %v1865, %v1865
  %v1994 = vpack.c.b16 %v1866, %v1866
  %v1995 = vpack.c.b16 %v1867, %v1867
  %v1996 = vpack.c.b16 %v1868, %v1868
  %v1997 = vpack.c.b16 %v1869, %v1869
  %v1998 = vpack.c.b16 %v1870, %v1870
  %v1999 = vpack.c.b16 %v1871, %v1871
  %v2000 = vpack.c.b16 %v1872, %v1872
  %v2001 = vpack.c.b16 %v1873, %v1873
  %v2002 = vpack.c.b16 %v1874, %v1874
  %v2003 = vpack.c.b16 %v1875, %v1875
  %v2004 = vpack.c.b16 %v1876, %v1876
  %v2005 = vpack.c.b16 %v1877, %v1877
  %v2006 = vpack.c.b16 %v1878, %v1878
  %v2007 = vpack.c.b16 %v1879, %v1879
  %v2008 = vpack.c.b16 %v1880, %v1880
  %v2009 = vpack.c.b16 %v1881, %v1881
  %v2010 = vpack.c.b16 %v1882, %v1882
  %v2011 = vpack.c.b16 %v1883, %v1883
  %v2012 = vpack.c.b16 %v1884, %v1884
  %v2013 = vpack.c.b16 %v1885, %v1885
  %v2014 = vpack.c.b16 %v1886, %v1886
  %v2015 = vpack.c.b16 %v1887, %v1887
  %v2016 = vpack.c.b16 %v1888, %v1888
  %v2017 = vpack.c.b16 %v1889, %v1889
  %v2018 = vpack.c.b16 %v1890, %v1890
  %v2019 = vpack.c.b16 %v1891, %v1891
  %v2020 = vpack.c.b16 %v1892, %v1892
  %v2021 = vpack.c.b16 %v1893, %v1893
  %v2022 = vpack.c.b16 %v1894, %v1894
  %v2023 = vpack.c.b16 %v1895, %v1895
  %v2024 = vpack.c.b16 %v1896, %v1896
  %v2025 = vpack.c.b16 %v1897, %v1897
  %v2026 = vpack.c.b16 %v1898, %v1898
  %v2027 = vpack.c.b16 %v1899, %v1899
  %v2028 = vpack.c.b16 %v1900, %v1900
  %v2029 = vpack.c.b16 %v1901, %v1901
  %v2030 = vpack.c.b16 %v1902, %v1902
  %v2031 = vpack.c.b16 %v1903, %v1903
  %v2032 = vpack.c.b16 %v1904, %v1904
  %v2033 = vpack.c.b16 %v1905, %v1905
  %v2034 = vpack.c.b16 %v1906, %v1906
  %v2035 = vpack.c.b16 %v1907, %v1907
  %v2036 = vpack.c.b16 %v1908, %v1908
  %v2037 = vpack.c.b16 %v1909, %v1909
  %v2038 = vpack.c.b16 %v1910, %v1910
  %v2039 = vpack.c.b16 %v1911, %v1911
  %v2040 = vpack.c.b16 %v1912, %v1912
  %v2041 = vpack.c.b16 %v1913, %v1913
  %2170 = vst [vmem:[%s4] sm:$0xf] %v1914
  %2171 = vst [vmem:[%s4 + $0x4] sm:$0xf] %v1915
  %2172 = vst [vmem:[%s4 + $0x8] sm:$0xf] %v1916
  %2173 = vst [vmem:[%s4 + $0xc] sm:$0xf] %v1917
  %2174 = vst [vmem:[%s4 + $0x10] sm:$0xf] %v1918
  %2175 = vst [vmem:[%s4 + $0x14] sm:$0xf] %v1919
  %2176 = vst [vmem:[%s4 + $0x18] sm:$0xf] %v1920
  %2177 = vst [vmem:[%s4 + $0x1c] sm:$0xf] %v1921
  %2178 = vst [vmem:[%s4 + $0x20] sm:$0xf] %v1922
  %2179 = vst [vmem:[%s4 + $0x24] sm:$0xf] %v1923
  %2180 = vst [vmem:[%s4 + $0x28] sm:$0xf] %v1924
  %2181 = vst [vmem:[%s4 + $0x2c] sm:$0xf] %v1925
  %2182 = vst [vmem:[%s4 + $0x30] sm:$0xf] %v1926
  %2183 = vst [vmem:[%s4 + $0x34] sm:$0xf] %v1927
  %2184 = vst [vmem:[%s4 + $0x38] sm:$0xf] %v1928
  %2185 = vst [vmem:[%s4 + $0x3c] sm:$0xf] %v1929
  %2186 = vst [vmem:[%s4 + $0x40] sm:$0xf] %v1930
  %2187 = vst [vmem:[%s4 + $0x44] sm:$0xf] %v1931
  %2188 = vst [vmem:[%s4 + $0x48] sm:$0xf] %v1932
  %2189 = vst [vmem:[%s4 + $0x4c] sm:$0xf] %v1933
  %2190 = vst [vmem:[%s4 + $0x50] sm:$0xf] %v1934
  %2191 = vst [vmem:[%s4 + $0x54] sm:$0xf] %v1935
  %2192 = vst [vmem:[%s4 + $0x58] sm:$0xf] %v1936
  %2193 = vst [vmem:[%s4 + $0x5c] sm:$0xf] %v1937
  %2194 = vst [vmem:[%s4 + $0x60] sm:$0xf] %v1938
  %2195 = vst [vmem:[%s4 + $0x64] sm:$0xf] %v1939
  %2196 = vst [vmem:[%s4 + $0x68] sm:$0xf] %v1940
  %2197 = vst [vmem:[%s4 + $0x6c] sm:$0xf] %v1941
  %2198 = vst [vmem:[%s4 + $0x70] sm:$0xf] %v1942
  %2199 = vst [vmem:[%s4 + $0x74] sm:$0xf] %v1943
  %2200 = vst [vmem:[%s4 + $0x78] sm:$0xf] %v1944
  %2201 = vst [vmem:[%s4 + $0x7c] sm:$0xf] %v1945
  %2202 = vst [vmem:[%s4 + $0x80] sm:$0xf] %v1946
  %2203 = vst [vmem:[%s4 + $0x84] sm:$0xf] %v1947
  %2204 = vst [vmem:[%s4 + $0x88] sm:$0xf] %v1948
  %2205 = vst [vmem:[%s4 + $0x8c] sm:$0xf] %v1949
  %2206 = vst [vmem:[%s4 + $0x90] sm:$0xf] %v1950
  %2207 = vst [vmem:[%s4 + $0x94] sm:$0xf] %v1951
  %2208 = vst [vmem:[%s4 + $0x98] sm:$0xf] %v1952
  %2209 = vst [vmem:[%s4 + $0x9c] sm:$0xf] %v1953
  %2210 = vst [vmem:[%s4 + $0xa0] sm:$0xf] %v1954
  %2211 = vst [vmem:[%s4 + $0xa4] sm:$0xf] %v1955
  %2212 = vst [vmem:[%s4 + $0xa8] sm:$0xf] %v1956
  %2213 = vst [vmem:[%s4 + $0xac] sm:$0xf] %v1957
  %2214 = vst [vmem:[%s4 + $0xb0] sm:$0xf] %v1958
  %2215 = vst [vmem:[%s4 + $0xb4] sm:$0xf] %v1959
  %2216 = vst [vmem:[%s4 + $0xb8] sm:$0xf] %v1960
  %2217 = vst [vmem:[%s4 + $0xbc] sm:$0xf] %v1961
  %2218 = vst [vmem:[%s4 + $0xc0] sm:$0xf] %v1962
  %2219 = vst [vmem:[%s4 + $0xc4] sm:$0xf] %v1963
  %2220 = vst [vmem:[%s4 + $0xc8] sm:$0xf] %v1964
  %2221 = vst [vmem:[%s4 + $0xcc] sm:$0xf] %v1965
  %2222 = vst [vmem:[%s4 + $0xd0] sm:$0xf] %v1966
  %2223 = vst [vmem:[%s4 + $0xd4] sm:$0xf] %v1967
  %2224 = vst [vmem:[%s4 + $0xd8] sm:$0xf] %v1968
  %2225 = vst [vmem:[%s4 + $0xdc] sm:$0xf] %v1969
  %2226 = vst [vmem:[%s4 + $0xe0] sm:$0xf] %v1970
  %2227 = vst [vmem:[%s4 + $0xe4] sm:$0xf] %v1971
  %2228 = vst [vmem:[%s4 + $0xe8] sm:$0xf] %v1972
  %2229 = vst [vmem:[%s4 + $0xec] sm:$0xf] %v1973
  %2230 = vst [vmem:[%s4 + $0xf0] sm:$0xf] %v1974
  %2231 = vst [vmem:[%s4 + $0xf4] sm:$0xf] %v1975
  %2232 = vst [vmem:[%s4 + $0xf8] sm:$0xf] %v1976
  %2233 = vst [vmem:[%s4 + $0xfc] sm:$0xf] %v1977
  %2234 = vst [vmem:[%s4 + $0x100] sm:$0xf] %v1978
  %2235 = vst [vmem:[%s4 + $0x104] sm:$0xf] %v1979
  %2236 = vst [vmem:[%s4 + $0x108] sm:$0xf] %v1980
  %2237 = vst [vmem:[%s4 + $0x10c] sm:$0xf] %v1981
  %2238 = vst [vmem:[%s4 + $0x110] sm:$0xf] %v1982
  %2239 = vst [vmem:[%s4 + $0x114] sm:$0xf] %v1983
  %2240 = vst [vmem:[%s4 + $0x118] sm:$0xf] %v1984
  %2241 = vst [vmem:[%s4 + $0x11c] sm:$0xf] %v1985
  %2242 = vst [vmem:[%s4 + $0x120] sm:$0xf] %v1986
  %2243 = vst [vmem:[%s4 + $0x124] sm:$0xf] %v1987
  %2244 = vst [vmem:[%s4 + $0x128] sm:$0xf] %v1988
  %2245 = vst [vmem:[%s4 + $0x12c] sm:$0xf] %v1989
  %2246 = vst [vmem:[%s4 + $0x130] sm:$0xf] %v1990
  %2247 = vst [vmem:[%s4 + $0x134] sm:$0xf] %v1991
  %2248 = vst [vmem:[%s4 + $0x138] sm:$0xf] %v1992
  %2249 = vst [vmem:[%s4 + $0x13c] sm:$0xf] %v1993
  %2250 = vst [vmem:[%s4 + $0x140] sm:$0xf] %v1994
  %2251 = vst [vmem:[%s4 + $0x144] sm:$0xf] %v1995
  %2252 = vst [vmem:[%s4 + $0x148] sm:$0xf] %v1996
  %2253 = vst [vmem:[%s4 + $0x14c] sm:$0xf] %v1997
  %2254 = vst [vmem:[%s4 + $0x150] sm:$0xf] %v1998
  %2255 = vst [vmem:[%s4 + $0x154] sm:$0xf] %v1999
  %2256 = vst [vmem:[%s4 + $0x158] sm:$0xf] %v2000
  %2257 = vst [vmem:[%s4 + $0x15c] sm:$0xf] %v2001
  %2258 = vst [vmem:[%s4 + $0x160] sm:$0xf] %v2002
  %2259 = vst [vmem:[%s4 + $0x164] sm:$0xf] %v2003
  %2260 = vst [vmem:[%s4 + $0x168] sm:$0xf] %v2004
  %2261 = vst [vmem:[%s4 + $0x16c] sm:$0xf] %v2005
  %2262 = vst [vmem:[%s4 + $0x170] sm:$0xf] %v2006
  %2263 = vst [vmem:[%s4 + $0x174] sm:$0xf] %v2007
  %2264 = vst [vmem:[%s4 + $0x178] sm:$0xf] %v2008
  %2265 = vst [vmem:[%s4 + $0x17c] sm:$0xf] %v2009
  %2266 = vst [vmem:[%s4 + $0x180] sm:$0xf] %v2010
  %2267 = vst [vmem:[%s4 + $0x184] sm:$0xf] %v2011
  %2268 = vst [vmem:[%s4 + $0x188] sm:$0xf] %v2012
  %2269 = vst [vmem:[%s4 + $0x18c] sm:$0xf] %v2013
  %2270 = vst [vmem:[%s4 + $0x190] sm:$0xf] %v2014
  %2271 = vst [vmem:[%s4 + $0x194] sm:$0xf] %v2015
  %2272 = vst [vmem:[%s4 + $0x198] sm:$0xf] %v2016
  %2273 = vst [vmem:[%s4 + $0x19c] sm:$0xf] %v2017
  %2274 = vst [vmem:[%s4 + $0x1a0] sm:$0xf] %v2018
  %2275 = vst [vmem:[%s4 + $0x1a4] sm:$0xf] %v2019
  %2276 = vst [vmem:[%s4 + $0x1a8] sm:$0xf] %v2020
  %2277 = vst [vmem:[%s4 + $0x1ac] sm:$0xf] %v2021
  %2278 = vst [vmem:[%s4 + $0x1b0] sm:$0xf] %v2022
  %2279 = vst [vmem:[%s4 + $0x1b4] sm:$0xf] %v2023
  %2280 = vst [vmem:[%s4 + $0x1b8] sm:$0xf] %v2024
  %2281 = vst [vmem:[%s4 + $0x1bc] sm:$0xf] %v2025
  %2282 = vst [vmem:[%s4 + $0x1c0] sm:$0xf] %v2026
  %2283 = vst [vmem:[%s4 + $0x1c4] sm:$0xf] %v2027
  %2284 = vst [vmem:[%s4 + $0x1c8] sm:$0xf] %v2028
  %2285 = vst [vmem:[%s4 + $0x1cc] sm:$0xf] %v2029
  %2286 = vst [vmem:[%s4 + $0x1d0] sm:$0xf] %v2030
  %2287 = vst [vmem:[%s4 + $0x1d4] sm:$0xf] %v2031
  %2288 = vst [vmem:[%s4 + $0x1d8] sm:$0xf] %v2032
  %2289 = vst [vmem:[%s4 + $0x1dc] sm:$0xf] %v2033
  %2290 = vst [vmem:[%s4 + $0x1e0] sm:$0xf] %v2034
  %2291 = vst [vmem:[%s4 + $0x1e4] sm:$0xf] %v2035
  %2292 = vst [vmem:[%s4 + $0x1e8] sm:$0xf] %v2036
  %2293 = vst [vmem:[%s4 + $0x1ec] sm:$0xf] %v2037
  %2294 = vst [vmem:[%s4 + $0x1f0] sm:$0xf] %v2038
  %2295 = vst [vmem:[%s4 + $0x1f4] sm:$0xf] %v2039
  %2296 = vst [vmem:[%s4 + $0x1f8] sm:$0xf] %v2040
  %2297 = vst [vmem:[%s4 + $0x1fc] sm:$0xf] %v2041
  // Predicated region
  $region18: #{mobrecon_forward.11} parent=0 // pred_check
    _
  $region19: #{mobrecon_forward.11} parent=0 // pred_check_branch
    %2299 = sbr.rel (0) target = $region21
  $region20: #{mobrecon_forward.11} parent=0 // pred_region
    _
  $region21: #{mobrecon_forward.11} parent=0 // pred_fallthru
    _
  // Predicated region
  $region22: #{mobrecon_forward.11} parent=0 // pred_check
    _
  $region23: #{mobrecon_forward.11} parent=0 // pred_check_branch
    %2301 = sbr.rel (0) target = $region25
  $region24: #{mobrecon_forward.11} parent=0 // pred_region
    _
  $region25: #{mobrecon_forward.11} parent=0 // pred_fallthru
    _

// kernel: mobrecon_forward.14
$region0: #{mobrecon_forward.14}
  #allocation0 [shape = 'u32[]', space=smem, size = 0x4, offset = 0x4, fixed_abs, tag = 'smem constant byte address 0x4 - core index']
  #allocation1 [shape = 'u32[144,128]{1,0:T(1,128)}', space=vmem, size = 0x12000, scoped, tag = 'internal scratch']
  %s0 = inlined_call_operand.vmem [shape: f32[88,256], index: 0, kind: input, shape index: {}]
  %s1 = inlined_call_operand.vmem [shape: f32[1,256], index: 1, kind: input, shape index: {}]
  %s2 = inlined_call_operand.vmem [shape: f32[1,256], index: 2, kind: input, shape index: {}]
  %s3 = inlined_call_operand.vmem [shape: f32[88,128], index: 3, kind: output, shape index: {}]
  %s4 = sld [smem:[#allocation0]]
  $region22: #{mobrecon_forward.14} parent=0
    _
  %s6 = ssub.s32 1, %s4
  %s7 = scalar_select 0, %s6, %s4
  // Predicated region
  $region2: #{mobrecon_forward.14} parent=0 // pred_check
    _
  $region3: #{mobrecon_forward.14} parent=0 // pred_check_branch
    %9 = sbr.rel (0) target = $region5
  $region4: #{mobrecon_forward.14} parent=0 // pred_region
    _
  $region5: #{mobrecon_forward.14} parent=0 // pred_fallthru
    _
  // Predicated region
  $region6: #{mobrecon_forward.14} parent=0 // pred_check
    _
  $region7: #{mobrecon_forward.14} parent=0 // pred_check_branch
    %11 = sbr.rel (0) target = $region9
  $region8: #{mobrecon_forward.14} parent=0 // pred_region
    _
  $region9: #{mobrecon_forward.14} parent=0 // pred_fallthru
    _
  // Predicated region
  $region10: #{mobrecon_forward.14} parent=0 // pred_check
    _
  $region11: #{mobrecon_forward.14} parent=0 // pred_check_branch
    %13 = sbr.rel (0) target = $region13
  $region12: #{mobrecon_forward.14} parent=0 // pred_region
    _
  $region13: #{mobrecon_forward.14} parent=0 // pred_fallthru
    _
  %v14 = vld [vmem:[%s0] sm:$0xff]
  %v15 = vld [vmem:[%s0 + $0x8] sm:$0xff]
  %v16 = vld [vmem:[%s0 + $0x10] sm:$0xff]
  %v17 = vld [vmem:[%s0 + $0x18] sm:$0xff]
  %v18 = vld [vmem:[%s0 + $0x20] sm:$0xff]
  %v19 = vld [vmem:[%s0 + $0x28] sm:$0xff]
  %v20 = vld [vmem:[%s0 + $0x30] sm:$0xff]
  %v21 = vld [vmem:[%s0 + $0x38] sm:$0xff]
  %v22 = vld [vmem:[%s0 + $0x40] sm:$0xff]
  %v23 = vld [vmem:[%s0 + $0x48] sm:$0xff]
  %v24 = vld [vmem:[%s0 + $0x50] sm:$0xff]
  %v25 = vld [vmem:[%s0 + $0x58] sm:$0xff]
  %v26 = vld [vmem:[%s0 + $0x60] sm:$0xff]
  %v27 = vld [vmem:[%s0 + $0x68] sm:$0xff]
  %v28 = vld [vmem:[%s0 + $0x70] sm:$0xff]
  %v29 = vld [vmem:[%s0 + $0x78] sm:$0xff]
  %v30 = vld [vmem:[%s0 + $0x80] sm:$0xff]
  %v31 = vld [vmem:[%s0 + $0x88] sm:$0xff]
  %v32 = vld [vmem:[%s0 + $0x90] sm:$0xff]
  %v33 = vld [vmem:[%s0 + $0x98] sm:$0xff]
  %v34 = vld [vmem:[%s0 + $0xa0] sm:$0xff]
  %v35 = vld [vmem:[%s0 + $0xa8] sm:$0xff]
  %v36 = vmax.f32 %v14, %v15
  %37 = vmax.xlane.f32.xlu0 %v36
  %v38 = vpop.xlane.xlu0 %37
  %v39 = vmax.f32 %v16, %v17
  %40 = vmax.xlane.f32.xlu0 %v39
  %v41 = vpop.xlane.xlu0 %40
  %v42 = vmax.f32 %v18, %v19
  %43 = vmax.xlane.f32.xlu0 %v42
  %v44 = vpop.xlane.xlu0 %43
  %v45 = vmax.f32 %v20, %v21
  %46 = vmax.xlane.f32.xlu0 %v45
  %v47 = vpop.xlane.xlu0 %46
  %v48 = vmax.f32 %v22, %v23
  %49 = vmax.xlane.f32.xlu0 %v48
  %v50 = vpop.xlane.xlu0 %49
  %v51 = vmax.f32 %v24, %v25
  %52 = vmax.xlane.f32.xlu0 %v51
  %v53 = vpop.xlane.xlu0 %52
  %v54 = vmax.f32 %v26, %v27
  %55 = vmax.xlane.f32.xlu0 %v54
  %v56 = vpop.xlane.xlu0 %55
  %v57 = vmax.f32 %v28, %v29
  %58 = vmax.xlane.f32.xlu0 %v57
  %v59 = vpop.xlane.xlu0 %58
  %v60 = vmax.f32 %v30, %v31
  %61 = vmax.xlane.f32.xlu0 %v60
  %v62 = vpop.xlane.xlu0 %61
  %v63 = vmax.f32 %v32, %v33
  %64 = vmax.xlane.f32.xlu0 %v63
  %v65 = vpop.xlane.xlu0 %64
  %v66 = vmax.f32 %v34, %v35
  %67 = vmax.xlane.f32.xlu0 %v66
  %v68 = vpop.xlane.xlu0 %67
  %v69 = vsub.f32 %v14, %v38
  %v70 = vsub.f32 %v15, %v38
  %v71 = vsub.f32 %v16, %v41
  %v72 = vsub.f32 %v17, %v41
  %v73 = vsub.f32 %v18, %v44
  %v74 = vsub.f32 %v19, %v44
  %v75 = vsub.f32 %v20, %v47
  %v76 = vsub.f32 %v21, %v47
  %v77 = vsub.f32 %v22, %v50
  %v78 = vsub.f32 %v23, %v50
  %v79 = vsub.f32 %v24, %v53
  %v80 = vsub.f32 %v25, %v53
  %v81 = vsub.f32 %v26, %v56
  %v82 = vsub.f32 %v27, %v56
  %v83 = vsub.f32 %v28, %v59
  %v84 = vsub.f32 %v29, %v59
  %v85 = vsub.f32 %v30, %v62
  %v86 = vsub.f32 %v31, %v62
  %v87 = vsub.f32 %v32, %v65
  %v88 = vsub.f32 %v33, %v65
  %v89 = vsub.f32 %v34, %v68
  %v90 = vsub.f32 %v35, %v68
  %v91 = vmul.f32 %v69, 1.442695
  %v92 = vpow.pop %v91
  %v93 = vmul.f32 %v70, 1.442695
  %v94 = vpow.pop %v93
  %v95 = vmul.f32 %v71, 1.442695
  %v96 = vpow.pop %v95
  %v97 = vmul.f32 %v72, 1.442695
  %v98 = vpow.pop %v97
  %v99 = vmul.f32 %v73, 1.442695
  %v100 = vpow.pop %v99
  %v101 = vmul.f32 %v74, 1.442695
  %v102 = vpow.pop %v101
  %v103 = vmul.f32 %v75, 1.442695
  %v104 = vpow.pop %v103
  %v105 = vmul.f32 %v76, 1.442695
  %v106 = vpow.pop %v105
  %v107 = vmul.f32 %v77, 1.442695
  %v108 = vpow.pop %v107
  %v109 = vmul.f32 %v78, 1.442695
  %v110 = vpow.pop %v109
  %v111 = vmul.f32 %v79, 1.442695
  %v112 = vpow.pop %v111
  %v113 = vmul.f32 %v80, 1.442695
  %v114 = vpow.pop %v113
  %v115 = vmul.f32 %v81, 1.442695
  %v116 = vpow.pop %v115
  %v117 = vmul.f32 %v82, 1.442695
  %v118 = vpow.pop %v117
  %v119 = vmul.f32 %v83, 1.442695
  %v120 = vpow.pop %v119
  %v121 = vmul.f32 %v84, 1.442695
  %v122 = vpow.pop %v121
  %v123 = vmul.f32 %v85, 1.442695
  %v124 = vpow.pop %v123
  %v125 = vmul.f32 %v86, 1.442695
  %v126 = vpow.pop %v125
  %v127 = vmul.f32 %v87, 1.442695
  %v128 = vpow.pop %v127
  %v129 = vmul.f32 %v88, 1.442695
  %v130 = vpow.pop %v129
  %v131 = vmul.f32 %v89, 1.442695
  %v132 = vpow.pop %v131
  %v133 = vmul.f32 %v90, 1.442695
  %v134 = vpow.pop %v133
  %v135 = vadd.f32 %v92, %v94
  %136 = vadd.xlane.f32.xlu0 %v135
  %v137 = vpop.xlane.xlu0 %136
  %v138 = vadd.f32 %v96, %v98
  %139 = vadd.xlane.f32.xlu0 %v138
  %v140 = vpop.xlane.xlu0 %139
  %v141 = vadd.f32 %v100, %v102
  %142 = vadd.xlane.f32.xlu0 %v141
  %v143 = vpop.xlane.xlu0 %142
  %v144 = vadd.f32 %v104, %v106
  %145 = vadd.xlane.f32.xlu0 %v144
  %v146 = vpop.xlane.xlu0 %145
  %v147 = vadd.f32 %v108, %v110
  %148 = vadd.xlane.f32.xlu0 %v147
  %v149 = vpop.xlane.xlu0 %148
  %v150 = vadd.f32 %v112, %v114
  %151 = vadd.xlane.f32.xlu0 %v150
  %v152 = vpop.xlane.xlu0 %151
  %v153 = vadd.f32 %v116, %v118
  %154 = vadd.xlane.f32.xlu0 %v153
  %v155 = vpop.xlane.xlu0 %154
  %v156 = vadd.f32 %v120, %v122
  %157 = vadd.xlane.f32.xlu0 %v156
  %v158 = vpop.xlane.xlu0 %157
  %v159 = vadd.f32 %v124, %v126
  %160 = vadd.xlane.f32.xlu0 %v159
  %v161 = vpop.xlane.xlu0 %160
  %v162 = vadd.f32 %v128, %v130
  %163 = vadd.xlane.f32.xlu0 %v162
  %v164 = vpop.xlane.xlu0 %163
  %v165 = vadd.f32 %v132, %v134
  %166 = vadd.xlane.f32.xlu0 %v165
  %v167 = vpop.xlane.xlu0 %166
  %v168 = vrcp.pop %v137
  %v169 = vmul.f32 %v92, %v168
  %v170 = vmul.f32 %v94, %v168
  %v171 = vrcp.pop %v140
  %v172 = vmul.f32 %v96, %v171
  %v173 = vmul.f32 %v98, %v171
  %v174 = vrcp.pop %v143
  %v175 = vmul.f32 %v100, %v174
  %v176 = vmul.f32 %v102, %v174
  %v177 = vrcp.pop %v146
  %v178 = vmul.f32 %v104, %v177
  %v179 = vmul.f32 %v106, %v177
  %v180 = vrcp.pop %v149
  %v181 = vmul.f32 %v108, %v180
  %v182 = vmul.f32 %v110, %v180
  %v183 = vrcp.pop %v152
  %v184 = vmul.f32 %v112, %v183
  %v185 = vmul.f32 %v114, %v183
  %v186 = vrcp.pop %v155
  %v187 = vmul.f32 %v116, %v186
  %v188 = vmul.f32 %v118, %v186
  %v189 = vrcp.pop %v158
  %v190 = vmul.f32 %v120, %v189
  %v191 = vmul.f32 %v122, %v189
  %v192 = vrcp.pop %v161
  %v193 = vmul.f32 %v124, %v192
  %v194 = vmul.f32 %v126, %v192
  %v195 = vrcp.pop %v164
  %v196 = vmul.f32 %v128, %v195
  %v197 = vmul.f32 %v130, %v195
  %v198 = vrcp.pop %v167
  %v199 = vmul.f32 %v132, %v198
  %v200 = vmul.f32 %v134, %v198
  %v201 = vld [vmem:[%s1] sm:$0x3]
  %v203 = vlaneseq
  %v204 = vshrl.u32 %v203, 7
  %v205 = vsub.s32 0, %v204
  %v206 = vrot.slane %v201, %v205
  %v207 = vlaneseq
  %v208 = vshrl.u32 %v207, 7
  %v209 = vsub.s32 1, %v208
  %v210 = vrot.slane %v201, %v209
  %v213 = vmul.f32 %v169, %v206
  %v214 = vmul.f32 %v170, %v210
  %v215 = vmul.f32 %v172, %v206
  %v216 = vmul.f32 %v173, %v210
  %v217 = vmul.f32 %v175, %v206
  %v218 = vmul.f32 %v176, %v210
  %v219 = vmul.f32 %v178, %v206
  %v220 = vmul.f32 %v179, %v210
  %v221 = vmul.f32 %v181, %v206
  %v222 = vmul.f32 %v182, %v210
  %v223 = vmul.f32 %v184, %v206
  %v224 = vmul.f32 %v185, %v210
  %v225 = vmul.f32 %v187, %v206
  %v226 = vmul.f32 %v188, %v210
  %v227 = vmul.f32 %v190, %v206
  %v228 = vmul.f32 %v191, %v210
  %v229 = vmul.f32 %v193, %v206
  %v230 = vmul.f32 %v194, %v210
  %v231 = vmul.f32 %v196, %v206
  %v232 = vmul.f32 %v197, %v210
  %v233 = vmul.f32 %v199, %v206
  %v234 = vmul.f32 %v200, %v210
  %v235 = vadd.f32 %v213, %v214
  %236 = vadd.xlane.f32.xlu0 %v235
  %v237 = vpop.xlane.xlu0 %236
  %v238 = vadd.f32 %v215, %v216
  %239 = vadd.xlane.f32.xlu0 %v238
  %v240 = vpop.xlane.xlu0 %239
  %v241 = vadd.f32 %v217, %v218
  %242 = vadd.xlane.f32.xlu0 %v241
  %v243 = vpop.xlane.xlu0 %242
  %v244 = vadd.f32 %v219, %v220
  %245 = vadd.xlane.f32.xlu0 %v244
  %v246 = vpop.xlane.xlu0 %245
  %v247 = vadd.f32 %v221, %v222
  %248 = vadd.xlane.f32.xlu0 %v247
  %v249 = vpop.xlane.xlu0 %248
  %v250 = vadd.f32 %v223, %v224
  %251 = vadd.xlane.f32.xlu0 %v250
  %v252 = vpop.xlane.xlu0 %251
  %v253 = vadd.f32 %v225, %v226
  %254 = vadd.xlane.f32.xlu0 %v253
  %v255 = vpop.xlane.xlu0 %254
  %v256 = vadd.f32 %v227, %v228
  %257 = vadd.xlane.f32.xlu0 %v256
  %v258 = vpop.xlane.xlu0 %257
  %v259 = vadd.f32 %v229, %v230
  %260 = vadd.xlane.f32.xlu0 %v259
  %v261 = vpop.xlane.xlu0 %260
  %v262 = vadd.f32 %v231, %v232
  %263 = vadd.xlane.f32.xlu0 %v262
  %v264 = vpop.xlane.xlu0 %263
  %v265 = vadd.f32 %v233, %v234
  %266 = vadd.xlane.f32.xlu0 %v265
  %v267 = vpop.xlane.xlu0 %266
  %v268 = vld [vmem:[%s2] sm:$0x3]
  %v270 = vlaneseq
  %v271 = vshrl.u32 %v270, 7
  %v272 = vsub.s32 0, %v271
  %v273 = vrot.slane %v268, %v272
  %v274 = vlaneseq
  %v275 = vshrl.u32 %v274, 7
  %v276 = vsub.s32 1, %v275
  %v277 = vrot.slane %v268, %v276
  %v280 = vmul.f32 %v169, %v273
  %v281 = vmul.f32 %v170, %v277
  %v282 = vmul.f32 %v172, %v273
  %v283 = vmul.f32 %v173, %v277
  %v284 = vmul.f32 %v175, %v273
  %v285 = vmul.f32 %v176, %v277
  %v286 = vmul.f32 %v178, %v273
  %v287 = vmul.f32 %v179, %v277
  %v288 = vmul.f32 %v181, %v273
  %v289 = vmul.f32 %v182, %v277
  %v290 = vmul.f32 %v184, %v273
  %v291 = vmul.f32 %v185, %v277
  %v292 = vmul.f32 %v187, %v273
  %v293 = vmul.f32 %v188, %v277
  %v294 = vmul.f32 %v190, %v273
  %v295 = vmul.f32 %v191, %v277
  %v296 = vmul.f32 %v193, %v273
  %v297 = vmul.f32 %v194, %v277
  %v298 = vmul.f32 %v196, %v273
  %v299 = vmul.f32 %v197, %v277
  %v300 = vmul.f32 %v199, %v273
  %v301 = vmul.f32 %v200, %v277
  %v302 = vadd.f32 %v280, %v281
  %303 = vadd.xlane.f32.xlu0 %v302
  %v304 = vpop.xlane.xlu0 %303
  %v305 = vadd.f32 %v282, %v283
  %306 = vadd.xlane.f32.xlu0 %v305
  %v307 = vpop.xlane.xlu0 %306
  %v308 = vadd.f32 %v284, %v285
  %309 = vadd.xlane.f32.xlu0 %v308
  %v310 = vpop.xlane.xlu0 %309
  %v311 = vadd.f32 %v286, %v287
  %312 = vadd.xlane.f32.xlu0 %v311
  %v313 = vpop.xlane.xlu0 %312
  %v314 = vadd.f32 %v288, %v289
  %315 = vadd.xlane.f32.xlu0 %v314
  %v316 = vpop.xlane.xlu0 %315
  %v317 = vadd.f32 %v290, %v291
  %318 = vadd.xlane.f32.xlu0 %v317
  %v319 = vpop.xlane.xlu0 %318
  %v320 = vadd.f32 %v292, %v293
  %321 = vadd.xlane.f32.xlu0 %v320
  %v322 = vpop.xlane.xlu0 %321
  %v323 = vadd.f32 %v294, %v295
  %324 = vadd.xlane.f32.xlu0 %v323
  %v325 = vpop.xlane.xlu0 %324
  %v326 = vadd.f32 %v296, %v297
  %327 = vadd.xlane.f32.xlu0 %v326
  %v328 = vpop.xlane.xlu0 %327
  %v329 = vadd.f32 %v298, %v299
  %330 = vadd.xlane.f32.xlu0 %v329
  %v331 = vpop.xlane.xlu0 %330
  %v332 = vadd.f32 %v300, %v301
  %333 = vadd.xlane.f32.xlu0 %v332
  %v334 = vpop.xlane.xlu0 %333
  %v335 = vlaneseq
  %v336 = vand.u32 %v335, 127
  %vm337 = vcmp.eq.s32.totalorder %v336, 0
  %vm338 = vcmp.eq.s32.totalorder %v336, 1
  %v339 = vsel %vm338, %v304, 0.0
  %v340 = vsel %vm338, %v307, 0.0
  %v341 = vsel %vm338, %v310, 0.0
  %v342 = vsel %vm338, %v313, 0.0
  %v343 = vsel %vm338, %v316, 0.0
  %v344 = vsel %vm338, %v319, 0.0
  %v345 = vsel %vm338, %v322, 0.0
  %v346 = vsel %vm338, %v325, 0.0
  %v347 = vsel %vm338, %v328, 0.0
  %v348 = vsel %vm338, %v331, 0.0
  %v349 = vsel %vm338, %v334, 0.0
  %v350 = vsel %vm337, %v237, %v339
  %v351 = vsel %vm337, %v240, %v340
  %v352 = vsel %vm337, %v243, %v341
  %v353 = vsel %vm337, %v246, %v342
  %v354 = vsel %vm337, %v249, %v343
  %v355 = vsel %vm337, %v252, %v344
  %v356 = vsel %vm337, %v255, %v345
  %v357 = vsel %vm337, %v258, %v346
  %v358 = vsel %vm337, %v261, %v347
  %v359 = vsel %vm337, %v264, %v348
  %v360 = vsel %vm337, %v267, %v349
  %361 = vst [vmem:[%s3] sm:$0xff] %v350
  %362 = vst [vmem:[%s3 + $0x8] sm:$0xff] %v351
  %363 = vst [vmem:[%s3 + $0x10] sm:$0xff] %v352
  %364 = vst [vmem:[%s3 + $0x18] sm:$0xff] %v353
  %365 = vst [vmem:[%s3 + $0x20] sm:$0xff] %v354
  %366 = vst [vmem:[%s3 + $0x28] sm:$0xff] %v355
  %367 = vst [vmem:[%s3 + $0x30] sm:$0xff] %v356
  %368 = vst [vmem:[%s3 + $0x38] sm:$0xff] %v357
  %369 = vst [vmem:[%s3 + $0x40] sm:$0xff] %v358
  %370 = vst [vmem:[%s3 + $0x48] sm:$0xff] %v359
  %371 = vst [vmem:[%s3 + $0x50] sm:$0xff] %v360
  // Predicated region
  $region14: #{mobrecon_forward.14} parent=0 // pred_check
    _
  $region15: #{mobrecon_forward.14} parent=0 // pred_check_branch
    %373 = sbr.rel (0) target = $region17
  $region16: #{mobrecon_forward.14} parent=0 // pred_region
    _
  $region17: #{mobrecon_forward.14} parent=0 // pred_fallthru
    _
  // Predicated region
  $region18: #{mobrecon_forward.14} parent=0 // pred_check
    _
  $region19: #{mobrecon_forward.14} parent=0 // pred_check_branch
    %375 = sbr.rel (0) target = $region21
  $region20: #{mobrecon_forward.14} parent=0 // pred_region
    _
  $region21: #{mobrecon_forward.14} parent=0 // pred_fallthru
    _

// kernel: squeeze.8
$region0: #{squeeze.8}
  %s0 = inlined_call_operand.vmem [shape: f32[42,2], index: 0, kind: input, shape index: {}]
  %s1 = inlined_call_operand.vmem [shape: f32[2,21,2], index: 1, kind: output, shape index: {}]
  $region1: #{squeeze.8} parent=0
    #allocation0 [shape = 'u8[8192]{0}', space=vmem, size = 0x2000, scoped, tag = 'scoped mem for output reshape']
    #allocation1 [shape = 'u8[4096]{0}', space=vmem, size = 0x1000, scoped, tag = 'scoped mem for input reshape']
    %s3 = sshllo.u32 0, 2
    %v4 = vld [vmem:[%s0] sm:%s3]
    %5 = vst [vmem:[#allocation1] sm:%s3] %v4
    %v6 = vld [vmem:[#allocation1] sm:$0x3]
    %vm7 = vcmask 171008
    %8 = vst.msk [vmem:[#allocation0] ss:$8 sm:$0x3] %vm7, %v6
    %v9 = vld [vmem:[#allocation1] sm:$0x3]
    %10 = vrot.lane.b32.xlu0 %v9, 107
    %v11 = vpop.permute.xlu0 %10
    %vm12 = vcmask 171008
    %s13 = scalar_lea.vmem [#allocation0], 1
    %14 = vst.msk [vmem:[%s13] ss:$8 sm:$0x3] %vm12, %v11
    %s16 = sshllo.u32 0, 2
    %v18 = vld [vmem:[#allocation0] sm:%s16]
    %s19 = sshllo.u32 0, 2
    %20 = vst [vmem:[%s1] sm:%s19] %v18
    %s21 = scalar_lea.vmem [#allocation0], 8
    %v22 = vld [vmem:[%s21] sm:%s16]
    %s23 = sshllo.u32 0, 2
    %s24 = scalar_lea.vmem %s1, 2
    %25 = vst [vmem:[%s24] sm:%s23] %v22

// kernel: mobrecon_forward.15
$region0: #{mobrecon_forward.15}
  #allocation0 [shape = 'u32[]', space=smem, size = 0x4, offset = 0x4, fixed_abs, tag = 'smem constant byte address 0x4 - core index']
  #allocation1 [shape = 'u32[144,128]{1,0:T(1,128)}', space=vmem, size = 0x12000, scoped, tag = 'internal scratch']
  %s0 = inlined_call_operand.vmem [shape: f32[4,21,32], index: 0, kind: input, shape index: {}]
  %s1 = inlined_call_operand.vmem [shape: f32[8,21], index: 1, kind: input, shape index: {}]
  %s2 = inlined_call_operand.vmem [shape: f32[4,16,8], index: 2, kind: input, shape index: {}]
  %s3 = inlined_call_operand.vmem [shape: f32[4,32,16], index: 3, kind: input, shape index: {}]
  %s4 = inlined_call_operand.vmem [shape: f32[1,16], index: 4, kind: input, shape index: {}]
  %s5 = inlined_call_operand.vmem [shape: f32[4,32,16], index: 5, kind: input, shape index: {}]
  %s6 = inlined_call_operand.vmem [shape: f32[4,16,16], index: 6, kind: input, shape index: {}]
  %s7 = inlined_call_operand.vmem [shape: f32[1,16], index: 7, kind: input, shape index: {}]
  %s8 = inlined_call_operand.vmem [shape: f32[4,64,32], index: 8, kind: input, shape index: {}]
  %s9 = inlined_call_operand.vmem [shape: f32[4,16,8], index: 9, kind: input, shape index: {}]
  %s10 = inlined_call_operand.vmem [shape: f32[1,8], index: 10, kind: input, shape index: {}]
  %s11 = inlined_call_operand.vmem [shape: f32[4,64,64], index: 11, kind: input, shape index: {}]
  %s12 = inlined_call_operand.vmem [shape: f32[4,8,128], index: 12, kind: input, shape index: {}]
  %s13 = inlined_call_operand.vmem [shape: f32[1,128], index: 13, kind: input, shape index: {}]
  %s14 = inlined_call_operand.vmem [shape: f32[4,64,128], index: 14, kind: output, shape index: {}]
  %s15 = sld [smem:[#allocation0]]
  $region89: #{mobrecon_forward.15} parent=0
    _
  %s17 = ssub.s32 1, %s15
  %s18 = scalar_select 0, %s17, %s15
  loop: start=0, step=1, limit=6
  $region2: #{mobrecon_forward.15} parent=0 // loop_pre_header
    _
  $region3: #{mobrecon_forward.15} parent=0 // loop_header
    %s20 = sphi 0, %s24
    %p21 = scmp.ge.s32.totalorder %s20, 6
    %s30 = sphi 0, %s32
    %s33 = sphi 0, %s30
    %s34 = sphi 0, %s33
    %s50 = sphi 0, %s34
    %s54 = sphi 0, %s54
    %s56 = sphi 0, %s54
    %s57 = sphi 0, %s56
    %s71 = sphi 0, %s57
    %s75 = sphi 0, %s75
    %s77 = sphi 0, %s75
    %s78 = sphi 0, %s77
    %s92 = sphi 0, %s78
    %s96 = sphi 0, %s96
    %s98 = sphi 0, %s96
    %s99 = sphi 0, %s98
    %s113 = sphi 0, %s99
    %s117 = sphi 0, %s117
    %s119 = sphi 0, %s117
    %s120 = sphi 0, %s119
    %s134 = sphi 0, %s120
    %s138 = sphi 0, %s138
    %s140 = sphi 0, %s138
    %s141 = sphi 0, %s140
    %s155 = sphi 0, %s141
    %s159 = sphi 0, %s159
    %s161 = sphi 0, %s159
    %s162 = sphi 0, %s161
    %s176 = sphi 0, %s162
    %s180 = sphi 0, %s180
    %s182 = sphi 0, %s180
    %s183 = sphi 0, %s182
    %s197 = sphi 0, %s183
    %s201 = sphi 0, %s201
    %s203 = sphi 0, %s201
    %s204 = sphi 0, %s203
    %s218 = sphi 0, %s204
    %s222 = sphi 0, %s222
    %s224 = sphi 0, %s222
    %s225 = sphi 0, %s224
    %s239 = sphi 0, %s225
    %s243 = sphi 0, %s243
    %s245 = sphi 0, %s243
    %s246 = sphi 0, %s245
    %s260 = sphi 0, %s246
    %s264 = sphi 0, %s264
    %s266 = sphi 0, %s264
    %s267 = sphi 0, %s266
    %s281 = sphi 0, %s267
    %s285 = sphi 0, %s285
    %s287 = sphi 0, %s285
    %s288 = sphi 0, %s287
    %s302 = sphi 0, %s288
    %s306 = sphi 0, %s306
    %s308 = sphi 0, %s306
    %s309 = sphi 0, %s308
    %s323 = sphi 0, %s309
    %s329 = sphi 0, %s331
    %s332 = sphi 0, %s329
    %s333 = sphi 0, %s332
    %s349 = sphi 0, %s333
  $region4: #{mobrecon_forward.15} parent=0 // loop_header_branch
    %23 = sbr.rel (%p21) target = $region8
  $region5: #{mobrecon_forward.15} parent=0 // loop_body
    %s25 = ssub.s32 %s20, 1
    %s26 = ssub.s32 %s20, 2
    %s27 = sadd.s32 %s20, 1
    %s28 = ssub.s32 %s20, %s27
    %p29 = scmp.eq.s32.totalorder %s28, 0
    %s31 = sadd.s32 %s30, 1
    %s32 = scalar_select %p29, %s30, %s31
    %p35 = pneg %p29
    %p36 = scmp.eq.s32.totalorder %s20, 3
    %p37 = por %p35, %p36
    %p38 = scmp.ne.s32.totalorder %s30, %s33
    %p39 = scmp.eq.s32.totalorder %s20, 0
    %p40 = por %p38, %p39
    %p41 = scmp.ne.s32.totalorder %s30, %s33
    %p42 = scmp.eq.s32.totalorder %s25, 3
    %p43 = por %p41, %p42
    %p44 = scmp.ne.s32.totalorder %s33, %s34
    %p45 = scmp.eq.s32.totalorder %s25, 0
    %p46 = por %p44, %p45
    %p47 = scmp.ne.s32.totalorder %s33, %s34
    %p48 = scmp.eq.s32.totalorder %s26, 3
    %p49 = por %p47, %p48
    %p51 = scmp.ne.s32.totalorder %s34, %s50
    %p52 = scmp.eq.s32.totalorder %s26, 0
    %p53 = por %p51, %p52
    %s55 = sadd.s32 %s54, 1
    %p58 = scmp.eq.s32.totalorder %s20, 3
    %p59 = scmp.ne.s32.totalorder %s54, %s56
    %p60 = scmp.eq.s32.totalorder %s20, 0
    %p61 = por %p59, %p60
    %p62 = scmp.ne.s32.totalorder %s54, %s56
    %p63 = scmp.eq.s32.totalorder %s25, 3
    %p64 = por %p62, %p63
    %p65 = scmp.ne.s32.totalorder %s56, %s57
    %p66 = scmp.eq.s32.totalorder %s25, 0
    %p67 = por %p65, %p66
    %p68 = scmp.ne.s32.totalorder %s56, %s57
    %p69 = scmp.eq.s32.totalorder %s26, 3
    %p70 = por %p68, %p69
    %p72 = scmp.ne.s32.totalorder %s57, %s71
    %p73 = scmp.eq.s32.totalorder %s26, 0
    %p74 = por %p72, %p73
    %s76 = sadd.s32 %s75, 1
    %p79 = scmp.eq.s32.totalorder %s20, 3
    %p80 = scmp.ne.s32.totalorder %s75, %s77
    %p81 = scmp.eq.s32.totalorder %s20, 0
    %p82 = por %p80, %p81
    %p83 = scmp.ne.s32.totalorder %s75, %s77
    %p84 = scmp.eq.s32.totalorder %s25, 3
    %p85 = por %p83, %p84
    %p86 = scmp.ne.s32.totalorder %s77, %s78
    %p87 = scmp.eq.s32.totalorder %s25, 0
    %p88 = por %p86, %p87
    %p89 = scmp.ne.s32.totalorder %s77, %s78
    %p90 = scmp.eq.s32.totalorder %s26, 3
    %p91 = por %p89, %p90
    %p93 = scmp.ne.s32.totalorder %s78, %s92
    %p94 = scmp.eq.s32.totalorder %s26, 0
    %p95 = por %p93, %p94
    %s97 = sadd.s32 %s96, 1
    %p100 = scmp.eq.s32.totalorder %s20, 3
    %p101 = scmp.ne.s32.totalorder %s96, %s98
    %p102 = scmp.eq.s32.totalorder %s20, 0
    %p103 = por %p101, %p102
    %p104 = scmp.ne.s32.totalorder %s96, %s98
    %p105 = scmp.eq.s32.totalorder %s25, 3
    %p106 = por %p104, %p105
    %p107 = scmp.ne.s32.totalorder %s98, %s99
    %p108 = scmp.eq.s32.totalorder %s25, 0
    %p109 = por %p107, %p108
    %p110 = scmp.ne.s32.totalorder %s98, %s99
    %p111 = scmp.eq.s32.totalorder %s26, 3
    %p112 = por %p110, %p111
    %p114 = scmp.ne.s32.totalorder %s99, %s113
    %p115 = scmp.eq.s32.totalorder %s26, 0
    %p116 = por %p114, %p115
    %s118 = sadd.s32 %s117, 1
    %p121 = scmp.eq.s32.totalorder %s20, 3
    %p122 = scmp.ne.s32.totalorder %s117, %s119
    %p123 = scmp.eq.s32.totalorder %s20, 0
    %p124 = por %p122, %p123
    %p125 = scmp.ne.s32.totalorder %s117, %s119
    %p126 = scmp.eq.s32.totalorder %s25, 3
    %p127 = por %p125, %p126
    %p128 = scmp.ne.s32.totalorder %s119, %s120
    %p129 = scmp.eq.s32.totalorder %s25, 0
    %p130 = por %p128, %p129
    %p131 = scmp.ne.s32.totalorder %s119, %s120
    %p132 = scmp.eq.s32.totalorder %s26, 3
    %p133 = por %p131, %p132
    %p135 = scmp.ne.s32.totalorder %s120, %s134
    %p136 = scmp.eq.s32.totalorder %s26, 0
    %p137 = por %p135, %p136
    %s139 = sadd.s32 %s138, 1
    %p142 = scmp.eq.s32.totalorder %s20, 3
    %p143 = scmp.ne.s32.totalorder %s138, %s140
    %p144 = scmp.eq.s32.totalorder %s20, 0
    %p145 = por %p143, %p144
    %p146 = scmp.ne.s32.totalorder %s138, %s140
    %p147 = scmp.eq.s32.totalorder %s25, 3
    %p148 = por %p146, %p147
    %p149 = scmp.ne.s32.totalorder %s140, %s141
    %p150 = scmp.eq.s32.totalorder %s25, 0
    %p151 = por %p149, %p150
    %p152 = scmp.ne.s32.totalorder %s140, %s141
    %p153 = scmp.eq.s32.totalorder %s26, 3
    %p154 = por %p152, %p153
    %p156 = scmp.ne.s32.totalorder %s141, %s155
    %p157 = scmp.eq.s32.totalorder %s26, 0
    %p158 = por %p156, %p157
    %s160 = sadd.s32 %s159, 1
    %p163 = scmp.eq.s32.totalorder %s20, 3
    %p164 = scmp.ne.s32.totalorder %s159, %s161
    %p165 = scmp.eq.s32.totalorder %s20, 0
    %p166 = por %p164, %p165
    %p167 = scmp.ne.s32.totalorder %s159, %s161
    %p168 = scmp.eq.s32.totalorder %s25, 3
    %p169 = por %p167, %p168
    %p170 = scmp.ne.s32.totalorder %s161, %s162
    %p171 = scmp.eq.s32.totalorder %s25, 0
    %p172 = por %p170, %p171
    %p173 = scmp.ne.s32.totalorder %s161, %s162
    %p174 = scmp.eq.s32.totalorder %s26, 3
    %p175 = por %p173, %p174
    %p177 = scmp.ne.s32.totalorder %s162, %s176
    %p178 = scmp.eq.s32.totalorder %s26, 0
    %p179 = por %p177, %p178
    %s181 = sadd.s32 %s180, 1
    %p184 = scmp.eq.s32.totalorder %s20, 3
    %p185 = scmp.ne.s32.totalorder %s180, %s182
    %p186 = scmp.eq.s32.totalorder %s20, 0
    %p187 = por %p185, %p186
    %p188 = scmp.ne.s32.totalorder %s180, %s182
    %p189 = scmp.eq.s32.totalorder %s25, 3
    %p190 = por %p188, %p189
    %p191 = scmp.ne.s32.totalorder %s182, %s183
    %p192 = scmp.eq.s32.totalorder %s25, 0
    %p193 = por %p191, %p192
    %p194 = scmp.ne.s32.totalorder %s182, %s183
    %p195 = scmp.eq.s32.totalorder %s26, 3
    %p196 = por %p194, %p195
    %p198 = scmp.ne.s32.totalorder %s183, %s197
    %p199 = scmp.eq.s32.totalorder %s26, 0
    %p200 = por %p198, %p199
    %s202 = sadd.s32 %s201, 1
    %p205 = scmp.eq.s32.totalorder %s20, 3
    %p206 = scmp.ne.s32.totalorder %s201, %s203
    %p207 = scmp.eq.s32.totalorder %s20, 0
    %p208 = por %p206, %p207
    %p209 = scmp.ne.s32.totalorder %s201, %s203
    %p210 = scmp.eq.s32.totalorder %s25, 3
    %p211 = por %p209, %p210
    %p212 = scmp.ne.s32.totalorder %s203, %s204
    %p213 = scmp.eq.s32.totalorder %s25, 0
    %p214 = por %p212, %p213
    %p215 = scmp.ne.s32.totalorder %s203, %s204
    %p216 = scmp.eq.s32.totalorder %s26, 3
    %p217 = por %p215, %p216
    %p219 = scmp.ne.s32.totalorder %s204, %s218
    %p220 = scmp.eq.s32.totalorder %s26, 0
    %p221 = por %p219, %p220
    %s223 = sadd.s32 %s222, 1
    %p226 = scmp.eq.s32.totalorder %s20, 3
    %p227 = scmp.ne.s32.totalorder %s222, %s224
    %p228 = scmp.eq.s32.totalorder %s20, 0
    %p229 = por %p227, %p228
    %p230 = scmp.ne.s32.totalorder %s222, %s224
    %p231 = scmp.eq.s32.totalorder %s25, 3
    %p232 = por %p230, %p231
    %p233 = scmp.ne.s32.totalorder %s224, %s225
    %p234 = scmp.eq.s32.totalorder %s25, 0
    %p235 = por %p233, %p234
    %p236 = scmp.ne.s32.totalorder %s224, %s225
    %p237 = scmp.eq.s32.totalorder %s26, 3
    %p238 = por %p236, %p237
    %p240 = scmp.ne.s32.totalorder %s225, %s239
    %p241 = scmp.eq.s32.totalorder %s26, 0
    %p242 = por %p240, %p241
    %s244 = sadd.s32 %s243, 1
    %p247 = scmp.eq.s32.totalorder %s20, 3
    %p248 = scmp.ne.s32.totalorder %s243, %s245
    %p249 = scmp.eq.s32.totalorder %s20, 0
    %p250 = por %p248, %p249
    %p251 = scmp.ne.s32.totalorder %s243, %s245
    %p252 = scmp.eq.s32.totalorder %s25, 3
    %p253 = por %p251, %p252
    %p254 = scmp.ne.s32.totalorder %s245, %s246
    %p255 = scmp.eq.s32.totalorder %s25, 0
    %p256 = por %p254, %p255
    %p257 = scmp.ne.s32.totalorder %s245, %s246
    %p258 = scmp.eq.s32.totalorder %s26, 3
    %p259 = por %p257, %p258
    %p261 = scmp.ne.s32.totalorder %s246, %s260
    %p262 = scmp.eq.s32.totalorder %s26, 0
    %p263 = por %p261, %p262
    %s265 = sadd.s32 %s264, 1
    %p268 = scmp.eq.s32.totalorder %s20, 3
    %p269 = scmp.ne.s32.totalorder %s264, %s266
    %p270 = scmp.eq.s32.totalorder %s20, 0
    %p271 = por %p269, %p270
    %p272 = scmp.ne.s32.totalorder %s264, %s266
    %p273 = scmp.eq.s32.totalorder %s25, 3
    %p274 = por %p272, %p273
    %p275 = scmp.ne.s32.totalorder %s266, %s267
    %p276 = scmp.eq.s32.totalorder %s25, 0
    %p277 = por %p275, %p276
    %p278 = scmp.ne.s32.totalorder %s266, %s267
    %p279 = scmp.eq.s32.totalorder %s26, 3
    %p280 = por %p278, %p279
    %p282 = scmp.ne.s32.totalorder %s267, %s281
    %p283 = scmp.eq.s32.totalorder %s26, 0
    %p284 = por %p282, %p283
    %s286 = sadd.s32 %s285, 1
    %p289 = scmp.eq.s32.totalorder %s20, 3
    %p290 = scmp.ne.s32.totalorder %s285, %s287
    %p291 = scmp.eq.s32.totalorder %s20, 0
    %p292 = por %p290, %p291
    %p293 = scmp.ne.s32.totalorder %s285, %s287
    %p294 = scmp.eq.s32.totalorder %s25, 3
    %p295 = por %p293, %p294
    %p296 = scmp.ne.s32.totalorder %s287, %s288
    %p297 = scmp.eq.s32.totalorder %s25, 0
    %p298 = por %p296, %p297
    %p299 = scmp.ne.s32.totalorder %s287, %s288
    %p300 = scmp.eq.s32.totalorder %s26, 3
    %p301 = por %p299, %p300
    %p303 = scmp.ne.s32.totalorder %s288, %s302
    %p304 = scmp.eq.s32.totalorder %s26, 0
    %p305 = por %p303, %p304
    %s307 = sadd.s32 %s306, 1
    %p310 = scmp.eq.s32.totalorder %s20, 3
    %p311 = scmp.ne.s32.totalorder %s306, %s308
    %p312 = scmp.eq.s32.totalorder %s20, 0
    %p313 = por %p311, %p312
    %p314 = scmp.ne.s32.totalorder %s306, %s308
    %p315 = scmp.eq.s32.totalorder %s25, 3
    %p316 = por %p314, %p315
    %p317 = scmp.ne.s32.totalorder %s308, %s309
    %p318 = scmp.eq.s32.totalorder %s25, 0
    %p319 = por %p317, %p318
    %p320 = scmp.ne.s32.totalorder %s308, %s309
    %p321 = scmp.eq.s32.totalorder %s26, 3
    %p322 = por %p320, %p321
    %p324 = scmp.ne.s32.totalorder %s309, %s323
    %p325 = scmp.eq.s32.totalorder %s26, 0
    %p326 = por %p324, %p325
    %s327 = ssub.s32 %s20, %s27
    %p328 = scmp.eq.s32.totalorder %s327, 0
    %s330 = sadd.s32 %s329, 1
    %s331 = scalar_select %p328, %s329, %s330
    %p334 = pneg %p328
    %p335 = scmp.eq.s32.totalorder %s20, 3
    %p336 = por %p334, %p335
    %p337 = scmp.ne.s32.totalorder %s329, %s332
    %p338 = scmp.eq.s32.totalorder %s20, 0
    %p339 = por %p337, %p338
    %p340 = scmp.ne.s32.totalorder %s329, %s332
    %p341 = scmp.eq.s32.totalorder %s25, 3
    %p342 = por %p340, %p341
    %p343 = scmp.ne.s32.totalorder %s332, %s333
    %p344 = scmp.eq.s32.totalorder %s25, 0
    %p345 = por %p343, %p344
    %p346 = scmp.ne.s32.totalorder %s332, %s333
    %p347 = scmp.eq.s32.totalorder %s26, 3
    %p348 = por %p346, %p347
    %p350 = scmp.ne.s32.totalorder %s333, %s349
    %p351 = scmp.eq.s32.totalorder %s26, 0
    %p352 = por %p350, %p351
    %p353 = scmp.le.s32.totalorder 1, %s20
    %p354 = scmp.lt.s32.totalorder %s20, 5
    %p355 = pnand %p353, %p354
    %p356 = pneg %p355
    // Predicated region
    $region9: #{mobrecon_forward.15} parent=5 // pred_check
      _
    $region10: #{mobrecon_forward.15} parent=5 // pred_check_branch
      %358 = sbr.rel (%p355) target = $region12
    $region11: #{mobrecon_forward.15} parent=5 // pred_region
      %s359 = ssub.s32 %s20, 1
      // Predicated region
      $region13: #{mobrecon_forward.15} parent=11 // pred_check
        %p360 = pneg %p67
      $region14: #{mobrecon_forward.15} parent=11 // pred_check_branch
        %362 = sbr.rel (%p360) target = $region16
      $region15: #{mobrecon_forward.15} parent=11 // pred_region
        _
      $region16: #{mobrecon_forward.15} parent=11 // pred_fallthru
        _
      // Predicated region
      $region17: #{mobrecon_forward.15} parent=11 // pred_check
        %p363 = pneg %p88
      $region18: #{mobrecon_forward.15} parent=11 // pred_check_branch
        %365 = sbr.rel (%p363) target = $region20
      $region19: #{mobrecon_forward.15} parent=11 // pred_region
        _
      $region20: #{mobrecon_forward.15} parent=11 // pred_fallthru
        _
      // Predicated region
      $region21: #{mobrecon_forward.15} parent=11 // pred_check
        %p366 = pneg %p109
      $region22: #{mobrecon_forward.15} parent=11 // pred_check_branch
        %368 = sbr.rel (%p366) target = $region24
      $region23: #{mobrecon_forward.15} parent=11 // pred_region
        _
      $region24: #{mobrecon_forward.15} parent=11 // pred_fallthru
        _
      // Predicated region
      $region25: #{mobrecon_forward.15} parent=11 // pred_check
        %p369 = pneg %p130
      $region26: #{mobrecon_forward.15} parent=11 // pred_check_branch
        %371 = sbr.rel (%p369) target = $region28
      $region27: #{mobrecon_forward.15} parent=11 // pred_region
        _
      $region28: #{mobrecon_forward.15} parent=11 // pred_fallthru
        _
      // Predicated region
      $region29: #{mobrecon_forward.15} parent=11 // pred_check
        %p372 = pneg %p151
      $region30: #{mobrecon_forward.15} parent=11 // pred_check_branch
        %374 = sbr.rel (%p372) target = $region32
      $region31: #{mobrecon_forward.15} parent=11 // pred_region
        _
      $region32: #{mobrecon_forward.15} parent=11 // pred_fallthru
        _
      // Predicated region
      $region33: #{mobrecon_forward.15} parent=11 // pred_check
        %p375 = pneg %p172
      $region34: #{mobrecon_forward.15} parent=11 // pred_check_branch
        %377 = sbr.rel (%p375) target = $region36
      $region35: #{mobrecon_forward.15} parent=11 // pred_region
        _
      $region36: #{mobrecon_forward.15} parent=11 // pred_fallthru
        _
      // Predicated region
      $region37: #{mobrecon_forward.15} parent=11 // pred_check
        %p378 = pneg %p193
      $region38: #{mobrecon_forward.15} parent=11 // pred_check_branch
        %380 = sbr.rel (%p378) target = $region40
      $region39: #{mobrecon_forward.15} parent=11 // pred_region
        _
      $region40: #{mobrecon_forward.15} parent=11 // pred_fallthru
        _
      // Predicated region
      $region41: #{mobrecon_forward.15} parent=11 // pred_check
        %p381 = pneg %p214
      $region42: #{mobrecon_forward.15} parent=11 // pred_check_branch
        %383 = sbr.rel (%p381) target = $region44
      $region43: #{mobrecon_forward.15} parent=11 // pred_region
        _
      $region44: #{mobrecon_forward.15} parent=11 // pred_fallthru
        _
      // Predicated region
      $region45: #{mobrecon_forward.15} parent=11 // pred_check
        %p384 = pneg %p235
      $region46: #{mobrecon_forward.15} parent=11 // pred_check_branch
        %386 = sbr.rel (%p384) target = $region48
      $region47: #{mobrecon_forward.15} parent=11 // pred_region
        _
      $region48: #{mobrecon_forward.15} parent=11 // pred_fallthru
        _
      // Predicated region
      $region49: #{mobrecon_forward.15} parent=11 // pred_check
        %p387 = pneg %p256
      $region50: #{mobrecon_forward.15} parent=11 // pred_check_branch
        %389 = sbr.rel (%p387) target = $region52
      $region51: #{mobrecon_forward.15} parent=11 // pred_region
        _
      $region52: #{mobrecon_forward.15} parent=11 // pred_fallthru
        _
      // Predicated region
      $region53: #{mobrecon_forward.15} parent=11 // pred_check
        %p390 = pneg %p277
      $region54: #{mobrecon_forward.15} parent=11 // pred_check_branch
        %392 = sbr.rel (%p390) target = $region56
      $region55: #{mobrecon_forward.15} parent=11 // pred_region
        _
      $region56: #{mobrecon_forward.15} parent=11 // pred_fallthru
        _
      // Predicated region
      $region57: #{mobrecon_forward.15} parent=11 // pred_check
        %p393 = pneg %p298
      $region58: #{mobrecon_forward.15} parent=11 // pred_check_branch
        %395 = sbr.rel (%p393) target = $region60
      $region59: #{mobrecon_forward.15} parent=11 // pred_region
        _
      $region60: #{mobrecon_forward.15} parent=11 // pred_fallthru
        _
      // Predicated region
      $region61: #{mobrecon_forward.15} parent=11 // pred_check
        %p396 = pneg %p319
      $region62: #{mobrecon_forward.15} parent=11 // pred_check_branch
        %398 = sbr.rel (%p396) target = $region64
      $region63: #{mobrecon_forward.15} parent=11 // pred_region
        _
      $region64: #{mobrecon_forward.15} parent=11 // pred_fallthru
        _
    $region12: #{mobrecon_forward.15} parent=5 // pred_fallthru
      _
    %p399 = scmp.lt.s32.totalorder %s20, 4
    // Predicated region
    $region65: #{mobrecon_forward.15} parent=5 // pred_check
      %p400 = pneg %p399
    $region66: #{mobrecon_forward.15} parent=5 // pred_check_branch
      %402 = sbr.rel (%p400) target = $region68
    $region67: #{mobrecon_forward.15} parent=5 // pred_region
      // Predicated region
      $region69: #{mobrecon_forward.15} parent=67 // pred_check
        %p403 = pneg %p40
      $region70: #{mobrecon_forward.15} parent=67 // pred_check_branch
        %405 = sbr.rel (%p403) target = $region72
      $region71: #{mobrecon_forward.15} parent=67 // pred_region
        %p406 = scmp.lt.s32.totalorder %s20, 3
        %s407 = scalar_select %p406, %s20, 3
        %s408 = smul.addr %s407, 3
        %s409 = smul.addr %s408, 8
        %s410 = scalar_lea.vmem %s0, %s409
      $region72: #{mobrecon_forward.15} parent=67 // pred_fallthru
        _
    $region68: #{mobrecon_forward.15} parent=5 // pred_fallthru
      _
    %p411 = scmp.le.s32.totalorder 1, %s20
    %p412 = scmp.lt.s32.totalorder %s20, 5
    %p413 = pnand %p411, %p412
    %p414 = pneg %p413
    // Predicated region
    $region73: #{mobrecon_forward.15} parent=5 // pred_check
      _
    $region74: #{mobrecon_forward.15} parent=5 // pred_check_branch
      %416 = sbr.rel (%p413) target = $region76
    $region75: #{mobrecon_forward.15} parent=5 // pred_region
      %s417 = ssub.s32 %s20, 1
      %p418 = scmp.lt.s32.totalorder %s25, 3
      %s419 = scalar_select %p418, %s25, 3
      %s420 = smul.addr %s419, 3
      %s421 = smul.addr %s420, 8
      %s422 = scalar_lea.vmem %s0, %s421
      %p423 = pneg %p46
      %p424 = pneg %p43
      %p425 = pneg %p67
      %p426 = pneg %p64
      %p427 = pneg %p88
      %p428 = pneg %p85
      %p429 = pneg %p109
      %p430 = pneg %p106
      %p431 = pneg %p130
      %p432 = pneg %p127
      %p433 = pneg %p151
      %p434 = pneg %p148
      %p435 = pneg %p172
      %p436 = pneg %p169
      %p437 = pneg %p193
      %p438 = pneg %p190
      %p439 = pneg %p214
      %p440 = pneg %p211
      %p441 = pneg %p235
      %p442 = pneg %p232
      %p443 = pneg %p256
      %p444 = pneg %p253
      %p445 = pneg %p277
      %p446 = pneg %p274
      %p447 = pneg %p298
      %p448 = pneg %p295
      %p449 = pneg %p319
      %p450 = pneg %p316
      %p451 = pneg %p345
      %p452 = pneg %p342
      %p453 = scmp.lt.s32.totalorder %s25, 3
      %s454 = scalar_select %p453, %s25, 3
      %s455 = smul.addr %s454, 8
      %s456 = smul.addr %s455, 8
      %s457 = scalar_lea.vmem %s14, %s456
      %p458 = scmp.lt.s32.totalorder %s25, 3
      %s459 = scalar_select %p458, %s25, 3
      %s460 = smul.addr %s459, 3
      %s461 = smul.addr %s460, 8
      %s462 = scalar_lea.vmem %s0, %s461
      %p463 = scmp.lt.s32.totalorder %s25, 3
      %s464 = scalar_select %p463, %s25, 3
      %s465 = smul.addr %s464, 8
      %s466 = smul.addr %s465, 8
      %s467 = scalar_lea.vmem %s14, %s466
      %v468 = vld [vmem:[%s1] sm:$0xff]
      %v469 = vld [vmem:[%s462] sm:$0xff]
      %v470 = vld [vmem:[%s462 + $0x8] sm:$0xff]
      %v471 = vld [vmem:[%s462 + $0x10] sm:$0x1f]
      %vm472 = vcmask 171008
      %v474 = vsel %vm472, %v468, 0
      %vm476 = vcmask 1044480
      %v478 = vsel %vm476, %v471, 0
      %480 = vmatprep.subr.mxu0 0.0
      %481 = vmatpush1.msra.mxu0 %v469
      %482 = vmatprep.subr.mxu0 0.0
      %483 = vmatpush1.msra.mxu0 %v470
      %484 = vmatprep.subr.mxu0 0.0
      %485 = vmatpush1.msra.mxu0 %v478
      %486 = vmatprep.subr.mxu0 0.0
      %487 = vmatpush1.msra.mxu0 0.0
      %488 = vmatprep.subr.mxu0 0.0
      %489 = vmatpush1.msra.mxu0 0.0
      %490 = vmatprep.subr.mxu0 0.0
      %491 = vmatpush1.msra.mxu0 0.0
      %492 = vmatprep.subr.mxu0 0.0
      %493 = vmatpush1.msra.mxu0 0.0
      %494 = vmatprep.subr.mxu0 0.0
      %495 = vmatpush1.msra.mxu0 0.0
      %496 = vmatprep.subr.mxu0 0.0
      %497 = vmatpush1.msra.mxu0 0.0
      %498 = vmatprep.subr.mxu0 0.0
      %499 = vmatpush1.msra.mxu0 0.0
      %500 = vmatprep.subr.mxu0 0.0
      %501 = vmatpush1.msra.mxu0 0.0
      %502 = vmatprep.subr.mxu0 0.0
      %503 = vmatpush1.msra.mxu0 0.0
      %504 = vmatprep.subr.mxu0 0.0
      %505 = vmatpush1.msra.mxu0 0.0
      %506 = vmatprep.subr.mxu0 0.0
      %507 = vmatpush1.msra.mxu0 0.0
      %508 = vmatprep.subr.mxu0 0.0
      %509 = vmatpush1.msra.mxu0 0.0
      %510 = vmatprep.subr.mxu0 0.0
      %511 = vmatpush1.msra.mxu0 0.0
      %512 = vmatprep.subr.mxu0 0.0
      %513 = vmatpush1.msra.mxu0 0.0
      %514 = vmatprep.subr.mxu0 0.0
      %515 = vmatpush1.msra.mxu0 0.0
      %516 = vmatprep.subr.mxu0 0.0
      %517 = vmatpush1.msra.mxu0 0.0
      %518 = vmatprep.subr.mxu0 0.0
      %519 = vmatpush1.msra.mxu0 0.0
      %520 = vmatprep.subr.mxu0 0.0
      %521 = vmatpush1.msra.mxu0 0.0
      %522 = vmatprep.subr.mxu0 0.0
      %523 = vmatpush1.msra.mxu0 0.0
      %524 = vmatprep.subr.mxu0 0.0
      %525 = vmatpush1.msra.mxu0 0.0
      %526 = vmatprep.subr.mxu0 0.0
      %527 = vmatpush1.msra.mxu0 0.0
      %528 = vmatprep.subr.mxu0 0.0
      %529 = vmatpush1.msra.mxu0 0.0
      %530 = vmatprep.subr.mxu0 0.0
      %531 = vmatpush1.msra.mxu0 0.0
      %532 = vmatprep.subr.mxu0 0.0
      %533 = vmatpush1.msra.mxu0 0.0
      %534 = vmatprep.subr.mxu0 0.0
      %535 = vmatpush1.msra.mxu0 0.0
      %536 = vmatprep.subr.mxu0 0.0
      %537 = vmatpush1.msra.mxu0 0.0
      %538 = vmatprep.subr.mxu0 0.0
      %539 = vmatpush1.msra.mxu0 0.0
      %540 = vmatprep.subr.mxu0 0.0
      %541 = vmatpush1.msra.mxu0 0.0
      %542 = vmatprep.subr.mxu0 0.0
      %543 = vmatpush1.msra.mxu0 0.0
      %544 = vmatprep.mubr.f32.mxu0 0.0
      %545 = vmatmul.mubr.f32.gmra.mrb[0].mxu0 %v474
      %v546 = vpop.f32.mrb[0].mxu0
      %v547 = vadd.f32 0.0, %v546
      %v548 = vpop.f32.mrb[0].mxu0
      %549 = vdwg.mxu0
      %v550 = vld [vmem:[%s3] sm:$0xff]
      %v551 = vld [vmem:[%s3 + $0x8] sm:$0xff]
      %v552 = vld [vmem:[%s3 + $0x10] sm:$0xff]
      %v553 = vld [vmem:[%s3 + $0x18] sm:$0xff]
      %vm554 = vcmask 261120
      %v556 = vsel %vm554, %v547, 0
      %558 = vmatprep.subr.mxu0 0.0
      %559 = vmatpush1.msra.mxu0 %v550
      %560 = vmatprep.subr.mxu0 0.0
      %561 = vmatpush1.msra.mxu0 %v551
      %562 = vmatprep.subr.mxu0 0.0
      %563 = vmatpush1.msra.mxu0 %v552
      %564 = vmatprep.subr.mxu0 0.0
      %565 = vmatpush1.msra.mxu0 %v553
      %566 = vmatprep.subr.mxu0 0.0
      %567 = vmatpush1.msra.mxu0 0.0
      %568 = vmatprep.subr.mxu0 0.0
      %569 = vmatpush1.msra.mxu0 0.0
      %570 = vmatprep.subr.mxu0 0.0
      %571 = vmatpush1.msra.mxu0 0.0
      %572 = vmatprep.subr.mxu0 0.0
      %573 = vmatpush1.msra.mxu0 0.0
      %574 = vmatprep.subr.mxu0 0.0
      %575 = vmatpush1.msra.mxu0 0.0
      %576 = vmatprep.subr.mxu0 0.0
      %577 = vmatpush1.msra.mxu0 0.0
      %578 = vmatprep.subr.mxu0 0.0
      %579 = vmatpush1.msra.mxu0 0.0
      %580 = vmatprep.subr.mxu0 0.0
      %581 = vmatpush1.msra.mxu0 0.0
      %582 = vmatprep.subr.mxu0 0.0
      %583 = vmatpush1.msra.mxu0 0.0
      %584 = vmatprep.subr.mxu0 0.0
      %585 = vmatpush1.msra.mxu0 0.0
      %586 = vmatprep.subr.mxu0 0.0
      %587 = vmatpush1.msra.mxu0 0.0
      %588 = vmatprep.subr.mxu0 0.0
      %589 = vmatpush1.msra.mxu0 0.0
      %590 = vmatprep.subr.mxu0 0.0
      %591 = vmatpush1.msra.mxu0 0.0
      %592 = vmatprep.subr.mxu0 0.0
      %593 = vmatpush1.msra.mxu0 0.0
      %594 = vmatprep.subr.mxu0 0.0
      %595 = vmatpush1.msra.mxu0 0.0
      %596 = vmatprep.subr.mxu0 0.0
      %597 = vmatpush1.msra.mxu0 0.0
      %598 = vmatprep.subr.mxu0 0.0
      %599 = vmatpush1.msra.mxu0 0.0
      %600 = vmatprep.subr.mxu0 0.0
      %601 = vmatpush1.msra.mxu0 0.0
      %602 = vmatprep.subr.mxu0 0.0
      %603 = vmatpush1.msra.mxu0 0.0
      %604 = vmatprep.subr.mxu0 0.0
      %605 = vmatpush1.msra.mxu0 0.0
      %606 = vmatprep.subr.mxu0 0.0
      %607 = vmatpush1.msra.mxu0 0.0
      %608 = vmatprep.subr.mxu0 0.0
      %609 = vmatpush1.msra.mxu0 0.0
      %610 = vmatprep.subr.mxu0 0.0
      %611 = vmatpush1.msra.mxu0 0.0
      %612 = vmatprep.subr.mxu0 0.0
      %613 = vmatpush1.msra.mxu0 0.0
      %614 = vmatprep.subr.mxu0 0.0
      %615 = vmatpush1.msra.mxu0 0.0
      %616 = vmatprep.subr.mxu0 0.0
      %617 = vmatpush1.msra.mxu0 0.0
      %618 = vmatprep.subr.mxu0 0.0
      %619 = vmatpush1.msra.mxu0 0.0
      %620 = vmatprep.subr.mxu0 0.0
      %621 = vmatpush1.msra.mxu0 0.0
      %622 = vmatprep.mubr.f32.mxu0 0.0
      %623 = vmatmul.mubr.f32.gmra.mrb[0].mxu0 %v556
      %v624 = vpop.f32.mrb[0].mxu0
      %v625 = vadd.f32 0.0, %v624
      %v626 = vpop.f32.mrb[0].mxu0
      %627 = vdwg.mxu0
      %v628 = vld [vmem:[%s2] sm:$0xff]
      %v629 = vld [vmem:[%s2 + $0x8] sm:$0xff]
      %s630 = scalar_lea.vmem %s3, 32
      %v631 = vld [vmem:[%s630] sm:$0xff]
      %v632 = vld [vmem:[%s630 + $0x8] sm:$0xff]
      %v633 = vld [vmem:[%s630 + $0x10] sm:$0xff]
      %v634 = vld [vmem:[%s630 + $0x18] sm:$0xff]
      %635 = vmatprep.subr.mxu0 0.0
      %636 = vmatpush1.msra.mxu0 %v631
      %637 = vmatprep.subr.mxu0 0.0
      %638 = vmatpush1.msra.mxu0 %v632
      %639 = vmatprep.subr.mxu0 0.0
      %640 = vmatpush1.msra.mxu0 %v633
      %641 = vmatprep.subr.mxu0 0.0
      %642 = vmatpush1.msra.mxu0 %v634
      %643 = vmatprep.subr.mxu0 0.0
      %644 = vmatpush1.msra.mxu0 0.0
      %645 = vmatprep.subr.mxu0 0.0
      %646 = vmatpush1.msra.mxu0 0.0
      %647 = vmatprep.subr.mxu0 0.0
      %648 = vmatpush1.msra.mxu0 0.0
      %649 = vmatprep.subr.mxu0 0.0
      %650 = vmatpush1.msra.mxu0 0.0
      %651 = vmatprep.subr.mxu0 0.0
      %652 = vmatpush1.msra.mxu0 0.0
      %653 = vmatprep.subr.mxu0 0.0
      %654 = vmatpush1.msra.mxu0 0.0
      %655 = vmatprep.subr.mxu0 0.0
      %656 = vmatpush1.msra.mxu0 0.0
      %657 = vmatprep.subr.mxu0 0.0
      %658 = vmatpush1.msra.mxu0 0.0
      %659 = vmatprep.subr.mxu0 0.0
      %660 = vmatpush1.msra.mxu0 0.0
      %661 = vmatprep.subr.mxu0 0.0
      %662 = vmatpush1.msra.mxu0 0.0
      %663 = vmatprep.subr.mxu0 0.0
      %664 = vmatpush1.msra.mxu0 0.0
      %665 = vmatprep.subr.mxu0 0.0
      %666 = vmatpush1.msra.mxu0 0.0
      %667 = vmatprep.subr.mxu0 0.0
      %668 = vmatpush1.msra.mxu0 0.0
      %669 = vmatprep.subr.mxu0 0.0
      %670 = vmatpush1.msra.mxu0 0.0
      %671 = vmatprep.subr.mxu0 0.0
      %672 = vmatpush1.msra.mxu0 0.0
      %673 = vmatprep.subr.mxu0 0.0
      %674 = vmatpush1.msra.mxu0 0.0
      %675 = vmatprep.subr.mxu0 0.0
      %676 = vmatpush1.msra.mxu0 0.0
      %677 = vmatprep.subr.mxu0 0.0
      %678 = vmatpush1.msra.mxu0 0.0
      %679 = vmatprep.subr.mxu0 0.0
      %680 = vmatpush1.msra.mxu0 0.0
      %681 = vmatprep.subr.mxu0 0.0
      %682 = vmatpush1.msra.mxu0 0.0
      %683 = vmatprep.subr.mxu0 0.0
      %684 = vmatpush1.msra.mxu0 0.0
      %685 = vmatprep.subr.mxu0 0.0
      %686 = vmatpush1.msra.mxu0 0.0
      %687 = vmatprep.subr.mxu0 0.0
      %688 = vmatpush1.msra.mxu0 0.0
      %689 = vmatprep.subr.mxu0 0.0
      %690 = vmatpush1.msra.mxu0 0.0
      %691 = vmatprep.subr.mxu0 0.0
      %692 = vmatpush1.msra.mxu0 0.0
      %693 = vmatprep.subr.mxu0 0.0
      %694 = vmatpush1.msra.mxu0 0.0
      %695 = vmatprep.subr.mxu0 0.0
      %696 = vmatpush1.msra.mxu0 0.0
      %697 = vmatprep.subr.mxu0 0.0
      %698 = vmatpush1.msra.mxu0 0.0
      %699 = vmatprep.mubr.f32.mxu0 0.0
      %700 = vmatmul.mubr.f32.gmra.mrb[0].mxu0 %v556
      %v701 = vpop.f32.mrb[0].mxu0
      %v702 = vadd.f32 0.0, %v701
      %v703 = vpop.f32.mrb[0].mxu0
      %704 = vdwg.mxu0
      %s705 = scalar_lea.vmem %s2, 16
      %v706 = vld [vmem:[%s705] sm:$0xff]
      %v707 = vld [vmem:[%s705 + $0x8] sm:$0xff]
      %vm708 = vcmask 64512
      %v710 = vsel %vm708, %v706, 0
      %v713 = vsel %vm708, %v707, 0
      %715 = vmatprep.subr.mxu0 0.0
      %716 = vmatpush1.msra.mxu0 %v702
      %717 = vmatprep.subr.mxu0 0.0
      %718 = vmatpush1.msra.mxu0 0.0
      %719 = vmatprep.subr.mxu0 0.0
      %720 = vmatpush1.msra.mxu0 0.0
      %721 = vmatprep.subr.mxu0 0.0
      %722 = vmatpush1.msra.mxu0 0.0
      %723 = vmatprep.subr.mxu0 0.0
      %724 = vmatpush1.msra.mxu0 0.0
      %725 = vmatprep.subr.mxu0 0.0
      %726 = vmatpush1.msra.mxu0 0.0
      %727 = vmatprep.subr.mxu0 0.0
      %728 = vmatpush1.msra.mxu0 0.0
      %729 = vmatprep.subr.mxu0 0.0
      %730 = vmatpush1.msra.mxu0 0.0
      %731 = vmatprep.subr.mxu0 0.0
      %732 = vmatpush1.msra.mxu0 0.0
      %733 = vmatprep.subr.mxu0 0.0
      %734 = vmatpush1.msra.mxu0 0.0
      %735 = vmatprep.subr.mxu0 0.0
      %736 = vmatpush1.msra.mxu0 0.0
      %737 = vmatprep.subr.mxu0 0.0
      %738 = vmatpush1.msra.mxu0 0.0
      %739 = vmatprep.subr.mxu0 0.0
      %740 = vmatpush1.msra.mxu0 0.0
      %741 = vmatprep.subr.mxu0 0.0
      %742 = vmatpush1.msra.mxu0 0.0
      %743 = vmatprep.subr.mxu0 0.0
      %744 = vmatpush1.msra.mxu0 0.0
      %745 = vmatprep.subr.mxu0 0.0
      %746 = vmatpush1.msra.mxu0 0.0
      %747 = vmatprep.subr.mxu0 0.0
      %748 = vmatpush1.msra.mxu0 0.0
      %749 = vmatprep.subr.mxu0 0.0
      %750 = vmatpush1.msra.mxu0 0.0
      %751 = vmatprep.subr.mxu0 0.0
      %752 = vmatpush1.msra.mxu0 0.0
      %753 = vmatprep.subr.mxu0 0.0
      %754 = vmatpush1.msra.mxu0 0.0
      %755 = vmatprep.subr.mxu0 0.0
      %756 = vmatpush1.msra.mxu0 0.0
      %757 = vmatprep.subr.mxu0 0.0
      %758 = vmatpush1.msra.mxu0 0.0
      %759 = vmatprep.subr.mxu0 0.0
      %760 = vmatpush1.msra.mxu0 0.0
      %761 = vmatprep.subr.mxu0 0.0
      %762 = vmatpush1.msra.mxu0 0.0
      %763 = vmatprep.subr.mxu0 0.0
      %764 = vmatpush1.msra.mxu0 0.0
      %765 = vmatprep.subr.mxu0 0.0
      %766 = vmatpush1.msra.mxu0 0.0
      %767 = vmatprep.subr.mxu0 0.0
      %768 = vmatpush1.msra.mxu0 0.0
      %769 = vmatprep.subr.mxu0 0.0
      %770 = vmatpush1.msra.mxu0 0.0
      %771 = vmatprep.subr.mxu0 0.0
      %772 = vmatpush1.msra.mxu0 0.0
      %773 = vmatprep.subr.mxu0 0.0
      %774 = vmatpush1.msra.mxu0 0.0
      %775 = vmatprep.subr.mxu0 0.0
      %776 = vmatpush1.msra.mxu0 0.0
      %777 = vmatprep.subr.mxu0 0.0
      %778 = vmatpush1.msra.mxu0 0.0
      %779 = vmatprep.mubr.f32.mxu0 0.0
      %780 = vmatmul.mubr.f32.gmra.mrb[0].mxu0 %v710
      %v781 = vpop.f32.mrb[0].mxu0
      %v782 = vadd.f32 0.0, %v781
      %v783 = vpop.f32.mrb[0].mxu0
      %784 = vmatprep.mubr.f32.mxu0 0.0
      %785 = vmatmul.mubr.f32.gmra.mrb[0].mxu0 %v713
      %v786 = vpop.f32.mrb[0].mxu0
      %v787 = vadd.f32 0.0, %v786
      %v788 = vpop.f32.mrb[0].mxu0
      %789 = vdwg.mxu0
      %v791 = vsel %vm708, %v628, 0
      %v794 = vsel %vm708, %v629, 0
      %796 = vmatprep.subr.mxu0 0.0
      %797 = vmatpush1.msra.mxu0 %v625
      %798 = vmatprep.subr.mxu0 0.0
      %799 = vmatpush1.msra.mxu0 0.0
      %800 = vmatprep.subr.mxu0 0.0
      %801 = vmatpush1.msra.mxu0 0.0
      %802 = vmatprep.subr.mxu0 0.0
      %803 = vmatpush1.msra.mxu0 0.0
      %804 = vmatprep.subr.mxu0 0.0
      %805 = vmatpush1.msra.mxu0 0.0
      %806 = vmatprep.subr.mxu0 0.0
      %807 = vmatpush1.msra.mxu0 0.0
      %808 = vmatprep.subr.mxu0 0.0
      %809 = vmatpush1.msra.mxu0 0.0
      %810 = vmatprep.subr.mxu0 0.0
      %811 = vmatpush1.msra.mxu0 0.0
      %812 = vmatprep.subr.mxu0 0.0
      %813 = vmatpush1.msra.mxu0 0.0
      %814 = vmatprep.subr.mxu0 0.0
      %815 = vmatpush1.msra.mxu0 0.0
      %816 = vmatprep.subr.mxu0 0.0
      %817 = vmatpush1.msra.mxu0 0.0
      %818 = vmatprep.subr.mxu0 0.0
      %819 = vmatpush1.msra.mxu0 0.0
      %820 = vmatprep.subr.mxu0 0.0
      %821 = vmatpush1.msra.mxu0 0.0
      %822 = vmatprep.subr.mxu0 0.0
      %823 = vmatpush1.msra.mxu0 0.0
      %824 = vmatprep.subr.mxu0 0.0
      %825 = vmatpush1.msra.mxu0 0.0
      %826 = vmatprep.subr.mxu0 0.0
      %827 = vmatpush1.msra.mxu0 0.0
      %828 = vmatprep.subr.mxu0 0.0
      %829 = vmatpush1.msra.mxu0 0.0
      %830 = vmatprep.subr.mxu0 0.0
      %831 = vmatpush1.msra.mxu0 0.0
      %832 = vmatprep.subr.mxu0 0.0
      %833 = vmatpush1.msra.mxu0 0.0
      %834 = vmatprep.subr.mxu0 0.0
      %835 = vmatpush1.msra.mxu0 0.0
      %836 = vmatprep.subr.mxu0 0.0
      %837 = vmatpush1.msra.mxu0 0.0
      %838 = vmatprep.subr.mxu0 0.0
      %839 = vmatpush1.msra.mxu0 0.0
      %840 = vmatprep.subr.mxu0 0.0
      %841 = vmatpush1.msra.mxu0 0.0
      %842 = vmatprep.subr.mxu0 0.0
      %843 = vmatpush1.msra.mxu0 0.0
      %844 = vmatprep.subr.mxu0 0.0
      %845 = vmatpush1.msra.mxu0 0.0
      %846 = vmatprep.subr.mxu0 0.0
      %847 = vmatpush1.msra.mxu0 0.0
      %848 = vmatprep.subr.mxu0 0.0
      %849 = vmatpush1.msra.mxu0 0.0
      %850 = vmatprep.subr.mxu0 0.0
      %851 = vmatpush1.msra.mxu0 0.0
      %852 = vmatprep.subr.mxu0 0.0
      %853 = vmatpush1.msra.mxu0 0.0
      %854 = vmatprep.subr.mxu0 0.0
      %855 = vmatpush1.msra.mxu0 0.0
      %856 = vmatprep.subr.mxu0 0.0
      %857 = vmatpush1.msra.mxu0 0.0
      %858 = vmatprep.subr.mxu0 0.0
      %859 = vmatpush1.msra.mxu0 0.0
      %860 = vmatprep.mubr.f32.mxu0 0.0
      %861 = vmatmul.mubr.f32.gmra.mrb[0].mxu0 %v791
      %v862 = vpop.f32.mrb[0].mxu0
      %v863 = vadd.f32 %v782, %v862
      %v864 = vpop.f32.mrb[0].mxu0
      %865 = vmatprep.mubr.f32.mxu0 0.0
      %866 = vmatmul.mubr.f32.gmra.mrb[0].mxu0 %v794
      %v867 = vpop.f32.mrb[0].mxu0
      %v868 = vadd.f32 %v787, %v867
      %v869 = vpop.f32.mrb[0].mxu0
      %870 = vdwg.mxu0
      %s871 = scalar_lea.vmem %s3, 64
      %v872 = vld [vmem:[%s871] sm:$0xff]
      %v873 = vld [vmem:[%s871 + $0x8] sm:$0xff]
      %v874 = vld [vmem:[%s871 + $0x10] sm:$0xff]
      %v875 = vld [vmem:[%s871 + $0x18] sm:$0xff]
      %876 = vmatprep.subr.mxu0 0.0
      %877 = vmatpush1.msra.mxu0 %v872
      %878 = vmatprep.subr.mxu0 0.0
      %879 = vmatpush1.msra.mxu0 %v873
      %880 = vmatprep.subr.mxu0 0.0
      %881 = vmatpush1.msra.mxu0 %v874
      %882 = vmatprep.subr.mxu0 0.0
      %883 = vmatpush1.msra.mxu0 %v875
      %884 = vmatprep.subr.mxu0 0.0
      %885 = vmatpush1.msra.mxu0 0.0
      %886 = vmatprep.subr.mxu0 0.0
      %887 = vmatpush1.msra.mxu0 0.0
      %888 = vmatprep.subr.mxu0 0.0
      %889 = vmatpush1.msra.mxu0 0.0
      %890 = vmatprep.subr.mxu0 0.0
      %891 = vmatpush1.msra.mxu0 0.0
      %892 = vmatprep.subr.mxu0 0.0
      %893 = vmatpush1.msra.mxu0 0.0
      %894 = vmatprep.subr.mxu0 0.0
      %895 = vmatpush1.msra.mxu0 0.0
      %896 = vmatprep.subr.mxu0 0.0
      %897 = vmatpush1.msra.mxu0 0.0
      %898 = vmatprep.subr.mxu0 0.0
      %899 = vmatpush1.msra.mxu0 0.0
      %900 = vmatprep.subr.mxu0 0.0
      %901 = vmatpush1.msra.mxu0 0.0
      %902 = vmatprep.subr.mxu0 0.0
      %903 = vmatpush1.msra.mxu0 0.0
      %904 = vmatprep.subr.mxu0 0.0
      %905 = vmatpush1.msra.mxu0 0.0
      %906 = vmatprep.subr.mxu0 0.0
      %907 = vmatpush1.msra.mxu0 0.0
      %908 = vmatprep.subr.mxu0 0.0
      %909 = vmatpush1.msra.mxu0 0.0
      %910 = vmatprep.subr.mxu0 0.0
      %911 = vmatpush1.msra.mxu0 0.0
      %912 = vmatprep.subr.mxu0 0.0
      %913 = vmatpush1.msra.mxu0 0.0
      %914 = vmatprep.subr.mxu0 0.0
      %915 = vmatpush1.msra.mxu0 0.0
      %916 = vmatprep.subr.mxu0 0.0
      %917 = vmatpush1.msra.mxu0 0.0
      %918 = vmatprep.subr.mxu0 0.0
      %919 = vmatpush1.msra.mxu0 0.0
      %920 = vmatprep.subr.mxu0 0.0
      %921 = vmatpush1.msra.mxu0 0.0
      %922 = vmatprep.subr.mxu0 0.0
      %923 = vmatpush1.msra.mxu0 0.0
      %924 = vmatprep.subr.mxu0 0.0
      %925 = vmatpush1.msra.mxu0 0.0
      %926 = vmatprep.subr.mxu0 0.0
      %927 = vmatpush1.msra.mxu0 0.0
      %928 = vmatprep.subr.mxu0 0.0
      %929 = vmatpush1.msra.mxu0 0.0
      %930 = vmatprep.subr.mxu0 0.0
      %931 = vmatpush1.msra.mxu0 0.0
      %932 = vmatprep.subr.mxu0 0.0
      %933 = vmatpush1.msra.mxu0 0.0
      %934 = vmatprep.subr.mxu0 0.0
      %935 = vmatpush1.msra.mxu0 0.0
      %936 = vmatprep.subr.mxu0 0.0
      %937 = vmatpush1.msra.mxu0 0.0
      %938 = vmatprep.subr.mxu0 0.0
      %939 = vmatpush1.msra.mxu0 0.0
      %940 = vmatprep.mubr.f32.mxu0 0.0
      %941 = vmatmul.mubr.f32.gmra.mrb[0].mxu0 %v556
      %v942 = vpop.f32.mrb[0].mxu0
      %v943 = vadd.f32 0.0, %v942
      %v944 = vpop.f32.mrb[0].mxu0
      %945 = vdwg.mxu0
      %s946 = scalar_lea.vmem %s2, 32
      %v947 = vld [vmem:[%s946] sm:$0xff]
      %v948 = vld [vmem:[%s946 + $0x8] sm:$0xff]
      %v950 = vsel %vm708, %v947, 0
      %v953 = vsel %vm708, %v948, 0
      %955 = vmatprep.subr.mxu0 0.0
      %956 = vmatpush1.msra.mxu0 %v943
      %957 = vmatprep.subr.mxu0 0.0
      %958 = vmatpush1.msra.mxu0 0.0
      %959 = vmatprep.subr.mxu0 0.0
      %960 = vmatpush1.msra.mxu0 0.0
      %961 = vmatprep.subr.mxu0 0.0
      %962 = vmatpush1.msra.mxu0 0.0
      %963 = vmatprep.subr.mxu0 0.0
      %964 = vmatpush1.msra.mxu0 0.0
      %965 = vmatprep.subr.mxu0 0.0
      %966 = vmatpush1.msra.mxu0 0.0
      %967 = vmatprep.subr.mxu0 0.0
      %968 = vmatpush1.msra.mxu0 0.0
      %969 = vmatprep.subr.mxu0 0.0
      %970 = vmatpush1.msra.mxu0 0.0
      %971 = vmatprep.subr.mxu0 0.0
      %972 = vmatpush1.msra.mxu0 0.0
      %973 = vmatprep.subr.mxu0 0.0
      %974 = vmatpush1.msra.mxu0 0.0
      %975 = vmatprep.subr.mxu0 0.0
      %976 = vmatpush1.msra.mxu0 0.0
      %977 = vmatprep.subr.mxu0 0.0
      %978 = vmatpush1.msra.mxu0 0.0
      %979 = vmatprep.subr.mxu0 0.0
      %980 = vmatpush1.msra.mxu0 0.0
      %981 = vmatprep.subr.mxu0 0.0
      %982 = vmatpush1.msra.mxu0 0.0
      %983 = vmatprep.subr.mxu0 0.0
      %984 = vmatpush1.msra.mxu0 0.0
      %985 = vmatprep.subr.mxu0 0.0
      %986 = vmatpush1.msra.mxu0 0.0
      %987 = vmatprep.subr.mxu0 0.0
      %988 = vmatpush1.msra.mxu0 0.0
      %989 = vmatprep.subr.mxu0 0.0
      %990 = vmatpush1.msra.mxu0 0.0
      %991 = vmatprep.subr.mxu0 0.0
      %992 = vmatpush1.msra.mxu0 0.0
      %993 = vmatprep.subr.mxu0 0.0
      %994 = vmatpush1.msra.mxu0 0.0
      %995 = vmatprep.subr.mxu0 0.0
      %996 = vmatpush1.msra.mxu0 0.0
      %997 = vmatprep.subr.mxu0 0.0
      %998 = vmatpush1.msra.mxu0 0.0
      %999 = vmatprep.subr.mxu0 0.0
      %1000 = vmatpush1.msra.mxu0 0.0
      %1001 = vmatprep.subr.mxu0 0.0
      %1002 = vmatpush1.msra.mxu0 0.0
      %1003 = vmatprep.subr.mxu0 0.0
      %1004 = vmatpush1.msra.mxu0 0.0
      %1005 = vmatprep.subr.mxu0 0.0
      %1006 = vmatpush1.msra.mxu0 0.0
      %1007 = vmatprep.subr.mxu0 0.0
      %1008 = vmatpush1.msra.mxu0 0.0
      %1009 = vmatprep.subr.mxu0 0.0
      %1010 = vmatpush1.msra.mxu0 0.0
      %1011 = vmatprep.subr.mxu0 0.0
      %1012 = vmatpush1.msra.mxu0 0.0
      %1013 = vmatprep.subr.mxu0 0.0
      %1014 = vmatpush1.msra.mxu0 0.0
      %1015 = vmatprep.subr.mxu0 0.0
      %1016 = vmatpush1.msra.mxu0 0.0
      %1017 = vmatprep.subr.mxu0 0.0
      %1018 = vmatpush1.msra.mxu0 0.0
      %1019 = vmatprep.mubr.f32.mxu0 0.0
      %1020 = vmatmul.mubr.f32.gmra.mrb[0].mxu0 %v950
      %v1021 = vpop.f32.mrb[0].mxu0
      %v1022 = vadd.f32 0.0, %v1021
      %v1023 = vpop.f32.mrb[0].mxu0
      %1024 = vmatprep.mubr.f32.mxu0 0.0
      %1025 = vmatmul.mubr.f32.gmra.mrb[0].mxu0 %v953
      %v1026 = vpop.f32.mrb[0].mxu0
      %v1027 = vadd.f32 0.0, %v1026
      %v1028 = vpop.f32.mrb[0].mxu0
      %1029 = vdwg.mxu0
      %v1030 = vadd.f32 %v863, %v1022
      %v1031 = vadd.f32 %v868, %v1027
      %s1032 = scalar_lea.vmem %s3, 96
      %v1033 = vld [vmem:[%s1032] sm:$0xff]
      %v1034 = vld [vmem:[%s1032 + $0x8] sm:$0xff]
      %v1035 = vld [vmem:[%s1032 + $0x10] sm:$0xff]
      %v1036 = vld [vmem:[%s1032 + $0x18] sm:$0xff]
      %1037 = vmatprep.subr.mxu0 0.0
      %1038 = vmatpush1.msra.mxu0 %v1033
      %1039 = vmatprep.subr.mxu0 0.0
      %1040 = vmatpush1.msra.mxu0 %v1034
      %1041 = vmatprep.subr.mxu0 0.0
      %1042 = vmatpush1.msra.mxu0 %v1035
      %1043 = vmatprep.subr.mxu0 0.0
      %1044 = vmatpush1.msra.mxu0 %v1036
      %1045 = vmatprep.subr.mxu0 0.0
      %1046 = vmatpush1.msra.mxu0 0.0
      %1047 = vmatprep.subr.mxu0 0.0
      %1048 = vmatpush1.msra.mxu0 0.0
      %1049 = vmatprep.subr.mxu0 0.0
      %1050 = vmatpush1.msra.mxu0 0.0
      %1051 = vmatprep.subr.mxu0 0.0
      %1052 = vmatpush1.msra.mxu0 0.0
      %1053 = vmatprep.subr.mxu0 0.0
      %1054 = vmatpush1.msra.mxu0 0.0
      %1055 = vmatprep.subr.mxu0 0.0
      %1056 = vmatpush1.msra.mxu0 0.0
      %1057 = vmatprep.subr.mxu0 0.0
      %1058 = vmatpush1.msra.mxu0 0.0
      %1059 = vmatprep.subr.mxu0 0.0
      %1060 = vmatpush1.msra.mxu0 0.0
      %1061 = vmatprep.subr.mxu0 0.0
      %1062 = vmatpush1.msra.mxu0 0.0
      %1063 = vmatprep.subr.mxu0 0.0
      %1064 = vmatpush1.msra.mxu0 0.0
      %1065 = vmatprep.subr.mxu0 0.0
      %1066 = vmatpush1.msra.mxu0 0.0
      %1067 = vmatprep.subr.mxu0 0.0
      %1068 = vmatpush1.msra.mxu0 0.0
      %1069 = vmatprep.subr.mxu0 0.0
      %1070 = vmatpush1.msra.mxu0 0.0
      %1071 = vmatprep.subr.mxu0 0.0
      %1072 = vmatpush1.msra.mxu0 0.0
      %1073 = vmatprep.subr.mxu0 0.0
      %1074 = vmatpush1.msra.mxu0 0.0
      %1075 = vmatprep.subr.mxu0 0.0
      %1076 = vmatpush1.msra.mxu0 0.0
      %1077 = vmatprep.subr.mxu0 0.0
      %1078 = vmatpush1.msra.mxu0 0.0
      %1079 = vmatprep.subr.mxu0 0.0
      %1080 = vmatpush1.msra.mxu0 0.0
      %1081 = vmatprep.subr.mxu0 0.0
      %1082 = vmatpush1.msra.mxu0 0.0
      %1083 = vmatprep.subr.mxu0 0.0
      %1084 = vmatpush1.msra.mxu0 0.0
      %1085 = vmatprep.subr.mxu0 0.0
      %1086 = vmatpush1.msra.mxu0 0.0
      %1087 = vmatprep.subr.mxu0 0.0
      %1088 = vmatpush1.msra.mxu0 0.0
      %1089 = vmatprep.subr.mxu0 0.0
      %1090 = vmatpush1.msra.mxu0 0.0
      %1091 = vmatprep.subr.mxu0 0.0
      %1092 = vmatpush1.msra.mxu0 0.0
      %1093 = vmatprep.subr.mxu0 0.0
      %1094 = vmatpush1.msra.mxu0 0.0
      %1095 = vmatprep.subr.mxu0 0.0
      %1096 = vmatpush1.msra.mxu0 0.0
      %1097 = vmatprep.subr.mxu0 0.0
      %1098 = vmatpush1.msra.mxu0 0.0
      %1099 = vmatprep.subr.mxu0 0.0
      %1100 = vmatpush1.msra.mxu0 0.0
      %1101 = vmatprep.mubr.f32.mxu0 0.0
      %1102 = vmatmul.mubr.f32.gmra.mrb[0].mxu0 %v556
      %v1103 = vpop.f32.mrb[0].mxu0
      %v1104 = vadd.f32 0.0, %v1103
      %v1105 = vpop.f32.mrb[0].mxu0
      %1106 = vdwg.mxu0
      %s1107 = scalar_lea.vmem %s2, 48
      %v1108 = vld [vmem:[%s1107] sm:$0xff]
      %v1109 = vld [vmem:[%s1107 + $0x8] sm:$0xff]
      %v1111 = vsel %vm708, %v1108, 0
      %v1114 = vsel %vm708, %v1109, 0
      %1116 = vmatprep.subr.mxu0 0.0
      %1117 = vmatpush1.msra.mxu0 %v1104
      %1118 = vmatprep.subr.mxu0 0.0
      %1119 = vmatpush1.msra.mxu0 0.0
      %1120 = vmatprep.subr.mxu0 0.0
      %1121 = vmatpush1.msra.mxu0 0.0
      %1122 = vmatprep.subr.mxu0 0.0
      %1123 = vmatpush1.msra.mxu0 0.0
      %1124 = vmatprep.subr.mxu0 0.0
      %1125 = vmatpush1.msra.mxu0 0.0
      %1126 = vmatprep.subr.mxu0 0.0
      %1127 = vmatpush1.msra.mxu0 0.0
      %1128 = vmatprep.subr.mxu0 0.0
      %1129 = vmatpush1.msra.mxu0 0.0
      %1130 = vmatprep.subr.mxu0 0.0
      %1131 = vmatpush1.msra.mxu0 0.0
      %1132 = vmatprep.subr.mxu0 0.0
      %1133 = vmatpush1.msra.mxu0 0.0
      %1134 = vmatprep.subr.mxu0 0.0
      %1135 = vmatpush1.msra.mxu0 0.0
      %1136 = vmatprep.subr.mxu0 0.0
      %1137 = vmatpush1.msra.mxu0 0.0
      %1138 = vmatprep.subr.mxu0 0.0
      %1139 = vmatpush1.msra.mxu0 0.0
      %1140 = vmatprep.subr.mxu0 0.0
      %1141 = vmatpush1.msra.mxu0 0.0
      %1142 = vmatprep.subr.mxu0 0.0
      %1143 = vmatpush1.msra.mxu0 0.0
      %1144 = vmatprep.subr.mxu0 0.0
      %1145 = vmatpush1.msra.mxu0 0.0
      %1146 = vmatprep.subr.mxu0 0.0
      %1147 = vmatpush1.msra.mxu0 0.0
      %1148 = vmatprep.subr.mxu0 0.0
      %1149 = vmatpush1.msra.mxu0 0.0
      %1150 = vmatprep.subr.mxu0 0.0
      %1151 = vmatpush1.msra.mxu0 0.0
      %1152 = vmatprep.subr.mxu0 0.0
      %1153 = vmatpush1.msra.mxu0 0.0
      %1154 = vmatprep.subr.mxu0 0.0
      %1155 = vmatpush1.msra.mxu0 0.0
      %1156 = vmatprep.subr.mxu0 0.0
      %1157 = vmatpush1.msra.mxu0 0.0
      %1158 = vmatprep.subr.mxu0 0.0
      %1159 = vmatpush1.msra.mxu0 0.0
      %1160 = vmatprep.subr.mxu0 0.0
      %1161 = vmatpush1.msra.mxu0 0.0
      %1162 = vmatprep.subr.mxu0 0.0
      %1163 = vmatpush1.msra.mxu0 0.0
      %1164 = vmatprep.subr.mxu0 0.0
      %1165 = vmatpush1.msra.mxu0 0.0
      %1166 = vmatprep.subr.mxu0 0.0
      %1167 = vmatpush1.msra.mxu0 0.0
      %1168 = vmatprep.subr.mxu0 0.0
      %1169 = vmatpush1.msra.mxu0 0.0
      %1170 = vmatprep.subr.mxu0 0.0
      %1171 = vmatpush1.msra.mxu0 0.0
      %1172 = vmatprep.subr.mxu0 0.0
      %1173 = vmatpush1.msra.mxu0 0.0
      %1174 = vmatprep.subr.mxu0 0.0
      %1175 = vmatpush1.msra.mxu0 0.0
      %1176 = vmatprep.subr.mxu0 0.0
      %1177 = vmatpush1.msra.mxu0 0.0
      %1178 = vmatprep.subr.mxu0 0.0
      %1179 = vmatpush1.msra.mxu0 0.0
      %1180 = vmatprep.mubr.f32.mxu0 0.0
      %1181 = vmatmul.mubr.f32.gmra.mrb[0].mxu0 %v1111
      %v1182 = vpop.f32.mrb[0].mxu0
      %v1183 = vadd.f32 0.0, %v1182
      %v1184 = vpop.f32.mrb[0].mxu0
      %1185 = vmatprep.mubr.f32.mxu0 0.0
      %1186 = vmatmul.mubr.f32.gmra.mrb[0].mxu0 %v1114
      %v1187 = vpop.f32.mrb[0].mxu0
      %v1188 = vadd.f32 0.0, %v1187
      %v1189 = vpop.f32.mrb[0].mxu0
      %1190 = vdwg.mxu0
      %v1191 = vadd.f32 %v1030, %v1183
      %v1192 = vadd.f32 %v1031, %v1188
      %v1193 = vld [vmem:[%s4] sm:$0x1]
      %v1195 = vlaneseq
      %v1196 = vshrl.u32 %v1195, 7
      %v1197 = vsub.s32 0, %v1196
      %v1198 = vrot.slane %v1193, %v1197
      %v1200 = vadd.f32 %v1191, %v1198
      %v1201 = vadd.f32 %v1192, %v1198
      %v1202 = vmax.f32 %v1200, 0.0
      %v1203 = vmax.f32 %v1201, 0.0
      %v1204 = vld [vmem:[%s6] sm:$0xff]
      %v1205 = vld [vmem:[%s6 + $0x8] sm:$0xff]
      %vm1206 = vcmask 130048
      %v1208 = vsel %vm1206, %v1202, 0
      %v1211 = vsel %vm1206, %v1203, 0
      %1213 = vmatprep.subr.mxu0 0.0
      %1214 = vmatpush1.msra.mxu0 %v1204
      %1215 = vmatprep.subr.mxu0 0.0
      %1216 = vmatpush1.msra.mxu0 %v1205
      %1217 = vmatprep.subr.mxu0 0.0
      %1218 = vmatpush1.msra.mxu0 0.0
      %1219 = vmatprep.subr.mxu0 0.0
      %1220 = vmatpush1.msra.mxu0 0.0
      %1221 = vmatprep.subr.mxu0 0.0
      %1222 = vmatpush1.msra.mxu0 0.0
      %1223 = vmatprep.subr.mxu0 0.0
      %1224 = vmatpush1.msra.mxu0 0.0
      %1225 = vmatprep.subr.mxu0 0.0
      %1226 = vmatpush1.msra.mxu0 0.0
      %1227 = vmatprep.subr.mxu0 0.0
      %1228 = vmatpush1.msra.mxu0 0.0
      %1229 = vmatprep.subr.mxu0 0.0
      %1230 = vmatpush1.msra.mxu0 0.0
      %1231 = vmatprep.subr.mxu0 0.0
      %1232 = vmatpush1.msra.mxu0 0.0
      %1233 = vmatprep.subr.mxu0 0.0
      %1234 = vmatpush1.msra.mxu0 0.0
      %1235 = vmatprep.subr.mxu0 0.0
      %1236 = vmatpush1.msra.mxu0 0.0
      %1237 = vmatprep.subr.mxu0 0.0
      %1238 = vmatpush1.msra.mxu0 0.0
      %1239 = vmatprep.subr.mxu0 0.0
      %1240 = vmatpush1.msra.mxu0 0.0
      %1241 = vmatprep.subr.mxu0 0.0
      %1242 = vmatpush1.msra.mxu0 0.0
      %1243 = vmatprep.subr.mxu0 0.0
      %1244 = vmatpush1.msra.mxu0 0.0
      %1245 = vmatprep.subr.mxu0 0.0
      %1246 = vmatpush1.msra.mxu0 0.0
      %1247 = vmatprep.subr.mxu0 0.0
      %1248 = vmatpush1.msra.mxu0 0.0
      %1249 = vmatprep.subr.mxu0 0.0
      %1250 = vmatpush1.msra.mxu0 0.0
      %1251 = vmatprep.subr.mxu0 0.0
      %1252 = vmatpush1.msra.mxu0 0.0
      %1253 = vmatprep.subr.mxu0 0.0
      %1254 = vmatpush1.msra.mxu0 0.0
      %1255 = vmatprep.subr.mxu0 0.0
      %1256 = vmatpush1.msra.mxu0 0.0
      %1257 = vmatprep.subr.mxu0 0.0
      %1258 = vmatpush1.msra.mxu0 0.0
      %1259 = vmatprep.subr.mxu0 0.0
      %1260 = vmatpush1.msra.mxu0 0.0
      %1261 = vmatprep.subr.mxu0 0.0
      %1262 = vmatpush1.msra.mxu0 0.0
      %1263 = vmatprep.subr.mxu0 0.0
      %1264 = vmatpush1.msra.mxu0 0.0
      %1265 = vmatprep.subr.mxu0 0.0
      %1266 = vmatpush1.msra.mxu0 0.0
      %1267 = vmatprep.subr.mxu0 0.0
      %1268 = vmatpush1.msra.mxu0 0.0
      %1269 = vmatprep.subr.mxu0 0.0
      %1270 = vmatpush1.msra.mxu0 0.0
      %1271 = vmatprep.subr.mxu0 0.0
      %1272 = vmatpush1.msra.mxu0 0.0
      %1273 = vmatprep.subr.mxu0 0.0
      %1274 = vmatpush1.msra.mxu0 0.0
      %1275 = vmatprep.subr.mxu0 0.0
      %1276 = vmatpush1.msra.mxu0 0.0
      %1277 = vmatprep.mubr.f32.mxu0 0.0
      %1278 = vmatmul.mubr.f32.gmra.mrb[0].mxu0 %v1208
      %v1279 = vpop.f32.mrb[0].mxu0
      %v1280 = vadd.f32 0.0, %v1279
      %v1281 = vpop.f32.mrb[0].mxu0
      %1282 = vmatprep.mubr.f32.mxu0 0.0
      %1283 = vmatmul.mubr.f32.gmra.mrb[0].mxu0 %v1211
      %v1284 = vpop.f32.mrb[0].mxu0
      %v1285 = vadd.f32 0.0, %v1284
      %v1286 = vpop.f32.mrb[0].mxu0
      %1287 = vdwg.mxu0
      %v1288 = vld [vmem:[%s5] sm:$0xff]
      %v1289 = vld [vmem:[%s5 + $0x8] sm:$0xff]
      %v1290 = vld [vmem:[%s5 + $0x10] sm:$0xff]
      %v1291 = vld [vmem:[%s5 + $0x18] sm:$0xff]
      %s1292 = scalar_lea.vmem %s6, 16
      %v1293 = vld [vmem:[%s1292] sm:$0xff]
      %v1294 = vld [vmem:[%s1292 + $0x8] sm:$0xff]
      %1295 = vmatprep.subr.mxu0 0.0
      %1296 = vmatpush1.msra.mxu0 %v1293
      %1297 = vmatprep.subr.mxu0 0.0
      %1298 = vmatpush1.msra.mxu0 %v1294
      %1299 = vmatprep.subr.mxu0 0.0
      %1300 = vmatpush1.msra.mxu0 0.0
      %1301 = vmatprep.subr.mxu0 0.0
      %1302 = vmatpush1.msra.mxu0 0.0
      %1303 = vmatprep.subr.mxu0 0.0
      %1304 = vmatpush1.msra.mxu0 0.0
      %1305 = vmatprep.subr.mxu0 0.0
      %1306 = vmatpush1.msra.mxu0 0.0
      %1307 = vmatprep.subr.mxu0 0.0
      %1308 = vmatpush1.msra.mxu0 0.0
      %1309 = vmatprep.subr.mxu0 0.0
      %1310 = vmatpush1.msra.mxu0 0.0
      %1311 = vmatprep.subr.mxu0 0.0
      %1312 = vmatpush1.msra.mxu0 0.0
      %1313 = vmatprep.subr.mxu0 0.0
      %1314 = vmatpush1.msra.mxu0 0.0
      %1315 = vmatprep.subr.mxu0 0.0
      %1316 = vmatpush1.msra.mxu0 0.0
      %1317 = vmatprep.subr.mxu0 0.0
      %1318 = vmatpush1.msra.mxu0 0.0
      %1319 = vmatprep.subr.mxu0 0.0
      %1320 = vmatpush1.msra.mxu0 0.0
      %1321 = vmatprep.subr.mxu0 0.0
      %1322 = vmatpush1.msra.mxu0 0.0
      %1323 = vmatprep.subr.mxu0 0.0
      %1324 = vmatpush1.msra.mxu0 0.0
      %1325 = vmatprep.subr.mxu0 0.0
      %1326 = vmatpush1.msra.mxu0 0.0
      %1327 = vmatprep.subr.mxu0 0.0
      %1328 = vmatpush1.msra.mxu0 0.0
      %1329 = vmatprep.subr.mxu0 0.0
      %1330 = vmatpush1.msra.mxu0 0.0
      %1331 = vmatprep.subr.mxu0 0.0
      %1332 = vmatpush1.msra.mxu0 0.0
      %1333 = vmatprep.subr.mxu0 0.0
      %1334 = vmatpush1.msra.mxu0 0.0
      %1335 = vmatprep.subr.mxu0 0.0
      %1336 = vmatpush1.msra.mxu0 0.0
      %1337 = vmatprep.subr.mxu0 0.0
      %1338 = vmatpush1.msra.mxu0 0.0
      %1339 = vmatprep.subr.mxu0 0.0
      %1340 = vmatpush1.msra.mxu0 0.0
      %1341 = vmatprep.subr.mxu0 0.0
      %1342 = vmatpush1.msra.mxu0 0.0
      %1343 = vmatprep.subr.mxu0 0.0
      %1344 = vmatpush1.msra.mxu0 0.0
      %1345 = vmatprep.subr.mxu0 0.0
      %1346 = vmatpush1.msra.mxu0 0.0
      %1347 = vmatprep.subr.mxu0 0.0
      %1348 = vmatpush1.msra.mxu0 0.0
      %1349 = vmatprep.subr.mxu0 0.0
      %1350 = vmatpush1.msra.mxu0 0.0
      %1351 = vmatprep.subr.mxu0 0.0
      %1352 = vmatpush1.msra.mxu0 0.0
      %1353 = vmatprep.subr.mxu0 0.0
      %1354 = vmatpush1.msra.mxu0 0.0
      %1355 = vmatprep.subr.mxu0 0.0
      %1356 = vmatpush1.msra.mxu0 0.0
      %1357 = vmatprep.subr.mxu0 0.0
      %1358 = vmatpush1.msra.mxu0 0.0
      %1359 = vmatprep.mubr.f32.mxu0 0.0
      %1360 = vmatmul.mubr.f32.gmra.mrb[0].mxu0 %v1208
      %v1361 = vpop.f32.mrb[0].mxu0
      %v1362 = vadd.f32 0.0, %v1361
      %v1363 = vpop.f32.mrb[0].mxu0
      %1364 = vmatprep.mubr.f32.mxu0 0.0
      %1365 = vmatmul.mubr.f32.gmra.mrb[0].mxu0 %v1211
      %v1366 = vpop.f32.mrb[0].mxu0
      %v1367 = vadd.f32 0.0, %v1366
      %v1368 = vpop.f32.mrb[0].mxu0
      %1369 = vdwg.mxu0
      %s1370 = scalar_lea.vmem %s5, 32
      %v1371 = vld [vmem:[%s1370] sm:$0xff]
      %v1372 = vld [vmem:[%s1370 + $0x8] sm:$0xff]
      %v1373 = vld [vmem:[%s1370 + $0x10] sm:$0xff]
      %v1374 = vld [vmem:[%s1370 + $0x18] sm:$0xff]
      %v1376 = vsel %vm1206, %v1371, 0
      %v1379 = vsel %vm1206, %v1372, 0
      %v1382 = vsel %vm1206, %v1373, 0
      %v1385 = vsel %vm1206, %v1374, 0
      %1387 = vmatprep.subr.mxu0 0.0
      %1388 = vmatpush1.msra.mxu0 %v1362
      %1389 = vmatprep.subr.mxu0 0.0
      %1390 = vmatpush1.msra.mxu0 %v1367
      %1391 = vmatprep.subr.mxu0 0.0
      %1392 = vmatpush1.msra.mxu0 0.0
      %1393 = vmatprep.subr.mxu0 0.0
      %1394 = vmatpush1.msra.mxu0 0.0
      %1395 = vmatprep.subr.mxu0 0.0
      %1396 = vmatpush1.msra.mxu0 0.0
      %1397 = vmatprep.subr.mxu0 0.0
      %1398 = vmatpush1.msra.mxu0 0.0
      %1399 = vmatprep.subr.mxu0 0.0
      %1400 = vmatpush1.msra.mxu0 0.0
      %1401 = vmatprep.subr.mxu0 0.0
      %1402 = vmatpush1.msra.mxu0 0.0
      %1403 = vmatprep.subr.mxu0 0.0
      %1404 = vmatpush1.msra.mxu0 0.0
      %1405 = vmatprep.subr.mxu0 0.0
      %1406 = vmatpush1.msra.mxu0 0.0
      %1407 = vmatprep.subr.mxu0 0.0
      %1408 = vmatpush1.msra.mxu0 0.0
      %1409 = vmatprep.subr.mxu0 0.0
      %1410 = vmatpush1.msra.mxu0 0.0
      %1411 = vmatprep.subr.mxu0 0.0
      %1412 = vmatpush1.msra.mxu0 0.0
      %1413 = vmatprep.subr.mxu0 0.0
      %1414 = vmatpush1.msra.mxu0 0.0
      %1415 = vmatprep.subr.mxu0 0.0
      %1416 = vmatpush1.msra.mxu0 0.0
      %1417 = vmatprep.subr.mxu0 0.0
      %1418 = vmatpush1.msra.mxu0 0.0
      %1419 = vmatprep.subr.mxu0 0.0
      %1420 = vmatpush1.msra.mxu0 0.0
      %1421 = vmatprep.subr.mxu0 0.0
      %1422 = vmatpush1.msra.mxu0 0.0
      %1423 = vmatprep.subr.mxu0 0.0
      %1424 = vmatpush1.msra.mxu0 0.0
      %1425 = vmatprep.subr.mxu0 0.0
      %1426 = vmatpush1.msra.mxu0 0.0
      %1427 = vmatprep.subr.mxu0 0.0
      %1428 = vmatpush1.msra.mxu0 0.0
      %1429 = vmatprep.subr.mxu0 0.0
      %1430 = vmatpush1.msra.mxu0 0.0
      %1431 = vmatprep.subr.mxu0 0.0
      %1432 = vmatpush1.msra.mxu0 0.0
      %1433 = vmatprep.subr.mxu0 0.0
      %1434 = vmatpush1.msra.mxu0 0.0
      %1435 = vmatprep.subr.mxu0 0.0
      %1436 = vmatpush1.msra.mxu0 0.0
      %1437 = vmatprep.subr.mxu0 0.0
      %1438 = vmatpush1.msra.mxu0 0.0
      %1439 = vmatprep.subr.mxu0 0.0
      %1440 = vmatpush1.msra.mxu0 0.0
      %1441 = vmatprep.subr.mxu0 0.0
      %1442 = vmatpush1.msra.mxu0 0.0
      %1443 = vmatprep.subr.mxu0 0.0
      %1444 = vmatpush1.msra.mxu0 0.0
      %1445 = vmatprep.subr.mxu0 0.0
      %1446 = vmatpush1.msra.mxu0 0.0
      %1447 = vmatprep.subr.mxu0 0.0
      %1448 = vmatpush1.msra.mxu0 0.0
      %1449 = vmatprep.subr.mxu0 0.0
      %1450 = vmatpush1.msra.mxu0 0.0
      %1451 = vmatprep.mubr.f32.mxu0 0.0
      %1452 = vmatmul.mubr.f32.gmra.mrb[0].mxu0 %v1376
      %v1453 = vpop.f32.mrb[0].mxu0
      %v1454 = vadd.f32 0.0, %v1453
      %v1455 = vpop.f32.mrb[0].mxu0
      %1456 = vmatprep.mubr.f32.mxu0 0.0
      %1457 = vmatmul.mubr.f32.gmra.mrb[0].mxu0 %v1379
      %v1458 = vpop.f32.mrb[0].mxu0
      %v1459 = vadd.f32 0.0, %v1458
      %v1460 = vpop.f32.mrb[0].mxu0
      %1461 = vmatprep.mubr.f32.mxu0 0.0
      %1462 = vmatmul.mubr.f32.gmra.mrb[0].mxu0 %v1382
      %v1463 = vpop.f32.mrb[0].mxu0
      %v1464 = vadd.f32 0.0, %v1463
      %v1465 = vpop.f32.mrb[0].mxu0
      %1466 = vmatprep.mubr.f32.mxu0 0.0
      %1467 = vmatmul.mubr.f32.gmra.mrb[0].mxu0 %v1385
      %v1468 = vpop.f32.mrb[0].mxu0
      %v1469 = vadd.f32 0.0, %v1468
      %v1470 = vpop.f32.mrb[0].mxu0
      %1471 = vdwg.mxu0
      %v1473 = vsel %vm1206, %v1288, 0
      %v1476 = vsel %vm1206, %v1289, 0
      %v1479 = vsel %vm1206, %v1290, 0
      %v1482 = vsel %vm1206, %v1291, 0
      %1484 = vmatprep.subr.mxu0 0.0
      %1485 = vmatpush1.msra.mxu0 %v1280
      %1486 = vmatprep.subr.mxu0 0.0
      %1487 = vmatpush1.msra.mxu0 %v1285
      %1488 = vmatprep.subr.mxu0 0.0
      %1489 = vmatpush1.msra.mxu0 0.0
      %1490 = vmatprep.subr.mxu0 0.0
      %1491 = vmatpush1.msra.mxu0 0.0
      %1492 = vmatprep.subr.mxu0 0.0
      %1493 = vmatpush1.msra.mxu0 0.0
      %1494 = vmatprep.subr.mxu0 0.0
      %1495 = vmatpush1.msra.mxu0 0.0
      %1496 = vmatprep.subr.mxu0 0.0
      %1497 = vmatpush1.msra.mxu0 0.0
      %1498 = vmatprep.subr.mxu0 0.0
      %1499 = vmatpush1.msra.mxu0 0.0
      %1500 = vmatprep.subr.mxu0 0.0
      %1501 = vmatpush1.msra.mxu0 0.0
      %1502 = vmatprep.subr.mxu0 0.0
      %1503 = vmatpush1.msra.mxu0 0.0
      %1504 = vmatprep.subr.mxu0 0.0
      %1505 = vmatpush1.msra.mxu0 0.0
      %1506 = vmatprep.subr.mxu0 0.0
      %1507 = vmatpush1.msra.mxu0 0.0
      %1508 = vmatprep.subr.mxu0 0.0
      %1509 = vmatpush1.msra.mxu0 0.0
      %1510 = vmatprep.subr.mxu0 0.0
      %1511 = vmatpush1.msra.mxu0 0.0
      %1512 = vmatprep.subr.mxu0 0.0
      %1513 = vmatpush1.msra.mxu0 0.0
      %1514 = vmatprep.subr.mxu0 0.0
      %1515 = vmatpush1.msra.mxu0 0.0
      %1516 = vmatprep.subr.mxu0 0.0
      %1517 = vmatpush1.msra.mxu0 0.0
      %1518 = vmatprep.subr.mxu0 0.0
      %1519 = vmatpush1.msra.mxu0 0.0
      %1520 = vmatprep.subr.mxu0 0.0
      %1521 = vmatpush1.msra.mxu0 0.0
      %1522 = vmatprep.subr.mxu0 0.0
      %1523 = vmatpush1.msra.mxu0 0.0
      %1524 = vmatprep.subr.mxu0 0.0
      %1525 = vmatpush1.msra.mxu0 0.0
      %1526 = vmatprep.subr.mxu0 0.0
      %1527 = vmatpush1.msra.mxu0 0.0
      %1528 = vmatprep.subr.mxu0 0.0
      %1529 = vmatpush1.msra.mxu0 0.0
      %1530 = vmatprep.subr.mxu0 0.0
      %1531 = vmatpush1.msra.mxu0 0.0
      %1532 = vmatprep.subr.mxu0 0.0
      %1533 = vmatpush1.msra.mxu0 0.0
      %1534 = vmatprep.subr.mxu0 0.0
      %1535 = vmatpush1.msra.mxu0 0.0
      %1536 = vmatprep.subr.mxu0 0.0
      %1537 = vmatpush1.msra.mxu0 0.0
      %1538 = vmatprep.subr.mxu0 0.0
      %1539 = vmatpush1.msra.mxu0 0.0
      %1540 = vmatprep.subr.mxu0 0.0
      %1541 = vmatpush1.msra.mxu0 0.0
      %1542 = vmatprep.subr.mxu0 0.0
      %1543 = vmatpush1.msra.mxu0 0.0
      %1544 = vmatprep.subr.mxu0 0.0
      %1545 = vmatpush1.msra.mxu0 0.0
      %1546 = vmatprep.subr.mxu0 0.0
      %1547 = vmatpush1.msra.mxu0 0.0
      %1548 = vmatprep.mubr.f32.mxu0 0.0
      %1549 = vmatmul.mubr.f32.gmra.mrb[0].mxu0 %v1473
      %v1550 = vpop.f32.mrb[0].mxu0
      %v1551 = vadd.f32 %v1454, %v1550
      %v1552 = vpop.f32.mrb[0].mxu0
      %1553 = vmatprep.mubr.f32.mxu0 0.0
      %1554 = vmatmul.mubr.f32.gmra.mrb[0].mxu0 %v1476
      %v1555 = vpop.f32.mrb[0].mxu0
      %v1556 = vadd.f32 %v1459, %v1555
      %v1557 = vpop.f32.mrb[0].mxu0
      %1558 = vmatprep.mubr.f32.mxu0 0.0
      %1559 = vmatmul.mubr.f32.gmra.mrb[0].mxu0 %v1479
      %v1560 = vpop.f32.mrb[0].mxu0
      %v1561 = vadd.f32 %v1464, %v1560
      %v1562 = vpop.f32.mrb[0].mxu0
      %1563 = vmatprep.mubr.f32.mxu0 0.0
      %1564 = vmatmul.mubr.f32.gmra.mrb[0].mxu0 %v1482
      %v1565 = vpop.f32.mrb[0].mxu0
      %v1566 = vadd.f32 %v1469, %v1565
      %v1567 = vpop.f32.mrb[0].mxu0
      %1568 = vdwg.mxu0
      %s1569 = scalar_lea.vmem %s6, 32
      %v1570 = vld [vmem:[%s1569] sm:$0xff]
      %v1571 = vld [vmem:[%s1569 + $0x8] sm:$0xff]
      %1572 = vmatprep.subr.mxu0 0.0
      %1573 = vmatpush1.msra.mxu0 %v1570
      %1574 = vmatprep.subr.mxu0 0.0
      %1575 = vmatpush1.msra.mxu0 %v1571
      %1576 = vmatprep.subr.mxu0 0.0
      %1577 = vmatpush1.msra.mxu0 0.0
      %1578 = vmatprep.subr.mxu0 0.0
      %1579 = vmatpush1.msra.mxu0 0.0
      %1580 = vmatprep.subr.mxu0 0.0
      %1581 = vmatpush1.msra.mxu0 0.0
      %1582 = vmatprep.subr.mxu0 0.0
      %1583 = vmatpush1.msra.mxu0 0.0
      %1584 = vmatprep.subr.mxu0 0.0
      %1585 = vmatpush1.msra.mxu0 0.0
      %1586 = vmatprep.subr.mxu0 0.0
      %1587 = vmatpush1.msra.mxu0 0.0
      %1588 = vmatprep.subr.mxu0 0.0
      %1589 = vmatpush1.msra.mxu0 0.0
      %1590 = vmatprep.subr.mxu0 0.0
      %1591 = vmatpush1.msra.mxu0 0.0
      %1592 = vmatprep.subr.mxu0 0.0
      %1593 = vmatpush1.msra.mxu0 0.0
      %1594 = vmatprep.subr.mxu0 0.0
      %1595 = vmatpush1.msra.mxu0 0.0
      %1596 = vmatprep.subr.mxu0 0.0
      %1597 = vmatpush1.msra.mxu0 0.0
      %1598 = vmatprep.subr.mxu0 0.0
      %1599 = vmatpush1.msra.mxu0 0.0
      %1600 = vmatprep.subr.mxu0 0.0
      %1601 = vmatpush1.msra.mxu0 0.0
      %1602 = vmatprep.subr.mxu0 0.0
      %1603 = vmatpush1.msra.mxu0 0.0
      %1604 = vmatprep.subr.mxu0 0.0
      %1605 = vmatpush1.msra.mxu0 0.0
      %1606 = vmatprep.subr.mxu0 0.0
      %1607 = vmatpush1.msra.mxu0 0.0
      %1608 = vmatprep.subr.mxu0 0.0
      %1609 = vmatpush1.msra.mxu0 0.0
      %1610 = vmatprep.subr.mxu0 0.0
      %1611 = vmatpush1.msra.mxu0 0.0
      %1612 = vmatprep.subr.mxu0 0.0
      %1613 = vmatpush1.msra.mxu0 0.0
      %1614 = vmatprep.subr.mxu0 0.0
      %1615 = vmatpush1.msra.mxu0 0.0
      %1616 = vmatprep.subr.mxu0 0.0
      %1617 = vmatpush1.msra.mxu0 0.0
      %1618 = vmatprep.subr.mxu0 0.0
      %1619 = vmatpush1.msra.mxu0 0.0
      %1620 = vmatprep.subr.mxu0 0.0
      %1621 = vmatpush1.msra.mxu0 0.0
      %1622 = vmatprep.subr.mxu0 0.0
      %1623 = vmatpush1.msra.mxu0 0.0
      %1624 = vmatprep.subr.mxu0 0.0
      %1625 = vmatpush1.msra.mxu0 0.0
      %1626 = vmatprep.subr.mxu0 0.0
      %1627 = vmatpush1.msra.mxu0 0.0
      %1628 = vmatprep.subr.mxu0 0.0
      %1629 = vmatpush1.msra.mxu0 0.0
      %1630 = vmatprep.subr.mxu0 0.0
      %1631 = vmatpush1.msra.mxu0 0.0
      %1632 = vmatprep.subr.mxu0 0.0
      %1633 = vmatpush1.msra.mxu0 0.0
      %1634 = vmatprep.subr.mxu0 0.0
      %1635 = vmatpush1.msra.mxu0 0.0
      %1636 = vmatprep.mubr.f32.mxu0 0.0
      %1637 = vmatmul.mubr.f32.gmra.mrb[0].mxu0 %v1208
      %v1638 = vpop.f32.mrb[0].mxu0
      %v1639 = vadd.f32 0.0, %v1638
      %v1640 = vpop.f32.mrb[0].mxu0
      %1641 = vmatprep.mubr.f32.mxu0 0.0
      %1642 = vmatmul.mubr.f32.gmra.mrb[0].mxu0 %v1211
      %v1643 = vpop.f32.mrb[0].mxu0
      %v1644 = vadd.f32 0.0, %v1643
      %v1645 = vpop.f32.mrb[0].mxu0
      %1646 = vdwg.mxu0
      %s1647 = scalar_lea.vmem %s5, 64
      %v1648 = vld [vmem:[%s1647] sm:$0xff]
      %v1649 = vld [vmem:[%s1647 + $0x8] sm:$0xff]
      %v1650 = vld [vmem:[%s1647 + $0x10] sm:$0xff]
      %v1651 = vld [vmem:[%s1647 + $0x18] sm:$0xff]
      %v1653 = vsel %vm1206, %v1648, 0
      %v1656 = vsel %vm1206, %v1649, 0
      %v1659 = vsel %vm1206, %v1650, 0
      %v1662 = vsel %vm1206, %v1651, 0
      %1664 = vmatprep.subr.mxu0 0.0
      %1665 = vmatpush1.msra.mxu0 %v1639
      %1666 = vmatprep.subr.mxu0 0.0
      %1667 = vmatpush1.msra.mxu0 %v1644
      %1668 = vmatprep.subr.mxu0 0.0
      %1669 = vmatpush1.msra.mxu0 0.0
      %1670 = vmatprep.subr.mxu0 0.0
      %1671 = vmatpush1.msra.mxu0 0.0
      %1672 = vmatprep.subr.mxu0 0.0
      %1673 = vmatpush1.msra.mxu0 0.0
      %1674 = vmatprep.subr.mxu0 0.0
      %1675 = vmatpush1.msra.mxu0 0.0
      %1676 = vmatprep.subr.mxu0 0.0
      %1677 = vmatpush1.msra.mxu0 0.0
      %1678 = vmatprep.subr.mxu0 0.0
      %1679 = vmatpush1.msra.mxu0 0.0
      %1680 = vmatprep.subr.mxu0 0.0
      %1681 = vmatpush1.msra.mxu0 0.0
      %1682 = vmatprep.subr.mxu0 0.0
      %1683 = vmatpush1.msra.mxu0 0.0
      %1684 = vmatprep.subr.mxu0 0.0
      %1685 = vmatpush1.msra.mxu0 0.0
      %1686 = vmatprep.subr.mxu0 0.0
      %1687 = vmatpush1.msra.mxu0 0.0
      %1688 = vmatprep.subr.mxu0 0.0
      %1689 = vmatpush1.msra.mxu0 0.0
      %1690 = vmatprep.subr.mxu0 0.0
      %1691 = vmatpush1.msra.mxu0 0.0
      %1692 = vmatprep.subr.mxu0 0.0
      %1693 = vmatpush1.msra.mxu0 0.0
      %1694 = vmatprep.subr.mxu0 0.0
      %1695 = vmatpush1.msra.mxu0 0.0
      %1696 = vmatprep.subr.mxu0 0.0
      %1697 = vmatpush1.msra.mxu0 0.0
      %1698 = vmatprep.subr.mxu0 0.0
      %1699 = vmatpush1.msra.mxu0 0.0
      %1700 = vmatprep.subr.mxu0 0.0
      %1701 = vmatpush1.msra.mxu0 0.0
      %1702 = vmatprep.subr.mxu0 0.0
      %1703 = vmatpush1.msra.mxu0 0.0
      %1704 = vmatprep.subr.mxu0 0.0
      %1705 = vmatpush1.msra.mxu0 0.0
      %1706 = vmatprep.subr.mxu0 0.0
      %1707 = vmatpush1.msra.mxu0 0.0
      %1708 = vmatprep.subr.mxu0 0.0
      %1709 = vmatpush1.msra.mxu0 0.0
      %1710 = vmatprep.subr.mxu0 0.0
      %1711 = vmatpush1.msra.mxu0 0.0
      %1712 = vmatprep.subr.mxu0 0.0
      %1713 = vmatpush1.msra.mxu0 0.0
      %1714 = vmatprep.subr.mxu0 0.0
      %1715 = vmatpush1.msra.mxu0 0.0
      %1716 = vmatprep.subr.mxu0 0.0
      %1717 = vmatpush1.msra.mxu0 0.0
      %1718 = vmatprep.subr.mxu0 0.0
      %1719 = vmatpush1.msra.mxu0 0.0
      %1720 = vmatprep.subr.mxu0 0.0
      %1721 = vmatpush1.msra.mxu0 0.0
      %1722 = vmatprep.subr.mxu0 0.0
      %1723 = vmatpush1.msra.mxu0 0.0
      %1724 = vmatprep.subr.mxu0 0.0
      %1725 = vmatpush1.msra.mxu0 0.0
      %1726 = vmatprep.subr.mxu0 0.0
      %1727 = vmatpush1.msra.mxu0 0.0
      %1728 = vmatprep.mubr.f32.mxu0 0.0
      %1729 = vmatmul.mubr.f32.gmra.mrb[0].mxu0 %v1653
      %v1730 = vpop.f32.mrb[0].mxu0
      %v1731 = vadd.f32 0.0, %v1730
      %v1732 = vpop.f32.mrb[0].mxu0
      %1733 = vmatprep.mubr.f32.mxu0 0.0
      %1734 = vmatmul.mubr.f32.gmra.mrb[0].mxu0 %v1656
      %v1735 = vpop.f32.mrb[0].mxu0
      %v1736 = vadd.f32 0.0, %v1735
      %v1737 = vpop.f32.mrb[0].mxu0
      %1738 = vmatprep.mubr.f32.mxu0 0.0
      %1739 = vmatmul.mubr.f32.gmra.mrb[0].mxu0 %v1659
      %v1740 = vpop.f32.mrb[0].mxu0
      %v1741 = vadd.f32 0.0, %v1740
      %v1742 = vpop.f32.mrb[0].mxu0
      %1743 = vmatprep.mubr.f32.mxu0 0.0
      %1744 = vmatmul.mubr.f32.gmra.mrb[0].mxu0 %v1662
      %v1745 = vpop.f32.mrb[0].mxu0
      %v1746 = vadd.f32 0.0, %v1745
      %v1747 = vpop.f32.mrb[0].mxu0
      %1748 = vdwg.mxu0
      %v1749 = vadd.f32 %v1551, %v1731
      %v1750 = vadd.f32 %v1556, %v1736
      %v1751 = vadd.f32 %v1561, %v1741
      %v1752 = vadd.f32 %v1566, %v1746
      %s1753 = scalar_lea.vmem %s6, 48
      %v1754 = vld [vmem:[%s1753] sm:$0xff]
      %v1755 = vld [vmem:[%s1753 + $0x8] sm:$0xff]
      %1756 = vmatprep.subr.mxu0 0.0
      %1757 = vmatpush1.msra.mxu0 %v1754
      %1758 = vmatprep.subr.mxu0 0.0
      %1759 = vmatpush1.msra.mxu0 %v1755
      %1760 = vmatprep.subr.mxu0 0.0
      %1761 = vmatpush1.msra.mxu0 0.0
      %1762 = vmatprep.subr.mxu0 0.0
      %1763 = vmatpush1.msra.mxu0 0.0
      %1764 = vmatprep.subr.mxu0 0.0
      %1765 = vmatpush1.msra.mxu0 0.0
      %1766 = vmatprep.subr.mxu0 0.0
      %1767 = vmatpush1.msra.mxu0 0.0
      %1768 = vmatprep.subr.mxu0 0.0
      %1769 = vmatpush1.msra.mxu0 0.0
      %1770 = vmatprep.subr.mxu0 0.0
      %1771 = vmatpush1.msra.mxu0 0.0
      %1772 = vmatprep.subr.mxu0 0.0
      %1773 = vmatpush1.msra.mxu0 0.0
      %1774 = vmatprep.subr.mxu0 0.0
      %1775 = vmatpush1.msra.mxu0 0.0
      %1776 = vmatprep.subr.mxu0 0.0
      %1777 = vmatpush1.msra.mxu0 0.0
      %1778 = vmatprep.subr.mxu0 0.0
      %1779 = vmatpush1.msra.mxu0 0.0
      %1780 = vmatprep.subr.mxu0 0.0
      %1781 = vmatpush1.msra.mxu0 0.0
      %1782 = vmatprep.subr.mxu0 0.0
      %1783 = vmatpush1.msra.mxu0 0.0
      %1784 = vmatprep.subr.mxu0 0.0
      %1785 = vmatpush1.msra.mxu0 0.0
      %1786 = vmatprep.subr.mxu0 0.0
      %1787 = vmatpush1.msra.mxu0 0.0
      %1788 = vmatprep.subr.mxu0 0.0
      %1789 = vmatpush1.msra.mxu0 0.0
      %1790 = vmatprep.subr.mxu0 0.0
      %1791 = vmatpush1.msra.mxu0 0.0
      %1792 = vmatprep.subr.mxu0 0.0
      %1793 = vmatpush1.msra.mxu0 0.0
      %1794 = vmatprep.subr.mxu0 0.0
      %1795 = vmatpush1.msra.mxu0 0.0
      %1796 = vmatprep.subr.mxu0 0.0
      %1797 = vmatpush1.msra.mxu0 0.0
      %1798 = vmatprep.subr.mxu0 0.0
      %1799 = vmatpush1.msra.mxu0 0.0
      %1800 = vmatprep.subr.mxu0 0.0
      %1801 = vmatpush1.msra.mxu0 0.0
      %1802 = vmatprep.subr.mxu0 0.0
      %1803 = vmatpush1.msra.mxu0 0.0
      %1804 = vmatprep.subr.mxu0 0.0
      %1805 = vmatpush1.msra.mxu0 0.0
      %1806 = vmatprep.subr.mxu0 0.0
      %1807 = vmatpush1.msra.mxu0 0.0
      %1808 = vmatprep.subr.mxu0 0.0
      %1809 = vmatpush1.msra.mxu0 0.0
      %1810 = vmatprep.subr.mxu0 0.0
      %1811 = vmatpush1.msra.mxu0 0.0
      %1812 = vmatprep.subr.mxu0 0.0
      %1813 = vmatpush1.msra.mxu0 0.0
      %1814 = vmatprep.subr.mxu0 0.0
      %1815 = vmatpush1.msra.mxu0 0.0
      %1816 = vmatprep.subr.mxu0 0.0
      %1817 = vmatpush1.msra.mxu0 0.0
      %1818 = vmatprep.subr.mxu0 0.0
      %1819 = vmatpush1.msra.mxu0 0.0
      %1820 = vmatprep.mubr.f32.mxu0 0.0
      %1821 = vmatmul.mubr.f32.gmra.mrb[0].mxu0 %v1208
      %v1822 = vpop.f32.mrb[0].mxu0
      %v1823 = vadd.f32 0.0, %v1822
      %v1824 = vpop.f32.mrb[0].mxu0
      %1825 = vmatprep.mubr.f32.mxu0 0.0
      %1826 = vmatmul.mubr.f32.gmra.mrb[0].mxu0 %v1211
      %v1827 = vpop.f32.mrb[0].mxu0
      %v1828 = vadd.f32 0.0, %v1827
      %v1829 = vpop.f32.mrb[0].mxu0
      %1830 = vdwg.mxu0
      %s1831 = scalar_lea.vmem %s5, 96
      %v1832 = vld [vmem:[%s1831] sm:$0xff]
      %v1833 = vld [vmem:[%s1831 + $0x8] sm:$0xff]
      %v1834 = vld [vmem:[%s1831 + $0x10] sm:$0xff]
      %v1835 = vld [vmem:[%s1831 + $0x18] sm:$0xff]
      %v1837 = vsel %vm1206, %v1832, 0
      %v1840 = vsel %vm1206, %v1833, 0
      %v1843 = vsel %vm1206, %v1834, 0
      %v1846 = vsel %vm1206, %v1835, 0
      %1848 = vmatprep.subr.mxu0 0.0
      %1849 = vmatpush1.msra.mxu0 %v1823
      %1850 = vmatprep.subr.mxu0 0.0
      %1851 = vmatpush1.msra.mxu0 %v1828
      %1852 = vmatprep.subr.mxu0 0.0
      %1853 = vmatpush1.msra.mxu0 0.0
      %1854 = vmatprep.subr.mxu0 0.0
      %1855 = vmatpush1.msra.mxu0 0.0
      %1856 = vmatprep.subr.mxu0 0.0
      %1857 = vmatpush1.msra.mxu0 0.0
      %1858 = vmatprep.subr.mxu0 0.0
      %1859 = vmatpush1.msra.mxu0 0.0
      %1860 = vmatprep.subr.mxu0 0.0
      %1861 = vmatpush1.msra.mxu0 0.0
      %1862 = vmatprep.subr.mxu0 0.0
      %1863 = vmatpush1.msra.mxu0 0.0
      %1864 = vmatprep.subr.mxu0 0.0
      %1865 = vmatpush1.msra.mxu0 0.0
      %1866 = vmatprep.subr.mxu0 0.0
      %1867 = vmatpush1.msra.mxu0 0.0
      %1868 = vmatprep.subr.mxu0 0.0
      %1869 = vmatpush1.msra.mxu0 0.0
      %1870 = vmatprep.subr.mxu0 0.0
      %1871 = vmatpush1.msra.mxu0 0.0
      %1872 = vmatprep.subr.mxu0 0.0
      %1873 = vmatpush1.msra.mxu0 0.0
      %1874 = vmatprep.subr.mxu0 0.0
      %1875 = vmatpush1.msra.mxu0 0.0
      %1876 = vmatprep.subr.mxu0 0.0
      %1877 = vmatpush1.msra.mxu0 0.0
      %1878 = vmatprep.subr.mxu0 0.0
      %1879 = vmatpush1.msra.mxu0 0.0
      %1880 = vmatprep.subr.mxu0 0.0
      %1881 = vmatpush1.msra.mxu0 0.0
      %1882 = vmatprep.subr.mxu0 0.0
      %1883 = vmatpush1.msra.mxu0 0.0
      %1884 = vmatprep.subr.mxu0 0.0
      %1885 = vmatpush1.msra.mxu0 0.0
      %1886 = vmatprep.subr.mxu0 0.0
      %1887 = vmatpush1.msra.mxu0 0.0
      %1888 = vmatprep.subr.mxu0 0.0
      %1889 = vmatpush1.msra.mxu0 0.0
      %1890 = vmatprep.subr.mxu0 0.0
      %1891 = vmatpush1.msra.mxu0 0.0
      %1892 = vmatprep.subr.mxu0 0.0
      %1893 = vmatpush1.msra.mxu0 0.0
      %1894 = vmatprep.subr.mxu0 0.0
      %1895 = vmatpush1.msra.mxu0 0.0
      %1896 = vmatprep.subr.mxu0 0.0
      %1897 = vmatpush1.msra.mxu0 0.0
      %1898 = vmatprep.subr.mxu0 0.0
      %1899 = vmatpush1.msra.mxu0 0.0
      %1900 = vmatprep.subr.mxu0 0.0
      %1901 = vmatpush1.msra.mxu0 0.0
      %1902 = vmatprep.subr.mxu0 0.0
      %1903 = vmatpush1.msra.mxu0 0.0
      %1904 = vmatprep.subr.mxu0 0.0
      %1905 = vmatpush1.msra.mxu0 0.0
      %1906 = vmatprep.subr.mxu0 0.0
      %1907 = vmatpush1.msra.mxu0 0.0
      %1908 = vmatprep.subr.mxu0 0.0
      %1909 = vmatpush1.msra.mxu0 0.0
      %1910 = vmatprep.subr.mxu0 0.0
      %1911 = vmatpush1.msra.mxu0 0.0
      %1912 = vmatprep.mubr.f32.mxu0 0.0
      %1913 = vmatmul.mubr.f32.gmra.mrb[0].mxu0 %v1837
      %v1914 = vpop.f32.mrb[0].mxu0
      %v1915 = vadd.f32 0.0, %v1914
      %v1916 = vpop.f32.mrb[0].mxu0
      %1917 = vmatprep.mubr.f32.mxu0 0.0
      %1918 = vmatmul.mubr.f32.gmra.mrb[0].mxu0 %v1840
      %v1919 = vpop.f32.mrb[0].mxu0
      %v1920 = vadd.f32 0.0, %v1919
      %v1921 = vpop.f32.mrb[0].mxu0
      %1922 = vmatprep.mubr.f32.mxu0 0.0
      %1923 = vmatmul.mubr.f32.gmra.mrb[0].mxu0 %v1843
      %v1924 = vpop.f32.mrb[0].mxu0
      %v1925 = vadd.f32 0.0, %v1924
      %v1926 = vpop.f32.mrb[0].mxu0
      %1927 = vmatprep.mubr.f32.mxu0 0.0
      %1928 = vmatmul.mubr.f32.gmra.mrb[0].mxu0 %v1846
      %v1929 = vpop.f32.mrb[0].mxu0
      %v1930 = vadd.f32 0.0, %v1929
      %v1931 = vpop.f32.mrb[0].mxu0
      %1932 = vdwg.mxu0
      %v1933 = vadd.f32 %v1749, %v1915
      %v1934 = vadd.f32 %v1750, %v1920
      %v1935 = vadd.f32 %v1751, %v1925
      %v1936 = vadd.f32 %v1752, %v1930
      %v1937 = vld [vmem:[%s7] sm:$0x1]
      %v1939 = vlaneseq
      %v1940 = vshrl.u32 %v1939, 7
      %v1941 = vsub.s32 0, %v1940
      %v1942 = vrot.slane %v1937, %v1941
      %v1944 = vadd.f32 %v1933, %v1942
      %v1945 = vadd.f32 %v1934, %v1942
      %v1946 = vadd.f32 %v1935, %v1942
      %v1947 = vadd.f32 %v1936, %v1942
      %v1948 = vmax.f32 %v1944, 0.0
      %v1949 = vmax.f32 %v1945, 0.0
      %v1950 = vmax.f32 %v1946, 0.0
      %v1951 = vmax.f32 %v1947, 0.0
      %v1952 = vld [vmem:[%s9] sm:$0xff]
      %v1953 = vld [vmem:[%s9 + $0x8] sm:$0xff]
      %v1955 = vsel %vm1206, %v1948, 0
      %v1958 = vsel %vm1206, %v1949, 0
      %v1961 = vsel %vm1206, %v1950, 0
      %v1964 = vsel %vm1206, %v1951, 0
      %1966 = vmatprep.subr.mxu0 0.0
      %1967 = vmatpush1.msra.mxu0 %v1952
      %1968 = vmatprep.subr.mxu0 0.0
      %1969 = vmatpush1.msra.mxu0 %v1953
      %1970 = vmatprep.subr.mxu0 0.0
      %1971 = vmatpush1.msra.mxu0 0.0
      %1972 = vmatprep.subr.mxu0 0.0
      %1973 = vmatpush1.msra.mxu0 0.0
      %1974 = vmatprep.subr.mxu0 0.0
      %1975 = vmatpush1.msra.mxu0 0.0
      %1976 = vmatprep.subr.mxu0 0.0
      %1977 = vmatpush1.msra.mxu0 0.0
      %1978 = vmatprep.subr.mxu0 0.0
      %1979 = vmatpush1.msra.mxu0 0.0
      %1980 = vmatprep.subr.mxu0 0.0
      %1981 = vmatpush1.msra.mxu0 0.0
      %1982 = vmatprep.subr.mxu0 0.0
      %1983 = vmatpush1.msra.mxu0 0.0
      %1984 = vmatprep.subr.mxu0 0.0
      %1985 = vmatpush1.msra.mxu0 0.0
      %1986 = vmatprep.subr.mxu0 0.0
      %1987 = vmatpush1.msra.mxu0 0.0
      %1988 = vmatprep.subr.mxu0 0.0
      %1989 = vmatpush1.msra.mxu0 0.0
      %1990 = vmatprep.subr.mxu0 0.0
      %1991 = vmatpush1.msra.mxu0 0.0
      %1992 = vmatprep.subr.mxu0 0.0
      %1993 = vmatpush1.msra.mxu0 0.0
      %1994 = vmatprep.subr.mxu0 0.0
      %1995 = vmatpush1.msra.mxu0 0.0
      %1996 = vmatprep.subr.mxu0 0.0
      %1997 = vmatpush1.msra.mxu0 0.0
      %1998 = vmatprep.subr.mxu0 0.0
      %1999 = vmatpush1.msra.mxu0 0.0
      %2000 = vmatprep.subr.mxu0 0.0
      %2001 = vmatpush1.msra.mxu0 0.0
      %2002 = vmatprep.subr.mxu0 0.0
      %2003 = vmatpush1.msra.mxu0 0.0
      %2004 = vmatprep.subr.mxu0 0.0
      %2005 = vmatpush1.msra.mxu0 0.0
      %2006 = vmatprep.subr.mxu0 0.0
      %2007 = vmatpush1.msra.mxu0 0.0
      %2008 = vmatprep.subr.mxu0 0.0
      %2009 = vmatpush1.msra.mxu0 0.0
      %2010 = vmatprep.subr.mxu0 0.0
      %2011 = vmatpush1.msra.mxu0 0.0
      %2012 = vmatprep.subr.mxu0 0.0
      %2013 = vmatpush1.msra.mxu0 0.0
      %2014 = vmatprep.subr.mxu0 0.0
      %2015 = vmatpush1.msra.mxu0 0.0
      %2016 = vmatprep.subr.mxu0 0.0
      %2017 = vmatpush1.msra.mxu0 0.0
      %2018 = vmatprep.subr.mxu0 0.0
      %2019 = vmatpush1.msra.mxu0 0.0
      %2020 = vmatprep.subr.mxu0 0.0
      %2021 = vmatpush1.msra.mxu0 0.0
      %2022 = vmatprep.subr.mxu0 0.0
      %2023 = vmatpush1.msra.mxu0 0.0
      %2024 = vmatprep.subr.mxu0 0.0
      %2025 = vmatpush1.msra.mxu0 0.0
      %2026 = vmatprep.subr.mxu0 0.0
      %2027 = vmatpush1.msra.mxu0 0.0
      %2028 = vmatprep.subr.mxu0 0.0
      %2029 = vmatpush1.msra.mxu0 0.0
      %2030 = vmatprep.mubr.f32.mxu0 0.0
      %2031 = vmatmul.mubr.f32.gmra.mrb[0].mxu0 %v1955
      %v2032 = vpop.f32.mrb[0].mxu0
      %v2033 = vadd.f32 0.0, %v2032
      %v2034 = vpop.f32.mrb[0].mxu0
      %2035 = vmatprep.mubr.f32.mxu0 0.0
      %2036 = vmatmul.mubr.f32.gmra.mrb[0].mxu0 %v1958
      %v2037 = vpop.f32.mrb[0].mxu0
      %v2038 = vadd.f32 0.0, %v2037
      %v2039 = vpop.f32.mrb[0].mxu0
      %2040 = vmatprep.mubr.f32.mxu0 0.0
      %2041 = vmatmul.mubr.f32.gmra.mrb[0].mxu0 %v1961
      %v2042 = vpop.f32.mrb[0].mxu0
      %v2043 = vadd.f32 0.0, %v2042
      %v2044 = vpop.f32.mrb[0].mxu0
      %2045 = vmatprep.mubr.f32.mxu0 0.0
      %2046 = vmatmul.mubr.f32.gmra.mrb[0].mxu0 %v1964
      %v2047 = vpop.f32.mrb[0].mxu0
      %v2048 = vadd.f32 0.0, %v2047
      %v2049 = vpop.f32.mrb[0].mxu0
      %2050 = vdwg.mxu0
      %v2051 = vld [vmem:[%s8] sm:$0xff]
      %v2052 = vld [vmem:[%s8 + $0x8] sm:$0xff]
      %v2053 = vld [vmem:[%s8 + $0x10] sm:$0xff]
      %v2054 = vld [vmem:[%s8 + $0x18] sm:$0xff]
      %v2055 = vld [vmem:[%s8 + $0x20] sm:$0xff]
      %v2056 = vld [vmem:[%s8 + $0x28] sm:$0xff]
      %v2057 = vld [vmem:[%s8 + $0x30] sm:$0xff]
      %v2058 = vld [vmem:[%s8 + $0x38] sm:$0xff]
      %s2059 = scalar_lea.vmem %s9, 16
      %v2060 = vld [vmem:[%s2059] sm:$0xff]
      %v2061 = vld [vmem:[%s2059 + $0x8] sm:$0xff]
      %2062 = vmatprep.subr.mxu0 0.0
      %2063 = vmatpush1.msra.mxu0 %v2060
      %2064 = vmatprep.subr.mxu0 0.0
      %2065 = vmatpush1.msra.mxu0 %v2061
      %2066 = vmatprep.subr.mxu0 0.0
      %2067 = vmatpush1.msra.mxu0 0.0
      %2068 = vmatprep.subr.mxu0 0.0
      %2069 = vmatpush1.msra.mxu0 0.0
      %2070 = vmatprep.subr.mxu0 0.0
      %2071 = vmatpush1.msra.mxu0 0.0
      %2072 = vmatprep.subr.mxu0 0.0
      %2073 = vmatpush1.msra.mxu0 0.0
      %2074 = vmatprep.subr.mxu0 0.0
      %2075 = vmatpush1.msra.mxu0 0.0
      %2076 = vmatprep.subr.mxu0 0.0
      %2077 = vmatpush1.msra.mxu0 0.0
      %2078 = vmatprep.subr.mxu0 0.0
      %2079 = vmatpush1.msra.mxu0 0.0
      %2080 = vmatprep.subr.mxu0 0.0
      %2081 = vmatpush1.msra.mxu0 0.0
      %2082 = vmatprep.subr.mxu0 0.0
      %2083 = vmatpush1.msra.mxu0 0.0
      %2084 = vmatprep.subr.mxu0 0.0
      %2085 = vmatpush1.msra.mxu0 0.0
      %2086 = vmatprep.subr.mxu0 0.0
      %2087 = vmatpush1.msra.mxu0 0.0
      %2088 = vmatprep.subr.mxu0 0.0
      %2089 = vmatpush1.msra.mxu0 0.0
      %2090 = vmatprep.subr.mxu0 0.0
      %2091 = vmatpush1.msra.mxu0 0.0
      %2092 = vmatprep.subr.mxu0 0.0
      %2093 = vmatpush1.msra.mxu0 0.0
      %2094 = vmatprep.subr.mxu0 0.0
      %2095 = vmatpush1.msra.mxu0 0.0
      %2096 = vmatprep.subr.mxu0 0.0
      %2097 = vmatpush1.msra.mxu0 0.0
      %2098 = vmatprep.subr.mxu0 0.0
      %2099 = vmatpush1.msra.mxu0 0.0
      %2100 = vmatprep.subr.mxu0 0.0
      %2101 = vmatpush1.msra.mxu0 0.0
      %2102 = vmatprep.subr.mxu0 0.0
      %2103 = vmatpush1.msra.mxu0 0.0
      %2104 = vmatprep.subr.mxu0 0.0
      %2105 = vmatpush1.msra.mxu0 0.0
      %2106 = vmatprep.subr.mxu0 0.0
      %2107 = vmatpush1.msra.mxu0 0.0
      %2108 = vmatprep.subr.mxu0 0.0
      %2109 = vmatpush1.msra.mxu0 0.0
      %2110 = vmatprep.subr.mxu0 0.0
      %2111 = vmatpush1.msra.mxu0 0.0
      %2112 = vmatprep.subr.mxu0 0.0
      %2113 = vmatpush1.msra.mxu0 0.0
      %2114 = vmatprep.subr.mxu0 0.0
      %2115 = vmatpush1.msra.mxu0 0.0
      %2116 = vmatprep.subr.mxu0 0.0
      %2117 = vmatpush1.msra.mxu0 0.0
      %2118 = vmatprep.subr.mxu0 0.0
      %2119 = vmatpush1.msra.mxu0 0.0
      %2120 = vmatprep.subr.mxu0 0.0
      %2121 = vmatpush1.msra.mxu0 0.0
      %2122 = vmatprep.subr.mxu0 0.0
      %2123 = vmatpush1.msra.mxu0 0.0
      %2124 = vmatprep.subr.mxu0 0.0
      %2125 = vmatpush1.msra.mxu0 0.0
      %2126 = vmatprep.mubr.f32.mxu0 0.0
      %2127 = vmatmul.mubr.f32.gmra.mrb[0].mxu0 %v1955
      %v2128 = vpop.f32.mrb[0].mxu0
      %v2129 = vadd.f32 0.0, %v2128
      %v2130 = vpop.f32.mrb[0].mxu0
      %2131 = vmatprep.mubr.f32.mxu0 0.0
      %2132 = vmatmul.mubr.f32.gmra.mrb[0].mxu0 %v1958
      %v2133 = vpop.f32.mrb[0].mxu0
      %v2134 = vadd.f32 0.0, %v2133
      %v2135 = vpop.f32.mrb[0].mxu0
      %2136 = vmatprep.mubr.f32.mxu0 0.0
      %2137 = vmatmul.mubr.f32.gmra.mrb[0].mxu0 %v1961
      %v2138 = vpop.f32.mrb[0].mxu0
      %v2139 = vadd.f32 0.0, %v2138
      %v2140 = vpop.f32.mrb[0].mxu0
      %2141 = vmatprep.mubr.f32.mxu0 0.0
      %2142 = vmatmul.mubr.f32.gmra.mrb[0].mxu0 %v1964
      %v2143 = vpop.f32.mrb[0].mxu0
      %v2144 = vadd.f32 0.0, %v2143
      %v2145 = vpop.f32.mrb[0].mxu0
      %2146 = vdwg.mxu0
      %s2147 = scalar_lea.vmem %s8, 64
      %v2148 = vld [vmem:[%s2147] sm:$0xff]
      %v2149 = vld [vmem:[%s2147 + $0x8] sm:$0xff]
      %v2150 = vld [vmem:[%s2147 + $0x10] sm:$0xff]
      %v2151 = vld [vmem:[%s2147 + $0x18] sm:$0xff]
      %v2152 = vld [vmem:[%s2147 + $0x20] sm:$0xff]
      %v2153 = vld [vmem:[%s2147 + $0x28] sm:$0xff]
      %v2154 = vld [vmem:[%s2147 + $0x30] sm:$0xff]
      %v2155 = vld [vmem:[%s2147 + $0x38] sm:$0xff]
      %v2157 = vsel %vm554, %v2148, 0
      %v2160 = vsel %vm554, %v2149, 0
      %v2163 = vsel %vm554, %v2150, 0
      %v2166 = vsel %vm554, %v2151, 0
      %v2169 = vsel %vm554, %v2152, 0
      %v2172 = vsel %vm554, %v2153, 0
      %v2175 = vsel %vm554, %v2154, 0
      %v2178 = vsel %vm554, %v2155, 0
      %2180 = vmatprep.subr.mxu0 0.0
      %2181 = vmatpush1.msra.mxu0 %v2129
      %2182 = vmatprep.subr.mxu0 0.0
      %2183 = vmatpush1.msra.mxu0 %v2134
      %2184 = vmatprep.subr.mxu0 0.0
      %2185 = vmatpush1.msra.mxu0 %v2139
      %2186 = vmatprep.subr.mxu0 0.0
      %2187 = vmatpush1.msra.mxu0 %v2144
      %2188 = vmatprep.subr.mxu0 0.0
      %2189 = vmatpush1.msra.mxu0 0.0
      %2190 = vmatprep.subr.mxu0 0.0
      %2191 = vmatpush1.msra.mxu0 0.0
      %2192 = vmatprep.subr.mxu0 0.0
      %2193 = vmatpush1.msra.mxu0 0.0
      %2194 = vmatprep.subr.mxu0 0.0
      %2195 = vmatpush1.msra.mxu0 0.0
      %2196 = vmatprep.subr.mxu0 0.0
      %2197 = vmatpush1.msra.mxu0 0.0
      %2198 = vmatprep.subr.mxu0 0.0
      %2199 = vmatpush1.msra.mxu0 0.0
      %2200 = vmatprep.subr.mxu0 0.0
      %2201 = vmatpush1.msra.mxu0 0.0
      %2202 = vmatprep.subr.mxu0 0.0
      %2203 = vmatpush1.msra.mxu0 0.0
      %2204 = vmatprep.subr.mxu0 0.0
      %2205 = vmatpush1.msra.mxu0 0.0
      %2206 = vmatprep.subr.mxu0 0.0
      %2207 = vmatpush1.msra.mxu0 0.0
      %2208 = vmatprep.subr.mxu0 0.0
      %2209 = vmatpush1.msra.mxu0 0.0
      %2210 = vmatprep.subr.mxu0 0.0
      %2211 = vmatpush1.msra.mxu0 0.0
      %2212 = vmatprep.subr.mxu0 0.0
      %2213 = vmatpush1.msra.mxu0 0.0
      %2214 = vmatprep.subr.mxu0 0.0
      %2215 = vmatpush1.msra.mxu0 0.0
      %2216 = vmatprep.subr.mxu0 0.0
      %2217 = vmatpush1.msra.mxu0 0.0
      %2218 = vmatprep.subr.mxu0 0.0
      %2219 = vmatpush1.msra.mxu0 0.0
      %2220 = vmatprep.subr.mxu0 0.0
      %2221 = vmatpush1.msra.mxu0 0.0
      %2222 = vmatprep.subr.mxu0 0.0
      %2223 = vmatpush1.msra.mxu0 0.0
      %2224 = vmatprep.subr.mxu0 0.0
      %2225 = vmatpush1.msra.mxu0 0.0
      %2226 = vmatprep.subr.mxu0 0.0
      %2227 = vmatpush1.msra.mxu0 0.0
      %2228 = vmatprep.subr.mxu0 0.0
      %2229 = vmatpush1.msra.mxu0 0.0
      %2230 = vmatprep.subr.mxu0 0.0
      %2231 = vmatpush1.msra.mxu0 0.0
      %2232 = vmatprep.subr.mxu0 0.0
      %2233 = vmatpush1.msra.mxu0 0.0
      %2234 = vmatprep.subr.mxu0 0.0
      %2235 = vmatpush1.msra.mxu0 0.0
      %2236 = vmatprep.subr.mxu0 0.0
      %2237 = vmatpush1.msra.mxu0 0.0
      %2238 = vmatprep.subr.mxu0 0.0
      %2239 = vmatpush1.msra.mxu0 0.0
      %2240 = vmatprep.subr.mxu0 0.0
      %2241 = vmatpush1.msra.mxu0 0.0
      %2242 = vmatprep.subr.mxu0 0.0
      %2243 = vmatpush1.msra.mxu0 0.0
      %2244 = vmatprep.mubr.f32.mxu0 0.0
      %2245 = vmatmul.mubr.f32.gmra.mrb[0].mxu0 %v2157
      %v2246 = vpop.f32.mrb[0].mxu0
      %v2247 = vadd.f32 0.0, %v2246
      %v2248 = vpop.f32.mrb[0].mxu0
      %2249 = vmatprep.mubr.f32.mxu0 0.0
      %2250 = vmatmul.mubr.f32.gmra.mrb[0].mxu0 %v2160
      %v2251 = vpop.f32.mrb[0].mxu0
      %v2252 = vadd.f32 0.0, %v2251
      %v2253 = vpop.f32.mrb[0].mxu0
      %2254 = vmatprep.mubr.f32.mxu0 0.0
      %2255 = vmatmul.mubr.f32.gmra.mrb[0].mxu0 %v2163
      %v2256 = vpop.f32.mrb[0].mxu0
      %v2257 = vadd.f32 0.0, %v2256
      %v2258 = vpop.f32.mrb[0].mxu0
      %2259 = vmatprep.mubr.f32.mxu0 0.0
      %2260 = vmatmul.mubr.f32.gmra.mrb[0].mxu0 %v2166
      %v2261 = vpop.f32.mrb[0].mxu0
      %v2262 = vadd.f32 0.0, %v2261
      %v2263 = vpop.f32.mrb[0].mxu0
      %2264 = vmatprep.mubr.f32.mxu0 0.0
      %2265 = vmatmul.mubr.f32.gmra.mrb[0].mxu0 %v2169
      %v2266 = vpop.f32.mrb[0].mxu0
      %v2267 = vadd.f32 0.0, %v2266
      %v2268 = vpop.f32.mrb[0].mxu0
      %2269 = vmatprep.mubr.f32.mxu0 0.0
      %2270 = vmatmul.mubr.f32.gmra.mrb[0].mxu0 %v2172
      %v2271 = vpop.f32.mrb[0].mxu0
      %v2272 = vadd.f32 0.0, %v2271
      %v2273 = vpop.f32.mrb[0].mxu0
      %2274 = vmatprep.mubr.f32.mxu0 0.0
      %2275 = vmatmul.mubr.f32.gmra.mrb[0].mxu0 %v2175
      %v2276 = vpop.f32.mrb[0].mxu0
      %v2277 = vadd.f32 0.0, %v2276
      %v2278 = vpop.f32.mrb[0].mxu0
      %2279 = vmatprep.mubr.f32.mxu0 0.0
      %2280 = vmatmul.mubr.f32.gmra.mrb[0].mxu0 %v2178
      %v2281 = vpop.f32.mrb[0].mxu0
      %v2282 = vadd.f32 0.0, %v2281
      %v2283 = vpop.f32.mrb[0].mxu0
      %2284 = vdwg.mxu0
      %v2286 = vsel %vm554, %v2051, 0
      %v2289 = vsel %vm554, %v2052, 0
      %v2292 = vsel %vm554, %v2053, 0
      %v2295 = vsel %vm554, %v2054, 0
      %v2298 = vsel %vm554, %v2055, 0
      %v2301 = vsel %vm554, %v2056, 0
      %v2304 = vsel %vm554, %v2057, 0
      %v2307 = vsel %vm554, %v2058, 0
      %2309 = vmatprep.subr.mxu0 0.0
      %2310 = vmatpush1.msra.mxu0 %v2033
      %2311 = vmatprep.subr.mxu0 0.0
      %2312 = vmatpush1.msra.mxu0 %v2038
      %2313 = vmatprep.subr.mxu0 0.0
      %2314 = vmatpush1.msra.mxu0 %v2043
      %2315 = vmatprep.subr.mxu0 0.0
      %2316 = vmatpush1.msra.mxu0 %v2048
      %2317 = vmatprep.subr.mxu0 0.0
      %2318 = vmatpush1.msra.mxu0 0.0
      %2319 = vmatprep.subr.mxu0 0.0
      %2320 = vmatpush1.msra.mxu0 0.0
      %2321 = vmatprep.subr.mxu0 0.0
      %2322 = vmatpush1.msra.mxu0 0.0
      %2323 = vmatprep.subr.mxu0 0.0
      %2324 = vmatpush1.msra.mxu0 0.0
      %2325 = vmatprep.subr.mxu0 0.0
      %2326 = vmatpush1.msra.mxu0 0.0
      %2327 = vmatprep.subr.mxu0 0.0
      %2328 = vmatpush1.msra.mxu0 0.0
      %2329 = vmatprep.subr.mxu0 0.0
      %2330 = vmatpush1.msra.mxu0 0.0
      %2331 = vmatprep.subr.mxu0 0.0
      %2332 = vmatpush1.msra.mxu0 0.0
      %2333 = vmatprep.subr.mxu0 0.0
      %2334 = vmatpush1.msra.mxu0 0.0
      %2335 = vmatprep.subr.mxu0 0.0
      %2336 = vmatpush1.msra.mxu0 0.0
      %2337 = vmatprep.subr.mxu0 0.0
      %2338 = vmatpush1.msra.mxu0 0.0
      %2339 = vmatprep.subr.mxu0 0.0
      %2340 = vmatpush1.msra.mxu0 0.0
      %2341 = vmatprep.subr.mxu0 0.0
      %2342 = vmatpush1.msra.mxu0 0.0
      %2343 = vmatprep.subr.mxu0 0.0
      %2344 = vmatpush1.msra.mxu0 0.0
      %2345 = vmatprep.subr.mxu0 0.0
      %2346 = vmatpush1.msra.mxu0 0.0
      %2347 = vmatprep.subr.mxu0 0.0
      %2348 = vmatpush1.msra.mxu0 0.0
      %2349 = vmatprep.subr.mxu0 0.0
      %2350 = vmatpush1.msra.mxu0 0.0
      %2351 = vmatprep.subr.mxu0 0.0
      %2352 = vmatpush1.msra.mxu0 0.0
      %2353 = vmatprep.subr.mxu0 0.0
      %2354 = vmatpush1.msra.mxu0 0.0
      %2355 = vmatprep.subr.mxu0 0.0
      %2356 = vmatpush1.msra.mxu0 0.0
      %2357 = vmatprep.subr.mxu0 0.0
      %2358 = vmatpush1.msra.mxu0 0.0
      %2359 = vmatprep.subr.mxu0 0.0
      %2360 = vmatpush1.msra.mxu0 0.0
      %2361 = vmatprep.subr.mxu0 0.0
      %2362 = vmatpush1.msra.mxu0 0.0
      %2363 = vmatprep.subr.mxu0 0.0
      %2364 = vmatpush1.msra.mxu0 0.0
      %2365 = vmatprep.subr.mxu0 0.0
      %2366 = vmatpush1.msra.mxu0 0.0
      %2367 = vmatprep.subr.mxu0 0.0
      %2368 = vmatpush1.msra.mxu0 0.0
      %2369 = vmatprep.subr.mxu0 0.0
      %2370 = vmatpush1.msra.mxu0 0.0
      %2371 = vmatprep.subr.mxu0 0.0
      %2372 = vmatpush1.msra.mxu0 0.0
      %2373 = vmatprep.mubr.f32.mxu0 0.0
      %2374 = vmatmul.mubr.f32.gmra.mrb[0].mxu0 %v2286
      %v2375 = vpop.f32.mrb[0].mxu0
      %v2376 = vadd.f32 %v2247, %v2375
      %v2377 = vpop.f32.mrb[0].mxu0
      %2378 = vmatprep.mubr.f32.mxu0 0.0
      %2379 = vmatmul.mubr.f32.gmra.mrb[0].mxu0 %v2289
      %v2380 = vpop.f32.mrb[0].mxu0
      %v2381 = vadd.f32 %v2252, %v2380
      %v2382 = vpop.f32.mrb[0].mxu0
      %2383 = vmatprep.mubr.f32.mxu0 0.0
      %2384 = vmatmul.mubr.f32.gmra.mrb[0].mxu0 %v2292
      %v2385 = vpop.f32.mrb[0].mxu0
      %v2386 = vadd.f32 %v2257, %v2385
      %v2387 = vpop.f32.mrb[0].mxu0
      %2388 = vmatprep.mubr.f32.mxu0 0.0
      %2389 = vmatmul.mubr.f32.gmra.mrb[0].mxu0 %v2295
      %v2390 = vpop.f32.mrb[0].mxu0
      %v2391 = vadd.f32 %v2262, %v2390
      %v2392 = vpop.f32.mrb[0].mxu0
      %2393 = vmatprep.mubr.f32.mxu0 0.0
      %2394 = vmatmul.mubr.f32.gmra.mrb[0].mxu0 %v2298
      %v2395 = vpop.f32.mrb[0].mxu0
      %v2396 = vadd.f32 %v2267, %v2395
      %v2397 = vpop.f32.mrb[0].mxu0
      %2398 = vmatprep.mubr.f32.mxu0 0.0
      %2399 = vmatmul.mubr.f32.gmra.mrb[0].mxu0 %v2301
      %v2400 = vpop.f32.mrb[0].mxu0
      %v2401 = vadd.f32 %v2272, %v2400
      %v2402 = vpop.f32.mrb[0].mxu0
      %2403 = vmatprep.mubr.f32.mxu0 0.0
      %2404 = vmatmul.mubr.f32.gmra.mrb[0].mxu0 %v2304
      %v2405 = vpop.f32.mrb[0].mxu0
      %v2406 = vadd.f32 %v2277, %v2405
      %v2407 = vpop.f32.mrb[0].mxu0
      %2408 = vmatprep.mubr.f32.mxu0 0.0
      %2409 = vmatmul.mubr.f32.gmra.mrb[0].mxu0 %v2307
      %v2410 = vpop.f32.mrb[0].mxu0
      %v2411 = vadd.f32 %v2282, %v2410
      %v2412 = vpop.f32.mrb[0].mxu0
      %2413 = vdwg.mxu0
      %s2414 = scalar_lea.vmem %s9, 32
      %v2415 = vld [vmem:[%s2414] sm:$0xff]
      %v2416 = vld [vmem:[%s2414 + $0x8] sm:$0xff]
      %2417 = vmatprep.subr.mxu0 0.0
      %2418 = vmatpush1.msra.mxu0 %v2415
      %2419 = vmatprep.subr.mxu0 0.0
      %2420 = vmatpush1.msra.mxu0 %v2416
      %2421 = vmatprep.subr.mxu0 0.0
      %2422 = vmatpush1.msra.mxu0 0.0
      %2423 = vmatprep.subr.mxu0 0.0
      %2424 = vmatpush1.msra.mxu0 0.0
      %2425 = vmatprep.subr.mxu0 0.0
      %2426 = vmatpush1.msra.mxu0 0.0
      %2427 = vmatprep.subr.mxu0 0.0
      %2428 = vmatpush1.msra.mxu0 0.0
      %2429 = vmatprep.subr.mxu0 0.0
      %2430 = vmatpush1.msra.mxu0 0.0
      %2431 = vmatprep.subr.mxu0 0.0
      %2432 = vmatpush1.msra.mxu0 0.0
      %2433 = vmatprep.subr.mxu0 0.0
      %2434 = vmatpush1.msra.mxu0 0.0
      %2435 = vmatprep.subr.mxu0 0.0
      %2436 = vmatpush1.msra.mxu0 0.0
      %2437 = vmatprep.subr.mxu0 0.0
      %2438 = vmatpush1.msra.mxu0 0.0
      %2439 = vmatprep.subr.mxu0 0.0
      %2440 = vmatpush1.msra.mxu0 0.0
      %2441 = vmatprep.subr.mxu0 0.0
      %2442 = vmatpush1.msra.mxu0 0.0
      %2443 = vmatprep.subr.mxu0 0.0
      %2444 = vmatpush1.msra.mxu0 0.0
      %2445 = vmatprep.subr.mxu0 0.0
      %2446 = vmatpush1.msra.mxu0 0.0
      %2447 = vmatprep.subr.mxu0 0.0
      %2448 = vmatpush1.msra.mxu0 0.0
      %2449 = vmatprep.subr.mxu0 0.0
      %2450 = vmatpush1.msra.mxu0 0.0
      %2451 = vmatprep.subr.mxu0 0.0
      %2452 = vmatpush1.msra.mxu0 0.0
      %2453 = vmatprep.subr.mxu0 0.0
      %2454 = vmatpush1.msra.mxu0 0.0
      %2455 = vmatprep.subr.mxu0 0.0
      %2456 = vmatpush1.msra.mxu0 0.0
      %2457 = vmatprep.subr.mxu0 0.0
      %2458 = vmatpush1.msra.mxu0 0.0
      %2459 = vmatprep.subr.mxu0 0.0
      %2460 = vmatpush1.msra.mxu0 0.0
      %2461 = vmatprep.subr.mxu0 0.0
      %2462 = vmatpush1.msra.mxu0 0.0
      %2463 = vmatprep.subr.mxu0 0.0
      %2464 = vmatpush1.msra.mxu0 0.0
      %2465 = vmatprep.subr.mxu0 0.0
      %2466 = vmatpush1.msra.mxu0 0.0
      %2467 = vmatprep.subr.mxu0 0.0
      %2468 = vmatpush1.msra.mxu0 0.0
      %2469 = vmatprep.subr.mxu0 0.0
      %2470 = vmatpush1.msra.mxu0 0.0
      %2471 = vmatprep.subr.mxu0 0.0
      %2472 = vmatpush1.msra.mxu0 0.0
      %2473 = vmatprep.subr.mxu0 0.0
      %2474 = vmatpush1.msra.mxu0 0.0
      %2475 = vmatprep.subr.mxu0 0.0
      %2476 = vmatpush1.msra.mxu0 0.0
      %2477 = vmatprep.subr.mxu0 0.0
      %2478 = vmatpush1.msra.mxu0 0.0
      %2479 = vmatprep.subr.mxu0 0.0
      %2480 = vmatpush1.msra.mxu0 0.0
      %2481 = vmatprep.mubr.f32.mxu0 0.0
      %2482 = vmatmul.mubr.f32.gmra.mrb[0].mxu0 %v1955
      %v2483 = vpop.f32.mrb[0].mxu0
      %v2484 = vadd.f32 0.0, %v2483
      %v2485 = vpop.f32.mrb[0].mxu0
      %2486 = vmatprep.mubr.f32.mxu0 0.0
      %2487 = vmatmul.mubr.f32.gmra.mrb[0].mxu0 %v1958
      %v2488 = vpop.f32.mrb[0].mxu0
      %v2489 = vadd.f32 0.0, %v2488
      %v2490 = vpop.f32.mrb[0].mxu0
      %2491 = vmatprep.mubr.f32.mxu0 0.0
      %2492 = vmatmul.mubr.f32.gmra.mrb[0].mxu0 %v1961
      %v2493 = vpop.f32.mrb[0].mxu0
      %v2494 = vadd.f32 0.0, %v2493
      %v2495 = vpop.f32.mrb[0].mxu0
      %2496 = vmatprep.mubr.f32.mxu0 0.0
      %2497 = vmatmul.mubr.f32.gmra.mrb[0].mxu0 %v1964
      %v2498 = vpop.f32.mrb[0].mxu0
      %v2499 = vadd.f32 0.0, %v2498
      %v2500 = vpop.f32.mrb[0].mxu0
      %2501 = vdwg.mxu0
      %s2502 = scalar_lea.vmem %s8, 128
      %v2503 = vld [vmem:[%s2502] sm:$0xff]
      %v2504 = vld [vmem:[%s2502 + $0x8] sm:$0xff]
      %v2505 = vld [vmem:[%s2502 + $0x10] sm:$0xff]
      %v2506 = vld [vmem:[%s2502 + $0x18] sm:$0xff]
      %v2507 = vld [vmem:[%s2502 + $0x20] sm:$0xff]
      %v2508 = vld [vmem:[%s2502 + $0x28] sm:$0xff]
      %v2509 = vld [vmem:[%s2502 + $0x30] sm:$0xff]
      %v2510 = vld [vmem:[%s2502 + $0x38] sm:$0xff]
      %v2512 = vsel %vm554, %v2503, 0
      %v2515 = vsel %vm554, %v2504, 0
      %v2518 = vsel %vm554, %v2505, 0
      %v2521 = vsel %vm554, %v2506, 0
      %v2524 = vsel %vm554, %v2507, 0
      %v2527 = vsel %vm554, %v2508, 0
      %v2530 = vsel %vm554, %v2509, 0
      %v2533 = vsel %vm554, %v2510, 0
      %2535 = vmatprep.subr.mxu0 0.0
      %2536 = vmatpush1.msra.mxu0 %v2484
      %2537 = vmatprep.subr.mxu0 0.0
      %2538 = vmatpush1.msra.mxu0 %v2489
      %2539 = vmatprep.subr.mxu0 0.0
      %2540 = vmatpush1.msra.mxu0 %v2494
      %2541 = vmatprep.subr.mxu0 0.0
      %2542 = vmatpush1.msra.mxu0 %v2499
      %2543 = vmatprep.subr.mxu0 0.0
      %2544 = vmatpush1.msra.mxu0 0.0
      %2545 = vmatprep.subr.mxu0 0.0
      %2546 = vmatpush1.msra.mxu0 0.0
      %2547 = vmatprep.subr.mxu0 0.0
      %2548 = vmatpush1.msra.mxu0 0.0
      %2549 = vmatprep.subr.mxu0 0.0
      %2550 = vmatpush1.msra.mxu0 0.0
      %2551 = vmatprep.subr.mxu0 0.0
      %2552 = vmatpush1.msra.mxu0 0.0
      %2553 = vmatprep.subr.mxu0 0.0
      %2554 = vmatpush1.msra.mxu0 0.0
      %2555 = vmatprep.subr.mxu0 0.0
      %2556 = vmatpush1.msra.mxu0 0.0
      %2557 = vmatprep.subr.mxu0 0.0
      %2558 = vmatpush1.msra.mxu0 0.0
      %2559 = vmatprep.subr.mxu0 0.0
      %2560 = vmatpush1.msra.mxu0 0.0
      %2561 = vmatprep.subr.mxu0 0.0
      %2562 = vmatpush1.msra.mxu0 0.0
      %2563 = vmatprep.subr.mxu0 0.0
      %2564 = vmatpush1.msra.mxu0 0.0
      %2565 = vmatprep.subr.mxu0 0.0
      %2566 = vmatpush1.msra.mxu0 0.0
      %2567 = vmatprep.subr.mxu0 0.0
      %2568 = vmatpush1.msra.mxu0 0.0
      %2569 = vmatprep.subr.mxu0 0.0
      %2570 = vmatpush1.msra.mxu0 0.0
      %2571 = vmatprep.subr.mxu0 0.0
      %2572 = vmatpush1.msra.mxu0 0.0
      %2573 = vmatprep.subr.mxu0 0.0
      %2574 = vmatpush1.msra.mxu0 0.0
      %2575 = vmatprep.subr.mxu0 0.0
      %2576 = vmatpush1.msra.mxu0 0.0
      %2577 = vmatprep.subr.mxu0 0.0
      %2578 = vmatpush1.msra.mxu0 0.0
      %2579 = vmatprep.subr.mxu0 0.0
      %2580 = vmatpush1.msra.mxu0 0.0
      %2581 = vmatprep.subr.mxu0 0.0
      %2582 = vmatpush1.msra.mxu0 0.0
      %2583 = vmatprep.subr.mxu0 0.0
      %2584 = vmatpush1.msra.mxu0 0.0
      %2585 = vmatprep.subr.mxu0 0.0
      %2586 = vmatpush1.msra.mxu0 0.0
      %2587 = vmatprep.subr.mxu0 0.0
      %2588 = vmatpush1.msra.mxu0 0.0
      %2589 = vmatprep.subr.mxu0 0.0
      %2590 = vmatpush1.msra.mxu0 0.0
      %2591 = vmatprep.subr.mxu0 0.0
      %2592 = vmatpush1.msra.mxu0 0.0
      %2593 = vmatprep.subr.mxu0 0.0
      %2594 = vmatpush1.msra.mxu0 0.0
      %2595 = vmatprep.subr.mxu0 0.0
      %2596 = vmatpush1.msra.mxu0 0.0
      %2597 = vmatprep.subr.mxu0 0.0
      %2598 = vmatpush1.msra.mxu0 0.0
      %2599 = vmatprep.mubr.f32.mxu0 0.0
      %2600 = vmatmul.mubr.f32.gmra.mrb[0].mxu0 %v2512
      %v2601 = vpop.f32.mrb[0].mxu0
      %v2602 = vadd.f32 0.0, %v2601
      %v2603 = vpop.f32.mrb[0].mxu0
      %2604 = vmatprep.mubr.f32.mxu0 0.0
      %2605 = vmatmul.mubr.f32.gmra.mrb[0].mxu0 %v2515
      %v2606 = vpop.f32.mrb[0].mxu0
      %v2607 = vadd.f32 0.0, %v2606
      %v2608 = vpop.f32.mrb[0].mxu0
      %2609 = vmatprep.mubr.f32.mxu0 0.0
      %2610 = vmatmul.mubr.f32.gmra.mrb[0].mxu0 %v2518
      %v2611 = vpop.f32.mrb[0].mxu0
      %v2612 = vadd.f32 0.0, %v2611
      %v2613 = vpop.f32.mrb[0].mxu0
      %2614 = vmatprep.mubr.f32.mxu0 0.0
      %2615 = vmatmul.mubr.f32.gmra.mrb[0].mxu0 %v2521
      %v2616 = vpop.f32.mrb[0].mxu0
      %v2617 = vadd.f32 0.0, %v2616
      %v2618 = vpop.f32.mrb[0].mxu0
      %2619 = vmatprep.mubr.f32.mxu0 0.0
      %2620 = vmatmul.mubr.f32.gmra.mrb[0].mxu0 %v2524
      %v2621 = vpop.f32.mrb[0].mxu0
      %v2622 = vadd.f32 0.0, %v2621
      %v2623 = vpop.f32.mrb[0].mxu0
      %2624 = vmatprep.mubr.f32.mxu0 0.0
      %2625 = vmatmul.mubr.f32.gmra.mrb[0].mxu0 %v2527
      %v2626 = vpop.f32.mrb[0].mxu0
      %v2627 = vadd.f32 0.0, %v2626
      %v2628 = vpop.f32.mrb[0].mxu0
      %2629 = vmatprep.mubr.f32.mxu0 0.0
      %2630 = vmatmul.mubr.f32.gmra.mrb[0].mxu0 %v2530
      %v2631 = vpop.f32.mrb[0].mxu0
      %v2632 = vadd.f32 0.0, %v2631
      %v2633 = vpop.f32.mrb[0].mxu0
      %2634 = vmatprep.mubr.f32.mxu0 0.0
      %2635 = vmatmul.mubr.f32.gmra.mrb[0].mxu0 %v2533
      %v2636 = vpop.f32.mrb[0].mxu0
      %v2637 = vadd.f32 0.0, %v2636
      %v2638 = vpop.f32.mrb[0].mxu0
      %2639 = vdwg.mxu0
      %v2640 = vadd.f32 %v2376, %v2602
      %v2641 = vadd.f32 %v2381, %v2607
      %v2642 = vadd.f32 %v2386, %v2612
      %v2643 = vadd.f32 %v2391, %v2617
      %v2644 = vadd.f32 %v2396, %v2622
      %v2645 = vadd.f32 %v2401, %v2627
      %v2646 = vadd.f32 %v2406, %v2632
      %v2647 = vadd.f32 %v2411, %v2637
      %s2648 = scalar_lea.vmem %s9, 48
      %v2649 = vld [vmem:[%s2648] sm:$0xff]
      %v2650 = vld [vmem:[%s2648 + $0x8] sm:$0xff]
      %2651 = vmatprep.subr.mxu0 0.0
      %2652 = vmatpush1.msra.mxu0 %v2649
      %2653 = vmatprep.subr.mxu0 0.0
      %2654 = vmatpush1.msra.mxu0 %v2650
      %2655 = vmatprep.subr.mxu0 0.0
      %2656 = vmatpush1.msra.mxu0 0.0
      %2657 = vmatprep.subr.mxu0 0.0
      %2658 = vmatpush1.msra.mxu0 0.0
      %2659 = vmatprep.subr.mxu0 0.0
      %2660 = vmatpush1.msra.mxu0 0.0
      %2661 = vmatprep.subr.mxu0 0.0
      %2662 = vmatpush1.msra.mxu0 0.0
      %2663 = vmatprep.subr.mxu0 0.0
      %2664 = vmatpush1.msra.mxu0 0.0
      %2665 = vmatprep.subr.mxu0 0.0
      %2666 = vmatpush1.msra.mxu0 0.0
      %2667 = vmatprep.subr.mxu0 0.0
      %2668 = vmatpush1.msra.mxu0 0.0
      %2669 = vmatprep.subr.mxu0 0.0
      %2670 = vmatpush1.msra.mxu0 0.0
      %2671 = vmatprep.subr.mxu0 0.0
      %2672 = vmatpush1.msra.mxu0 0.0
      %2673 = vmatprep.subr.mxu0 0.0
      %2674 = vmatpush1.msra.mxu0 0.0
      %2675 = vmatprep.subr.mxu0 0.0
      %2676 = vmatpush1.msra.mxu0 0.0
      %2677 = vmatprep.subr.mxu0 0.0
      %2678 = vmatpush1.msra.mxu0 0.0
      %2679 = vmatprep.subr.mxu0 0.0
      %2680 = vmatpush1.msra.mxu0 0.0
      %2681 = vmatprep.subr.mxu0 0.0
      %2682 = vmatpush1.msra.mxu0 0.0
      %2683 = vmatprep.subr.mxu0 0.0
      %2684 = vmatpush1.msra.mxu0 0.0
      %2685 = vmatprep.subr.mxu0 0.0
      %2686 = vmatpush1.msra.mxu0 0.0
      %2687 = vmatprep.subr.mxu0 0.0
      %2688 = vmatpush1.msra.mxu0 0.0
      %2689 = vmatprep.subr.mxu0 0.0
      %2690 = vmatpush1.msra.mxu0 0.0
      %2691 = vmatprep.subr.mxu0 0.0
      %2692 = vmatpush1.msra.mxu0 0.0
      %2693 = vmatprep.subr.mxu0 0.0
      %2694 = vmatpush1.msra.mxu0 0.0
      %2695 = vmatprep.subr.mxu0 0.0
      %2696 = vmatpush1.msra.mxu0 0.0
      %2697 = vmatprep.subr.mxu0 0.0
      %2698 = vmatpush1.msra.mxu0 0.0
      %2699 = vmatprep.subr.mxu0 0.0
      %2700 = vmatpush1.msra.mxu0 0.0
      %2701 = vmatprep.subr.mxu0 0.0
      %2702 = vmatpush1.msra.mxu0 0.0
      %2703 = vmatprep.subr.mxu0 0.0
      %2704 = vmatpush1.msra.mxu0 0.0
      %2705 = vmatprep.subr.mxu0 0.0
      %2706 = vmatpush1.msra.mxu0 0.0
      %2707 = vmatprep.subr.mxu0 0.0
      %2708 = vmatpush1.msra.mxu0 0.0
      %2709 = vmatprep.subr.mxu0 0.0
      %2710 = vmatpush1.msra.mxu0 0.0
      %2711 = vmatprep.subr.mxu0 0.0
      %2712 = vmatpush1.msra.mxu0 0.0
      %2713 = vmatprep.subr.mxu0 0.0
      %2714 = vmatpush1.msra.mxu0 0.0
      %2715 = vmatprep.mubr.f32.mxu0 0.0
      %2716 = vmatmul.mubr.f32.gmra.mrb[0].mxu0 %v1955
      %v2717 = vpop.f32.mrb[0].mxu0
      %v2718 = vadd.f32 0.0, %v2717
      %v2719 = vpop.f32.mrb[0].mxu0
      %2720 = vmatprep.mubr.f32.mxu0 0.0
      %2721 = vmatmul.mubr.f32.gmra.mrb[0].mxu0 %v1958
      %v2722 = vpop.f32.mrb[0].mxu0
      %v2723 = vadd.f32 0.0, %v2722
      %v2724 = vpop.f32.mrb[0].mxu0
      %2725 = vmatprep.mubr.f32.mxu0 0.0
      %2726 = vmatmul.mubr.f32.gmra.mrb[0].mxu0 %v1961
      %v2727 = vpop.f32.mrb[0].mxu0
      %v2728 = vadd.f32 0.0, %v2727
      %v2729 = vpop.f32.mrb[0].mxu0
      %2730 = vmatprep.mubr.f32.mxu0 0.0
      %2731 = vmatmul.mubr.f32.gmra.mrb[0].mxu0 %v1964
      %v2732 = vpop.f32.mrb[0].mxu0
      %v2733 = vadd.f32 0.0, %v2732
      %v2734 = vpop.f32.mrb[0].mxu0
      %2735 = vdwg.mxu0
      %s2736 = scalar_lea.vmem %s8, 192
      %v2737 = vld [vmem:[%s2736] sm:$0xff]
      %v2738 = vld [vmem:[%s2736 + $0x8] sm:$0xff]
      %v2739 = vld [vmem:[%s2736 + $0x10] sm:$0xff]
      %v2740 = vld [vmem:[%s2736 + $0x18] sm:$0xff]
      %v2741 = vld [vmem:[%s2736 + $0x20] sm:$0xff]
      %v2742 = vld [vmem:[%s2736 + $0x28] sm:$0xff]
      %v2743 = vld [vmem:[%s2736 + $0x30] sm:$0xff]
      %v2744 = vld [vmem:[%s2736 + $0x38] sm:$0xff]
      %v2746 = vsel %vm554, %v2737, 0
      %v2749 = vsel %vm554, %v2738, 0
      %v2752 = vsel %vm554, %v2739, 0
      %v2755 = vsel %vm554, %v2740, 0
      %v2758 = vsel %vm554, %v2741, 0
      %v2761 = vsel %vm554, %v2742, 0
      %v2764 = vsel %vm554, %v2743, 0
      %v2767 = vsel %vm554, %v2744, 0
      %2769 = vmatprep.subr.mxu0 0.0
      %2770 = vmatpush1.msra.mxu0 %v2718
      %2771 = vmatprep.subr.mxu0 0.0
      %2772 = vmatpush1.msra.mxu0 %v2723
      %2773 = vmatprep.subr.mxu0 0.0
      %2774 = vmatpush1.msra.mxu0 %v2728
      %2775 = vmatprep.subr.mxu0 0.0
      %2776 = vmatpush1.msra.mxu0 %v2733
      %2777 = vmatprep.subr.mxu0 0.0
      %2778 = vmatpush1.msra.mxu0 0.0
      %2779 = vmatprep.subr.mxu0 0.0
      %2780 = vmatpush1.msra.mxu0 0.0
      %2781 = vmatprep.subr.mxu0 0.0
      %2782 = vmatpush1.msra.mxu0 0.0
      %2783 = vmatprep.subr.mxu0 0.0
      %2784 = vmatpush1.msra.mxu0 0.0
      %2785 = vmatprep.subr.mxu0 0.0
      %2786 = vmatpush1.msra.mxu0 0.0
      %2787 = vmatprep.subr.mxu0 0.0
      %2788 = vmatpush1.msra.mxu0 0.0
      %2789 = vmatprep.subr.mxu0 0.0
      %2790 = vmatpush1.msra.mxu0 0.0
      %2791 = vmatprep.subr.mxu0 0.0
      %2792 = vmatpush1.msra.mxu0 0.0
      %2793 = vmatprep.subr.mxu0 0.0
      %2794 = vmatpush1.msra.mxu0 0.0
      %2795 = vmatprep.subr.mxu0 0.0
      %2796 = vmatpush1.msra.mxu0 0.0
      %2797 = vmatprep.subr.mxu0 0.0
      %2798 = vmatpush1.msra.mxu0 0.0
      %2799 = vmatprep.subr.mxu0 0.0
      %2800 = vmatpush1.msra.mxu0 0.0
      %2801 = vmatprep.subr.mxu0 0.0
      %2802 = vmatpush1.msra.mxu0 0.0
      %2803 = vmatprep.subr.mxu0 0.0
      %2804 = vmatpush1.msra.mxu0 0.0
      %2805 = vmatprep.subr.mxu0 0.0
      %2806 = vmatpush1.msra.mxu0 0.0
      %2807 = vmatprep.subr.mxu0 0.0
      %2808 = vmatpush1.msra.mxu0 0.0
      %2809 = vmatprep.subr.mxu0 0.0
      %2810 = vmatpush1.msra.mxu0 0.0
      %2811 = vmatprep.subr.mxu0 0.0
      %2812 = vmatpush1.msra.mxu0 0.0
      %2813 = vmatprep.subr.mxu0 0.0
      %2814 = vmatpush1.msra.mxu0 0.0
      %2815 = vmatprep.subr.mxu0 0.0
      %2816 = vmatpush1.msra.mxu0 0.0
      %2817 = vmatprep.subr.mxu0 0.0
      %2818 = vmatpush1.msra.mxu0 0.0
      %2819 = vmatprep.subr.mxu0 0.0
      %2820 = vmatpush1.msra.mxu0 0.0
      %2821 = vmatprep.subr.mxu0 0.0
      %2822 = vmatpush1.msra.mxu0 0.0
      %2823 = vmatprep.subr.mxu0 0.0
      %2824 = vmatpush1.msra.mxu0 0.0
      %2825 = vmatprep.subr.mxu0 0.0
      %2826 = vmatpush1.msra.mxu0 0.0
      %2827 = vmatprep.subr.mxu0 0.0
      %2828 = vmatpush1.msra.mxu0 0.0
      %2829 = vmatprep.subr.mxu0 0.0
      %2830 = vmatpush1.msra.mxu0 0.0
      %2831 = vmatprep.subr.mxu0 0.0
      %2832 = vmatpush1.msra.mxu0 0.0
      %2833 = vmatprep.mubr.f32.mxu0 0.0
      %2834 = vmatmul.mubr.f32.gmra.mrb[0].mxu0 %v2746
      %v2835 = vpop.f32.mrb[0].mxu0
      %v2836 = vadd.f32 0.0, %v2835
      %v2837 = vpop.f32.mrb[0].mxu0
      %2838 = vmatprep.mubr.f32.mxu0 0.0
      %2839 = vmatmul.mubr.f32.gmra.mrb[0].mxu0 %v2749
      %v2840 = vpop.f32.mrb[0].mxu0
      %v2841 = vadd.f32 0.0, %v2840
      %v2842 = vpop.f32.mrb[0].mxu0
      %2843 = vmatprep.mubr.f32.mxu0 0.0
      %2844 = vmatmul.mubr.f32.gmra.mrb[0].mxu0 %v2752
      %v2845 = vpop.f32.mrb[0].mxu0
      %v2846 = vadd.f32 0.0, %v2845
      %v2847 = vpop.f32.mrb[0].mxu0
      %2848 = vmatprep.mubr.f32.mxu0 0.0
      %2849 = vmatmul.mubr.f32.gmra.mrb[0].mxu0 %v2755
      %v2850 = vpop.f32.mrb[0].mxu0
      %v2851 = vadd.f32 0.0, %v2850
      %v2852 = vpop.f32.mrb[0].mxu0
      %2853 = vmatprep.mubr.f32.mxu0 0.0
      %2854 = vmatmul.mubr.f32.gmra.mrb[0].mxu0 %v2758
      %v2855 = vpop.f32.mrb[0].mxu0
      %v2856 = vadd.f32 0.0, %v2855
      %v2857 = vpop.f32.mrb[0].mxu0
      %2858 = vmatprep.mubr.f32.mxu0 0.0
      %2859 = vmatmul.mubr.f32.gmra.mrb[0].mxu0 %v2761
      %v2860 = vpop.f32.mrb[0].mxu0
      %v2861 = vadd.f32 0.0, %v2860
      %v2862 = vpop.f32.mrb[0].mxu0
      %2863 = vmatprep.mubr.f32.mxu0 0.0
      %2864 = vmatmul.mubr.f32.gmra.mrb[0].mxu0 %v2764
      %v2865 = vpop.f32.mrb[0].mxu0
      %v2866 = vadd.f32 0.0, %v2865
      %v2867 = vpop.f32.mrb[0].mxu0
      %2868 = vmatprep.mubr.f32.mxu0 0.0
      %2869 = vmatmul.mubr.f32.gmra.mrb[0].mxu0 %v2767
      %v2870 = vpop.f32.mrb[0].mxu0
      %v2871 = vadd.f32 0.0, %v2870
      %v2872 = vpop.f32.mrb[0].mxu0
      %2873 = vdwg.mxu0
      %v2874 = vadd.f32 %v2640, %v2836
      %v2875 = vadd.f32 %v2641, %v2841
      %v2876 = vadd.f32 %v2642, %v2846
      %v2877 = vadd.f32 %v2643, %v2851
      %v2878 = vadd.f32 %v2644, %v2856
      %v2879 = vadd.f32 %v2645, %v2861
      %v2880 = vadd.f32 %v2646, %v2866
      %v2881 = vadd.f32 %v2647, %v2871
      %v2882 = vld [vmem:[%s10] sm:$0x1]
      %v2884 = vlaneseq
      %v2885 = vshrl.u32 %v2884, 7
      %v2886 = vsub.s32 0, %v2885
      %v2887 = vrot.slane %v2882, %v2886
      %v2889 = vadd.f32 %v2874, %v2887
      %v2890 = vadd.f32 %v2875, %v2887
      %v2891 = vadd.f32 %v2876, %v2887
      %v2892 = vadd.f32 %v2877, %v2887
      %v2893 = vadd.f32 %v2878, %v2887
      %v2894 = vadd.f32 %v2879, %v2887
      %v2895 = vadd.f32 %v2880, %v2887
      %v2896 = vadd.f32 %v2881, %v2887
      %v2897 = vmax.f32 %v2889, 0.0
      %v2898 = vmax.f32 %v2890, 0.0
      %v2899 = vmax.f32 %v2891, 0.0
      %v2900 = vmax.f32 %v2892, 0.0
      %v2901 = vmax.f32 %v2893, 0.0
      %v2902 = vmax.f32 %v2894, 0.0
      %v2903 = vmax.f32 %v2895, 0.0
      %v2904 = vmax.f32 %v2896, 0.0
      %v2905 = vld [vmem:[%s12] sm:$0xff]
      %v2907 = vsel %vm708, %v2897, 0
      %v2910 = vsel %vm708, %v2898, 0
      %v2913 = vsel %vm708, %v2899, 0
      %v2916 = vsel %vm708, %v2900, 0
      %v2919 = vsel %vm708, %v2901, 0
      %v2922 = vsel %vm708, %v2902, 0
      %v2925 = vsel %vm708, %v2903, 0
      %v2928 = vsel %vm708, %v2904, 0
      %2930 = vmatprep.subr.mxu0 0.0
      %2931 = vmatpush1.msra.mxu0 %v2905
      %2932 = vmatprep.subr.mxu0 0.0
      %2933 = vmatpush1.msra.mxu0 0.0
      %2934 = vmatprep.subr.mxu0 0.0
      %2935 = vmatpush1.msra.mxu0 0.0
      %2936 = vmatprep.subr.mxu0 0.0
      %2937 = vmatpush1.msra.mxu0 0.0
      %2938 = vmatprep.subr.mxu0 0.0
      %2939 = vmatpush1.msra.mxu0 0.0
      %2940 = vmatprep.subr.mxu0 0.0
      %2941 = vmatpush1.msra.mxu0 0.0
      %2942 = vmatprep.subr.mxu0 0.0
      %2943 = vmatpush1.msra.mxu0 0.0
      %2944 = vmatprep.subr.mxu0 0.0
      %2945 = vmatpush1.msra.mxu0 0.0
      %2946 = vmatprep.subr.mxu0 0.0
      %2947 = vmatpush1.msra.mxu0 0.0
      %2948 = vmatprep.subr.mxu0 0.0
      %2949 = vmatpush1.msra.mxu0 0.0
      %2950 = vmatprep.subr.mxu0 0.0
      %2951 = vmatpush1.msra.mxu0 0.0
      %2952 = vmatprep.subr.mxu0 0.0
      %2953 = vmatpush1.msra.mxu0 0.0
      %2954 = vmatprep.subr.mxu0 0.0
      %2955 = vmatpush1.msra.mxu0 0.0
      %2956 = vmatprep.subr.mxu0 0.0
      %2957 = vmatpush1.msra.mxu0 0.0
      %2958 = vmatprep.subr.mxu0 0.0
      %2959 = vmatpush1.msra.mxu0 0.0
      %2960 = vmatprep.subr.mxu0 0.0
      %2961 = vmatpush1.msra.mxu0 0.0
      %2962 = vmatprep.subr.mxu0 0.0
      %2963 = vmatpush1.msra.mxu0 0.0
      %2964 = vmatprep.subr.mxu0 0.0
      %2965 = vmatpush1.msra.mxu0 0.0
      %2966 = vmatprep.subr.mxu0 0.0
      %2967 = vmatpush1.msra.mxu0 0.0
      %2968 = vmatprep.subr.mxu0 0.0
      %2969 = vmatpush1.msra.mxu0 0.0
      %2970 = vmatprep.subr.mxu0 0.0
      %2971 = vmatpush1.msra.mxu0 0.0
      %2972 = vmatprep.subr.mxu0 0.0
      %2973 = vmatpush1.msra.mxu0 0.0
      %2974 = vmatprep.subr.mxu0 0.0
      %2975 = vmatpush1.msra.mxu0 0.0
      %2976 = vmatprep.subr.mxu0 0.0
      %2977 = vmatpush1.msra.mxu0 0.0
      %2978 = vmatprep.subr.mxu0 0.0
      %2979 = vmatpush1.msra.mxu0 0.0
      %2980 = vmatprep.subr.mxu0 0.0
      %2981 = vmatpush1.msra.mxu0 0.0
      %2982 = vmatprep.subr.mxu0 0.0
      %2983 = vmatpush1.msra.mxu0 0.0
      %2984 = vmatprep.subr.mxu0 0.0
      %2985 = vmatpush1.msra.mxu0 0.0
      %2986 = vmatprep.subr.mxu0 0.0
      %2987 = vmatpush1.msra.mxu0 0.0
      %2988 = vmatprep.subr.mxu0 0.0
      %2989 = vmatpush1.msra.mxu0 0.0
      %2990 = vmatprep.subr.mxu0 0.0
      %2991 = vmatpush1.msra.mxu0 0.0
      %2992 = vmatprep.subr.mxu0 0.0
      %2993 = vmatpush1.msra.mxu0 0.0
      %2994 = vmatprep.mubr.f32.mxu0 0.0
      %2995 = vmatmul.mubr.f32.gmra.mrb[0].mxu0 %v2907
      %v2996 = vpop.f32.mrb[0].mxu0
      %v2997 = vadd.f32 0.0, %v2996
      %v2998 = vpop.f32.mrb[0].mxu0
      %2999 = vmatprep.mubr.f32.mxu0 0.0
      %3000 = vmatmul.mubr.f32.gmra.mrb[0].mxu0 %v2910
      %v3001 = vpop.f32.mrb[0].mxu0
      %v3002 = vadd.f32 0.0, %v3001
      %v3003 = vpop.f32.mrb[0].mxu0
      %3004 = vmatprep.mubr.f32.mxu0 0.0
      %3005 = vmatmul.mubr.f32.gmra.mrb[0].mxu0 %v2913
      %v3006 = vpop.f32.mrb[0].mxu0
      %v3007 = vadd.f32 0.0, %v3006
      %v3008 = vpop.f32.mrb[0].mxu0
      %3009 = vmatprep.mubr.f32.mxu0 0.0
      %3010 = vmatmul.mubr.f32.gmra.mrb[0].mxu0 %v2916
      %v3011 = vpop.f32.mrb[0].mxu0
      %v3012 = vadd.f32 0.0, %v3011
      %v3013 = vpop.f32.mrb[0].mxu0
      %3014 = vmatprep.mubr.f32.mxu0 0.0
      %3015 = vmatmul.mubr.f32.gmra.mrb[0].mxu0 %v2919
      %v3016 = vpop.f32.mrb[0].mxu0
      %v3017 = vadd.f32 0.0, %v3016
      %v3018 = vpop.f32.mrb[0].mxu0
      %3019 = vmatprep.mubr.f32.mxu0 0.0
      %3020 = vmatmul.mubr.f32.gmra.mrb[0].mxu0 %v2922
      %v3021 = vpop.f32.mrb[0].mxu0
      %v3022 = vadd.f32 0.0, %v3021
      %v3023 = vpop.f32.mrb[0].mxu0
      %3024 = vmatprep.mubr.f32.mxu0 0.0
      %3025 = vmatmul.mubr.f32.gmra.mrb[0].mxu0 %v2925
      %v3026 = vpop.f32.mrb[0].mxu0
      %v3027 = vadd.f32 0.0, %v3026
      %v3028 = vpop.f32.mrb[0].mxu0
      %3029 = vmatprep.mubr.f32.mxu0 0.0
      %3030 = vmatmul.mubr.f32.gmra.mrb[0].mxu0 %v2928
      %v3031 = vpop.f32.mrb[0].mxu0
      %v3032 = vadd.f32 0.0, %v3031
      %v3033 = vpop.f32.mrb[0].mxu0
      %3034 = vdwg.mxu0
      %v3035 = vld [vmem:[%s11] sm:$0xff]
      %v3036 = vld [vmem:[%s11 + $0x8] sm:$0xff]
      %v3037 = vld [vmem:[%s11 + $0x10] sm:$0xff]
      %v3038 = vld [vmem:[%s11 + $0x18] sm:$0xff]
      %v3039 = vld [vmem:[%s11 + $0x20] sm:$0xff]
      %v3040 = vld [vmem:[%s11 + $0x28] sm:$0xff]
      %v3041 = vld [vmem:[%s11 + $0x30] sm:$0xff]
      %v3042 = vld [vmem:[%s11 + $0x38] sm:$0xff]
      %s3043 = scalar_lea.vmem %s12, 8
      %v3044 = vld [vmem:[%s3043] sm:$0xff]
      %3045 = vmatprep.subr.mxu0 0.0
      %3046 = vmatpush1.msra.mxu0 %v3044
      %3047 = vmatprep.subr.mxu0 0.0
      %3048 = vmatpush1.msra.mxu0 0.0
      %3049 = vmatprep.subr.mxu0 0.0
      %3050 = vmatpush1.msra.mxu0 0.0
      %3051 = vmatprep.subr.mxu0 0.0
      %3052 = vmatpush1.msra.mxu0 0.0
      %3053 = vmatprep.subr.mxu0 0.0
      %3054 = vmatpush1.msra.mxu0 0.0
      %3055 = vmatprep.subr.mxu0 0.0
      %3056 = vmatpush1.msra.mxu0 0.0
      %3057 = vmatprep.subr.mxu0 0.0
      %3058 = vmatpush1.msra.mxu0 0.0
      %3059 = vmatprep.subr.mxu0 0.0
      %3060 = vmatpush1.msra.mxu0 0.0
      %3061 = vmatprep.subr.mxu0 0.0
      %3062 = vmatpush1.msra.mxu0 0.0
      %3063 = vmatprep.subr.mxu0 0.0
      %3064 = vmatpush1.msra.mxu0 0.0
      %3065 = vmatprep.subr.mxu0 0.0
      %3066 = vmatpush1.msra.mxu0 0.0
      %3067 = vmatprep.subr.mxu0 0.0
      %3068 = vmatpush1.msra.mxu0 0.0
      %3069 = vmatprep.subr.mxu0 0.0
      %3070 = vmatpush1.msra.mxu0 0.0
      %3071 = vmatprep.subr.mxu0 0.0
      %3072 = vmatpush1.msra.mxu0 0.0
      %3073 = vmatprep.subr.mxu0 0.0
      %3074 = vmatpush1.msra.mxu0 0.0
      %3075 = vmatprep.subr.mxu0 0.0
      %3076 = vmatpush1.msra.mxu0 0.0
      %3077 = vmatprep.subr.mxu0 0.0
      %3078 = vmatpush1.msra.mxu0 0.0
      %3079 = vmatprep.subr.mxu0 0.0
      %3080 = vmatpush1.msra.mxu0 0.0
      %3081 = vmatprep.subr.mxu0 0.0
      %3082 = vmatpush1.msra.mxu0 0.0
      %3083 = vmatprep.subr.mxu0 0.0
      %3084 = vmatpush1.msra.mxu0 0.0
      %3085 = vmatprep.subr.mxu0 0.0
      %3086 = vmatpush1.msra.mxu0 0.0
      %3087 = vmatprep.subr.mxu0 0.0
      %3088 = vmatpush1.msra.mxu0 0.0
      %3089 = vmatprep.subr.mxu0 0.0
      %3090 = vmatpush1.msra.mxu0 0.0
      %3091 = vmatprep.subr.mxu0 0.0
      %3092 = vmatpush1.msra.mxu0 0.0
      %3093 = vmatprep.subr.mxu0 0.0
      %3094 = vmatpush1.msra.mxu0 0.0
      %3095 = vmatprep.subr.mxu0 0.0
      %3096 = vmatpush1.msra.mxu0 0.0
      %3097 = vmatprep.subr.mxu0 0.0
      %3098 = vmatpush1.msra.mxu0 0.0
      %3099 = vmatprep.subr.mxu0 0.0
      %3100 = vmatpush1.msra.mxu0 0.0
      %3101 = vmatprep.subr.mxu0 0.0
      %3102 = vmatpush1.msra.mxu0 0.0
      %3103 = vmatprep.subr.mxu0 0.0
      %3104 = vmatpush1.msra.mxu0 0.0
      %3105 = vmatprep.subr.mxu0 0.0
      %3106 = vmatpush1.msra.mxu0 0.0
      %3107 = vmatprep.subr.mxu0 0.0
      %3108 = vmatpush1.msra.mxu0 0.0
      %3109 = vmatprep.mubr.f32.mxu0 0.0
      %3110 = vmatmul.mubr.f32.gmra.mrb[0].mxu0 %v2907
      %v3111 = vpop.f32.mrb[0].mxu0
      %v3112 = vadd.f32 0.0, %v3111
      %v3113 = vpop.f32.mrb[0].mxu0
      %3114 = vmatprep.mubr.f32.mxu0 0.0
      %3115 = vmatmul.mubr.f32.gmra.mrb[0].mxu0 %v2910
      %v3116 = vpop.f32.mrb[0].mxu0
      %v3117 = vadd.f32 0.0, %v3116
      %v3118 = vpop.f32.mrb[0].mxu0
      %3119 = vmatprep.mubr.f32.mxu0 0.0
      %3120 = vmatmul.mubr.f32.gmra.mrb[0].mxu0 %v2913
      %v3121 = vpop.f32.mrb[0].mxu0
      %v3122 = vadd.f32 0.0, %v3121
      %v3123 = vpop.f32.mrb[0].mxu0
      %3124 = vmatprep.mubr.f32.mxu0 0.0
      %3125 = vmatmul.mubr.f32.gmra.mrb[0].mxu0 %v2916
      %v3126 = vpop.f32.mrb[0].mxu0
      %v3127 = vadd.f32 0.0, %v3126
      %v3128 = vpop.f32.mrb[0].mxu0
      %3129 = vmatprep.mubr.f32.mxu0 0.0
      %3130 = vmatmul.mubr.f32.gmra.mrb[0].mxu0 %v2919
      %v3131 = vpop.f32.mrb[0].mxu0
      %v3132 = vadd.f32 0.0, %v3131
      %v3133 = vpop.f32.mrb[0].mxu0
      %3134 = vmatprep.mubr.f32.mxu0 0.0
      %3135 = vmatmul.mubr.f32.gmra.mrb[0].mxu0 %v2922
      %v3136 = vpop.f32.mrb[0].mxu0
      %v3137 = vadd.f32 0.0, %v3136
      %v3138 = vpop.f32.mrb[0].mxu0
      %3139 = vmatprep.mubr.f32.mxu0 0.0
      %3140 = vmatmul.mubr.f32.gmra.mrb[0].mxu0 %v2925
      %v3141 = vpop.f32.mrb[0].mxu0
      %v3142 = vadd.f32 0.0, %v3141
      %v3143 = vpop.f32.mrb[0].mxu0
      %3144 = vmatprep.mubr.f32.mxu0 0.0
      %3145 = vmatmul.mubr.f32.gmra.mrb[0].mxu0 %v2928
      %v3146 = vpop.f32.mrb[0].mxu0
      %v3147 = vadd.f32 0.0, %v3146
      %v3148 = vpop.f32.mrb[0].mxu0
      %3149 = vdwg.mxu0
      %s3150 = scalar_lea.vmem %s11, 64
      %v3151 = vld [vmem:[%s3150] sm:$0xff]
      %v3152 = vld [vmem:[%s3150 + $0x8] sm:$0xff]
      %v3153 = vld [vmem:[%s3150 + $0x10] sm:$0xff]
      %v3154 = vld [vmem:[%s3150 + $0x18] sm:$0xff]
      %v3155 = vld [vmem:[%s3150 + $0x20] sm:$0xff]
      %v3156 = vld [vmem:[%s3150 + $0x28] sm:$0xff]
      %v3157 = vld [vmem:[%s3150 + $0x30] sm:$0xff]
      %v3158 = vld [vmem:[%s3150 + $0x38] sm:$0xff]
      %vm3159 = vcmask 523264
      %v3161 = vsel %vm3159, %v3151, 0
      %v3164 = vsel %vm3159, %v3152, 0
      %v3167 = vsel %vm3159, %v3153, 0
      %v3170 = vsel %vm3159, %v3154, 0
      %v3173 = vsel %vm3159, %v3155, 0
      %v3176 = vsel %vm3159, %v3156, 0
      %v3179 = vsel %vm3159, %v3157, 0
      %v3182 = vsel %vm3159, %v3158, 0
      %3184 = vmatprep.subr.mxu0 0.0
      %3185 = vmatpush1.msra.mxu0 %v3112
      %3186 = vmatprep.subr.mxu0 0.0
      %3187 = vmatpush1.msra.mxu0 %v3117
      %3188 = vmatprep.subr.mxu0 0.0
      %3189 = vmatpush1.msra.mxu0 %v3122
      %3190 = vmatprep.subr.mxu0 0.0
      %3191 = vmatpush1.msra.mxu0 %v3127
      %3192 = vmatprep.subr.mxu0 0.0
      %3193 = vmatpush1.msra.mxu0 %v3132
      %3194 = vmatprep.subr.mxu0 0.0
      %3195 = vmatpush1.msra.mxu0 %v3137
      %3196 = vmatprep.subr.mxu0 0.0
      %3197 = vmatpush1.msra.mxu0 %v3142
      %3198 = vmatprep.subr.mxu0 0.0
      %3199 = vmatpush1.msra.mxu0 %v3147
      %3200 = vmatprep.subr.mxu0 0.0
      %3201 = vmatpush1.msra.mxu0 0.0
      %3202 = vmatprep.subr.mxu0 0.0
      %3203 = vmatpush1.msra.mxu0 0.0
      %3204 = vmatprep.subr.mxu0 0.0
      %3205 = vmatpush1.msra.mxu0 0.0
      %3206 = vmatprep.subr.mxu0 0.0
      %3207 = vmatpush1.msra.mxu0 0.0
      %3208 = vmatprep.subr.mxu0 0.0
      %3209 = vmatpush1.msra.mxu0 0.0
      %3210 = vmatprep.subr.mxu0 0.0
      %3211 = vmatpush1.msra.mxu0 0.0
      %3212 = vmatprep.subr.mxu0 0.0
      %3213 = vmatpush1.msra.mxu0 0.0
      %3214 = vmatprep.subr.mxu0 0.0
      %3215 = vmatpush1.msra.mxu0 0.0
      %3216 = vmatprep.subr.mxu0 0.0
      %3217 = vmatpush1.msra.mxu0 0.0
      %3218 = vmatprep.subr.mxu0 0.0
      %3219 = vmatpush1.msra.mxu0 0.0
      %3220 = vmatprep.subr.mxu0 0.0
      %3221 = vmatpush1.msra.mxu0 0.0
      %3222 = vmatprep.subr.mxu0 0.0
      %3223 = vmatpush1.msra.mxu0 0.0
      %3224 = vmatprep.subr.mxu0 0.0
      %3225 = vmatpush1.msra.mxu0 0.0
      %3226 = vmatprep.subr.mxu0 0.0
      %3227 = vmatpush1.msra.mxu0 0.0
      %3228 = vmatprep.subr.mxu0 0.0
      %3229 = vmatpush1.msra.mxu0 0.0
      %3230 = vmatprep.subr.mxu0 0.0
      %3231 = vmatpush1.msra.mxu0 0.0
      %3232 = vmatprep.subr.mxu0 0.0
      %3233 = vmatpush1.msra.mxu0 0.0
      %3234 = vmatprep.subr.mxu0 0.0
      %3235 = vmatpush1.msra.mxu0 0.0
      %3236 = vmatprep.subr.mxu0 0.0
      %3237 = vmatpush1.msra.mxu0 0.0
      %3238 = vmatprep.subr.mxu0 0.0
      %3239 = vmatpush1.msra.mxu0 0.0
      %3240 = vmatprep.subr.mxu0 0.0
      %3241 = vmatpush1.msra.mxu0 0.0
      %3242 = vmatprep.subr.mxu0 0.0
      %3243 = vmatpush1.msra.mxu0 0.0
      %3244 = vmatprep.subr.mxu0 0.0
      %3245 = vmatpush1.msra.mxu0 0.0
      %3246 = vmatprep.subr.mxu0 0.0
      %3247 = vmatpush1.msra.mxu0 0.0
      %3248 = vmatprep.mubr.f32.mxu0 0.0
      %3249 = vmatmul.mubr.f32.gmra.mrb[0].mxu0 %v3161
      %v3250 = vpop.f32.mrb[0].mxu0
      %v3251 = vadd.f32 0.0, %v3250
      %v3252 = vpop.f32.mrb[0].mxu0
      %3253 = vmatprep.mubr.f32.mxu0 0.0
      %3254 = vmatmul.mubr.f32.gmra.mrb[0].mxu0 %v3164
      %v3255 = vpop.f32.mrb[0].mxu0
      %v3256 = vadd.f32 0.0, %v3255
      %v3257 = vpop.f32.mrb[0].mxu0
      %3258 = vmatprep.mubr.f32.mxu0 0.0
      %3259 = vmatmul.mubr.f32.gmra.mrb[0].mxu0 %v3167
      %v3260 = vpop.f32.mrb[0].mxu0
      %v3261 = vadd.f32 0.0, %v3260
      %v3262 = vpop.f32.mrb[0].mxu0
      %3263 = vmatprep.mubr.f32.mxu0 0.0
      %3264 = vmatmul.mubr.f32.gmra.mrb[0].mxu0 %v3170
      %v3265 = vpop.f32.mrb[0].mxu0
      %v3266 = vadd.f32 0.0, %v3265
      %v3267 = vpop.f32.mrb[0].mxu0
      %3268 = vmatprep.mubr.f32.mxu0 0.0
      %3269 = vmatmul.mubr.f32.gmra.mrb[0].mxu0 %v3173
      %v3270 = vpop.f32.mrb[0].mxu0
      %v3271 = vadd.f32 0.0, %v3270
      %v3272 = vpop.f32.mrb[0].mxu0
      %3273 = vmatprep.mubr.f32.mxu0 0.0
      %3274 = vmatmul.mubr.f32.gmra.mrb[0].mxu0 %v3176
      %v3275 = vpop.f32.mrb[0].mxu0
      %v3276 = vadd.f32 0.0, %v3275
      %v3277 = vpop.f32.mrb[0].mxu0
      %3278 = vmatprep.mubr.f32.mxu0 0.0
      %3279 = vmatmul.mubr.f32.gmra.mrb[0].mxu0 %v3179
      %v3280 = vpop.f32.mrb[0].mxu0
      %v3281 = vadd.f32 0.0, %v3280
      %v3282 = vpop.f32.mrb[0].mxu0
      %3283 = vmatprep.mubr.f32.mxu0 0.0
      %3284 = vmatmul.mubr.f32.gmra.mrb[0].mxu0 %v3182
      %v3285 = vpop.f32.mrb[0].mxu0
      %v3286 = vadd.f32 0.0, %v3285
      %v3287 = vpop.f32.mrb[0].mxu0
      %3288 = vdwg.mxu0
      %v3290 = vsel %vm3159, %v3035, 0
      %v3293 = vsel %vm3159, %v3036, 0
      %v3296 = vsel %vm3159, %v3037, 0
      %v3299 = vsel %vm3159, %v3038, 0
      %v3302 = vsel %vm3159, %v3039, 0
      %v3305 = vsel %vm3159, %v3040, 0
      %v3308 = vsel %vm3159, %v3041, 0
      %v3311 = vsel %vm3159, %v3042, 0
      %3313 = vmatprep.subr.mxu0 0.0
      %3314 = vmatpush1.msra.mxu0 %v2997
      %3315 = vmatprep.subr.mxu0 0.0
      %3316 = vmatpush1.msra.mxu0 %v3002
      %3317 = vmatprep.subr.mxu0 0.0
      %3318 = vmatpush1.msra.mxu0 %v3007
      %3319 = vmatprep.subr.mxu0 0.0
      %3320 = vmatpush1.msra.mxu0 %v3012
      %3321 = vmatprep.subr.mxu0 0.0
      %3322 = vmatpush1.msra.mxu0 %v3017
      %3323 = vmatprep.subr.mxu0 0.0
      %3324 = vmatpush1.msra.mxu0 %v3022
      %3325 = vmatprep.subr.mxu0 0.0
      %3326 = vmatpush1.msra.mxu0 %v3027
      %3327 = vmatprep.subr.mxu0 0.0
      %3328 = vmatpush1.msra.mxu0 %v3032
      %3329 = vmatprep.subr.mxu0 0.0
      %3330 = vmatpush1.msra.mxu0 0.0
      %3331 = vmatprep.subr.mxu0 0.0
      %3332 = vmatpush1.msra.mxu0 0.0
      %3333 = vmatprep.subr.mxu0 0.0
      %3334 = vmatpush1.msra.mxu0 0.0
      %3335 = vmatprep.subr.mxu0 0.0
      %3336 = vmatpush1.msra.mxu0 0.0
      %3337 = vmatprep.subr.mxu0 0.0
      %3338 = vmatpush1.msra.mxu0 0.0
      %3339 = vmatprep.subr.mxu0 0.0
      %3340 = vmatpush1.msra.mxu0 0.0
      %3341 = vmatprep.subr.mxu0 0.0
      %3342 = vmatpush1.msra.mxu0 0.0
      %3343 = vmatprep.subr.mxu0 0.0
      %3344 = vmatpush1.msra.mxu0 0.0
      %3345 = vmatprep.subr.mxu0 0.0
      %3346 = vmatpush1.msra.mxu0 0.0
      %3347 = vmatprep.subr.mxu0 0.0
      %3348 = vmatpush1.msra.mxu0 0.0
      %3349 = vmatprep.subr.mxu0 0.0
      %3350 = vmatpush1.msra.mxu0 0.0
      %3351 = vmatprep.subr.mxu0 0.0
      %3352 = vmatpush1.msra.mxu0 0.0
      %3353 = vmatprep.subr.mxu0 0.0
      %3354 = vmatpush1.msra.mxu0 0.0
      %3355 = vmatprep.subr.mxu0 0.0
      %3356 = vmatpush1.msra.mxu0 0.0
      %3357 = vmatprep.subr.mxu0 0.0
      %3358 = vmatpush1.msra.mxu0 0.0
      %3359 = vmatprep.subr.mxu0 0.0
      %3360 = vmatpush1.msra.mxu0 0.0
      %3361 = vmatprep.subr.mxu0 0.0
      %3362 = vmatpush1.msra.mxu0 0.0
      %3363 = vmatprep.subr.mxu0 0.0
      %3364 = vmatpush1.msra.mxu0 0.0
      %3365 = vmatprep.subr.mxu0 0.0
      %3366 = vmatpush1.msra.mxu0 0.0
      %3367 = vmatprep.subr.mxu0 0.0
      %3368 = vmatpush1.msra.mxu0 0.0
      %3369 = vmatprep.subr.mxu0 0.0
      %3370 = vmatpush1.msra.mxu0 0.0
      %3371 = vmatprep.subr.mxu0 0.0
      %3372 = vmatpush1.msra.mxu0 0.0
      %3373 = vmatprep.subr.mxu0 0.0
      %3374 = vmatpush1.msra.mxu0 0.0
      %3375 = vmatprep.subr.mxu0 0.0
      %3376 = vmatpush1.msra.mxu0 0.0
      %3377 = vmatprep.mubr.f32.mxu0 0.0
      %3378 = vmatmul.mubr.f32.gmra.mrb[0].mxu0 %v3290
      %v3379 = vpop.f32.mrb[0].mxu0
      %v3380 = vadd.f32 %v3251, %v3379
      %v3381 = vpop.f32.mrb[0].mxu0
      %3382 = vmatprep.mubr.f32.mxu0 0.0
      %3383 = vmatmul.mubr.f32.gmra.mrb[0].mxu0 %v3293
      %v3384 = vpop.f32.mrb[0].mxu0
      %v3385 = vadd.f32 %v3256, %v3384
      %v3386 = vpop.f32.mrb[0].mxu0
      %3387 = vmatprep.mubr.f32.mxu0 0.0
      %3388 = vmatmul.mubr.f32.gmra.mrb[0].mxu0 %v3296
      %v3389 = vpop.f32.mrb[0].mxu0
      %v3390 = vadd.f32 %v3261, %v3389
      %v3391 = vpop.f32.mrb[0].mxu0
      %3392 = vmatprep.mubr.f32.mxu0 0.0
      %3393 = vmatmul.mubr.f32.gmra.mrb[0].mxu0 %v3299
      %v3394 = vpop.f32.mrb[0].mxu0
      %v3395 = vadd.f32 %v3266, %v3394
      %v3396 = vpop.f32.mrb[0].mxu0
      %3397 = vmatprep.mubr.f32.mxu0 0.0
      %3398 = vmatmul.mubr.f32.gmra.mrb[0].mxu0 %v3302
      %v3399 = vpop.f32.mrb[0].mxu0
      %v3400 = vadd.f32 %v3271, %v3399
      %v3401 = vpop.f32.mrb[0].mxu0
      %3402 = vmatprep.mubr.f32.mxu0 0.0
      %3403 = vmatmul.mubr.f32.gmra.mrb[0].mxu0 %v3305
      %v3404 = vpop.f32.mrb[0].mxu0
      %v3405 = vadd.f32 %v3276, %v3404
      %v3406 = vpop.f32.mrb[0].mxu0
      %3407 = vmatprep.mubr.f32.mxu0 0.0
      %3408 = vmatmul.mubr.f32.gmra.mrb[0].mxu0 %v3308
      %v3409 = vpop.f32.mrb[0].mxu0
      %v3410 = vadd.f32 %v3281, %v3409
      %v3411 = vpop.f32.mrb[0].mxu0
      %3412 = vmatprep.mubr.f32.mxu0 0.0
      %3413 = vmatmul.mubr.f32.gmra.mrb[0].mxu0 %v3311
      %v3414 = vpop.f32.mrb[0].mxu0
      %v3415 = vadd.f32 %v3286, %v3414
      %v3416 = vpop.f32.mrb[0].mxu0
      %3417 = vdwg.mxu0
      %s3418 = scalar_lea.vmem %s12, 16
      %v3419 = vld [vmem:[%s3418] sm:$0xff]
      %3420 = vmatprep.subr.mxu0 0.0
      %3421 = vmatpush1.msra.mxu0 %v3419
      %3422 = vmatprep.subr.mxu0 0.0
      %3423 = vmatpush1.msra.mxu0 0.0
      %3424 = vmatprep.subr.mxu0 0.0
      %3425 = vmatpush1.msra.mxu0 0.0
      %3426 = vmatprep.subr.mxu0 0.0
      %3427 = vmatpush1.msra.mxu0 0.0
      %3428 = vmatprep.subr.mxu0 0.0
      %3429 = vmatpush1.msra.mxu0 0.0
      %3430 = vmatprep.subr.mxu0 0.0
      %3431 = vmatpush1.msra.mxu0 0.0
      %3432 = vmatprep.subr.mxu0 0.0
      %3433 = vmatpush1.msra.mxu0 0.0
      %3434 = vmatprep.subr.mxu0 0.0
      %3435 = vmatpush1.msra.mxu0 0.0
      %3436 = vmatprep.subr.mxu0 0.0
      %3437 = vmatpush1.msra.mxu0 0.0
      %3438 = vmatprep.subr.mxu0 0.0
      %3439 = vmatpush1.msra.mxu0 0.0
      %3440 = vmatprep.subr.mxu0 0.0
      %3441 = vmatpush1.msra.mxu0 0.0
      %3442 = vmatprep.subr.mxu0 0.0
      %3443 = vmatpush1.msra.mxu0 0.0
      %3444 = vmatprep.subr.mxu0 0.0
      %3445 = vmatpush1.msra.mxu0 0.0
      %3446 = vmatprep.subr.mxu0 0.0
      %3447 = vmatpush1.msra.mxu0 0.0
      %3448 = vmatprep.subr.mxu0 0.0
      %3449 = vmatpush1.msra.mxu0 0.0
      %3450 = vmatprep.subr.mxu0 0.0
      %3451 = vmatpush1.msra.mxu0 0.0
      %3452 = vmatprep.subr.mxu0 0.0
      %3453 = vmatpush1.msra.mxu0 0.0
      %3454 = vmatprep.subr.mxu0 0.0
      %3455 = vmatpush1.msra.mxu0 0.0
      %3456 = vmatprep.subr.mxu0 0.0
      %3457 = vmatpush1.msra.mxu0 0.0
      %3458 = vmatprep.subr.mxu0 0.0
      %3459 = vmatpush1.msra.mxu0 0.0
      %3460 = vmatprep.subr.mxu0 0.0
      %3461 = vmatpush1.msra.mxu0 0.0
      %3462 = vmatprep.subr.mxu0 0.0
      %3463 = vmatpush1.msra.mxu0 0.0
      %3464 = vmatprep.subr.mxu0 0.0
      %3465 = vmatpush1.msra.mxu0 0.0
      %3466 = vmatprep.subr.mxu0 0.0
      %3467 = vmatpush1.msra.mxu0 0.0
      %3468 = vmatprep.subr.mxu0 0.0
      %3469 = vmatpush1.msra.mxu0 0.0
      %3470 = vmatprep.subr.mxu0 0.0
      %3471 = vmatpush1.msra.mxu0 0.0
      %3472 = vmatprep.subr.mxu0 0.0
      %3473 = vmatpush1.msra.mxu0 0.0
      %3474 = vmatprep.subr.mxu0 0.0
      %3475 = vmatpush1.msra.mxu0 0.0
      %3476 = vmatprep.subr.mxu0 0.0
      %3477 = vmatpush1.msra.mxu0 0.0
      %3478 = vmatprep.subr.mxu0 0.0
      %3479 = vmatpush1.msra.mxu0 0.0
      %3480 = vmatprep.subr.mxu0 0.0
      %3481 = vmatpush1.msra.mxu0 0.0
      %3482 = vmatprep.subr.mxu0 0.0
      %3483 = vmatpush1.msra.mxu0 0.0
      %3484 = vmatprep.mubr.f32.mxu0 0.0
      %3485 = vmatmul.mubr.f32.gmra.mrb[0].mxu0 %v2907
      %v3486 = vpop.f32.mrb[0].mxu0
      %v3487 = vadd.f32 0.0, %v3486
      %v3488 = vpop.f32.mrb[0].mxu0
      %3489 = vmatprep.mubr.f32.mxu0 0.0
      %3490 = vmatmul.mubr.f32.gmra.mrb[0].mxu0 %v2910
      %v3491 = vpop.f32.mrb[0].mxu0
      %v3492 = vadd.f32 0.0, %v3491
      %v3493 = vpop.f32.mrb[0].mxu0
      %3494 = vmatprep.mubr.f32.mxu0 0.0
      %3495 = vmatmul.mubr.f32.gmra.mrb[0].mxu0 %v2913
      %v3496 = vpop.f32.mrb[0].mxu0
      %v3497 = vadd.f32 0.0, %v3496
      %v3498 = vpop.f32.mrb[0].mxu0
      %3499 = vmatprep.mubr.f32.mxu0 0.0
      %3500 = vmatmul.mubr.f32.gmra.mrb[0].mxu0 %v2916
      %v3501 = vpop.f32.mrb[0].mxu0
      %v3502 = vadd.f32 0.0, %v3501
      %v3503 = vpop.f32.mrb[0].mxu0
      %3504 = vmatprep.mubr.f32.mxu0 0.0
      %3505 = vmatmul.mubr.f32.gmra.mrb[0].mxu0 %v2919
      %v3506 = vpop.f32.mrb[0].mxu0
      %v3507 = vadd.f32 0.0, %v3506
      %v3508 = vpop.f32.mrb[0].mxu0
      %3509 = vmatprep.mubr.f32.mxu0 0.0
      %3510 = vmatmul.mubr.f32.gmra.mrb[0].mxu0 %v2922
      %v3511 = vpop.f32.mrb[0].mxu0
      %v3512 = vadd.f32 0.0, %v3511
      %v3513 = vpop.f32.mrb[0].mxu0
      %3514 = vmatprep.mubr.f32.mxu0 0.0
      %3515 = vmatmul.mubr.f32.gmra.mrb[0].mxu0 %v2925
      %v3516 = vpop.f32.mrb[0].mxu0
      %v3517 = vadd.f32 0.0, %v3516
      %v3518 = vpop.f32.mrb[0].mxu0
      %3519 = vmatprep.mubr.f32.mxu0 0.0
      %3520 = vmatmul.mubr.f32.gmra.mrb[0].mxu0 %v2928
      %v3521 = vpop.f32.mrb[0].mxu0
      %v3522 = vadd.f32 0.0, %v3521
      %v3523 = vpop.f32.mrb[0].mxu0
      %3524 = vdwg.mxu0
      %s3525 = scalar_lea.vmem %s11, 128
      %v3526 = vld [vmem:[%s3525] sm:$0xff]
      %v3527 = vld [vmem:[%s3525 + $0x8] sm:$0xff]
      %v3528 = vld [vmem:[%s3525 + $0x10] sm:$0xff]
      %v3529 = vld [vmem:[%s3525 + $0x18] sm:$0xff]
      %v3530 = vld [vmem:[%s3525 + $0x20] sm:$0xff]
      %v3531 = vld [vmem:[%s3525 + $0x28] sm:$0xff]
      %v3532 = vld [vmem:[%s3525 + $0x30] sm:$0xff]
      %v3533 = vld [vmem:[%s3525 + $0x38] sm:$0xff]
      %v3535 = vsel %vm3159, %v3526, 0
      %v3538 = vsel %vm3159, %v3527, 0
      %v3541 = vsel %vm3159, %v3528, 0
      %v3544 = vsel %vm3159, %v3529, 0
      %v3547 = vsel %vm3159, %v3530, 0
      %v3550 = vsel %vm3159, %v3531, 0
      %v3553 = vsel %vm3159, %v3532, 0
      %v3556 = vsel %vm3159, %v3533, 0
      %3558 = vmatprep.subr.mxu0 0.0
      %3559 = vmatpush1.msra.mxu0 %v3487
      %3560 = vmatprep.subr.mxu0 0.0
      %3561 = vmatpush1.msra.mxu0 %v3492
      %3562 = vmatprep.subr.mxu0 0.0
      %3563 = vmatpush1.msra.mxu0 %v3497
      %3564 = vmatprep.subr.mxu0 0.0
      %3565 = vmatpush1.msra.mxu0 %v3502
      %3566 = vmatprep.subr.mxu0 0.0
      %3567 = vmatpush1.msra.mxu0 %v3507
      %3568 = vmatprep.subr.mxu0 0.0
      %3569 = vmatpush1.msra.mxu0 %v3512
      %3570 = vmatprep.subr.mxu0 0.0
      %3571 = vmatpush1.msra.mxu0 %v3517
      %3572 = vmatprep.subr.mxu0 0.0
      %3573 = vmatpush1.msra.mxu0 %v3522
      %3574 = vmatprep.subr.mxu0 0.0
      %3575 = vmatpush1.msra.mxu0 0.0
      %3576 = vmatprep.subr.mxu0 0.0
      %3577 = vmatpush1.msra.mxu0 0.0
      %3578 = vmatprep.subr.mxu0 0.0
      %3579 = vmatpush1.msra.mxu0 0.0
      %3580 = vmatprep.subr.mxu0 0.0
      %3581 = vmatpush1.msra.mxu0 0.0
      %3582 = vmatprep.subr.mxu0 0.0
      %3583 = vmatpush1.msra.mxu0 0.0
      %3584 = vmatprep.subr.mxu0 0.0
      %3585 = vmatpush1.msra.mxu0 0.0
      %3586 = vmatprep.subr.mxu0 0.0
      %3587 = vmatpush1.msra.mxu0 0.0
      %3588 = vmatprep.subr.mxu0 0.0
      %3589 = vmatpush1.msra.mxu0 0.0
      %3590 = vmatprep.subr.mxu0 0.0
      %3591 = vmatpush1.msra.mxu0 0.0
      %3592 = vmatprep.subr.mxu0 0.0
      %3593 = vmatpush1.msra.mxu0 0.0
      %3594 = vmatprep.subr.mxu0 0.0
      %3595 = vmatpush1.msra.mxu0 0.0
      %3596 = vmatprep.subr.mxu0 0.0
      %3597 = vmatpush1.msra.mxu0 0.0
      %3598 = vmatprep.subr.mxu0 0.0
      %3599 = vmatpush1.msra.mxu0 0.0
      %3600 = vmatprep.subr.mxu0 0.0
      %3601 = vmatpush1.msra.mxu0 0.0
      %3602 = vmatprep.subr.mxu0 0.0
      %3603 = vmatpush1.msra.mxu0 0.0
      %3604 = vmatprep.subr.mxu0 0.0
      %3605 = vmatpush1.msra.mxu0 0.0
      %3606 = vmatprep.subr.mxu0 0.0
      %3607 = vmatpush1.msra.mxu0 0.0
      %3608 = vmatprep.subr.mxu0 0.0
      %3609 = vmatpush1.msra.mxu0 0.0
      %3610 = vmatprep.subr.mxu0 0.0
      %3611 = vmatpush1.msra.mxu0 0.0
      %3612 = vmatprep.subr.mxu0 0.0
      %3613 = vmatpush1.msra.mxu0 0.0
      %3614 = vmatprep.subr.mxu0 0.0
      %3615 = vmatpush1.msra.mxu0 0.0
      %3616 = vmatprep.subr.mxu0 0.0
      %3617 = vmatpush1.msra.mxu0 0.0
      %3618 = vmatprep.subr.mxu0 0.0
      %3619 = vmatpush1.msra.mxu0 0.0
      %3620 = vmatprep.subr.mxu0 0.0
      %3621 = vmatpush1.msra.mxu0 0.0
      %3622 = vmatprep.mubr.f32.mxu0 0.0
      %3623 = vmatmul.mubr.f32.gmra.mrb[0].mxu0 %v3535
      %v3624 = vpop.f32.mrb[0].mxu0
      %v3625 = vadd.f32 0.0, %v3624
      %v3626 = vpop.f32.mrb[0].mxu0
      %3627 = vmatprep.mubr.f32.mxu0 0.0
      %3628 = vmatmul.mubr.f32.gmra.mrb[0].mxu0 %v3538
      %v3629 = vpop.f32.mrb[0].mxu0
      %v3630 = vadd.f32 0.0, %v3629
      %v3631 = vpop.f32.mrb[0].mxu0
      %3632 = vmatprep.mubr.f32.mxu0 0.0
      %3633 = vmatmul.mubr.f32.gmra.mrb[0].mxu0 %v3541
      %v3634 = vpop.f32.mrb[0].mxu0
      %v3635 = vadd.f32 0.0, %v3634
      %v3636 = vpop.f32.mrb[0].mxu0
      %3637 = vmatprep.mubr.f32.mxu0 0.0
      %3638 = vmatmul.mubr.f32.gmra.mrb[0].mxu0 %v3544
      %v3639 = vpop.f32.mrb[0].mxu0
      %v3640 = vadd.f32 0.0, %v3639
      %v3641 = vpop.f32.mrb[0].mxu0
      %3642 = vmatprep.mubr.f32.mxu0 0.0
      %3643 = vmatmul.mubr.f32.gmra.mrb[0].mxu0 %v3547
      %v3644 = vpop.f32.mrb[0].mxu0
      %v3645 = vadd.f32 0.0, %v3644
      %v3646 = vpop.f32.mrb[0].mxu0
      %3647 = vmatprep.mubr.f32.mxu0 0.0
      %3648 = vmatmul.mubr.f32.gmra.mrb[0].mxu0 %v3550
      %v3649 = vpop.f32.mrb[0].mxu0
      %v3650 = vadd.f32 0.0, %v3649
      %v3651 = vpop.f32.mrb[0].mxu0
      %3652 = vmatprep.mubr.f32.mxu0 0.0
      %3653 = vmatmul.mubr.f32.gmra.mrb[0].mxu0 %v3553
      %v3654 = vpop.f32.mrb[0].mxu0
      %v3655 = vadd.f32 0.0, %v3654
      %v3656 = vpop.f32.mrb[0].mxu0
      %3657 = vmatprep.mubr.f32.mxu0 0.0
      %3658 = vmatmul.mubr.f32.gmra.mrb[0].mxu0 %v3556
      %v3659 = vpop.f32.mrb[0].mxu0
      %v3660 = vadd.f32 0.0, %v3659
      %v3661 = vpop.f32.mrb[0].mxu0
      %3662 = vdwg.mxu0
      %v3663 = vadd.f32 %v3380, %v3625
      %v3664 = vadd.f32 %v3385, %v3630
      %v3665 = vadd.f32 %v3390, %v3635
      %v3666 = vadd.f32 %v3395, %v3640
      %v3667 = vadd.f32 %v3400, %v3645
      %v3668 = vadd.f32 %v3405, %v3650
      %v3669 = vadd.f32 %v3410, %v3655
      %v3670 = vadd.f32 %v3415, %v3660
      %s3671 = scalar_lea.vmem %s12, 24
      %v3672 = vld [vmem:[%s3671] sm:$0xff]
      %3673 = vmatprep.subr.mxu0 0.0
      %3674 = vmatpush1.msra.mxu0 %v3672
      %3675 = vmatprep.subr.mxu0 0.0
      %3676 = vmatpush1.msra.mxu0 0.0
      %3677 = vmatprep.subr.mxu0 0.0
      %3678 = vmatpush1.msra.mxu0 0.0
      %3679 = vmatprep.subr.mxu0 0.0
      %3680 = vmatpush1.msra.mxu0 0.0
      %3681 = vmatprep.subr.mxu0 0.0
      %3682 = vmatpush1.msra.mxu0 0.0
      %3683 = vmatprep.subr.mxu0 0.0
      %3684 = vmatpush1.msra.mxu0 0.0
      %3685 = vmatprep.subr.mxu0 0.0
      %3686 = vmatpush1.msra.mxu0 0.0
      %3687 = vmatprep.subr.mxu0 0.0
      %3688 = vmatpush1.msra.mxu0 0.0
      %3689 = vmatprep.subr.mxu0 0.0
      %3690 = vmatpush1.msra.mxu0 0.0
      %3691 = vmatprep.subr.mxu0 0.0
      %3692 = vmatpush1.msra.mxu0 0.0
      %3693 = vmatprep.subr.mxu0 0.0
      %3694 = vmatpush1.msra.mxu0 0.0
      %3695 = vmatprep.subr.mxu0 0.0
      %3696 = vmatpush1.msra.mxu0 0.0
      %3697 = vmatprep.subr.mxu0 0.0
      %3698 = vmatpush1.msra.mxu0 0.0
      %3699 = vmatprep.subr.mxu0 0.0
      %3700 = vmatpush1.msra.mxu0 0.0
      %3701 = vmatprep.subr.mxu0 0.0
      %3702 = vmatpush1.msra.mxu0 0.0
      %3703 = vmatprep.subr.mxu0 0.0
      %3704 = vmatpush1.msra.mxu0 0.0
      %3705 = vmatprep.subr.mxu0 0.0
      %3706 = vmatpush1.msra.mxu0 0.0
      %3707 = vmatprep.subr.mxu0 0.0
      %3708 = vmatpush1.msra.mxu0 0.0
      %3709 = vmatprep.subr.mxu0 0.0
      %3710 = vmatpush1.msra.mxu0 0.0
      %3711 = vmatprep.subr.mxu0 0.0
      %3712 = vmatpush1.msra.mxu0 0.0
      %3713 = vmatprep.subr.mxu0 0.0
      %3714 = vmatpush1.msra.mxu0 0.0
      %3715 = vmatprep.subr.mxu0 0.0
      %3716 = vmatpush1.msra.mxu0 0.0
      %3717 = vmatprep.subr.mxu0 0.0
      %3718 = vmatpush1.msra.mxu0 0.0
      %3719 = vmatprep.subr.mxu0 0.0
      %3720 = vmatpush1.msra.mxu0 0.0
      %3721 = vmatprep.subr.mxu0 0.0
      %3722 = vmatpush1.msra.mxu0 0.0
      %3723 = vmatprep.subr.mxu0 0.0
      %3724 = vmatpush1.msra.mxu0 0.0
      %3725 = vmatprep.subr.mxu0 0.0
      %3726 = vmatpush1.msra.mxu0 0.0
      %3727 = vmatprep.subr.mxu0 0.0
      %3728 = vmatpush1.msra.mxu0 0.0
      %3729 = vmatprep.subr.mxu0 0.0
      %3730 = vmatpush1.msra.mxu0 0.0
      %3731 = vmatprep.subr.mxu0 0.0
      %3732 = vmatpush1.msra.mxu0 0.0
      %3733 = vmatprep.subr.mxu0 0.0
      %3734 = vmatpush1.msra.mxu0 0.0
      %3735 = vmatprep.subr.mxu0 0.0
      %3736 = vmatpush1.msra.mxu0 0.0
      %3737 = vmatprep.mubr.f32.mxu0 0.0
      %3738 = vmatmul.mubr.f32.gmra.mrb[0].mxu0 %v2907
      %v3739 = vpop.f32.mrb[0].mxu0
      %v3740 = vadd.f32 0.0, %v3739
      %v3741 = vpop.f32.mrb[0].mxu0
      %3742 = vmatprep.mubr.f32.mxu0 0.0
      %3743 = vmatmul.mubr.f32.gmra.mrb[0].mxu0 %v2910
      %v3744 = vpop.f32.mrb[0].mxu0
      %v3745 = vadd.f32 0.0, %v3744
      %v3746 = vpop.f32.mrb[0].mxu0
      %3747 = vmatprep.mubr.f32.mxu0 0.0
      %3748 = vmatmul.mubr.f32.gmra.mrb[0].mxu0 %v2913
      %v3749 = vpop.f32.mrb[0].mxu0
      %v3750 = vadd.f32 0.0, %v3749
      %v3751 = vpop.f32.mrb[0].mxu0
      %3752 = vmatprep.mubr.f32.mxu0 0.0
      %3753 = vmatmul.mubr.f32.gmra.mrb[0].mxu0 %v2916
      %v3754 = vpop.f32.mrb[0].mxu0
      %v3755 = vadd.f32 0.0, %v3754
      %v3756 = vpop.f32.mrb[0].mxu0
      %3757 = vmatprep.mubr.f32.mxu0 0.0
      %3758 = vmatmul.mubr.f32.gmra.mrb[0].mxu0 %v2919
      %v3759 = vpop.f32.mrb[0].mxu0
      %v3760 = vadd.f32 0.0, %v3759
      %v3761 = vpop.f32.mrb[0].mxu0
      %3762 = vmatprep.mubr.f32.mxu0 0.0
      %3763 = vmatmul.mubr.f32.gmra.mrb[0].mxu0 %v2922
      %v3764 = vpop.f32.mrb[0].mxu0
      %v3765 = vadd.f32 0.0, %v3764
      %v3766 = vpop.f32.mrb[0].mxu0
      %3767 = vmatprep.mubr.f32.mxu0 0.0
      %3768 = vmatmul.mubr.f32.gmra.mrb[0].mxu0 %v2925
      %v3769 = vpop.f32.mrb[0].mxu0
      %v3770 = vadd.f32 0.0, %v3769
      %v3771 = vpop.f32.mrb[0].mxu0
      %3772 = vmatprep.mubr.f32.mxu0 0.0
      %3773 = vmatmul.mubr.f32.gmra.mrb[0].mxu0 %v2928
      %v3774 = vpop.f32.mrb[0].mxu0
      %v3775 = vadd.f32 0.0, %v3774
      %v3776 = vpop.f32.mrb[0].mxu0
      %3777 = vdwg.mxu0
      %s3778 = scalar_lea.vmem %s11, 192
      %v3779 = vld [vmem:[%s3778] sm:$0xff]
      %v3780 = vld [vmem:[%s3778 + $0x8] sm:$0xff]
      %v3781 = vld [vmem:[%s3778 + $0x10] sm:$0xff]
      %v3782 = vld [vmem:[%s3778 + $0x18] sm:$0xff]
      %v3783 = vld [vmem:[%s3778 + $0x20] sm:$0xff]
      %v3784 = vld [vmem:[%s3778 + $0x28] sm:$0xff]
      %v3785 = vld [vmem:[%s3778 + $0x30] sm:$0xff]
      %v3786 = vld [vmem:[%s3778 + $0x38] sm:$0xff]
      %v3788 = vsel %vm3159, %v3779, 0
      %v3791 = vsel %vm3159, %v3780, 0
      %v3794 = vsel %vm3159, %v3781, 0
      %v3797 = vsel %vm3159, %v3782, 0
      %v3800 = vsel %vm3159, %v3783, 0
      %v3803 = vsel %vm3159, %v3784, 0
      %v3806 = vsel %vm3159, %v3785, 0
      %v3809 = vsel %vm3159, %v3786, 0
      %3811 = vmatprep.subr.mxu0 0.0
      %3812 = vmatpush1.msra.mxu0 %v3740
      %3813 = vmatprep.subr.mxu0 0.0
      %3814 = vmatpush1.msra.mxu0 %v3745
      %3815 = vmatprep.subr.mxu0 0.0
      %3816 = vmatpush1.msra.mxu0 %v3750
      %3817 = vmatprep.subr.mxu0 0.0
      %3818 = vmatpush1.msra.mxu0 %v3755
      %3819 = vmatprep.subr.mxu0 0.0
      %3820 = vmatpush1.msra.mxu0 %v3760
      %3821 = vmatprep.subr.mxu0 0.0
      %3822 = vmatpush1.msra.mxu0 %v3765
      %3823 = vmatprep.subr.mxu0 0.0
      %3824 = vmatpush1.msra.mxu0 %v3770
      %3825 = vmatprep.subr.mxu0 0.0
      %3826 = vmatpush1.msra.mxu0 %v3775
      %3827 = vmatprep.subr.mxu0 0.0
      %3828 = vmatpush1.msra.mxu0 0.0
      %3829 = vmatprep.subr.mxu0 0.0
      %3830 = vmatpush1.msra.mxu0 0.0
      %3831 = vmatprep.subr.mxu0 0.0
      %3832 = vmatpush1.msra.mxu0 0.0
      %3833 = vmatprep.subr.mxu0 0.0
      %3834 = vmatpush1.msra.mxu0 0.0
      %3835 = vmatprep.subr.mxu0 0.0
      %3836 = vmatpush1.msra.mxu0 0.0
      %3837 = vmatprep.subr.mxu0 0.0
      %3838 = vmatpush1.msra.mxu0 0.0
      %3839 = vmatprep.subr.mxu0 0.0
      %3840 = vmatpush1.msra.mxu0 0.0
      %3841 = vmatprep.subr.mxu0 0.0
      %3842 = vmatpush1.msra.mxu0 0.0
      %3843 = vmatprep.subr.mxu0 0.0
      %3844 = vmatpush1.msra.mxu0 0.0
      %3845 = vmatprep.subr.mxu0 0.0
      %3846 = vmatpush1.msra.mxu0 0.0
      %3847 = vmatprep.subr.mxu0 0.0
      %3848 = vmatpush1.msra.mxu0 0.0
      %3849 = vmatprep.subr.mxu0 0.0
      %3850 = vmatpush1.msra.mxu0 0.0
      %3851 = vmatprep.subr.mxu0 0.0
      %3852 = vmatpush1.msra.mxu0 0.0
      %3853 = vmatprep.subr.mxu0 0.0
      %3854 = vmatpush1.msra.mxu0 0.0
      %3855 = vmatprep.subr.mxu0 0.0
      %3856 = vmatpush1.msra.mxu0 0.0
      %3857 = vmatprep.subr.mxu0 0.0
      %3858 = vmatpush1.msra.mxu0 0.0
      %3859 = vmatprep.subr.mxu0 0.0
      %3860 = vmatpush1.msra.mxu0 0.0
      %3861 = vmatprep.subr.mxu0 0.0
      %3862 = vmatpush1.msra.mxu0 0.0
      %3863 = vmatprep.subr.mxu0 0.0
      %3864 = vmatpush1.msra.mxu0 0.0
      %3865 = vmatprep.subr.mxu0 0.0
      %3866 = vmatpush1.msra.mxu0 0.0
      %3867 = vmatprep.subr.mxu0 0.0
      %3868 = vmatpush1.msra.mxu0 0.0
      %3869 = vmatprep.subr.mxu0 0.0
      %3870 = vmatpush1.msra.mxu0 0.0
      %3871 = vmatprep.subr.mxu0 0.0
      %3872 = vmatpush1.msra.mxu0 0.0
      %3873 = vmatprep.subr.mxu0 0.0
      %3874 = vmatpush1.msra.mxu0 0.0
      %3875 = vmatprep.mubr.f32.mxu0 0.0
      %3876 = vmatmul.mubr.f32.gmra.mrb[0].mxu0 %v3788
      %v3877 = vpop.f32.mrb[0].mxu0
      %v3878 = vadd.f32 0.0, %v3877
      %v3879 = vpop.f32.mrb[0].mxu0
      %3880 = vmatprep.mubr.f32.mxu0 0.0
      %3881 = vmatmul.mubr.f32.gmra.mrb[0].mxu0 %v3791
      %v3882 = vpop.f32.mrb[0].mxu0
      %v3883 = vadd.f32 0.0, %v3882
      %v3884 = vpop.f32.mrb[0].mxu0
      %3885 = vmatprep.mubr.f32.mxu0 0.0
      %3886 = vmatmul.mubr.f32.gmra.mrb[0].mxu0 %v3794
      %v3887 = vpop.f32.mrb[0].mxu0
      %v3888 = vadd.f32 0.0, %v3887
      %v3889 = vpop.f32.mrb[0].mxu0
      %3890 = vmatprep.mubr.f32.mxu0 0.0
      %3891 = vmatmul.mubr.f32.gmra.mrb[0].mxu0 %v3797
      %v3892 = vpop.f32.mrb[0].mxu0
      %v3893 = vadd.f32 0.0, %v3892
      %v3894 = vpop.f32.mrb[0].mxu0
      %3895 = vmatprep.mubr.f32.mxu0 0.0
      %3896 = vmatmul.mubr.f32.gmra.mrb[0].mxu0 %v3800
      %v3897 = vpop.f32.mrb[0].mxu0
      %v3898 = vadd.f32 0.0, %v3897
      %v3899 = vpop.f32.mrb[0].mxu0
      %3900 = vmatprep.mubr.f32.mxu0 0.0
      %3901 = vmatmul.mubr.f32.gmra.mrb[0].mxu0 %v3803
      %v3902 = vpop.f32.mrb[0].mxu0
      %v3903 = vadd.f32 0.0, %v3902
      %v3904 = vpop.f32.mrb[0].mxu0
      %3905 = vmatprep.mubr.f32.mxu0 0.0
      %3906 = vmatmul.mubr.f32.gmra.mrb[0].mxu0 %v3806
      %v3907 = vpop.f32.mrb[0].mxu0
      %v3908 = vadd.f32 0.0, %v3907
      %v3909 = vpop.f32.mrb[0].mxu0
      %3910 = vmatprep.mubr.f32.mxu0 0.0
      %3911 = vmatmul.mubr.f32.gmra.mrb[0].mxu0 %v3809
      %v3912 = vpop.f32.mrb[0].mxu0
      %v3913 = vadd.f32 0.0, %v3912
      %v3914 = vpop.f32.mrb[0].mxu0
      %3915 = vdwg.mxu0
      %v3916 = vadd.f32 %v3663, %v3878
      %v3917 = vadd.f32 %v3664, %v3883
      %v3918 = vadd.f32 %v3665, %v3888
      %v3919 = vadd.f32 %v3666, %v3893
      %v3920 = vadd.f32 %v3667, %v3898
      %v3921 = vadd.f32 %v3668, %v3903
      %v3922 = vadd.f32 %v3669, %v3908
      %v3923 = vadd.f32 %v3670, %v3913
      %v3924 = vld [vmem:[%s13] sm:$0x1]
      %v3926 = vlaneseq
      %v3927 = vshrl.u32 %v3926, 7
      %v3928 = vsub.s32 0, %v3927
      %v3929 = vrot.slane %v3924, %v3928
      %v3931 = vadd.f32 %v3916, %v3929
      %v3932 = vadd.f32 %v3917, %v3929
      %v3933 = vadd.f32 %v3918, %v3929
      %v3934 = vadd.f32 %v3919, %v3929
      %v3935 = vadd.f32 %v3920, %v3929
      %v3936 = vadd.f32 %v3921, %v3929
      %v3937 = vadd.f32 %v3922, %v3929
      %v3938 = vadd.f32 %v3923, %v3929
      %3939 = vst [vmem:[%s467] sm:$0xff] %v3931
      %3940 = vst [vmem:[%s467 + $0x8] sm:$0xff] %v3932
      %3941 = vst [vmem:[%s467 + $0x10] sm:$0xff] %v3933
      %3942 = vst [vmem:[%s467 + $0x18] sm:$0xff] %v3934
      %3943 = vst [vmem:[%s467 + $0x20] sm:$0xff] %v3935
      %3944 = vst [vmem:[%s467 + $0x28] sm:$0xff] %v3936
      %3945 = vst [vmem:[%s467 + $0x30] sm:$0xff] %v3937
      %3946 = vst [vmem:[%s467 + $0x38] sm:$0xff] %v3938
      %p3947 = scmp.lt.s32.totalorder %s25, 3
      %s3948 = scalar_select %p3947, %s25, 3
      %s3949 = smul.addr %s3948, 8
      %s3950 = smul.addr %s3949, 8
      %s3951 = scalar_lea.vmem %s14, %s3950
      // Predicated region
      $region77: #{mobrecon_forward.15} parent=75 // pred_check
        %p3952 = pneg %p342
      $region78: #{mobrecon_forward.15} parent=75 // pred_check_branch
        %3954 = sbr.rel (%p3952) target = $region80
      $region79: #{mobrecon_forward.15} parent=75 // pred_region
        _
      $region80: #{mobrecon_forward.15} parent=75 // pred_fallthru
        _
    $region76: #{mobrecon_forward.15} parent=5 // pred_fallthru
      _
    %p3955 = scmp.le.s32.totalorder 2, %s20
    // Predicated region
    $region81: #{mobrecon_forward.15} parent=5 // pred_check
      %p3956 = pneg %p3955
    $region82: #{mobrecon_forward.15} parent=5 // pred_check_branch
      %3958 = sbr.rel (%p3956) target = $region84
    $region83: #{mobrecon_forward.15} parent=5 // pred_region
      %s3959 = ssub.s32 %s20, 2
      // Predicated region
      $region85: #{mobrecon_forward.15} parent=83 // pred_check
        %p3960 = pneg %p348
      $region86: #{mobrecon_forward.15} parent=83 // pred_check_branch
        %3962 = sbr.rel (%p3960) target = $region88
      $region87: #{mobrecon_forward.15} parent=83 // pred_region
        %p3963 = scmp.lt.s32.totalorder %s26, 3
        %s3964 = scalar_select %p3963, %s26, 3
        %s3965 = smul.addr %s3964, 8
        %s3966 = smul.addr %s3965, 8
        %s3967 = scalar_lea.vmem %s14, %s3966
      $region88: #{mobrecon_forward.15} parent=83 // pred_fallthru
        _
    $region84: #{mobrecon_forward.15} parent=5 // pred_fallthru
      _
  $region6: #{mobrecon_forward.15} parent=0 // loop_footer
    %s24 = sadd.s32 1, %s20
  $region7: #{mobrecon_forward.15} parent=0 // loop_footer_branch
    %19 = sbr.rel target = $region3
  $region8: #{mobrecon_forward.15} parent=0 // loop_exit
    _

</llo_original>
